<compile_context>
chip_gen: v5e
topology: v5e:2x2
jax: 0.10.0
libtpu: 0.0.40
codegen_flags: <defaults>
</compile_context>

<pallas_src>
import jax
import jax.numpy as jnp
from jax.experimental import pallas as pl
from jax.experimental.pallas import tpu as pltpu


# ------------------------------ Pallas kernel -------------------------------

def cnn_fused_kernel(p1_ref, w1_ref, b1_ref, w2_ref, b2_ref,
                     fw1_ref, fb1_ref, fw2_ref, fb2_ref,
                     o_ref,
                     c1_scr, pad2d, patch_scr, c2_scr, flat_scr):
    f32 = jnp.float32
    bf16 = jnp.bfloat16

    # ---- conv1 (im2col matmul) + bias + ReLU -> c1_scr (784, 32); row = h*28+w
    CH = 112                                   # 784 = 7 * 112 (multiple of 8)
    for blk in range(7):
        r0 = blk * CH
        x = p1_ref[pl.ds(r0, CH), :]           # (112, 16) bf16
        y = jnp.dot(x, w1_ref[...], preferred_element_type=f32)
        y = jnp.maximum(y + b1_ref[...], 0.0)
        c1_scr[pl.ds(r0, CH), :] = y

    # ---- pool1 (2x2 max) -> zero-padded flattened conv2 input pad2d
    # pad2d row = hp*16 + wp; interior hp,wp in [1,14] holds the 14x14 pooled
    # image, border rows stay zero (this IS the SAME padding of conv2).
    pad2d[...] = jnp.zeros(pad2d.shape, f32)
    for ho in range(14):
        r0 = (2 * ho) * 28
        r1 = r0 + 28
        p00 = c1_scr[pl.ds(r0, 14, 2), :]      # h = 2ho,   w even
        p01 = c1_scr[pl.ds(r0 + 1, 14, 2), :]  # h = 2ho,   w odd
        p10 = c1_scr[pl.ds(r1, 14, 2), :]      # h = 2ho+1, w even
        p11 = c1_scr[pl.ds(r1 + 1, 14, 2), :]  # h = 2ho+1, w odd
        pooled = jnp.maximum(jnp.maximum(p00, p01), jnp.maximum(p10, p11))
        pad2d[pl.ds((ho + 1) * 16 + 1, 14), :] = pooled   # (14, 32)

    # ---- conv2 im2col: each 3x3 tap is ONE contiguous 224-row slice of pad2d.
    # patch row r = h2*16 + w2 (rows with w2 >= 14 are junk, never read later).
    for kh in range(3):
        for kw in range(3):
            t = kh * 3 + kw
            patch_scr[:, t * 32:(t + 1) * 32] = pad2d[pl.ds(kh * 16 + kw, 224), :]

    h2 = jnp.dot(patch_scr[...].astype(bf16), w2_ref[...],
                 preferred_element_type=f32)
    c2_scr[...] = jnp.maximum(h2 + b2_ref[...], 0.0)       # (224, 64)

    # ---- pool2 (2x2 max) + NHWC flatten -> flat_scr (1, 3136)
    for ho in range(7):
        r0 = (2 * ho) * 16
        r1 = r0 + 16
        q00 = c2_scr[pl.ds(r0, 7, 2), :]
        q01 = c2_scr[pl.ds(r0 + 1, 7, 2), :]
        q10 = c2_scr[pl.ds(r1, 7, 2), :]
        q11 = c2_scr[pl.ds(r1 + 1, 7, 2), :]
        prow = jnp.maximum(jnp.maximum(q00, q01), jnp.maximum(q10, q11))  # (7,64)
        for wo in range(7):
            k = ho * 7 + wo
            flat_scr[:, k * 64:(k + 1) * 64] = prow[wo:wo + 1, :]

    # ---- fc1 + ReLU, fc2
    h3 = jnp.dot(flat_scr[...].astype(bf16), fw1_ref[...],
                 preferred_element_type=f32)
    h3 = jnp.maximum(h3 + fb1_ref[...], 0.0)                # (1, 128)
    out = jnp.dot(h3.astype(bf16), fw2_ref[...],
                  preferred_element_type=f32) + fb2_ref[...]  # (1, 10)
    o_ref[...] = out


# ------------------------------ Pallas wrapper -------------------------------

def conv1_im2col(x_nchw):
    """(B,1,28,28) -> (B,784,16) bf16: 3x3 SAME patches (Cin=1), taps padded 9->16."""
    B = x_nchw.shape[0]
    x = x_nchw[:, 0].astype(jnp.float32)                  # (B, 28, 28)
    xp = jnp.pad(x, ((0, 0), (1, 1), (1, 1)))             # (B, 30, 30)
    taps = [xp[:, kh:kh + 28, kw:kw + 28] for kh in range(3) for kw in range(3)]
    pat = jnp.stack(taps, axis=-1).reshape(B, 28 * 28, 9)
    pat = jnp.pad(pat, ((0, 0), (0, 0), (0, 7)))          # (B, 784, 16)
    return pat.astype(jnp.bfloat16)


def cnn_forward(x_nchw, p):
    B = x_nchw.shape[0]
    patches1 = conv1_im2col(x_nchw)

    def full(a):
        n = a.ndim
        return pl.BlockSpec(a.shape, lambda b, _n=n: (0,) * _n)

    out = pl.pallas_call(
        cnn_fused_kernel,
        out_shape=jax.ShapeDtypeStruct((B, 1, 10), jnp.float32),
        grid=(B,),
        in_specs=[
            pl.BlockSpec((None, 784, 16), lambda b: (b, 0, 0)),  # conv1 patches
            full(p["w1"]), full(p["b1"]),
            full(p["w2"]), full(p["b2"]),
            full(p["fw1"]), full(p["fb1"]),
            full(p["fw2"]), full(p["fb2"]),
        ],
        out_specs=pl.BlockSpec((None, 1, 10), lambda b: (b, 0, 0)),
        scratch_shapes=[
            pltpu.VMEM((784, 32), jnp.float32),    # conv1+relu output (h*28+w, c)
            pltpu.VMEM((264, 32), jnp.float32),    # zero-padded flattened pool1
            pltpu.VMEM((224, 288), jnp.float32),   # conv2 im2col patch matrix
            pltpu.VMEM((224, 64), jnp.float32),    # conv2+relu output (h*16+w, c)
            pltpu.VMEM((1, 3136), jnp.float32),    # NHWC-flattened pool2 output
        ],
        compiler_params=pltpu.CompilerParams(
            dimension_semantics=("parallel",)),
    )(patches1, p["w1"], p["b1"], p["w2"], p["b2"],
      p["fw1"], p["fb1"], p["fw2"], p["fb2"])
    return out.reshape(B, 10)


# --------------------------- parameter preparation ---------------------------

def prepare_params(tp):
    # conv1: OIHW (32,1,3,3) -> (9,32) tap-major, pad K 9->16 to match patches.
    w1 = jnp.pad(tp["conv1_w"].reshape(32, 9).T, ((0, 7), (0, 0)))       # (16, 32)
    # conv2: OIHW (64,32,3,3) -> (kh,kw,cin,o) -> (288, 64); row = kh*96+kw*32+cin
    w2 = jnp.transpose(tp["conv2_w"], (2, 3, 1, 0)).reshape(288, 64)
    # fc1: permute input features from PyTorch NCHW-flatten order (c*49 + h*7 + w)
    # to the kernel's NHWC-flatten order ((h*7 + w)*64 + c).
    fw1 = jnp.transpose(tp["fc1_w"].reshape(128, 64, 7, 7), (0, 2, 3, 1))
    fw1 = fw1.reshape(128, 64 * 7 * 7).T                                  # (3136, 128)
    return {
        "w1": w1.astype(jnp.bfloat16),
        "b1": tp["conv1_b"].reshape(1, 32).astype(jnp.float32),
        "w2": w2.astype(jnp.bfloat16),
        "b2": tp["conv2_b"].reshape(1, 64).astype(jnp.float32),
        "fw1": fw1.astype(jnp.bfloat16),
        "fb1": tp["fc1_b"].reshape(1, 128).astype(jnp.float32),
        "fw2": tp["fc2_w"].T.astype(jnp.bfloat16),
        "fb2": tp["fc2_b"].reshape(1, 10).astype(jnp.float32),
    }


# ------------------------- Pure-JAX reference (check) -----------------------

def reference_forward(x_nchw, tp):
    x = jnp.transpose(x_nchw, (0, 2, 3, 1))

    def conv(z, w_oihw, b):
        w = jnp.transpose(w_oihw, (2, 3, 1, 0))  # OIHW -> HWIO
        y = jax.lax.conv_general_dilated(
            z, w, (1, 1), "SAME",
            dimension_numbers=("NHWC", "HWIO", "NHWC"))
        return jax.nn.relu(y + b)

    def pool(z):
        return jax.lax.reduce_window(z, -jnp.inf, jax.lax.max,
                                     (1, 2, 2, 1), (1, 2, 2, 1), "VALID")

    y = pool(conv(x, tp["conv1_w"], tp["conv1_b"]))
    y = pool(conv(y, tp["conv2_w"], tp["conv2_b"]))
    flat = jnp.transpose(y, (0, 3, 1, 2)).reshape(x.shape[0], -1)
    h = jax.nn.relu(flat @ tp["fc1_w"].T + tp["fc1_b"])
    return h @ tp["fc2_w"].T + tp["fc2_b"]


# ----------------------------------- main ------------------------------------

if __name__ == "__main__":
    key = jax.random.PRNGKey(0)
    ks = jax.random.split(key, 9)

    # Deterministic synthetic parameters (PyTorch-native shapes).
    tp = {
        "conv1_w": jax.random.normal(ks[0], (32, 1, 3, 3), jnp.float32) / (1 * 9) ** 0.5,
        "conv1_b": jax.random.normal(ks[1], (32,), jnp.float32) * 0.1,
        "conv2_w": jax.random.normal(ks[2], (64, 32, 3, 3), jnp.float32) / (32 * 9) ** 0.5,
        "conv2_b": jax.random.normal(ks[3], (64,), jnp.float32) * 0.1,
        "fc1_w": jax.random.normal(ks[4], (128, 64 * 7 * 7), jnp.float32) / (64 * 7 * 7) ** 0.5,
        "fc1_b": jax.random.normal(ks[5], (128,), jnp.float32) * 0.1,
        "fc2_w": jax.random.normal(ks[6], (10, 128), jnp.float32) / 128 ** 0.5,
        "fc2_b": jax.random.normal(ks[7], (10,), jnp.float32) * 0.1,
    }
    p = prepare_params(tp)

    # fc1 expects 64*7*7 features => input spatial must be 28x28 (MNIST-style).
    x = jax.random.normal(ks[8], (2, 1, 28, 28), jnp.float32)

    out = jax.jit(cnn_forward)(x, p)
    out = jax.block_until_ready(out)
    assert out.shape == (2, 10) and out.dtype == jnp.float32

    ref = reference_forward(x, tp)
    err = float(jnp.max(jnp.abs(out - ref)))
    scale = float(jnp.max(jnp.abs(ref))) + 1e-6
    # bf16 MXU operands with f32 accumulation -> expect <~1-2% relative error.
    assert err <= 5e-2 * scale + 1e-2, f"mismatch vs reference: max|diff|={err}"

    print("KERNEL_OK")
</pallas_src>

<mosaic_0001>
module attributes {stable_mosaic.version = 11 : i64} {
  func.func @cnn_fused_kernel(%arg0: i32, %arg1: memref<1x784x16xbf16, #tpu.memory_space<vmem>>, %arg2: memref<16x32xbf16, #tpu.memory_space<vmem>>, %arg3: memref<1x32xf32, #tpu.memory_space<vmem>>, %arg4: memref<288x64xbf16, #tpu.memory_space<vmem>>, %arg5: memref<1x64xf32, #tpu.memory_space<vmem>>, %arg6: memref<3136x128xbf16, #tpu.memory_space<vmem>>, %arg7: memref<1x128xf32, #tpu.memory_space<vmem>>, %arg8: memref<128x10xbf16, #tpu.memory_space<vmem>>, %arg9: memref<1x10xf32, #tpu.memory_space<vmem>>, %arg10: memref<1x1x10xf32, #tpu.memory_space<vmem>>, %arg11: memref<784x32xf32, #tpu.memory_space<vmem>>, %arg12: memref<264x32xf32, #tpu.memory_space<vmem>>, %arg13: memref<224x288xf32, #tpu.memory_space<vmem>>, %arg14: memref<224x64xf32, #tpu.memory_space<vmem>>, %arg15: memref<1x3136xf32, #tpu.memory_space<vmem>>) attributes {dimension_semantics = [#tpu.dimension_semantics<parallel>], iteration_bounds = array<i64: 2>, scalar_prefetch = 0 : i64, scratch_operands = 5 : i64, tpu.core_type = #tpu.core_type<tc>, window_params = [{transform_indices = @transform_0, window_bounds = array<i64: 1, 784, 16>}, {pipeline_mode = #tpu.pipeline_mode<synchronous>, transform_indices = @transform_1, window_bounds = array<i64: 16, 32>}, {pipeline_mode = #tpu.pipeline_mode<synchronous>, transform_indices = @transform_2, window_bounds = array<i64: 1, 32>}, {pipeline_mode = #tpu.pipeline_mode<synchronous>, transform_indices = @transform_3, window_bounds = array<i64: 288, 64>}, {pipeline_mode = #tpu.pipeline_mode<synchronous>, transform_indices = @transform_4, window_bounds = array<i64: 1, 64>}, {pipeline_mode = #tpu.pipeline_mode<synchronous>, transform_indices = @transform_5, window_bounds = array<i64: 3136, 128>}, {pipeline_mode = #tpu.pipeline_mode<synchronous>, transform_indices = @transform_6, window_bounds = array<i64: 1, 128>}, {pipeline_mode = #tpu.pipeline_mode<synchronous>, transform_indices = @transform_7, window_bounds = array<i64: 128, 10>}, {pipeline_mode = #tpu.pipeline_mode<synchronous>, transform_indices = @transform_8, window_bounds = array<i64: 1, 10>}, {transform_indices = @transform_9, window_bounds = array<i64: 1, 1, 10>}]} {
    %c0 = arith.constant 0 : index
    %c0_0 = arith.constant 0 : index
    %c0_1 = arith.constant 0 : index
    %0 = vector.load %arg1[%c0, %c0_0, %c0_1] : memref<1x784x16xbf16, #tpu.memory_space<vmem>>, vector<1x112x16xbf16>
    %1 = vector.shape_cast %0 : vector<1x112x16xbf16> to vector<112x16xbf16>
    %c0_2 = arith.constant 0 : index
    %c0_3 = arith.constant 0 : index
    %2 = vector.load %arg2[%c0_2, %c0_3] : memref<16x32xbf16, #tpu.memory_space<vmem>>, vector<16x32xbf16>
    %cst = arith.constant dense<0.000000e+00> : vector<112x32xf32>
    %3 = tpu.matmul %1, %2, %cst {dimension_numbers = #tpu.dot_dimension_numbers<[1], [0], [0], [1], [0, 0, 1, 1], [], []>} : vector<112x16xbf16>, vector<16x32xbf16>, vector<112x32xf32> -> vector<112x32xf32>
    %c0_4 = arith.constant 0 : index
    %c0_5 = arith.constant 0 : index
    %4 = vector.load %arg3[%c0_4, %c0_5] : memref<1x32xf32, #tpu.memory_space<vmem>>, vector<1x32xf32>
    %5 = vector.broadcast %4 : vector<1x32xf32> to vector<112x32xf32>
    %6 = arith.addf %3, %5 : vector<112x32xf32>
    %cst_6 = arith.constant 0.000000e+00 : f32
    %7 = vector.broadcast %cst_6 : f32 to vector<112x32xf32>
    %8 = arith.maximumf %6, %7 : vector<112x32xf32>
    %c0_7 = arith.constant 0 : index
    %c0_8 = arith.constant 0 : index
    %9 = vector.load %arg11[%c0_7, %c0_8] : memref<784x32xf32, #tpu.memory_space<vmem>>, vector<112x32xf32>
    tpu.vector_store %arg11[%c0_7, %c0_8], %8 {strides = array<i32>} : memref<784x32xf32, #tpu.memory_space<vmem>>, vector<112x32xf32>,
    %c0_9 = arith.constant 0 : index
    %c112 = arith.constant 112 : index
    %c0_10 = arith.constant 0 : index
    %10 = vector.load %arg1[%c0_9, %c112, %c0_10] : memref<1x784x16xbf16, #tpu.memory_space<vmem>>, vector<1x112x16xbf16>
    %11 = vector.shape_cast %10 : vector<1x112x16xbf16> to vector<112x16xbf16>
    %c0_11 = arith.constant 0 : index
    %c0_12 = arith.constant 0 : index
    %12 = vector.load %arg2[%c0_11, %c0_12] : memref<16x32xbf16, #tpu.memory_space<vmem>>, vector<16x32xbf16>
    %cst_13 = arith.constant dense<0.000000e+00> : vector<112x32xf32>
    %13 = tpu.matmul %11, %12, %cst_13 {dimension_numbers = #tpu.dot_dimension_numbers<[1], [0], [0], [1], [0, 0, 1, 1], [], []>} : vector<112x16xbf16>, vector<16x32xbf16>, vector<112x32xf32> -> vector<112x32xf32>
    %c0_14 = arith.constant 0 : index
    %c0_15 = arith.constant 0 : index
    %14 = vector.load %arg3[%c0_14, %c0_15] : memref<1x32xf32, #tpu.memory_space<vmem>>, vector<1x32xf32>
    %15 = vector.broadcast %14 : vector<1x32xf32> to vector<112x32xf32>
    %16 = arith.addf %13, %15 : vector<112x32xf32>
    %cst_16 = arith.constant 0.000000e+00 : f32
    %17 = vector.broadcast %cst_16 : f32 to vector<112x32xf32>
    %18 = arith.maximumf %16, %17 : vector<112x32xf32>
    %c112_17 = arith.constant 112 : index
    %c0_18 = arith.constant 0 : index
    %19 = vector.load %arg11[%c112_17, %c0_18] : memref<784x32xf32, #tpu.memory_space<vmem>>, vector<112x32xf32>
    tpu.vector_store %arg11[%c112_17, %c0_18], %18 {strides = array<i32>} : memref<784x32xf32, #tpu.memory_space<vmem>>, vector<112x32xf32>,
    %c0_19 = arith.constant 0 : index
    %c224 = arith.constant 224 : index
    %c0_20 = arith.constant 0 : index
    %20 = vector.load %arg1[%c0_19, %c224, %c0_20] : memref<1x784x16xbf16, #tpu.memory_space<vmem>>, vector<1x112x16xbf16>
    %21 = vector.shape_cast %20 : vector<1x112x16xbf16> to vector<112x16xbf16>
    %c0_21 = arith.constant 0 : index
    %c0_22 = arith.constant 0 : index
    %22 = vector.load %arg2[%c0_21, %c0_22] : memref<16x32xbf16, #tpu.memory_space<vmem>>, vector<16x32xbf16>
    %cst_23 = arith.constant dense<0.000000e+00> : vector<112x32xf32>
    %23 = tpu.matmul %21, %22, %cst_23 {dimension_numbers = #tpu.dot_dimension_numbers<[1], [0], [0], [1], [0, 0, 1, 1], [], []>} : vector<112x16xbf16>, vector<16x32xbf16>, vector<112x32xf32> -> vector<112x32xf32>
    %c0_24 = arith.constant 0 : index
    %c0_25 = arith.constant 0 : index
    %24 = vector.load %arg3[%c0_24, %c0_25] : memref<1x32xf32, #tpu.memory_space<vmem>>, vector<1x32xf32>
    %25 = vector.broadcast %24 : vector<1x32xf32> to vector<112x32xf32>
    %26 = arith.addf %23, %25 : vector<112x32xf32>
    %cst_26 = arith.constant 0.000000e+00 : f32
    %27 = vector.broadcast %cst_26 : f32 to vector<112x32xf32>
    %28 = arith.maximumf %26, %27 : vector<112x32xf32>
    %c224_27 = arith.constant 224 : index
    %c0_28 = arith.constant 0 : index
    %29 = vector.load %arg11[%c224_27, %c0_28] : memref<784x32xf32, #tpu.memory_space<vmem>>, vector<112x32xf32>
    tpu.vector_store %arg11[%c224_27, %c0_28], %28 {strides = array<i32>} : memref<784x32xf32, #tpu.memory_space<vmem>>, vector<112x32xf32>,
    %c0_29 = arith.constant 0 : index
    %c336 = arith.constant 336 : index
    %c0_30 = arith.constant 0 : index
    %30 = vector.load %arg1[%c0_29, %c336, %c0_30] : memref<1x784x16xbf16, #tpu.memory_space<vmem>>, vector<1x112x16xbf16>
    %31 = vector.shape_cast %30 : vector<1x112x16xbf16> to vector<112x16xbf16>
    %c0_31 = arith.constant 0 : index
    %c0_32 = arith.constant 0 : index
    %32 = vector.load %arg2[%c0_31, %c0_32] : memref<16x32xbf16, #tpu.memory_space<vmem>>, vector<16x32xbf16>
    %cst_33 = arith.constant dense<0.000000e+00> : vector<112x32xf32>
    %33 = tpu.matmul %31, %32, %cst_33 {dimension_numbers = #tpu.dot_dimension_numbers<[1], [0], [0], [1], [0, 0, 1, 1], [], []>} : vector<112x16xbf16>, vector<16x32xbf16>, vector<112x32xf32> -> vector<112x32xf32>
    %c0_34 = arith.constant 0 : index
    %c0_35 = arith.constant 0 : index
    %34 = vector.load %arg3[%c0_34, %c0_35] : memref<1x32xf32, #tpu.memory_space<vmem>>, vector<1x32xf32>
    %35 = vector.broadcast %34 : vector<1x32xf32> to vector<112x32xf32>
    %36 = arith.addf %33, %35 : vector<112x32xf32>
    %cst_36 = arith.constant 0.000000e+00 : f32
    %37 = vector.broadcast %cst_36 : f32 to vector<112x32xf32>
    %38 = arith.maximumf %36, %37 : vector<112x32xf32>
    %c336_37 = arith.constant 336 : index
    %c0_38 = arith.constant 0 : index
    %39 = vector.load %arg11[%c336_37, %c0_38] : memref<784x32xf32, #tpu.memory_space<vmem>>, vector<112x32xf32>
    tpu.vector_store %arg11[%c336_37, %c0_38], %38 {strides = array<i32>} : memref<784x32xf32, #tpu.memory_space<vmem>>, vector<112x32xf32>,
    %c0_39 = arith.constant 0 : index
    %c448 = arith.constant 448 : index
    %c0_40 = arith.constant 0 : index
    %40 = vector.load %arg1[%c0_39, %c448, %c0_40] : memref<1x784x16xbf16, #tpu.memory_space<vmem>>, vector<1x112x16xbf16>
    %41 = vector.shape_cast %40 : vector<1x112x16xbf16> to vector<112x16xbf16>
    %c0_41 = arith.constant 0 : index
    %c0_42 = arith.constant 0 : index
    %42 = vector.load %arg2[%c0_41, %c0_42] : memref<16x32xbf16, #tpu.memory_space<vmem>>, vector<16x32xbf16>
    %cst_43 = arith.constant dense<0.000000e+00> : vector<112x32xf32>
    %43 = tpu.matmul %41, %42, %cst_43 {dimension_numbers = #tpu.dot_dimension_numbers<[1], [0], [0], [1], [0, 0, 1, 1], [], []>} : vector<112x16xbf16>, vector<16x32xbf16>, vector<112x32xf32> -> vector<112x32xf32>
    %c0_44 = arith.constant 0 : index
    %c0_45 = arith.constant 0 : index
    %44 = vector.load %arg3[%c0_44, %c0_45] : memref<1x32xf32, #tpu.memory_space<vmem>>, vector<1x32xf32>
    %45 = vector.broadcast %44 : vector<1x32xf32> to vector<112x32xf32>
    %46 = arith.addf %43, %45 : vector<112x32xf32>
    %cst_46 = arith.constant 0.000000e+00 : f32
    %47 = vector.broadcast %cst_46 : f32 to vector<112x32xf32>
    %48 = arith.maximumf %46, %47 : vector<112x32xf32>
    %c448_47 = arith.constant 448 : index
    %c0_48 = arith.constant 0 : index
    %49 = vector.load %arg11[%c448_47, %c0_48] : memref<784x32xf32, #tpu.memory_space<vmem>>, vector<112x32xf32>
    tpu.vector_store %arg11[%c448_47, %c0_48], %48 {strides = array<i32>} : memref<784x32xf32, #tpu.memory_space<vmem>>, vector<112x32xf32>,
    %c0_49 = arith.constant 0 : index
    %c560 = arith.constant 560 : index
    %c0_50 = arith.constant 0 : index
    %50 = vector.load %arg1[%c0_49, %c560, %c0_50] : memref<1x784x16xbf16, #tpu.memory_space<vmem>>, vector<1x112x16xbf16>
    %51 = vector.shape_cast %50 : vector<1x112x16xbf16> to vector<112x16xbf16>
    %c0_51 = arith.constant 0 : index
    %c0_52 = arith.constant 0 : index
    %52 = vector.load %arg2[%c0_51, %c0_52] : memref<16x32xbf16, #tpu.memory_space<vmem>>, vector<16x32xbf16>
    %cst_53 = arith.constant dense<0.000000e+00> : vector<112x32xf32>
    %53 = tpu.matmul %51, %52, %cst_53 {dimension_numbers = #tpu.dot_dimension_numbers<[1], [0], [0], [1], [0, 0, 1, 1], [], []>} : vector<112x16xbf16>, vector<16x32xbf16>, vector<112x32xf32> -> vector<112x32xf32>
    %c0_54 = arith.constant 0 : index
    %c0_55 = arith.constant 0 : index
    %54 = vector.load %arg3[%c0_54, %c0_55] : memref<1x32xf32, #tpu.memory_space<vmem>>, vector<1x32xf32>
    %55 = vector.broadcast %54 : vector<1x32xf32> to vector<112x32xf32>
    %56 = arith.addf %53, %55 : vector<112x32xf32>
    %cst_56 = arith.constant 0.000000e+00 : f32
    %57 = vector.broadcast %cst_56 : f32 to vector<112x32xf32>
    %58 = arith.maximumf %56, %57 : vector<112x32xf32>
    %c560_57 = arith.constant 560 : index
    %c0_58 = arith.constant 0 : index
    %59 = vector.load %arg11[%c560_57, %c0_58] : memref<784x32xf32, #tpu.memory_space<vmem>>, vector<112x32xf32>
    tpu.vector_store %arg11[%c560_57, %c0_58], %58 {strides = array<i32>} : memref<784x32xf32, #tpu.memory_space<vmem>>, vector<112x32xf32>,
    %c0_59 = arith.constant 0 : index
    %c672 = arith.constant 672 : index
    %c0_60 = arith.constant 0 : index
    %60 = vector.load %arg1[%c0_59, %c672, %c0_60] : memref<1x784x16xbf16, #tpu.memory_space<vmem>>, vector<1x112x16xbf16>
    %61 = vector.shape_cast %60 : vector<1x112x16xbf16> to vector<112x16xbf16>
    %c0_61 = arith.constant 0 : index
    %c0_62 = arith.constant 0 : index
    %62 = vector.load %arg2[%c0_61, %c0_62] : memref<16x32xbf16, #tpu.memory_space<vmem>>, vector<16x32xbf16>
    %cst_63 = arith.constant dense<0.000000e+00> : vector<112x32xf32>
    %63 = tpu.matmul %61, %62, %cst_63 {dimension_numbers = #tpu.dot_dimension_numbers<[1], [0], [0], [1], [0, 0, 1, 1], [], []>} : vector<112x16xbf16>, vector<16x32xbf16>, vector<112x32xf32> -> vector<112x32xf32>
    %c0_64 = arith.constant 0 : index
    %c0_65 = arith.constant 0 : index
    %64 = vector.load %arg3[%c0_64, %c0_65] : memref<1x32xf32, #tpu.memory_space<vmem>>, vector<1x32xf32>
    %65 = vector.broadcast %64 : vector<1x32xf32> to vector<112x32xf32>
    %66 = arith.addf %63, %65 : vector<112x32xf32>
    %cst_66 = arith.constant 0.000000e+00 : f32
    %67 = vector.broadcast %cst_66 : f32 to vector<112x32xf32>
    %68 = arith.maximumf %66, %67 : vector<112x32xf32>
    %c672_67 = arith.constant 672 : index
    %c0_68 = arith.constant 0 : index
    %69 = vector.load %arg11[%c672_67, %c0_68] : memref<784x32xf32, #tpu.memory_space<vmem>>, vector<112x32xf32>
    tpu.vector_store %arg11[%c672_67, %c0_68], %68 {strides = array<i32>} : memref<784x32xf32, #tpu.memory_space<vmem>>, vector<112x32xf32>,
    %cst_69 = arith.constant 0.000000e+00 : f32
    %70 = vector.broadcast %cst_69 : f32 to vector<264x32xf32>
    %c0_70 = arith.constant 0 : index
    %c0_71 = arith.constant 0 : index
    %71 = vector.load %arg12[%c0_70, %c0_71] : memref<264x32xf32, #tpu.memory_space<vmem>>, vector<264x32xf32>
    tpu.vector_store %arg12[%c0_70, %c0_71], %70 {strides = array<i32>} : memref<264x32xf32, #tpu.memory_space<vmem>>, vector<264x32xf32>,
    %c0_72 = arith.constant 0 : index
    %c0_73 = arith.constant 0 : index
    %72 = tpu.strided_load %arg11[%c0_72, %c0_73] {strides = array<i32: 2, 1>} : memref<784x32xf32, #tpu.memory_space<vmem>>, vector<14x32xf32>
    %c1 = arith.constant 1 : index
    %c0_74 = arith.constant 0 : index
    %73 = tpu.strided_load %arg11[%c1, %c0_74] {strides = array<i32: 2, 1>} : memref<784x32xf32, #tpu.memory_space<vmem>>, vector<14x32xf32>
    %c28 = arith.constant 28 : index
    %c0_75 = arith.constant 0 : index
    %74 = tpu.strided_load %arg11[%c28, %c0_75] {strides = array<i32: 2, 1>} : memref<784x32xf32, #tpu.memory_space<vmem>>, vector<14x32xf32>
    %c29 = arith.constant 29 : index
    %c0_76 = arith.constant 0 : index
    %75 = tpu.strided_load %arg11[%c29, %c0_76] {strides = array<i32: 2, 1>} : memref<784x32xf32, #tpu.memory_space<vmem>>, vector<14x32xf32>
    %76 = arith.maximumf %72, %73 : vector<14x32xf32>
    %77 = arith.maximumf %74, %75 : vector<14x32xf32>
    %78 = arith.maximumf %76, %77 : vector<14x32xf32>
    %c17 = arith.constant 17 : index
    %c0_77 = arith.constant 0 : index
    %79 = vector.load %arg12[%c17, %c0_77] : memref<264x32xf32, #tpu.memory_space<vmem>>, vector<14x32xf32>
    tpu.vector_store %arg12[%c17, %c0_77], %78 {strides = array<i32>} : memref<264x32xf32, #tpu.memory_space<vmem>>, vector<14x32xf32>,
    %c56 = arith.constant 56 : index
    %c0_78 = arith.constant 0 : index
    %80 = tpu.strided_load %arg11[%c56, %c0_78] {strides = array<i32: 2, 1>} : memref<784x32xf32, #tpu.memory_space<vmem>>, vector<14x32xf32>
    %c57 = arith.constant 57 : index
    %c0_79 = arith.constant 0 : index
    %81 = tpu.strided_load %arg11[%c57, %c0_79] {strides = array<i32: 2, 1>} : memref<784x32xf32, #tpu.memory_space<vmem>>, vector<14x32xf32>
    %c84 = arith.constant 84 : index
    %c0_80 = arith.constant 0 : index
    %82 = tpu.strided_load %arg11[%c84, %c0_80] {strides = array<i32: 2, 1>} : memref<784x32xf32, #tpu.memory_space<vmem>>, vector<14x32xf32>
    %c85 = arith.constant 85 : index
    %c0_81 = arith.constant 0 : index
    %83 = tpu.strided_load %arg11[%c85, %c0_81] {strides = array<i32: 2, 1>} : memref<784x32xf32, #tpu.memory_space<vmem>>, vector<14x32xf32>
    %84 = arith.maximumf %80, %81 : vector<14x32xf32>
    %85 = arith.maximumf %82, %83 : vector<14x32xf32>
    %86 = arith.maximumf %84, %85 : vector<14x32xf32>
    %c33 = arith.constant 33 : index
    %c0_82 = arith.constant 0 : index
    %87 = vector.load %arg12[%c33, %c0_82] : memref<264x32xf32, #tpu.memory_space<vmem>>, vector<14x32xf32>
    tpu.vector_store %arg12[%c33, %c0_82], %86 {strides = array<i32>} : memref<264x32xf32, #tpu.memory_space<vmem>>, vector<14x32xf32>,
    %c112_83 = arith.constant 112 : index
    %c0_84 = arith.constant 0 : index
    %88 = tpu.strided_load %arg11[%c112_83, %c0_84] {strides = array<i32: 2, 1>} : memref<784x32xf32, #tpu.memory_space<vmem>>, vector<14x32xf32>
    %c113 = arith.constant 113 : index
    %c0_85 = arith.constant 0 : index
    %89 = tpu.strided_load %arg11[%c113, %c0_85] {strides = array<i32: 2, 1>} : memref<784x32xf32, #tpu.memory_space<vmem>>, vector<14x32xf32>
    %c140 = arith.constant 140 : index
    %c0_86 = arith.constant 0 : index
    %90 = tpu.strided_load %arg11[%c140, %c0_86] {strides = array<i32: 2, 1>} : memref<784x32xf32, #tpu.memory_space<vmem>>, vector<14x32xf32>
    %c141 = arith.constant 141 : index
    %c0_87 = arith.constant 0 : index
    %91 = tpu.strided_load %arg11[%c141, %c0_87] {strides = array<i32: 2, 1>} : memref<784x32xf32, #tpu.memory_space<vmem>>, vector<14x32xf32>
    %92 = arith.maximumf %88, %89 : vector<14x32xf32>
    %93 = arith.maximumf %90, %91 : vector<14x32xf32>
    %94 = arith.maximumf %92, %93 : vector<14x32xf32>
    %c49 = arith.constant 49 : index
    %c0_88 = arith.constant 0 : index
    %95 = vector.load %arg12[%c49, %c0_88] : memref<264x32xf32, #tpu.memory_space<vmem>>, vector<14x32xf32>
    tpu.vector_store %arg12[%c49, %c0_88], %94 {strides = array<i32>} : memref<264x32xf32, #tpu.memory_space<vmem>>, vector<14x32xf32>,
    %c168 = arith.constant 168 : index
    %c0_89 = arith.constant 0 : index
    %96 = tpu.strided_load %arg11[%c168, %c0_89] {strides = array<i32: 2, 1>} : memref<784x32xf32, #tpu.memory_space<vmem>>, vector<14x32xf32>
    %c169 = arith.constant 169 : index
    %c0_90 = arith.constant 0 : index
    %97 = tpu.strided_load %arg11[%c169, %c0_90] {strides = array<i32: 2, 1>} : memref<784x32xf32, #tpu.memory_space<vmem>>, vector<14x32xf32>
    %c196 = arith.constant 196 : index
    %c0_91 = arith.constant 0 : index
    %98 = tpu.strided_load %arg11[%c196, %c0_91] {strides = array<i32: 2, 1>} : memref<784x32xf32, #tpu.memory_space<vmem>>, vector<14x32xf32>
    %c197 = arith.constant 197 : index
    %c0_92 = arith.constant 0 : index
    %99 = tpu.strided_load %arg11[%c197, %c0_92] {strides = array<i32: 2, 1>} : memref<784x32xf32, #tpu.memory_space<vmem>>, vector<14x32xf32>
    %100 = arith.maximumf %96, %97 : vector<14x32xf32>
    %101 = arith.maximumf %98, %99 : vector<14x32xf32>
    %102 = arith.maximumf %100, %101 : vector<14x32xf32>
    %c65 = arith.constant 65 : index
    %c0_93 = arith.constant 0 : index
    %103 = vector.load %arg12[%c65, %c0_93] : memref<264x32xf32, #tpu.memory_space<vmem>>, vector<14x32xf32>
    tpu.vector_store %arg12[%c65, %c0_93], %102 {strides = array<i32>} : memref<264x32xf32, #tpu.memory_space<vmem>>, vector<14x32xf32>,
    %c224_94 = arith.constant 224 : index
    %c0_95 = arith.constant 0 : index
    %104 = tpu.strided_load %arg11[%c224_94, %c0_95] {strides = array<i32: 2, 1>} : memref<784x32xf32, #tpu.memory_space<vmem>>, vector<14x32xf32>
    %c225 = arith.constant 225 : index
    %c0_96 = arith.constant 0 : index
    %105 = tpu.strided_load %arg11[%c225, %c0_96] {strides = array<i32: 2, 1>} : memref<784x32xf32, #tpu.memory_space<vmem>>, vector<14x32xf32>
    %c252 = arith.constant 252 : index
    %c0_97 = arith.constant 0 : index
    %106 = tpu.strided_load %arg11[%c252, %c0_97] {strides = array<i32: 2, 1>} : memref<784x32xf32, #tpu.memory_space<vmem>>, vector<14x32xf32>
    %c253 = arith.constant 253 : index
    %c0_98 = arith.constant 0 : index
    %107 = tpu.strided_load %arg11[%c253, %c0_98] {strides = array<i32: 2, 1>} : memref<784x32xf32, #tpu.memory_space<vmem>>, vector<14x32xf32>
    %108 = arith.maximumf %104, %105 : vector<14x32xf32>
    %109 = arith.maximumf %106, %107 : vector<14x32xf32>
    %110 = arith.maximumf %108, %109 : vector<14x32xf32>
    %c81 = arith.constant 81 : index
    %c0_99 = arith.constant 0 : index
    %111 = vector.load %arg12[%c81, %c0_99] : memref<264x32xf32, #tpu.memory_space<vmem>>, vector<14x32xf32>
    tpu.vector_store %arg12[%c81, %c0_99], %110 {strides = array<i32>} : memref<264x32xf32, #tpu.memory_space<vmem>>, vector<14x32xf32>,
    %c280 = arith.constant 280 : index
    %c0_100 = arith.constant 0 : index
    %112 = tpu.strided_load %arg11[%c280, %c0_100] {strides = array<i32: 2, 1>} : memref<784x32xf32, #tpu.memory_space<vmem>>, vector<14x32xf32>
    %c281 = arith.constant 281 : index
    %c0_101 = arith.constant 0 : index
    %113 = tpu.strided_load %arg11[%c281, %c0_101] {strides = array<i32: 2, 1>} : memref<784x32xf32, #tpu.memory_space<vmem>>, vector<14x32xf32>
    %c308 = arith.constant 308 : index
    %c0_102 = arith.constant 0 : index
    %114 = tpu.strided_load %arg11[%c308, %c0_102] {strides = array<i32: 2, 1>} : memref<784x32xf32, #tpu.memory_space<vmem>>, vector<14x32xf32>
    %c309 = arith.constant 309 : index
    %c0_103 = arith.constant 0 : index
    %115 = tpu.strided_load %arg11[%c309, %c0_103] {strides = array<i32: 2, 1>} : memref<784x32xf32, #tpu.memory_space<vmem>>, vector<14x32xf32>
    %116 = arith.maximumf %112, %113 : vector<14x32xf32>
    %117 = arith.maximumf %114, %115 : vector<14x32xf32>
    %118 = arith.maximumf %116, %117 : vector<14x32xf32>
    %c97 = arith.constant 97 : index
    %c0_104 = arith.constant 0 : index
    %119 = vector.load %arg12[%c97, %c0_104] : memref<264x32xf32, #tpu.memory_space<vmem>>, vector<14x32xf32>
    tpu.vector_store %arg12[%c97, %c0_104], %118 {strides = array<i32>} : memref<264x32xf32, #tpu.memory_space<vmem>>, vector<14x32xf32>,
    %c336_105 = arith.constant 336 : index
    %c0_106 = arith.constant 0 : index
    %120 = tpu.strided_load %arg11[%c336_105, %c0_106] {strides = array<i32: 2, 1>} : memref<784x32xf32, #tpu.memory_space<vmem>>, vector<14x32xf32>
    %c337 = arith.constant 337 : index
    %c0_107 = arith.constant 0 : index
    %121 = tpu.strided_load %arg11[%c337, %c0_107] {strides = array<i32: 2, 1>} : memref<784x32xf32, #tpu.memory_space<vmem>>, vector<14x32xf32>
    %c364 = arith.constant 364 : index
    %c0_108 = arith.constant 0 : index
    %122 = tpu.strided_load %arg11[%c364, %c0_108] {strides = array<i32: 2, 1>} : memref<784x32xf32, #tpu.memory_space<vmem>>, vector<14x32xf32>
    %c365 = arith.constant 365 : index
    %c0_109 = arith.constant 0 : index
    %123 = tpu.strided_load %arg11[%c365, %c0_109] {strides = array<i32: 2, 1>} : memref<784x32xf32, #tpu.memory_space<vmem>>, vector<14x32xf32>
    %124 = arith.maximumf %120, %121 : vector<14x32xf32>
    %125 = arith.maximumf %122, %123 : vector<14x32xf32>
    %126 = arith.maximumf %124, %125 : vector<14x32xf32>
    %c113_110 = arith.constant 113 : index
    %c0_111 = arith.constant 0 : index
    %127 = vector.load %arg12[%c113_110, %c0_111] : memref<264x32xf32, #tpu.memory_space<vmem>>, vector<14x32xf32>
    tpu.vector_store %arg12[%c113_110, %c0_111], %126 {strides = array<i32>} : memref<264x32xf32, #tpu.memory_space<vmem>>, vector<14x32xf32>,
    %c392 = arith.constant 392 : index
    %c0_112 = arith.constant 0 : index
    %128 = tpu.strided_load %arg11[%c392, %c0_112] {strides = array<i32: 2, 1>} : memref<784x32xf32, #tpu.memory_space<vmem>>, vector<14x32xf32>
    %c393 = arith.constant 393 : index
    %c0_113 = arith.constant 0 : index
    %129 = tpu.strided_load %arg11[%c393, %c0_113] {strides = array<i32: 2, 1>} : memref<784x32xf32, #tpu.memory_space<vmem>>, vector<14x32xf32>
    %c420 = arith.constant 420 : index
    %c0_114 = arith.constant 0 : index
    %130 = tpu.strided_load %arg11[%c420, %c0_114] {strides = array<i32: 2, 1>} : memref<784x32xf32, #tpu.memory_space<vmem>>, vector<14x32xf32>
    %c421 = arith.constant 421 : index
    %c0_115 = arith.constant 0 : index
    %131 = tpu.strided_load %arg11[%c421, %c0_115] {strides = array<i32: 2, 1>} : memref<784x32xf32, #tpu.memory_space<vmem>>, vector<14x32xf32>
    %132 = arith.maximumf %128, %129 : vector<14x32xf32>
    %133 = arith.maximumf %130, %131 : vector<14x32xf32>
    %134 = arith.maximumf %132, %133 : vector<14x32xf32>
    %c129 = arith.constant 129 : index
    %c0_116 = arith.constant 0 : index
    %135 = vector.load %arg12[%c129, %c0_116] : memref<264x32xf32, #tpu.memory_space<vmem>>, vector<14x32xf32>
    tpu.vector_store %arg12[%c129, %c0_116], %134 {strides = array<i32>} : memref<264x32xf32, #tpu.memory_space<vmem>>, vector<14x32xf32>,
    %c448_117 = arith.constant 448 : index
    %c0_118 = arith.constant 0 : index
    %136 = tpu.strided_load %arg11[%c448_117, %c0_118] {strides = array<i32: 2, 1>} : memref<784x32xf32, #tpu.memory_space<vmem>>, vector<14x32xf32>
    %c449 = arith.constant 449 : index
    %c0_119 = arith.constant 0 : index
    %137 = tpu.strided_load %arg11[%c449, %c0_119] {strides = array<i32: 2, 1>} : memref<784x32xf32, #tpu.memory_space<vmem>>, vector<14x32xf32>
    %c476 = arith.constant 476 : index
    %c0_120 = arith.constant 0 : index
    %138 = tpu.strided_load %arg11[%c476, %c0_120] {strides = array<i32: 2, 1>} : memref<784x32xf32, #tpu.memory_space<vmem>>, vector<14x32xf32>
    %c477 = arith.constant 477 : index
    %c0_121 = arith.constant 0 : index
    %139 = tpu.strided_load %arg11[%c477, %c0_121] {strides = array<i32: 2, 1>} : memref<784x32xf32, #tpu.memory_space<vmem>>, vector<14x32xf32>
    %140 = arith.maximumf %136, %137 : vector<14x32xf32>
    %141 = arith.maximumf %138, %139 : vector<14x32xf32>
    %142 = arith.maximumf %140, %141 : vector<14x32xf32>
    %c145 = arith.constant 145 : index
    %c0_122 = arith.constant 0 : index
    %143 = vector.load %arg12[%c145, %c0_122] : memref<264x32xf32, #tpu.memory_space<vmem>>, vector<14x32xf32>
    tpu.vector_store %arg12[%c145, %c0_122], %142 {strides = array<i32>} : memref<264x32xf32, #tpu.memory_space<vmem>>, vector<14x32xf32>,
    %c504 = arith.constant 504 : index
    %c0_123 = arith.constant 0 : index
    %144 = tpu.strided_load %arg11[%c504, %c0_123] {strides = array<i32: 2, 1>} : memref<784x32xf32, #tpu.memory_space<vmem>>, vector<14x32xf32>
    %c505 = arith.constant 505 : index
    %c0_124 = arith.constant 0 : index
    %145 = tpu.strided_load %arg11[%c505, %c0_124] {strides = array<i32: 2, 1>} : memref<784x32xf32, #tpu.memory_space<vmem>>, vector<14x32xf32>
    %c532 = arith.constant 532 : index
    %c0_125 = arith.constant 0 : index
    %146 = tpu.strided_load %arg11[%c532, %c0_125] {strides = array<i32: 2, 1>} : memref<784x32xf32, #tpu.memory_space<vmem>>, vector<14x32xf32>
    %c533 = arith.constant 533 : index
    %c0_126 = arith.constant 0 : index
    %147 = tpu.strided_load %arg11[%c533, %c0_126] {strides = array<i32: 2, 1>} : memref<784x32xf32, #tpu.memory_space<vmem>>, vector<14x32xf32>
    %148 = arith.maximumf %144, %145 : vector<14x32xf32>
    %149 = arith.maximumf %146, %147 : vector<14x32xf32>
    %150 = arith.maximumf %148, %149 : vector<14x32xf32>
    %c161 = arith.constant 161 : index
    %c0_127 = arith.constant 0 : index
    %151 = vector.load %arg12[%c161, %c0_127] : memref<264x32xf32, #tpu.memory_space<vmem>>, vector<14x32xf32>
    tpu.vector_store %arg12[%c161, %c0_127], %150 {strides = array<i32>} : memref<264x32xf32, #tpu.memory_space<vmem>>, vector<14x32xf32>,
    %c560_128 = arith.constant 560 : index
    %c0_129 = arith.constant 0 : index
    %152 = tpu.strided_load %arg11[%c560_128, %c0_129] {strides = array<i32: 2, 1>} : memref<784x32xf32, #tpu.memory_space<vmem>>, vector<14x32xf32>
    %c561 = arith.constant 561 : index
    %c0_130 = arith.constant 0 : index
    %153 = tpu.strided_load %arg11[%c561, %c0_130] {strides = array<i32: 2, 1>} : memref<784x32xf32, #tpu.memory_space<vmem>>, vector<14x32xf32>
    %c588 = arith.constant 588 : index
    %c0_131 = arith.constant 0 : index
    %154 = tpu.strided_load %arg11[%c588, %c0_131] {strides = array<i32: 2, 1>} : memref<784x32xf32, #tpu.memory_space<vmem>>, vector<14x32xf32>
    %c589 = arith.constant 589 : index
    %c0_132 = arith.constant 0 : index
    %155 = tpu.strided_load %arg11[%c589, %c0_132] {strides = array<i32: 2, 1>} : memref<784x32xf32, #tpu.memory_space<vmem>>, vector<14x32xf32>
    %156 = arith.maximumf %152, %153 : vector<14x32xf32>
    %157 = arith.maximumf %154, %155 : vector<14x32xf32>
    %158 = arith.maximumf %156, %157 : vector<14x32xf32>
    %c177 = arith.constant 177 : index
    %c0_133 = arith.constant 0 : index
    %159 = vector.load %arg12[%c177, %c0_133] : memref<264x32xf32, #tpu.memory_space<vmem>>, vector<14x32xf32>
    tpu.vector_store %arg12[%c177, %c0_133], %158 {strides = array<i32>} : memref<264x32xf32, #tpu.memory_space<vmem>>, vector<14x32xf32>,
    %c616 = arith.constant 616 : index
    %c0_134 = arith.constant 0 : index
    %160 = tpu.strided_load %arg11[%c616, %c0_134] {strides = array<i32: 2, 1>} : memref<784x32xf32, #tpu.memory_space<vmem>>, vector<14x32xf32>
    %c617 = arith.constant 617 : index
    %c0_135 = arith.constant 0 : index
    %161 = tpu.strided_load %arg11[%c617, %c0_135] {strides = array<i32: 2, 1>} : memref<784x32xf32, #tpu.memory_space<vmem>>, vector<14x32xf32>
    %c644 = arith.constant 644 : index
    %c0_136 = arith.constant 0 : index
    %162 = tpu.strided_load %arg11[%c644, %c0_136] {strides = array<i32: 2, 1>} : memref<784x32xf32, #tpu.memory_space<vmem>>, vector<14x32xf32>
    %c645 = arith.constant 645 : index
    %c0_137 = arith.constant 0 : index
    %163 = tpu.strided_load %arg11[%c645, %c0_137] {strides = array<i32: 2, 1>} : memref<784x32xf32, #tpu.memory_space<vmem>>, vector<14x32xf32>
    %164 = arith.maximumf %160, %161 : vector<14x32xf32>
    %165 = arith.maximumf %162, %163 : vector<14x32xf32>
    %166 = arith.maximumf %164, %165 : vector<14x32xf32>
    %c193 = arith.constant 193 : index
    %c0_138 = arith.constant 0 : index
    %167 = vector.load %arg12[%c193, %c0_138] : memref<264x32xf32, #tpu.memory_space<vmem>>, vector<14x32xf32>
    tpu.vector_store %arg12[%c193, %c0_138], %166 {strides = array<i32>} : memref<264x32xf32, #tpu.memory_space<vmem>>, vector<14x32xf32>,
    %c672_139 = arith.constant 672 : index
    %c0_140 = arith.constant 0 : index
    %168 = tpu.strided_load %arg11[%c672_139, %c0_140] {strides = array<i32: 2, 1>} : memref<784x32xf32, #tpu.memory_space<vmem>>, vector<14x32xf32>
    %c673 = arith.constant 673 : index
    %c0_141 = arith.constant 0 : index
    %169 = tpu.strided_load %arg11[%c673, %c0_141] {strides = array<i32: 2, 1>} : memref<784x32xf32, #tpu.memory_space<vmem>>, vector<14x32xf32>
    %c700 = arith.constant 700 : index
    %c0_142 = arith.constant 0 : index
    %170 = tpu.strided_load %arg11[%c700, %c0_142] {strides = array<i32: 2, 1>} : memref<784x32xf32, #tpu.memory_space<vmem>>, vector<14x32xf32>
    %c701 = arith.constant 701 : index
    %c0_143 = arith.constant 0 : index
    %171 = tpu.strided_load %arg11[%c701, %c0_143] {strides = array<i32: 2, 1>} : memref<784x32xf32, #tpu.memory_space<vmem>>, vector<14x32xf32>
    %172 = arith.maximumf %168, %169 : vector<14x32xf32>
    %173 = arith.maximumf %170, %171 : vector<14x32xf32>
    %174 = arith.maximumf %172, %173 : vector<14x32xf32>
    %c209 = arith.constant 209 : index
    %c0_144 = arith.constant 0 : index
    %175 = vector.load %arg12[%c209, %c0_144] : memref<264x32xf32, #tpu.memory_space<vmem>>, vector<14x32xf32>
    tpu.vector_store %arg12[%c209, %c0_144], %174 {strides = array<i32>} : memref<264x32xf32, #tpu.memory_space<vmem>>, vector<14x32xf32>,
    %c728 = arith.constant 728 : index
    %c0_145 = arith.constant 0 : index
    %176 = tpu.strided_load %arg11[%c728, %c0_145] {strides = array<i32: 2, 1>} : memref<784x32xf32, #tpu.memory_space<vmem>>, vector<14x32xf32>
    %c729 = arith.constant 729 : index
    %c0_146 = arith.constant 0 : index
    %177 = tpu.strided_load %arg11[%c729, %c0_146] {strides = array<i32: 2, 1>} : memref<784x32xf32, #tpu.memory_space<vmem>>, vector<14x32xf32>
    %c756 = arith.constant 756 : index
    %c0_147 = arith.constant 0 : index
    %178 = tpu.strided_load %arg11[%c756, %c0_147] {strides = array<i32: 2, 1>} : memref<784x32xf32, #tpu.memory_space<vmem>>, vector<14x32xf32>
    %c757 = arith.constant 757 : index
    %c0_148 = arith.constant 0 : index
    %179 = tpu.strided_load %arg11[%c757, %c0_148] {strides = array<i32: 2, 1>} : memref<784x32xf32, #tpu.memory_space<vmem>>, vector<14x32xf32>
    %180 = arith.maximumf %176, %177 : vector<14x32xf32>
    %181 = arith.maximumf %178, %179 : vector<14x32xf32>
    %182 = arith.maximumf %180, %181 : vector<14x32xf32>
    %c225_149 = arith.constant 225 : index
    %c0_150 = arith.constant 0 : index
    %183 = vector.load %arg12[%c225_149, %c0_150] : memref<264x32xf32, #tpu.memory_space<vmem>>, vector<14x32xf32>
    tpu.vector_store %arg12[%c225_149, %c0_150], %182 {strides = array<i32>} : memref<264x32xf32, #tpu.memory_space<vmem>>, vector<14x32xf32>,
    %c0_151 = arith.constant 0 : index
    %c0_152 = arith.constant 0 : index
    %184 = vector.load %arg12[%c0_151, %c0_152] : memref<264x32xf32, #tpu.memory_space<vmem>>, vector<224x32xf32>
    %c0_153 = arith.constant 0 : index
    %c0_154 = arith.constant 0 : index
    %185 = vector.load %arg13[%c0_153, %c0_154] : memref<224x288xf32, #tpu.memory_space<vmem>>, vector<224x32xf32>
    tpu.vector_store %arg13[%c0_153, %c0_154], %184 {strides = array<i32>} : memref<224x288xf32, #tpu.memory_space<vmem>>, vector<224x32xf32>,
    %c1_155 = arith.constant 1 : index
    %c0_156 = arith.constant 0 : index
    %186 = vector.load %arg12[%c1_155, %c0_156] : memref<264x32xf32, #tpu.memory_space<vmem>>, vector<224x32xf32>
    %c0_157 = arith.constant 0 : index
    %c32 = arith.constant 32 : index
    %187 = vector.load %arg13[%c0_157, %c32] : memref<224x288xf32, #tpu.memory_space<vmem>>, vector<224x32xf32>
    tpu.vector_store %arg13[%c0_157, %c32], %186 {strides = array<i32>} : memref<224x288xf32, #tpu.memory_space<vmem>>, vector<224x32xf32>,
    %c2 = arith.constant 2 : index
    %c0_158 = arith.constant 0 : index
    %188 = vector.load %arg12[%c2, %c0_158] : memref<264x32xf32, #tpu.memory_space<vmem>>, vector<224x32xf32>
    %c0_159 = arith.constant 0 : index
    %c64 = arith.constant 64 : index
    %189 = vector.load %arg13[%c0_159, %c64] : memref<224x288xf32, #tpu.memory_space<vmem>>, vector<224x32xf32>
    tpu.vector_store %arg13[%c0_159, %c64], %188 {strides = array<i32>} : memref<224x288xf32, #tpu.memory_space<vmem>>, vector<224x32xf32>,
    %c16 = arith.constant 16 : index
    %c0_160 = arith.constant 0 : index
    %190 = vector.load %arg12[%c16, %c0_160] : memref<264x32xf32, #tpu.memory_space<vmem>>, vector<224x32xf32>
    %c0_161 = arith.constant 0 : index
    %c96 = arith.constant 96 : index
    %191 = vector.load %arg13[%c0_161, %c96] : memref<224x288xf32, #tpu.memory_space<vmem>>, vector<224x32xf32>
    tpu.vector_store %arg13[%c0_161, %c96], %190 {strides = array<i32>} : memref<224x288xf32, #tpu.memory_space<vmem>>, vector<224x32xf32>,
    %c17_162 = arith.constant 17 : index
    %c0_163 = arith.constant 0 : index
    %192 = vector.load %arg12[%c17_162, %c0_163] : memref<264x32xf32, #tpu.memory_space<vmem>>, vector<224x32xf32>
    %c0_164 = arith.constant 0 : index
    %c128 = arith.constant 128 : index
    %193 = vector.load %arg13[%c0_164, %c128] : memref<224x288xf32, #tpu.memory_space<vmem>>, vector<224x32xf32>
    tpu.vector_store %arg13[%c0_164, %c128], %192 {strides = array<i32>} : memref<224x288xf32, #tpu.memory_space<vmem>>, vector<224x32xf32>,
    %c18 = arith.constant 18 : index
    %c0_165 = arith.constant 0 : index
    %194 = vector.load %arg12[%c18, %c0_165] : memref<264x32xf32, #tpu.memory_space<vmem>>, vector<224x32xf32>
    %c0_166 = arith.constant 0 : index
    %c160 = arith.constant 160 : index
    %195 = vector.load %arg13[%c0_166, %c160] : memref<224x288xf32, #tpu.memory_space<vmem>>, vector<224x32xf32>
    tpu.vector_store %arg13[%c0_166, %c160], %194 {strides = array<i32>} : memref<224x288xf32, #tpu.memory_space<vmem>>, vector<224x32xf32>,
    %c32_167 = arith.constant 32 : index
    %c0_168 = arith.constant 0 : index
    %196 = vector.load %arg12[%c32_167, %c0_168] : memref<264x32xf32, #tpu.memory_space<vmem>>, vector<224x32xf32>
    %c0_169 = arith.constant 0 : index
    %c192 = arith.constant 192 : index
    %197 = vector.load %arg13[%c0_169, %c192] : memref<224x288xf32, #tpu.memory_space<vmem>>, vector<224x32xf32>
    tpu.vector_store %arg13[%c0_169, %c192], %196 {strides = array<i32>} : memref<224x288xf32, #tpu.memory_space<vmem>>, vector<224x32xf32>,
    %c33_170 = arith.constant 33 : index
    %c0_171 = arith.constant 0 : index
    %198 = vector.load %arg12[%c33_170, %c0_171] : memref<264x32xf32, #tpu.memory_space<vmem>>, vector<224x32xf32>
    %c0_172 = arith.constant 0 : index
    %c224_173 = arith.constant 224 : index
    %199 = vector.load %arg13[%c0_172, %c224_173] : memref<224x288xf32, #tpu.memory_space<vmem>>, vector<224x32xf32>
    tpu.vector_store %arg13[%c0_172, %c224_173], %198 {strides = array<i32>} : memref<224x288xf32, #tpu.memory_space<vmem>>, vector<224x32xf32>,
    %c34 = arith.constant 34 : index
    %c0_174 = arith.constant 0 : index
    %200 = vector.load %arg12[%c34, %c0_174] : memref<264x32xf32, #tpu.memory_space<vmem>>, vector<224x32xf32>
    %c0_175 = arith.constant 0 : index
    %c256 = arith.constant 256 : index
    %201 = vector.load %arg13[%c0_175, %c256] : memref<224x288xf32, #tpu.memory_space<vmem>>, vector<224x32xf32>
    tpu.vector_store %arg13[%c0_175, %c256], %200 {strides = array<i32>} : memref<224x288xf32, #tpu.memory_space<vmem>>, vector<224x32xf32>,
    %c0_176 = arith.constant 0 : index
    %c0_177 = arith.constant 0 : index
    %202 = vector.load %arg13[%c0_176, %c0_177] : memref<224x288xf32, #tpu.memory_space<vmem>>, vector<224x288xf32>
    %203 = arith.truncf %202 : vector<224x288xf32> to vector<224x288xbf16>
    %c0_178 = arith.constant 0 : index
    %c0_179 = arith.constant 0 : index
    %204 = vector.load %arg4[%c0_178, %c0_179] : memref<288x64xbf16, #tpu.memory_space<vmem>>, vector<288x64xbf16>
    %cst_180 = arith.constant dense<0.000000e+00> : vector<224x64xf32>
    %205 = tpu.matmul %203, %204, %cst_180 {dimension_numbers = #tpu.dot_dimension_numbers<[1], [0], [0], [1], [0, 0, 1, 1], [], []>} : vector<224x288xbf16>, vector<288x64xbf16>, vector<224x64xf32> -> vector<224x64xf32>
    %c0_181 = arith.constant 0 : index
    %c0_182 = arith.constant 0 : index
    %206 = vector.load %arg5[%c0_181, %c0_182] : memref<1x64xf32, #tpu.memory_space<vmem>>, vector<1x64xf32>
    %207 = vector.broadcast %206 : vector<1x64xf32> to vector<224x64xf32>
    %208 = arith.addf %205, %207 : vector<224x64xf32>
    %cst_183 = arith.constant 0.000000e+00 : f32
    %209 = vector.broadcast %cst_183 : f32 to vector<224x64xf32>
    %210 = arith.maximumf %208, %209 : vector<224x64xf32>
    %c0_184 = arith.constant 0 : index
    %c0_185 = arith.constant 0 : index
    %211 = vector.load %arg14[%c0_184, %c0_185] : memref<224x64xf32, #tpu.memory_space<vmem>>, vector<224x64xf32>
    tpu.vector_store %arg14[%c0_184, %c0_185], %210 {strides = array<i32>} : memref<224x64xf32, #tpu.memory_space<vmem>>, vector<224x64xf32>,
    %c0_186 = arith.constant 0 : index
    %c0_187 = arith.constant 0 : index
    %212 = tpu.strided_load %arg14[%c0_186, %c0_187] {strides = array<i32: 2, 1>} : memref<224x64xf32, #tpu.memory_space<vmem>>, vector<7x64xf32>
    %c1_188 = arith.constant 1 : index
    %c0_189 = arith.constant 0 : index
    %213 = tpu.strided_load %arg14[%c1_188, %c0_189] {strides = array<i32: 2, 1>} : memref<224x64xf32, #tpu.memory_space<vmem>>, vector<7x64xf32>
    %c16_190 = arith.constant 16 : index
    %c0_191 = arith.constant 0 : index
    %214 = tpu.strided_load %arg14[%c16_190, %c0_191] {strides = array<i32: 2, 1>} : memref<224x64xf32, #tpu.memory_space<vmem>>, vector<7x64xf32>
    %c17_192 = arith.constant 17 : index
    %c0_193 = arith.constant 0 : index
    %215 = tpu.strided_load %arg14[%c17_192, %c0_193] {strides = array<i32: 2, 1>} : memref<224x64xf32, #tpu.memory_space<vmem>>, vector<7x64xf32>
    %216 = arith.maximumf %212, %213 : vector<7x64xf32>
    %217 = arith.maximumf %214, %215 : vector<7x64xf32>
    %218 = arith.maximumf %216, %217 : vector<7x64xf32>
    %219 = vector.extract_strided_slice %218 {offsets = [0, 0], sizes = [1, 64], strides = [1, 1]} : vector<7x64xf32> to vector<1x64xf32>
    %c0_194 = arith.constant 0 : index
    %c0_195 = arith.constant 0 : index
    %220 = vector.load %arg15[%c0_194, %c0_195] : memref<1x3136xf32, #tpu.memory_space<vmem>>, vector<1x64xf32>
    tpu.vector_store %arg15[%c0_194, %c0_195], %219 {strides = array<i32>} : memref<1x3136xf32, #tpu.memory_space<vmem>>, vector<1x64xf32>,
    %221 = vector.extract_strided_slice %218 {offsets = [1, 0], sizes = [1, 64], strides = [1, 1]} : vector<7x64xf32> to vector<1x64xf32>
    %c0_196 = arith.constant 0 : index
    %c64_197 = arith.constant 64 : index
    %222 = vector.load %arg15[%c0_196, %c64_197] : memref<1x3136xf32, #tpu.memory_space<vmem>>, vector<1x64xf32>
    tpu.vector_store %arg15[%c0_196, %c64_197], %221 {strides = array<i32>} : memref<1x3136xf32, #tpu.memory_space<vmem>>, vector<1x64xf32>,
    %223 = vector.extract_strided_slice %218 {offsets = [2, 0], sizes = [1, 64], strides = [1, 1]} : vector<7x64xf32> to vector<1x64xf32>
    %c0_198 = arith.constant 0 : index
    %c128_199 = arith.constant 128 : index
    %224 = vector.load %arg15[%c0_198, %c128_199] : memref<1x3136xf32, #tpu.memory_space<vmem>>, vector<1x64xf32>
    tpu.vector_store %arg15[%c0_198, %c128_199], %223 {strides = array<i32>} : memref<1x3136xf32, #tpu.memory_space<vmem>>, vector<1x64xf32>,
    %225 = vector.extract_strided_slice %218 {offsets = [3, 0], sizes = [1, 64], strides = [1, 1]} : vector<7x64xf32> to vector<1x64xf32>
    %c0_200 = arith.constant 0 : index
    %c192_201 = arith.constant 192 : index
    %226 = vector.load %arg15[%c0_200, %c192_201] : memref<1x3136xf32, #tpu.memory_space<vmem>>, vector<1x64xf32>
    tpu.vector_store %arg15[%c0_200, %c192_201], %225 {strides = array<i32>} : memref<1x3136xf32, #tpu.memory_space<vmem>>, vector<1x64xf32>,
    %227 = vector.extract_strided_slice %218 {offsets = [4, 0], sizes = [1, 64], strides = [1, 1]} : vector<7x64xf32> to vector<1x64xf32>
    %c0_202 = arith.constant 0 : index
    %c256_203 = arith.constant 256 : index
    %228 = vector.load %arg15[%c0_202, %c256_203] : memref<1x3136xf32, #tpu.memory_space<vmem>>, vector<1x64xf32>
    tpu.vector_store %arg15[%c0_202, %c256_203], %227 {strides = array<i32>} : memref<1x3136xf32, #tpu.memory_space<vmem>>, vector<1x64xf32>,
    %229 = vector.extract_strided_slice %218 {offsets = [5, 0], sizes = [1, 64], strides = [1, 1]} : vector<7x64xf32> to vector<1x64xf32>
    %c0_204 = arith.constant 0 : index
    %c320 = arith.constant 320 : index
    %230 = vector.load %arg15[%c0_204, %c320] : memref<1x3136xf32, #tpu.memory_space<vmem>>, vector<1x64xf32>
    tpu.vector_store %arg15[%c0_204, %c320], %229 {strides = array<i32>} : memref<1x3136xf32, #tpu.memory_space<vmem>>, vector<1x64xf32>,
    %231 = vector.extract_strided_slice %218 {offsets = [6, 0], sizes = [1, 64], strides = [1, 1]} : vector<7x64xf32> to vector<1x64xf32>
    %c0_205 = arith.constant 0 : index
    %c384 = arith.constant 384 : index
    %232 = vector.load %arg15[%c0_205, %c384] : memref<1x3136xf32, #tpu.memory_space<vmem>>, vector<1x64xf32>
    tpu.vector_store %arg15[%c0_205, %c384], %231 {strides = array<i32>} : memref<1x3136xf32, #tpu.memory_space<vmem>>, vector<1x64xf32>,
    %c32_206 = arith.constant 32 : index
    %c0_207 = arith.constant 0 : index
    %233 = tpu.strided_load %arg14[%c32_206, %c0_207] {strides = array<i32: 2, 1>} : memref<224x64xf32, #tpu.memory_space<vmem>>, vector<7x64xf32>
    %c33_208 = arith.constant 33 : index
    %c0_209 = arith.constant 0 : index
    %234 = tpu.strided_load %arg14[%c33_208, %c0_209] {strides = array<i32: 2, 1>} : memref<224x64xf32, #tpu.memory_space<vmem>>, vector<7x64xf32>
    %c48 = arith.constant 48 : index
    %c0_210 = arith.constant 0 : index
    %235 = tpu.strided_load %arg14[%c48, %c0_210] {strides = array<i32: 2, 1>} : memref<224x64xf32, #tpu.memory_space<vmem>>, vector<7x64xf32>
    %c49_211 = arith.constant 49 : index
    %c0_212 = arith.constant 0 : index
    %236 = tpu.strided_load %arg14[%c49_211, %c0_212] {strides = array<i32: 2, 1>} : memref<224x64xf32, #tpu.memory_space<vmem>>, vector<7x64xf32>
    %237 = arith.maximumf %233, %234 : vector<7x64xf32>
    %238 = arith.maximumf %235, %236 : vector<7x64xf32>
    %239 = arith.maximumf %237, %238 : vector<7x64xf32>
    %240 = vector.extract_strided_slice %239 {offsets = [0, 0], sizes = [1, 64], strides = [1, 1]} : vector<7x64xf32> to vector<1x64xf32>
    %c0_213 = arith.constant 0 : index
    %c448_214 = arith.constant 448 : index
    %241 = vector.load %arg15[%c0_213, %c448_214] : memref<1x3136xf32, #tpu.memory_space<vmem>>, vector<1x64xf32>
    tpu.vector_store %arg15[%c0_213, %c448_214], %240 {strides = array<i32>} : memref<1x3136xf32, #tpu.memory_space<vmem>>, vector<1x64xf32>,
    %242 = vector.extract_strided_slice %239 {offsets = [1, 0], sizes = [1, 64], strides = [1, 1]} : vector<7x64xf32> to vector<1x64xf32>
    %c0_215 = arith.constant 0 : index
    %c512 = arith.constant 512 : index
    %243 = vector.load %arg15[%c0_215, %c512] : memref<1x3136xf32, #tpu.memory_space<vmem>>, vector<1x64xf32>
    tpu.vector_store %arg15[%c0_215, %c512], %242 {strides = array<i32>} : memref<1x3136xf32, #tpu.memory_space<vmem>>, vector<1x64xf32>,
    %244 = vector.extract_strided_slice %239 {offsets = [2, 0], sizes = [1, 64], strides = [1, 1]} : vector<7x64xf32> to vector<1x64xf32>
    %c0_216 = arith.constant 0 : index
    %c576 = arith.constant 576 : index
    %245 = vector.load %arg15[%c0_216, %c576] : memref<1x3136xf32, #tpu.memory_space<vmem>>, vector<1x64xf32>
    tpu.vector_store %arg15[%c0_216, %c576], %244 {strides = array<i32>} : memref<1x3136xf32, #tpu.memory_space<vmem>>, vector<1x64xf32>,
    %246 = vector.extract_strided_slice %239 {offsets = [3, 0], sizes = [1, 64], strides = [1, 1]} : vector<7x64xf32> to vector<1x64xf32>
    %c0_217 = arith.constant 0 : index
    %c640 = arith.constant 640 : index
    %247 = vector.load %arg15[%c0_217, %c640] : memref<1x3136xf32, #tpu.memory_space<vmem>>, vector<1x64xf32>
    tpu.vector_store %arg15[%c0_217, %c640], %246 {strides = array<i32>} : memref<1x3136xf32, #tpu.memory_space<vmem>>, vector<1x64xf32>,
    %248 = vector.extract_strided_slice %239 {offsets = [4, 0], sizes = [1, 64], strides = [1, 1]} : vector<7x64xf32> to vector<1x64xf32>
    %c0_218 = arith.constant 0 : index
    %c704 = arith.constant 704 : index
    %249 = vector.load %arg15[%c0_218, %c704] : memref<1x3136xf32, #tpu.memory_space<vmem>>, vector<1x64xf32>
    tpu.vector_store %arg15[%c0_218, %c704], %248 {strides = array<i32>} : memref<1x3136xf32, #tpu.memory_space<vmem>>, vector<1x64xf32>,
    %250 = vector.extract_strided_slice %239 {offsets = [5, 0], sizes = [1, 64], strides = [1, 1]} : vector<7x64xf32> to vector<1x64xf32>
    %c0_219 = arith.constant 0 : index
    %c768 = arith.constant 768 : index
    %251 = vector.load %arg15[%c0_219, %c768] : memref<1x3136xf32, #tpu.memory_space<vmem>>, vector<1x64xf32>
    tpu.vector_store %arg15[%c0_219, %c768], %250 {strides = array<i32>} : memref<1x3136xf32, #tpu.memory_space<vmem>>, vector<1x64xf32>,
    %252 = vector.extract_strided_slice %239 {offsets = [6, 0], sizes = [1, 64], strides = [1, 1]} : vector<7x64xf32> to vector<1x64xf32>
    %c0_220 = arith.constant 0 : index
    %c832 = arith.constant 832 : index
    %253 = vector.load %arg15[%c0_220, %c832] : memref<1x3136xf32, #tpu.memory_space<vmem>>, vector<1x64xf32>
    tpu.vector_store %arg15[%c0_220, %c832], %252 {strides = array<i32>} : memref<1x3136xf32, #tpu.memory_space<vmem>>, vector<1x64xf32>,
    %c64_221 = arith.constant 64 : index
    %c0_222 = arith.constant 0 : index
    %254 = tpu.strided_load %arg14[%c64_221, %c0_222] {strides = array<i32: 2, 1>} : memref<224x64xf32, #tpu.memory_space<vmem>>, vector<7x64xf32>
    %c65_223 = arith.constant 65 : index
    %c0_224 = arith.constant 0 : index
    %255 = tpu.strided_load %arg14[%c65_223, %c0_224] {strides = array<i32: 2, 1>} : memref<224x64xf32, #tpu.memory_space<vmem>>, vector<7x64xf32>
    %c80 = arith.constant 80 : index
    %c0_225 = arith.constant 0 : index
    %256 = tpu.strided_load %arg14[%c80, %c0_225] {strides = array<i32: 2, 1>} : memref<224x64xf32, #tpu.memory_space<vmem>>, vector<7x64xf32>
    %c81_226 = arith.constant 81 : index
    %c0_227 = arith.constant 0 : index
    %257 = tpu.strided_load %arg14[%c81_226, %c0_227] {strides = array<i32: 2, 1>} : memref<224x64xf32, #tpu.memory_space<vmem>>, vector<7x64xf32>
    %258 = arith.maximumf %254, %255 : vector<7x64xf32>
    %259 = arith.maximumf %256, %257 : vector<7x64xf32>
    %260 = arith.maximumf %258, %259 : vector<7x64xf32>
    %261 = vector.extract_strided_slice %260 {offsets = [0, 0], sizes = [1, 64], strides = [1, 1]} : vector<7x64xf32> to vector<1x64xf32>
    %c0_228 = arith.constant 0 : index
    %c896 = arith.constant 896 : index
    %262 = vector.load %arg15[%c0_228, %c896] : memref<1x3136xf32, #tpu.memory_space<vmem>>, vector<1x64xf32>
    tpu.vector_store %arg15[%c0_228, %c896], %261 {strides = array<i32>} : memref<1x3136xf32, #tpu.memory_space<vmem>>, vector<1x64xf32>,
    %263 = vector.extract_strided_slice %260 {offsets = [1, 0], sizes = [1, 64], strides = [1, 1]} : vector<7x64xf32> to vector<1x64xf32>
    %c0_229 = arith.constant 0 : index
    %c960 = arith.constant 960 : index
    %264 = vector.load %arg15[%c0_229, %c960] : memref<1x3136xf32, #tpu.memory_space<vmem>>, vector<1x64xf32>
    tpu.vector_store %arg15[%c0_229, %c960], %263 {strides = array<i32>} : memref<1x3136xf32, #tpu.memory_space<vmem>>, vector<1x64xf32>,
    %265 = vector.extract_strided_slice %260 {offsets = [2, 0], sizes = [1, 64], strides = [1, 1]} : vector<7x64xf32> to vector<1x64xf32>
    %c0_230 = arith.constant 0 : index
    %c1024 = arith.constant 1024 : index
    %266 = vector.load %arg15[%c0_230, %c1024] : memref<1x3136xf32, #tpu.memory_space<vmem>>, vector<1x64xf32>
    tpu.vector_store %arg15[%c0_230, %c1024], %265 {strides = array<i32>} : memref<1x3136xf32, #tpu.memory_space<vmem>>, vector<1x64xf32>,
    %267 = vector.extract_strided_slice %260 {offsets = [3, 0], sizes = [1, 64], strides = [1, 1]} : vector<7x64xf32> to vector<1x64xf32>
    %c0_231 = arith.constant 0 : index
    %c1088 = arith.constant 1088 : index
    %268 = vector.load %arg15[%c0_231, %c1088] : memref<1x3136xf32, #tpu.memory_space<vmem>>, vector<1x64xf32>
    tpu.vector_store %arg15[%c0_231, %c1088], %267 {strides = array<i32>} : memref<1x3136xf32, #tpu.memory_space<vmem>>, vector<1x64xf32>,
    %269 = vector.extract_strided_slice %260 {offsets = [4, 0], sizes = [1, 64], strides = [1, 1]} : vector<7x64xf32> to vector<1x64xf32>
    %c0_232 = arith.constant 0 : index
    %c1152 = arith.constant 1152 : index
    %270 = vector.load %arg15[%c0_232, %c1152] : memref<1x3136xf32, #tpu.memory_space<vmem>>, vector<1x64xf32>
    tpu.vector_store %arg15[%c0_232, %c1152], %269 {strides = array<i32>} : memref<1x3136xf32, #tpu.memory_space<vmem>>, vector<1x64xf32>,
    %271 = vector.extract_strided_slice %260 {offsets = [5, 0], sizes = [1, 64], strides = [1, 1]} : vector<7x64xf32> to vector<1x64xf32>
    %c0_233 = arith.constant 0 : index
    %c1216 = arith.constant 1216 : index
    %272 = vector.load %arg15[%c0_233, %c1216] : memref<1x3136xf32, #tpu.memory_space<vmem>>, vector<1x64xf32>
    tpu.vector_store %arg15[%c0_233, %c1216], %271 {strides = array<i32>} : memref<1x3136xf32, #tpu.memory_space<vmem>>, vector<1x64xf32>,
    %273 = vector.extract_strided_slice %260 {offsets = [6, 0], sizes = [1, 64], strides = [1, 1]} : vector<7x64xf32> to vector<1x64xf32>
    %c0_234 = arith.constant 0 : index
    %c1280 = arith.constant 1280 : index
    %274 = vector.load %arg15[%c0_234, %c1280] : memref<1x3136xf32, #tpu.memory_space<vmem>>, vector<1x64xf32>
    tpu.vector_store %arg15[%c0_234, %c1280], %273 {strides = array<i32>} : memref<1x3136xf32, #tpu.memory_space<vmem>>, vector<1x64xf32>,
    %c96_235 = arith.constant 96 : index
    %c0_236 = arith.constant 0 : index
    %275 = tpu.strided_load %arg14[%c96_235, %c0_236] {strides = array<i32: 2, 1>} : memref<224x64xf32, #tpu.memory_space<vmem>>, vector<7x64xf32>
    %c97_237 = arith.constant 97 : index
    %c0_238 = arith.constant 0 : index
    %276 = tpu.strided_load %arg14[%c97_237, %c0_238] {strides = array<i32: 2, 1>} : memref<224x64xf32, #tpu.memory_space<vmem>>, vector<7x64xf32>
    %c112_239 = arith.constant 112 : index
    %c0_240 = arith.constant 0 : index
    %277 = tpu.strided_load %arg14[%c112_239, %c0_240] {strides = array<i32: 2, 1>} : memref<224x64xf32, #tpu.memory_space<vmem>>, vector<7x64xf32>
    %c113_241 = arith.constant 113 : index
    %c0_242 = arith.constant 0 : index
    %278 = tpu.strided_load %arg14[%c113_241, %c0_242] {strides = array<i32: 2, 1>} : memref<224x64xf32, #tpu.memory_space<vmem>>, vector<7x64xf32>
    %279 = arith.maximumf %275, %276 : vector<7x64xf32>
    %280 = arith.maximumf %277, %278 : vector<7x64xf32>
    %281 = arith.maximumf %279, %280 : vector<7x64xf32>
    %282 = vector.extract_strided_slice %281 {offsets = [0, 0], sizes = [1, 64], strides = [1, 1]} : vector<7x64xf32> to vector<1x64xf32>
    %c0_243 = arith.constant 0 : index
    %c1344 = arith.constant 1344 : index
    %283 = vector.load %arg15[%c0_243, %c1344] : memref<1x3136xf32, #tpu.memory_space<vmem>>, vector<1x64xf32>
    tpu.vector_store %arg15[%c0_243, %c1344], %282 {strides = array<i32>} : memref<1x3136xf32, #tpu.memory_space<vmem>>, vector<1x64xf32>,
    %284 = vector.extract_strided_slice %281 {offsets = [1, 0], sizes = [1, 64], strides = [1, 1]} : vector<7x64xf32> to vector<1x64xf32>
    %c0_244 = arith.constant 0 : index
    %c1408 = arith.constant 1408 : index
    %285 = vector.load %arg15[%c0_244, %c1408] : memref<1x3136xf32, #tpu.memory_space<vmem>>, vector<1x64xf32>
    tpu.vector_store %arg15[%c0_244, %c1408], %284 {strides = array<i32>} : memref<1x3136xf32, #tpu.memory_space<vmem>>, vector<1x64xf32>,
    %286 = vector.extract_strided_slice %281 {offsets = [2, 0], sizes = [1, 64], strides = [1, 1]} : vector<7x64xf32> to vector<1x64xf32>
    %c0_245 = arith.constant 0 : index
    %c1472 = arith.constant 1472 : index
    %287 = vector.load %arg15[%c0_245, %c1472] : memref<1x3136xf32, #tpu.memory_space<vmem>>, vector<1x64xf32>
    tpu.vector_store %arg15[%c0_245, %c1472], %286 {strides = array<i32>} : memref<1x3136xf32, #tpu.memory_space<vmem>>, vector<1x64xf32>,
    %288 = vector.extract_strided_slice %281 {offsets = [3, 0], sizes = [1, 64], strides = [1, 1]} : vector<7x64xf32> to vector<1x64xf32>
    %c0_246 = arith.constant 0 : index
    %c1536 = arith.constant 1536 : index
    %289 = vector.load %arg15[%c0_246, %c1536] : memref<1x3136xf32, #tpu.memory_space<vmem>>, vector<1x64xf32>
    tpu.vector_store %arg15[%c0_246, %c1536], %288 {strides = array<i32>} : memref<1x3136xf32, #tpu.memory_space<vmem>>, vector<1x64xf32>,
    %290 = vector.extract_strided_slice %281 {offsets = [4, 0], sizes = [1, 64], strides = [1, 1]} : vector<7x64xf32> to vector<1x64xf32>
    %c0_247 = arith.constant 0 : index
    %c1600 = arith.constant 1600 : index
    %291 = vector.load %arg15[%c0_247, %c1600] : memref<1x3136xf32, #tpu.memory_space<vmem>>, vector<1x64xf32>
    tpu.vector_store %arg15[%c0_247, %c1600], %290 {strides = array<i32>} : memref<1x3136xf32, #tpu.memory_space<vmem>>, vector<1x64xf32>,
    %292 = vector.extract_strided_slice %281 {offsets = [5, 0], sizes = [1, 64], strides = [1, 1]} : vector<7x64xf32> to vector<1x64xf32>
    %c0_248 = arith.constant 0 : index
    %c1664 = arith.constant 1664 : index
    %293 = vector.load %arg15[%c0_248, %c1664] : memref<1x3136xf32, #tpu.memory_space<vmem>>, vector<1x64xf32>
    tpu.vector_store %arg15[%c0_248, %c1664], %292 {strides = array<i32>} : memref<1x3136xf32, #tpu.memory_space<vmem>>, vector<1x64xf32>,
    %294 = vector.extract_strided_slice %281 {offsets = [6, 0], sizes = [1, 64], strides = [1, 1]} : vector<7x64xf32> to vector<1x64xf32>
    %c0_249 = arith.constant 0 : index
    %c1728 = arith.constant 1728 : index
    %295 = vector.load %arg15[%c0_249, %c1728] : memref<1x3136xf32, #tpu.memory_space<vmem>>, vector<1x64xf32>
    tpu.vector_store %arg15[%c0_249, %c1728], %294 {strides = array<i32>} : memref<1x3136xf32, #tpu.memory_space<vmem>>, vector<1x64xf32>,
    %c128_250 = arith.constant 128 : index
    %c0_251 = arith.constant 0 : index
    %296 = tpu.strided_load %arg14[%c128_250, %c0_251] {strides = array<i32: 2, 1>} : memref<224x64xf32, #tpu.memory_space<vmem>>, vector<7x64xf32>
    %c129_252 = arith.constant 129 : index
    %c0_253 = arith.constant 0 : index
    %297 = tpu.strided_load %arg14[%c129_252, %c0_253] {strides = array<i32: 2, 1>} : memref<224x64xf32, #tpu.memory_space<vmem>>, vector<7x64xf32>
    %c144 = arith.constant 144 : index
    %c0_254 = arith.constant 0 : index
    %298 = tpu.strided_load %arg14[%c144, %c0_254] {strides = array<i32: 2, 1>} : memref<224x64xf32, #tpu.memory_space<vmem>>, vector<7x64xf32>
    %c145_255 = arith.constant 145 : index
    %c0_256 = arith.constant 0 : index
    %299 = tpu.strided_load %arg14[%c145_255, %c0_256] {strides = array<i32: 2, 1>} : memref<224x64xf32, #tpu.memory_space<vmem>>, vector<7x64xf32>
    %300 = arith.maximumf %296, %297 : vector<7x64xf32>
    %301 = arith.maximumf %298, %299 : vector<7x64xf32>
    %302 = arith.maximumf %300, %301 : vector<7x64xf32>
    %303 = vector.extract_strided_slice %302 {offsets = [0, 0], sizes = [1, 64], strides = [1, 1]} : vector<7x64xf32> to vector<1x64xf32>
    %c0_257 = arith.constant 0 : index
    %c1792 = arith.constant 1792 : index
    %304 = vector.load %arg15[%c0_257, %c1792] : memref<1x3136xf32, #tpu.memory_space<vmem>>, vector<1x64xf32>
    tpu.vector_store %arg15[%c0_257, %c1792], %303 {strides = array<i32>} : memref<1x3136xf32, #tpu.memory_space<vmem>>, vector<1x64xf32>,
    %305 = vector.extract_strided_slice %302 {offsets = [1, 0], sizes = [1, 64], strides = [1, 1]} : vector<7x64xf32> to vector<1x64xf32>
    %c0_258 = arith.constant 0 : index
    %c1856 = arith.constant 1856 : index
    %306 = vector.load %arg15[%c0_258, %c1856] : memref<1x3136xf32, #tpu.memory_space<vmem>>, vector<1x64xf32>
    tpu.vector_store %arg15[%c0_258, %c1856], %305 {strides = array<i32>} : memref<1x3136xf32, #tpu.memory_space<vmem>>, vector<1x64xf32>,
    %307 = vector.extract_strided_slice %302 {offsets = [2, 0], sizes = [1, 64], strides = [1, 1]} : vector<7x64xf32> to vector<1x64xf32>
    %c0_259 = arith.constant 0 : index
    %c1920 = arith.constant 1920 : index
    %308 = vector.load %arg15[%c0_259, %c1920] : memref<1x3136xf32, #tpu.memory_space<vmem>>, vector<1x64xf32>
    tpu.vector_store %arg15[%c0_259, %c1920], %307 {strides = array<i32>} : memref<1x3136xf32, #tpu.memory_space<vmem>>, vector<1x64xf32>,
    %309 = vector.extract_strided_slice %302 {offsets = [3, 0], sizes = [1, 64], strides = [1, 1]} : vector<7x64xf32> to vector<1x64xf32>
    %c0_260 = arith.constant 0 : index
    %c1984 = arith.constant 1984 : index
    %310 = vector.load %arg15[%c0_260, %c1984] : memref<1x3136xf32, #tpu.memory_space<vmem>>, vector<1x64xf32>
    tpu.vector_store %arg15[%c0_260, %c1984], %309 {strides = array<i32>} : memref<1x3136xf32, #tpu.memory_space<vmem>>, vector<1x64xf32>,
    %311 = vector.extract_strided_slice %302 {offsets = [4, 0], sizes = [1, 64], strides = [1, 1]} : vector<7x64xf32> to vector<1x64xf32>
    %c0_261 = arith.constant 0 : index
    %c2048 = arith.constant 2048 : index
    %312 = vector.load %arg15[%c0_261, %c2048] : memref<1x3136xf32, #tpu.memory_space<vmem>>, vector<1x64xf32>
    tpu.vector_store %arg15[%c0_261, %c2048], %311 {strides = array<i32>} : memref<1x3136xf32, #tpu.memory_space<vmem>>, vector<1x64xf32>,
    %313 = vector.extract_strided_slice %302 {offsets = [5, 0], sizes = [1, 64], strides = [1, 1]} : vector<7x64xf32> to vector<1x64xf32>
    %c0_262 = arith.constant 0 : index
    %c2112 = arith.constant 2112 : index
    %314 = vector.load %arg15[%c0_262, %c2112] : memref<1x3136xf32, #tpu.memory_space<vmem>>, vector<1x64xf32>
    tpu.vector_store %arg15[%c0_262, %c2112], %313 {strides = array<i32>} : memref<1x3136xf32, #tpu.memory_space<vmem>>, vector<1x64xf32>,
    %315 = vector.extract_strided_slice %302 {offsets = [6, 0], sizes = [1, 64], strides = [1, 1]} : vector<7x64xf32> to vector<1x64xf32>
    %c0_263 = arith.constant 0 : index
    %c2176 = arith.constant 2176 : index
    %316 = vector.load %arg15[%c0_263, %c2176] : memref<1x3136xf32, #tpu.memory_space<vmem>>, vector<1x64xf32>
    tpu.vector_store %arg15[%c0_263, %c2176], %315 {strides = array<i32>} : memref<1x3136xf32, #tpu.memory_space<vmem>>, vector<1x64xf32>,
    %c160_264 = arith.constant 160 : index
    %c0_265 = arith.constant 0 : index
    %317 = tpu.strided_load %arg14[%c160_264, %c0_265] {strides = array<i32: 2, 1>} : memref<224x64xf32, #tpu.memory_space<vmem>>, vector<7x64xf32>
    %c161_266 = arith.constant 161 : index
    %c0_267 = arith.constant 0 : index
    %318 = tpu.strided_load %arg14[%c161_266, %c0_267] {strides = array<i32: 2, 1>} : memref<224x64xf32, #tpu.memory_space<vmem>>, vector<7x64xf32>
    %c176 = arith.constant 176 : index
    %c0_268 = arith.constant 0 : index
    %319 = tpu.strided_load %arg14[%c176, %c0_268] {strides = array<i32: 2, 1>} : memref<224x64xf32, #tpu.memory_space<vmem>>, vector<7x64xf32>
    %c177_269 = arith.constant 177 : index
    %c0_270 = arith.constant 0 : index
    %320 = tpu.strided_load %arg14[%c177_269, %c0_270] {strides = array<i32: 2, 1>} : memref<224x64xf32, #tpu.memory_space<vmem>>, vector<7x64xf32>
    %321 = arith.maximumf %317, %318 : vector<7x64xf32>
    %322 = arith.maximumf %319, %320 : vector<7x64xf32>
    %323 = arith.maximumf %321, %322 : vector<7x64xf32>
    %324 = vector.extract_strided_slice %323 {offsets = [0, 0], sizes = [1, 64], strides = [1, 1]} : vector<7x64xf32> to vector<1x64xf32>
    %c0_271 = arith.constant 0 : index
    %c2240 = arith.constant 2240 : index
    %325 = vector.load %arg15[%c0_271, %c2240] : memref<1x3136xf32, #tpu.memory_space<vmem>>, vector<1x64xf32>
    tpu.vector_store %arg15[%c0_271, %c2240], %324 {strides = array<i32>} : memref<1x3136xf32, #tpu.memory_space<vmem>>, vector<1x64xf32>,
    %326 = vector.extract_strided_slice %323 {offsets = [1, 0], sizes = [1, 64], strides = [1, 1]} : vector<7x64xf32> to vector<1x64xf32>
    %c0_272 = arith.constant 0 : index
    %c2304 = arith.constant 2304 : index
    %327 = vector.load %arg15[%c0_272, %c2304] : memref<1x3136xf32, #tpu.memory_space<vmem>>, vector<1x64xf32>
    tpu.vector_store %arg15[%c0_272, %c2304], %326 {strides = array<i32>} : memref<1x3136xf32, #tpu.memory_space<vmem>>, vector<1x64xf32>,
    %328 = vector.extract_strided_slice %323 {offsets = [2, 0], sizes = [1, 64], strides = [1, 1]} : vector<7x64xf32> to vector<1x64xf32>
    %c0_273 = arith.constant 0 : index
    %c2368 = arith.constant 2368 : index
    %329 = vector.load %arg15[%c0_273, %c2368] : memref<1x3136xf32, #tpu.memory_space<vmem>>, vector<1x64xf32>
    tpu.vector_store %arg15[%c0_273, %c2368], %328 {strides = array<i32>} : memref<1x3136xf32, #tpu.memory_space<vmem>>, vector<1x64xf32>,
    %330 = vector.extract_strided_slice %323 {offsets = [3, 0], sizes = [1, 64], strides = [1, 1]} : vector<7x64xf32> to vector<1x64xf32>
    %c0_274 = arith.constant 0 : index
    %c2432 = arith.constant 2432 : index
    %331 = vector.load %arg15[%c0_274, %c2432] : memref<1x3136xf32, #tpu.memory_space<vmem>>, vector<1x64xf32>
    tpu.vector_store %arg15[%c0_274, %c2432], %330 {strides = array<i32>} : memref<1x3136xf32, #tpu.memory_space<vmem>>, vector<1x64xf32>,
    %332 = vector.extract_strided_slice %323 {offsets = [4, 0], sizes = [1, 64], strides = [1, 1]} : vector<7x64xf32> to vector<1x64xf32>
    %c0_275 = arith.constant 0 : index
    %c2496 = arith.constant 2496 : index
    %333 = vector.load %arg15[%c0_275, %c2496] : memref<1x3136xf32, #tpu.memory_space<vmem>>, vector<1x64xf32>
    tpu.vector_store %arg15[%c0_275, %c2496], %332 {strides = array<i32>} : memref<1x3136xf32, #tpu.memory_space<vmem>>, vector<1x64xf32>,
    %334 = vector.extract_strided_slice %323 {offsets = [5, 0], sizes = [1, 64], strides = [1, 1]} : vector<7x64xf32> to vector<1x64xf32>
    %c0_276 = arith.constant 0 : index
    %c2560 = arith.constant 2560 : index
    %335 = vector.load %arg15[%c0_276, %c2560] : memref<1x3136xf32, #tpu.memory_space<vmem>>, vector<1x64xf32>
    tpu.vector_store %arg15[%c0_276, %c2560], %334 {strides = array<i32>} : memref<1x3136xf32, #tpu.memory_space<vmem>>, vector<1x64xf32>,
    %336 = vector.extract_strided_slice %323 {offsets = [6, 0], sizes = [1, 64], strides = [1, 1]} : vector<7x64xf32> to vector<1x64xf32>
    %c0_277 = arith.constant 0 : index
    %c2624 = arith.constant 2624 : index
    %337 = vector.load %arg15[%c0_277, %c2624] : memref<1x3136xf32, #tpu.memory_space<vmem>>, vector<1x64xf32>
    tpu.vector_store %arg15[%c0_277, %c2624], %336 {strides = array<i32>} : memref<1x3136xf32, #tpu.memory_space<vmem>>, vector<1x64xf32>,
    %c192_278 = arith.constant 192 : index
    %c0_279 = arith.constant 0 : index
    %338 = tpu.strided_load %arg14[%c192_278, %c0_279] {strides = array<i32: 2, 1>} : memref<224x64xf32, #tpu.memory_space<vmem>>, vector<7x64xf32>
    %c193_280 = arith.constant 193 : index
    %c0_281 = arith.constant 0 : index
    %339 = tpu.strided_load %arg14[%c193_280, %c0_281] {strides = array<i32: 2, 1>} : memref<224x64xf32, #tpu.memory_space<vmem>>, vector<7x64xf32>
    %c208 = arith.constant 208 : index
    %c0_282 = arith.constant 0 : index
    %340 = tpu.strided_load %arg14[%c208, %c0_282] {strides = array<i32: 2, 1>} : memref<224x64xf32, #tpu.memory_space<vmem>>, vector<7x64xf32>
    %c209_283 = arith.constant 209 : index
    %c0_284 = arith.constant 0 : index
    %341 = tpu.strided_load %arg14[%c209_283, %c0_284] {strides = array<i32: 2, 1>} : memref<224x64xf32, #tpu.memory_space<vmem>>, vector<7x64xf32>
    %342 = arith.maximumf %338, %339 : vector<7x64xf32>
    %343 = arith.maximumf %340, %341 : vector<7x64xf32>
    %344 = arith.maximumf %342, %343 : vector<7x64xf32>
    %345 = vector.extract_strided_slice %344 {offsets = [0, 0], sizes = [1, 64], strides = [1, 1]} : vector<7x64xf32> to vector<1x64xf32>
    %c0_285 = arith.constant 0 : index
    %c2688 = arith.constant 2688 : index
    %346 = vector.load %arg15[%c0_285, %c2688] : memref<1x3136xf32, #tpu.memory_space<vmem>>, vector<1x64xf32>
    tpu.vector_store %arg15[%c0_285, %c2688], %345 {strides = array<i32>} : memref<1x3136xf32, #tpu.memory_space<vmem>>, vector<1x64xf32>,
    %347 = vector.extract_strided_slice %344 {offsets = [1, 0], sizes = [1, 64], strides = [1, 1]} : vector<7x64xf32> to vector<1x64xf32>
    %c0_286 = arith.constant 0 : index
    %c2752 = arith.constant 2752 : index
    %348 = vector.load %arg15[%c0_286, %c2752] : memref<1x3136xf32, #tpu.memory_space<vmem>>, vector<1x64xf32>
    tpu.vector_store %arg15[%c0_286, %c2752], %347 {strides = array<i32>} : memref<1x3136xf32, #tpu.memory_space<vmem>>, vector<1x64xf32>,
    %349 = vector.extract_strided_slice %344 {offsets = [2, 0], sizes = [1, 64], strides = [1, 1]} : vector<7x64xf32> to vector<1x64xf32>
    %c0_287 = arith.constant 0 : index
    %c2816 = arith.constant 2816 : index
    %350 = vector.load %arg15[%c0_287, %c2816] : memref<1x3136xf32, #tpu.memory_space<vmem>>, vector<1x64xf32>
    tpu.vector_store %arg15[%c0_287, %c2816], %349 {strides = array<i32>} : memref<1x3136xf32, #tpu.memory_space<vmem>>, vector<1x64xf32>,
    %351 = vector.extract_strided_slice %344 {offsets = [3, 0], sizes = [1, 64], strides = [1, 1]} : vector<7x64xf32> to vector<1x64xf32>
    %c0_288 = arith.constant 0 : index
    %c2880 = arith.constant 2880 : index
    %352 = vector.load %arg15[%c0_288, %c2880] : memref<1x3136xf32, #tpu.memory_space<vmem>>, vector<1x64xf32>
    tpu.vector_store %arg15[%c0_288, %c2880], %351 {strides = array<i32>} : memref<1x3136xf32, #tpu.memory_space<vmem>>, vector<1x64xf32>,
    %353 = vector.extract_strided_slice %344 {offsets = [4, 0], sizes = [1, 64], strides = [1, 1]} : vector<7x64xf32> to vector<1x64xf32>
    %c0_289 = arith.constant 0 : index
    %c2944 = arith.constant 2944 : index
    %354 = vector.load %arg15[%c0_289, %c2944] : memref<1x3136xf32, #tpu.memory_space<vmem>>, vector<1x64xf32>
    tpu.vector_store %arg15[%c0_289, %c2944], %353 {strides = array<i32>} : memref<1x3136xf32, #tpu.memory_space<vmem>>, vector<1x64xf32>,
    %355 = vector.extract_strided_slice %344 {offsets = [5, 0], sizes = [1, 64], strides = [1, 1]} : vector<7x64xf32> to vector<1x64xf32>
    %c0_290 = arith.constant 0 : index
    %c3008 = arith.constant 3008 : index
    %356 = vector.load %arg15[%c0_290, %c3008] : memref<1x3136xf32, #tpu.memory_space<vmem>>, vector<1x64xf32>
    tpu.vector_store %arg15[%c0_290, %c3008], %355 {strides = array<i32>} : memref<1x3136xf32, #tpu.memory_space<vmem>>, vector<1x64xf32>,
    %357 = vector.extract_strided_slice %344 {offsets = [6, 0], sizes = [1, 64], strides = [1, 1]} : vector<7x64xf32> to vector<1x64xf32>
    %c0_291 = arith.constant 0 : index
    %c3072 = arith.constant 3072 : index
    %358 = vector.load %arg15[%c0_291, %c3072] : memref<1x3136xf32, #tpu.memory_space<vmem>>, vector<1x64xf32>
    tpu.vector_store %arg15[%c0_291, %c3072], %357 {strides = array<i32>} : memref<1x3136xf32, #tpu.memory_space<vmem>>, vector<1x64xf32>,
    %c0_292 = arith.constant 0 : index
    %c0_293 = arith.constant 0 : index
    %359 = vector.load %arg15[%c0_292, %c0_293] : memref<1x3136xf32, #tpu.memory_space<vmem>>, vector<1x3136xf32>
    %360 = arith.truncf %359 : vector<1x3136xf32> to vector<1x3136xbf16>
    %c0_294 = arith.constant 0 : index
    %c0_295 = arith.constant 0 : index
    %361 = vector.load %arg6[%c0_294, %c0_295] : memref<3136x128xbf16, #tpu.memory_space<vmem>>, vector<3136x128xbf16>
    %cst_296 = arith.constant dense<0.000000e+00> : vector<1x128xf32>
    %362 = tpu.matmul %360, %361, %cst_296 {dimension_numbers = #tpu.dot_dimension_numbers<[1], [0], [0], [1], [0, 0, 1, 1], [], []>} : vector<1x3136xbf16>, vector<3136x128xbf16>, vector<1x128xf32> -> vector<1x128xf32>
    %c0_297 = arith.constant 0 : index
    %c0_298 = arith.constant 0 : index
    %363 = vector.load %arg7[%c0_297, %c0_298] : memref<1x128xf32, #tpu.memory_space<vmem>>, vector<1x128xf32>
    %364 = arith.addf %362, %363 : vector<1x128xf32>
    %cst_299 = arith.constant 0.000000e+00 : f32
    %365 = vector.broadcast %cst_299 : f32 to vector<1x128xf32>
    %366 = arith.maximumf %364, %365 : vector<1x128xf32>
    %367 = arith.truncf %366 : vector<1x128xf32> to vector<1x128xbf16>
    %c0_300 = arith.constant 0 : index
    %c0_301 = arith.constant 0 : index
    %368 = vector.load %arg8[%c0_300, %c0_301] : memref<128x10xbf16, #tpu.memory_space<vmem>>, vector<128x10xbf16>
    %cst_302 = arith.constant dense<0.000000e+00> : vector<1x10xf32>
    %369 = tpu.matmul %367, %368, %cst_302 {dimension_numbers = #tpu.dot_dimension_numbers<[1], [0], [0], [1], [0, 0, 1, 1], [], []>} : vector<1x128xbf16>, vector<128x10xbf16>, vector<1x10xf32> -> vector<1x10xf32>
    %c0_303 = arith.constant 0 : index
    %c0_304 = arith.constant 0 : index
    %370 = vector.load %arg9[%c0_303, %c0_304] : memref<1x10xf32, #tpu.memory_space<vmem>>, vector<1x10xf32>
    %371 = arith.addf %369, %370 : vector<1x10xf32>
    %c0_305 = arith.constant 0 : index
    %c0_306 = arith.constant 0 : index
    %c0_307 = arith.constant 0 : index
    %372 = vector.load %arg10[%c0_305, %c0_306, %c0_307] : memref<1x1x10xf32, #tpu.memory_space<vmem>>, vector<1x1x10xf32>
    %373 = vector.shape_cast %372 : vector<1x1x10xf32> to vector<1x10xf32>
    %374 = vector.shape_cast %371 : vector<1x10xf32> to vector<1x1x10xf32>
    tpu.vector_store %arg10[%c0_305, %c0_306, %c0_307], %374 {strides = array<i32>} : memref<1x1x10xf32, #tpu.memory_space<vmem>>, vector<1x1x10xf32>,
    return
  }
  func.func @transform_0(%arg0: i32) -> (i32, i32, i32) {
    %c0_i32 = arith.constant 0 : i32
    %c0_i32_0 = arith.constant 0 : i32
    %c0_i32_1 = arith.constant 0 : i32
    return %arg0, %c0_i32, %c0_i32_0 : i32, i32, i32
  }
  func.func @transform_1(%arg0: i32) -> (i32, i32) {
    %c0_i32 = arith.constant 0 : i32
    %c0_i32_0 = arith.constant 0 : i32
    %c0_i32_1 = arith.constant 0 : i32
    return %c0_i32, %c0_i32_0 : i32, i32
  }
  func.func @transform_2(%arg0: i32) -> (i32, i32) {
    %c0_i32 = arith.constant 0 : i32
    %c0_i32_0 = arith.constant 0 : i32
    %c0_i32_1 = arith.constant 0 : i32
    return %c0_i32, %c0_i32_0 : i32, i32
  }
  func.func @transform_3(%arg0: i32) -> (i32, i32) {
    %c0_i32 = arith.constant 0 : i32
    %c0_i32_0 = arith.constant 0 : i32
    %c0_i32_1 = arith.constant 0 : i32
    return %c0_i32, %c0_i32_0 : i32, i32
  }
  func.func @transform_4(%arg0: i32) -> (i32, i32) {
    %c0_i32 = arith.constant 0 : i32
    %c0_i32_0 = arith.constant 0 : i32
    %c0_i32_1 = arith.constant 0 : i32
    return %c0_i32, %c0_i32_0 : i32, i32
  }
  func.func @transform_5(%arg0: i32) -> (i32, i32) {
    %c0_i32 = arith.constant 0 : i32
    %c0_i32_0 = arith.constant 0 : i32
    %c0_i32_1 = arith.constant 0 : i32
    return %c0_i32, %c0_i32_0 : i32, i32
  }
  func.func @transform_6(%arg0: i32) -> (i32, i32) {
    %c0_i32 = arith.constant 0 : i32
    %c0_i32_0 = arith.constant 0 : i32
    %c0_i32_1 = arith.constant 0 : i32
    return %c0_i32, %c0_i32_0 : i32, i32
  }
  func.func @transform_7(%arg0: i32) -> (i32, i32) {
    %c0_i32 = arith.constant 0 : i32
    %c0_i32_0 = arith.constant 0 : i32
    %c0_i32_1 = arith.constant 0 : i32
    return %c0_i32, %c0_i32_0 : i32, i32
  }
  func.func @transform_8(%arg0: i32) -> (i32, i32) {
    %c0_i32 = arith.constant 0 : i32
    %c0_i32_0 = arith.constant 0 : i32
    %c0_i32_1 = arith.constant 0 : i32
    return %c0_i32, %c0_i32_0 : i32, i32
  }
  func.func @transform_9(%arg0: i32) -> (i32, i32, i32) {
    %c0_i32 = arith.constant 0 : i32
    %c0_i32_0 = arith.constant 0 : i32
    %c0_i32_1 = arith.constant 0 : i32
    return %arg0, %c0_i32, %c0_i32_0 : i32, i32, i32
  }
}

</mosaic_0001>

<llo_original>
// kernel: cnn_forward.1
$region0: #{cnn_forward.1}
  #allocation0 [shape = 'u32[]', space=smem, size = 0x4, offset = 0x4, fixed_abs, tag = 'smem constant byte address 0x4 - core index']
  #allocation1 [shape = 'u32[72,128]{1,0:T(1,128)}', space=vmem, size = 0x9000, scoped, tag = 'internal scratch']
  #allocation2 [shape = 'f32[784,32]{1,0:T(8,128)}', space=vmem, size = 0x62000, scoped, tag = 'scratch operand']
  #allocation3 [shape = 'f32[264,32]{1,0:T(8,128)}', space=vmem, size = 0x21000, scoped, tag = 'scratch operand']
  #allocation4 [shape = 'f32[224,288]{1,0:T(8,128)}', space=vmem, size = 0x54000, scoped, tag = 'scratch operand']
  #allocation5 [shape = 'f32[224,64]{1,0:T(8,128)}', space=vmem, size = 0x1c000, scoped, tag = 'scratch operand']
  #allocation6 [shape = 'f32[1,3136]{1,0:T(1,128)}', space=vmem, size = 0x3200, scoped, tag = 'scratch operand']
  %s0 = inlined_call_operand.vmem [shape: bf16[2,784,16], index: 0, kind: input, shape index: {}]
  %s1 = inlined_call_operand.vmem [shape: bf16[16,32], index: 1, kind: input, shape index: {}]
  %s2 = inlined_call_operand.vmem [shape: f32[1,32], index: 2, kind: input, shape index: {}]
  %s3 = inlined_call_operand.vmem [shape: bf16[288,64], index: 3, kind: input, shape index: {}]
  %s4 = inlined_call_operand.vmem [shape: f32[1,64], index: 4, kind: input, shape index: {}]
  %s5 = inlined_call_operand.vmem [shape: bf16[3136,128], index: 5, kind: input, shape index: {}]
  %s6 = inlined_call_operand.vmem [shape: f32[1,128], index: 6, kind: input, shape index: {}]
  %s7 = inlined_call_operand.vmem [shape: bf16[128,10], index: 7, kind: input, shape index: {}]
  %s8 = inlined_call_operand.vmem [shape: f32[1,10], index: 8, kind: input, shape index: {}]
  %s9 = inlined_call_operand.hbm [shape: f32[2,1,10], index: 9, kind: output, shape index: {}]
  %s10 = sld [smem:[#allocation0]]
  $region69: #{cnn_forward.1} parent=0
    _
  %s12 = ssub.s32 1, %s10
  %s13 = scalar_select 0, %s12, %s10
  $region1: #{cnn_forward.1} parent=0
    #allocation7 [shape = 'u8[1024]{0}', space=vmem, size = 0x400, scoped, tag = 'output window, operand 0']
    #allocation8 [shape = 's32[2]{0}', space=sflag, size = 0x8, scoped, tag = 'scoped memory for cnn_forward.1']
    %14 = vsyncpa [#allocation8], 0
    %s15 = scalar_lea.sflag [#allocation8], 1
    %16 = vsyncpa %s15, 0
    loop: start=0, step=1, limit=4
    $region2: #{cnn_forward.1} parent=1 // loop_pre_header
      _
    $region3: #{cnn_forward.1} parent=1 // loop_header
      %s18 = sphi 0, %s22
      %p19 = scmp.ge.s32.totalorder %s18, 4
      %s28 = sphi 0, %s30
      %s31 = sphi 0, %s28
      %s32 = sphi 0, %s31
      %s48 = sphi 0, %s32
      %s52 = sphi 0, %s52
      %s54 = sphi 0, %s52
      %s55 = sphi 0, %s54
      %s69 = sphi 0, %s55
      %s73 = sphi 0, %s73
      %s75 = sphi 0, %s73
      %s76 = sphi 0, %s75
      %s90 = sphi 0, %s76
      %s94 = sphi 0, %s94
      %s96 = sphi 0, %s94
      %s97 = sphi 0, %s96
      %s111 = sphi 0, %s97
      %s115 = sphi 0, %s115
      %s117 = sphi 0, %s115
      %s118 = sphi 0, %s117
      %s132 = sphi 0, %s118
      %s136 = sphi 0, %s136
      %s138 = sphi 0, %s136
      %s139 = sphi 0, %s138
      %s153 = sphi 0, %s139
      %s157 = sphi 0, %s157
      %s159 = sphi 0, %s157
      %s160 = sphi 0, %s159
      %s174 = sphi 0, %s160
      %s178 = sphi 0, %s178
      %s180 = sphi 0, %s178
      %s181 = sphi 0, %s180
      %s195 = sphi 0, %s181
      %s199 = sphi 0, %s199
      %s201 = sphi 0, %s199
      %s202 = sphi 0, %s201
      %s216 = sphi 0, %s202
      %s222 = sphi 0, %s224
      %s225 = sphi 0, %s222
      %s226 = sphi 0, %s225
      %s242 = sphi 0, %s226
    $region4: #{cnn_forward.1} parent=1 // loop_header_branch
      %21 = sbr.rel (%p19) target = $region8
    $region5: #{cnn_forward.1} parent=1 // loop_body
      %s23 = ssub.s32 %s18, 1
      %s24 = ssub.s32 %s18, 2
      %s25 = sadd.s32 %s18, 1
      %s26 = ssub.s32 %s18, %s25
      %p27 = scmp.eq.s32.totalorder %s26, 0
      %s29 = sadd.s32 %s28, 1
      %s30 = scalar_select %p27, %s28, %s29
      %p33 = pneg %p27
      %p34 = scmp.eq.s32.totalorder %s18, 1
      %p35 = por %p33, %p34
      %p36 = scmp.ne.s32.totalorder %s28, %s31
      %p37 = scmp.eq.s32.totalorder %s18, 0
      %p38 = por %p36, %p37
      %p39 = scmp.ne.s32.totalorder %s28, %s31
      %p40 = scmp.eq.s32.totalorder %s23, 1
      %p41 = por %p39, %p40
      %p42 = scmp.ne.s32.totalorder %s31, %s32
      %p43 = scmp.eq.s32.totalorder %s23, 0
      %p44 = por %p42, %p43
      %p45 = scmp.ne.s32.totalorder %s31, %s32
      %p46 = scmp.eq.s32.totalorder %s24, 1
      %p47 = por %p45, %p46
      %p49 = scmp.ne.s32.totalorder %s32, %s48
      %p50 = scmp.eq.s32.totalorder %s24, 0
      %p51 = por %p49, %p50
      %s53 = sadd.s32 %s52, 1
      %p56 = scmp.eq.s32.totalorder %s18, 1
      %p57 = scmp.ne.s32.totalorder %s52, %s54
      %p58 = scmp.eq.s32.totalorder %s18, 0
      %p59 = por %p57, %p58
      %p60 = scmp.ne.s32.totalorder %s52, %s54
      %p61 = scmp.eq.s32.totalorder %s23, 1
      %p62 = por %p60, %p61
      %p63 = scmp.ne.s32.totalorder %s54, %s55
      %p64 = scmp.eq.s32.totalorder %s23, 0
      %p65 = por %p63, %p64
      %p66 = scmp.ne.s32.totalorder %s54, %s55
      %p67 = scmp.eq.s32.totalorder %s24, 1
      %p68 = por %p66, %p67
      %p70 = scmp.ne.s32.totalorder %s55, %s69
      %p71 = scmp.eq.s32.totalorder %s24, 0
      %p72 = por %p70, %p71
      %s74 = sadd.s32 %s73, 1
      %p77 = scmp.eq.s32.totalorder %s18, 1
      %p78 = scmp.ne.s32.totalorder %s73, %s75
      %p79 = scmp.eq.s32.totalorder %s18, 0
      %p80 = por %p78, %p79
      %p81 = scmp.ne.s32.totalorder %s73, %s75
      %p82 = scmp.eq.s32.totalorder %s23, 1
      %p83 = por %p81, %p82
      %p84 = scmp.ne.s32.totalorder %s75, %s76
      %p85 = scmp.eq.s32.totalorder %s23, 0
      %p86 = por %p84, %p85
      %p87 = scmp.ne.s32.totalorder %s75, %s76
      %p88 = scmp.eq.s32.totalorder %s24, 1
      %p89 = por %p87, %p88
      %p91 = scmp.ne.s32.totalorder %s76, %s90
      %p92 = scmp.eq.s32.totalorder %s24, 0
      %p93 = por %p91, %p92
      %s95 = sadd.s32 %s94, 1
      %p98 = scmp.eq.s32.totalorder %s18, 1
      %p99 = scmp.ne.s32.totalorder %s94, %s96
      %p100 = scmp.eq.s32.totalorder %s18, 0
      %p101 = por %p99, %p100
      %p102 = scmp.ne.s32.totalorder %s94, %s96
      %p103 = scmp.eq.s32.totalorder %s23, 1
      %p104 = por %p102, %p103
      %p105 = scmp.ne.s32.totalorder %s96, %s97
      %p106 = scmp.eq.s32.totalorder %s23, 0
      %p107 = por %p105, %p106
      %p108 = scmp.ne.s32.totalorder %s96, %s97
      %p109 = scmp.eq.s32.totalorder %s24, 1
      %p110 = por %p108, %p109
      %p112 = scmp.ne.s32.totalorder %s97, %s111
      %p113 = scmp.eq.s32.totalorder %s24, 0
      %p114 = por %p112, %p113
      %s116 = sadd.s32 %s115, 1
      %p119 = scmp.eq.s32.totalorder %s18, 1
      %p120 = scmp.ne.s32.totalorder %s115, %s117
      %p121 = scmp.eq.s32.totalorder %s18, 0
      %p122 = por %p120, %p121
      %p123 = scmp.ne.s32.totalorder %s115, %s117
      %p124 = scmp.eq.s32.totalorder %s23, 1
      %p125 = por %p123, %p124
      %p126 = scmp.ne.s32.totalorder %s117, %s118
      %p127 = scmp.eq.s32.totalorder %s23, 0
      %p128 = por %p126, %p127
      %p129 = scmp.ne.s32.totalorder %s117, %s118
      %p130 = scmp.eq.s32.totalorder %s24, 1
      %p131 = por %p129, %p130
      %p133 = scmp.ne.s32.totalorder %s118, %s132
      %p134 = scmp.eq.s32.totalorder %s24, 0
      %p135 = por %p133, %p134
      %s137 = sadd.s32 %s136, 1
      %p140 = scmp.eq.s32.totalorder %s18, 1
      %p141 = scmp.ne.s32.totalorder %s136, %s138
      %p142 = scmp.eq.s32.totalorder %s18, 0
      %p143 = por %p141, %p142
      %p144 = scmp.ne.s32.totalorder %s136, %s138
      %p145 = scmp.eq.s32.totalorder %s23, 1
      %p146 = por %p144, %p145
      %p147 = scmp.ne.s32.totalorder %s138, %s139
      %p148 = scmp.eq.s32.totalorder %s23, 0
      %p149 = por %p147, %p148
      %p150 = scmp.ne.s32.totalorder %s138, %s139
      %p151 = scmp.eq.s32.totalorder %s24, 1
      %p152 = por %p150, %p151
      %p154 = scmp.ne.s32.totalorder %s139, %s153
      %p155 = scmp.eq.s32.totalorder %s24, 0
      %p156 = por %p154, %p155
      %s158 = sadd.s32 %s157, 1
      %p161 = scmp.eq.s32.totalorder %s18, 1
      %p162 = scmp.ne.s32.totalorder %s157, %s159
      %p163 = scmp.eq.s32.totalorder %s18, 0
      %p164 = por %p162, %p163
      %p165 = scmp.ne.s32.totalorder %s157, %s159
      %p166 = scmp.eq.s32.totalorder %s23, 1
      %p167 = por %p165, %p166
      %p168 = scmp.ne.s32.totalorder %s159, %s160
      %p169 = scmp.eq.s32.totalorder %s23, 0
      %p170 = por %p168, %p169
      %p171 = scmp.ne.s32.totalorder %s159, %s160
      %p172 = scmp.eq.s32.totalorder %s24, 1
      %p173 = por %p171, %p172
      %p175 = scmp.ne.s32.totalorder %s160, %s174
      %p176 = scmp.eq.s32.totalorder %s24, 0
      %p177 = por %p175, %p176
      %s179 = sadd.s32 %s178, 1
      %p182 = scmp.eq.s32.totalorder %s18, 1
      %p183 = scmp.ne.s32.totalorder %s178, %s180
      %p184 = scmp.eq.s32.totalorder %s18, 0
      %p185 = por %p183, %p184
      %p186 = scmp.ne.s32.totalorder %s178, %s180
      %p187 = scmp.eq.s32.totalorder %s23, 1
      %p188 = por %p186, %p187
      %p189 = scmp.ne.s32.totalorder %s180, %s181
      %p190 = scmp.eq.s32.totalorder %s23, 0
      %p191 = por %p189, %p190
      %p192 = scmp.ne.s32.totalorder %s180, %s181
      %p193 = scmp.eq.s32.totalorder %s24, 1
      %p194 = por %p192, %p193
      %p196 = scmp.ne.s32.totalorder %s181, %s195
      %p197 = scmp.eq.s32.totalorder %s24, 0
      %p198 = por %p196, %p197
      %s200 = sadd.s32 %s199, 1
      %p203 = scmp.eq.s32.totalorder %s18, 1
      %p204 = scmp.ne.s32.totalorder %s199, %s201
      %p205 = scmp.eq.s32.totalorder %s18, 0
      %p206 = por %p204, %p205
      %p207 = scmp.ne.s32.totalorder %s199, %s201
      %p208 = scmp.eq.s32.totalorder %s23, 1
      %p209 = por %p207, %p208
      %p210 = scmp.ne.s32.totalorder %s201, %s202
      %p211 = scmp.eq.s32.totalorder %s23, 0
      %p212 = por %p210, %p211
      %p213 = scmp.ne.s32.totalorder %s201, %s202
      %p214 = scmp.eq.s32.totalorder %s24, 1
      %p215 = por %p213, %p214
      %p217 = scmp.ne.s32.totalorder %s202, %s216
      %p218 = scmp.eq.s32.totalorder %s24, 0
      %p219 = por %p217, %p218
      %s220 = ssub.s32 %s18, %s25
      %p221 = scmp.eq.s32.totalorder %s220, 0
      %s223 = sadd.s32 %s222, 1
      %s224 = scalar_select %p221, %s222, %s223
      %p227 = pneg %p221
      %p228 = scmp.eq.s32.totalorder %s18, 1
      %p229 = por %p227, %p228
      %p230 = scmp.ne.s32.totalorder %s222, %s225
      %p231 = scmp.eq.s32.totalorder %s18, 0
      %p232 = por %p230, %p231
      %p233 = scmp.ne.s32.totalorder %s222, %s225
      %p234 = scmp.eq.s32.totalorder %s23, 1
      %p235 = por %p233, %p234
      %p236 = scmp.ne.s32.totalorder %s225, %s226
      %p237 = scmp.eq.s32.totalorder %s23, 0
      %p238 = por %p236, %p237
      %p239 = scmp.ne.s32.totalorder %s225, %s226
      %p240 = scmp.eq.s32.totalorder %s24, 1
      %p241 = por %p239, %p240
      %p243 = scmp.ne.s32.totalorder %s226, %s242
      %p244 = scmp.eq.s32.totalorder %s24, 0
      %p245 = por %p243, %p244
      %p246 = scmp.le.s32.totalorder 1, %s18
      %p247 = scmp.lt.s32.totalorder %s18, 3
      %p248 = pnand %p246, %p247
      %p249 = pneg %p248
      // Predicated region
      $region9: #{cnn_forward.1} parent=5 // pred_check
        _
      $region10: #{cnn_forward.1} parent=5 // pred_check_branch
        %251 = sbr.rel (%p248) target = $region12
      $region11: #{cnn_forward.1} parent=5 // pred_region
        %s252 = ssub.s32 %s18, 1
        // Predicated region
        $region13: #{cnn_forward.1} parent=11 // pred_check
          %p253 = pneg %p65
        $region14: #{cnn_forward.1} parent=11 // pred_check_branch
          %255 = sbr.rel (%p253) target = $region16
        $region15: #{cnn_forward.1} parent=11 // pred_region
          _
        $region16: #{cnn_forward.1} parent=11 // pred_fallthru
          _
        // Predicated region
        $region17: #{cnn_forward.1} parent=11 // pred_check
          %p256 = pneg %p86
        $region18: #{cnn_forward.1} parent=11 // pred_check_branch
          %258 = sbr.rel (%p256) target = $region20
        $region19: #{cnn_forward.1} parent=11 // pred_region
          _
        $region20: #{cnn_forward.1} parent=11 // pred_fallthru
          _
        // Predicated region
        $region21: #{cnn_forward.1} parent=11 // pred_check
          %p259 = pneg %p107
        $region22: #{cnn_forward.1} parent=11 // pred_check_branch
          %261 = sbr.rel (%p259) target = $region24
        $region23: #{cnn_forward.1} parent=11 // pred_region
          _
        $region24: #{cnn_forward.1} parent=11 // pred_fallthru
          _
        // Predicated region
        $region25: #{cnn_forward.1} parent=11 // pred_check
          %p262 = pneg %p128
        $region26: #{cnn_forward.1} parent=11 // pred_check_branch
          %264 = sbr.rel (%p262) target = $region28
        $region27: #{cnn_forward.1} parent=11 // pred_region
          _
        $region28: #{cnn_forward.1} parent=11 // pred_fallthru
          _
        // Predicated region
        $region29: #{cnn_forward.1} parent=11 // pred_check
          %p265 = pneg %p149
        $region30: #{cnn_forward.1} parent=11 // pred_check_branch
          %267 = sbr.rel (%p265) target = $region32
        $region31: #{cnn_forward.1} parent=11 // pred_region
          _
        $region32: #{cnn_forward.1} parent=11 // pred_fallthru
          _
        // Predicated region
        $region33: #{cnn_forward.1} parent=11 // pred_check
          %p268 = pneg %p170
        $region34: #{cnn_forward.1} parent=11 // pred_check_branch
          %270 = sbr.rel (%p268) target = $region36
        $region35: #{cnn_forward.1} parent=11 // pred_region
          _
        $region36: #{cnn_forward.1} parent=11 // pred_fallthru
          _
        // Predicated region
        $region37: #{cnn_forward.1} parent=11 // pred_check
          %p271 = pneg %p191
        $region38: #{cnn_forward.1} parent=11 // pred_check_branch
          %273 = sbr.rel (%p271) target = $region40
        $region39: #{cnn_forward.1} parent=11 // pred_region
          _
        $region40: #{cnn_forward.1} parent=11 // pred_fallthru
          _
        // Predicated region
        $region41: #{cnn_forward.1} parent=11 // pred_check
          %p274 = pneg %p212
        $region42: #{cnn_forward.1} parent=11 // pred_check_branch
          %276 = sbr.rel (%p274) target = $region44
        $region43: #{cnn_forward.1} parent=11 // pred_region
          _
        $region44: #{cnn_forward.1} parent=11 // pred_fallthru
          _
      $region12: #{cnn_forward.1} parent=5 // pred_fallthru
        _
      %p277 = scmp.lt.s32.totalorder %s18, 2
      // Predicated region
      $region45: #{cnn_forward.1} parent=5 // pred_check
        %p278 = pneg %p277
      $region46: #{cnn_forward.1} parent=5 // pred_check_branch
        %280 = sbr.rel (%p278) target = $region48
      $region47: #{cnn_forward.1} parent=5 // pred_region
        // Predicated region
        $region49: #{cnn_forward.1} parent=47 // pred_check
          %p281 = pneg %p38
        $region50: #{cnn_forward.1} parent=47 // pred_check_branch
          %283 = sbr.rel (%p281) target = $region52
        $region51: #{cnn_forward.1} parent=47 // pred_region
          %p284 = scmp.lt.s32.totalorder %s18, 1
          %s285 = scalar_select %p284, %s18, 1
          %s286 = smul.addr %s285, 98
          %s287 = smul.addr %s286, 4
          %s288 = scalar_lea.vmem %s0, %s287
        $region52: #{cnn_forward.1} parent=47 // pred_fallthru
          _
      $region48: #{cnn_forward.1} parent=5 // pred_fallthru
        _
      %p289 = scmp.le.s32.totalorder 1, %s18
      %p290 = scmp.lt.s32.totalorder %s18, 3
      %p291 = pnand %p289, %p290
      %p292 = pneg %p291
      // Predicated region
      $region53: #{cnn_forward.1} parent=5 // pred_check
        _
      $region54: #{cnn_forward.1} parent=5 // pred_check_branch
        %294 = sbr.rel (%p291) target = $region56
      $region55: #{cnn_forward.1} parent=5 // pred_region
        %s295 = ssub.s32 %s18, 1
        %p296 = scmp.lt.s32.totalorder %s23, 1
        %s297 = scalar_select %p296, %s23, 1
        %s298 = smul.addr %s297, 98
        %s299 = smul.addr %s298, 4
        %s300 = scalar_lea.vmem %s0, %s299
        %p301 = pneg %p44
        %p302 = pneg %p41
        %p303 = pneg %p65
        %p304 = pneg %p62
        %p305 = pneg %p86
        %p306 = pneg %p83
        %p307 = pneg %p107
        %p308 = pneg %p104
        %p309 = pneg %p128
        %p310 = pneg %p125
        %p311 = pneg %p149
        %p312 = pneg %p146
        %p313 = pneg %p170
        %p314 = pneg %p167
        %p315 = pneg %p191
        %p316 = pneg %p188
        %p317 = pneg %p212
        %p318 = pneg %p209
        %p319 = pneg %p238
        %p320 = pneg %p235
        %s321 = sand.u32 %s225, 1
        %s322 = scalar_lea.sflag [#allocation8], %s321
        %s323 = sand.u32 %s225, 1
        %s324 = scalar_lea.vmem [#allocation7], %s323
        %p325 = scmp.lt.s32.totalorder %s23, 1
        %s326 = scalar_select %p325, %s23, 1
        %s327 = smul.addr %s326, 98
        %s328 = smul.addr %s327, 4
        %s329 = scalar_lea.vmem %s0, %s328
        %v331 = vld [vmem:[%s329] sm:$0xf]
        %v332 = vld [vmem:[%s329 + $0x4] sm:$0xf]
        %v333 = vld [vmem:[%s329 + $0x8] sm:$0xf]
        %v334 = vld [vmem:[%s329 + $0xc] sm:$0xf]
        %v335 = vld [vmem:[%s329 + $0x10] sm:$0xf]
        %v336 = vld [vmem:[%s329 + $0x14] sm:$0xf]
        %v337 = vld [vmem:[%s329 + $0x18] sm:$0xf]
        %v338 = vld [vmem:[%s329 + $0x1c] sm:$0xf]
        %v339 = vld [vmem:[%s329 + $0x20] sm:$0xf]
        %v340 = vld [vmem:[%s329 + $0x24] sm:$0xf]
        %v341 = vld [vmem:[%s329 + $0x28] sm:$0xf]
        %v342 = vld [vmem:[%s329 + $0x2c] sm:$0xf]
        %v343 = vld [vmem:[%s329 + $0x30] sm:$0xf]
        %v344 = vld [vmem:[%s329 + $0x34] sm:$0xf]
        %v345 = vld [vmem:[%s1] sm:$0xf]
        %v346 = vld [vmem:[%s1 + $0x4] sm:$0xf]
        %v347 = vld [vmem:[%s2] sm:$0x1]
        %v349 = vperm.slane %v347, 0
        %v365 = vunpack.c.l.b16 %v331
        %v366 = vunpack.c.l.b16 %v332
        %v367 = vunpack.c.l.b16 %v333
        %v368 = vunpack.c.l.b16 %v334
        %v369 = vunpack.c.l.b16 %v335
        %v370 = vunpack.c.l.b16 %v336
        %v371 = vunpack.c.l.b16 %v337
        %v372 = vunpack.c.l.b16 %v338
        %v373 = vunpack.c.l.b16 %v339
        %v374 = vunpack.c.l.b16 %v340
        %v375 = vunpack.c.l.b16 %v341
        %v376 = vunpack.c.l.b16 %v342
        %v377 = vunpack.c.l.b16 %v343
        %v378 = vunpack.c.l.b16 %v344
        %v379 = vpack.c.b16 %v366, %v365
        %v380 = vpack.c.b16 %v368, %v367
        %v381 = vpack.c.b16 %v370, %v369
        %v382 = vpack.c.b16 %v372, %v371
        %v383 = vpack.c.b16 %v374, %v373
        %v384 = vpack.c.b16 %v376, %v375
        %v385 = vpack.c.b16 %v378, %v377
        %v388 = vunpack.c.l.b16 %v345
        %v389 = vunpack.c.l.b16 %v346
        %v390 = vpack.c.b16 %v389, %v388
        %vm392 = vcmask 130048
        %v394 = vsel %vm392, %v379, 0
        %v397 = vsel %vm392, %v380, 0
        %v400 = vsel %vm392, %v381, 0
        %v403 = vsel %vm392, %v382, 0
        %v406 = vsel %vm392, %v383, 0
        %v409 = vsel %vm392, %v384, 0
        %v412 = vsel %vm392, %v385, 0
        %414 = vmatpush.bf16.msra.mxu0 0
        %415 = vmatpush.bf16.msra.mxu0 0
        %416 = vmatpush.bf16.msra.mxu0 0
        %417 = vmatpush.bf16.msra.mxu0 0
        %418 = vmatpush.bf16.msra.mxu0 0
        %419 = vmatpush.bf16.msra.mxu0 0
        %420 = vmatpush.bf16.msra.mxu0 0
        %421 = vmatpush.bf16.msra.mxu0 %v390
        %422 = vmatmul.bf16.gmra.mxu0 %v394
        %v423 = vpop.f32.mrf.mxu0
        %v424 = vadd.f32 %v349, %v423
        %v425 = vpop.f32.mrf.mxu0
        %v426 = vadd.f32 %v349, %v425
        %427 = vmatmul.bf16.gmra.mxu0 %v397
        %v428 = vpop.f32.mrf.mxu0
        %v429 = vadd.f32 %v349, %v428
        %v430 = vpop.f32.mrf.mxu0
        %v431 = vadd.f32 %v349, %v430
        %432 = vmatmul.bf16.gmra.mxu0 %v400
        %v433 = vpop.f32.mrf.mxu0
        %v434 = vadd.f32 %v349, %v433
        %v435 = vpop.f32.mrf.mxu0
        %v436 = vadd.f32 %v349, %v435
        %437 = vmatmul.bf16.gmra.mxu0 %v403
        %v438 = vpop.f32.mrf.mxu0
        %v439 = vadd.f32 %v349, %v438
        %v440 = vpop.f32.mrf.mxu0
        %v441 = vadd.f32 %v349, %v440
        %442 = vmatmul.bf16.gmra.mxu0 %v406
        %v443 = vpop.f32.mrf.mxu0
        %v444 = vadd.f32 %v349, %v443
        %v445 = vpop.f32.mrf.mxu0
        %v446 = vadd.f32 %v349, %v445
        %447 = vmatmul.bf16.gmra.mxu0 %v409
        %v448 = vpop.f32.mrf.mxu0
        %v449 = vadd.f32 %v349, %v448
        %v450 = vpop.f32.mrf.mxu0
        %v451 = vadd.f32 %v349, %v450
        %452 = vmatmul.bf16.gmra.mxu0 %v412
        %v453 = vpop.f32.mrf.mxu0
        %v454 = vadd.f32 %v349, %v453
        %v455 = vpop.f32.mrf.mxu0
        %v456 = vadd.f32 %v349, %v455
        %457 = vdwg.mxu0
        %v458 = vmax.f32 %v424, 0.0
        %v459 = vmax.f32 %v426, 0.0
        %v460 = vmax.f32 %v429, 0.0
        %v461 = vmax.f32 %v431, 0.0
        %v462 = vmax.f32 %v434, 0.0
        %v463 = vmax.f32 %v436, 0.0
        %v464 = vmax.f32 %v439, 0.0
        %v465 = vmax.f32 %v441, 0.0
        %v466 = vmax.f32 %v444, 0.0
        %v467 = vmax.f32 %v446, 0.0
        %v468 = vmax.f32 %v449, 0.0
        %v469 = vmax.f32 %v451, 0.0
        %v470 = vmax.f32 %v454, 0.0
        %v471 = vmax.f32 %v456, 0.0
        %vm472 = vcmask 261120
        %473 = vst.msk [vmem:[#allocation2] sm:$0xff] %vm472, %v458
        %474 = vst.msk [vmem:[#allocation2 + $0x8] sm:$0xff] %vm472, %v459
        %475 = vst.msk [vmem:[#allocation2 + $0x10] sm:$0xff] %vm472, %v460
        %476 = vst.msk [vmem:[#allocation2 + $0x18] sm:$0xff] %vm472, %v461
        %477 = vst.msk [vmem:[#allocation2 + $0x20] sm:$0xff] %vm472, %v462
        %478 = vst.msk [vmem:[#allocation2 + $0x28] sm:$0xff] %vm472, %v463
        %479 = vst.msk [vmem:[#allocation2 + $0x30] sm:$0xff] %vm472, %v464
        %480 = vst.msk [vmem:[#allocation2 + $0x38] sm:$0xff] %vm472, %v465
        %481 = vst.msk [vmem:[#allocation2 + $0x40] sm:$0xff] %vm472, %v466
        %482 = vst.msk [vmem:[#allocation2 + $0x48] sm:$0xff] %vm472, %v467
        %483 = vst.msk [vmem:[#allocation2 + $0x50] sm:$0xff] %vm472, %v468
        %484 = vst.msk [vmem:[#allocation2 + $0x58] sm:$0xff] %vm472, %v469
        %485 = vst.msk [vmem:[#allocation2 + $0x60] sm:$0xff] %vm472, %v470
        %486 = vst.msk [vmem:[#allocation2 + $0x68] sm:$0xff] %vm472, %v471
        %v487 = vld [vmem:[%s329 + $0x38] sm:$0xf]
        %v488 = vld [vmem:[%s329 + $0x3c] sm:$0xf]
        %v489 = vld [vmem:[%s329 + $0x40] sm:$0xf]
        %v490 = vld [vmem:[%s329 + $0x44] sm:$0xf]
        %v491 = vld [vmem:[%s329 + $0x48] sm:$0xf]
        %v492 = vld [vmem:[%s329 + $0x4c] sm:$0xf]
        %v493 = vld [vmem:[%s329 + $0x50] sm:$0xf]
        %v494 = vld [vmem:[%s329 + $0x54] sm:$0xf]
        %v495 = vld [vmem:[%s329 + $0x58] sm:$0xf]
        %v496 = vld [vmem:[%s329 + $0x5c] sm:$0xf]
        %v497 = vld [vmem:[%s329 + $0x60] sm:$0xf]
        %v498 = vld [vmem:[%s329 + $0x64] sm:$0xf]
        %v499 = vld [vmem:[%s329 + $0x68] sm:$0xf]
        %v500 = vld [vmem:[%s329 + $0x6c] sm:$0xf]
        %v501 = vld [vmem:[%s1] sm:$0xf]
        %v502 = vld [vmem:[%s1 + $0x4] sm:$0xf]
        %v503 = vld [vmem:[%s2] sm:$0x1]
        %v505 = vperm.slane %v503, 0
        %v521 = vunpack.c.l.b16 %v487
        %v522 = vunpack.c.l.b16 %v488
        %v523 = vunpack.c.l.b16 %v489
        %v524 = vunpack.c.l.b16 %v490
        %v525 = vunpack.c.l.b16 %v491
        %v526 = vunpack.c.l.b16 %v492
        %v527 = vunpack.c.l.b16 %v493
        %v528 = vunpack.c.l.b16 %v494
        %v529 = vunpack.c.l.b16 %v495
        %v530 = vunpack.c.l.b16 %v496
        %v531 = vunpack.c.l.b16 %v497
        %v532 = vunpack.c.l.b16 %v498
        %v533 = vunpack.c.l.b16 %v499
        %v534 = vunpack.c.l.b16 %v500
        %v535 = vpack.c.b16 %v522, %v521
        %v536 = vpack.c.b16 %v524, %v523
        %v537 = vpack.c.b16 %v526, %v525
        %v538 = vpack.c.b16 %v528, %v527
        %v539 = vpack.c.b16 %v530, %v529
        %v540 = vpack.c.b16 %v532, %v531
        %v541 = vpack.c.b16 %v534, %v533
        %v544 = vunpack.c.l.b16 %v501
        %v545 = vunpack.c.l.b16 %v502
        %v546 = vpack.c.b16 %v545, %v544
        %v549 = vsel %vm392, %v535, 0
        %v552 = vsel %vm392, %v536, 0
        %v555 = vsel %vm392, %v537, 0
        %v558 = vsel %vm392, %v538, 0
        %v561 = vsel %vm392, %v539, 0
        %v564 = vsel %vm392, %v540, 0
        %v567 = vsel %vm392, %v541, 0
        %569 = vmatpush.bf16.msra.mxu0 0
        %570 = vmatpush.bf16.msra.mxu0 0
        %571 = vmatpush.bf16.msra.mxu0 0
        %572 = vmatpush.bf16.msra.mxu0 0
        %573 = vmatpush.bf16.msra.mxu0 0
        %574 = vmatpush.bf16.msra.mxu0 0
        %575 = vmatpush.bf16.msra.mxu0 0
        %576 = vmatpush.bf16.msra.mxu0 %v546
        %577 = vmatmul.bf16.gmra.mxu0 %v549
        %v578 = vpop.f32.mrf.mxu0
        %v579 = vadd.f32 %v505, %v578
        %v580 = vpop.f32.mrf.mxu0
        %v581 = vadd.f32 %v505, %v580
        %582 = vmatmul.bf16.gmra.mxu0 %v552
        %v583 = vpop.f32.mrf.mxu0
        %v584 = vadd.f32 %v505, %v583
        %v585 = vpop.f32.mrf.mxu0
        %v586 = vadd.f32 %v505, %v585
        %587 = vmatmul.bf16.gmra.mxu0 %v555
        %v588 = vpop.f32.mrf.mxu0
        %v589 = vadd.f32 %v505, %v588
        %v590 = vpop.f32.mrf.mxu0
        %v591 = vadd.f32 %v505, %v590
        %592 = vmatmul.bf16.gmra.mxu0 %v558
        %v593 = vpop.f32.mrf.mxu0
        %v594 = vadd.f32 %v505, %v593
        %v595 = vpop.f32.mrf.mxu0
        %v596 = vadd.f32 %v505, %v595
        %597 = vmatmul.bf16.gmra.mxu0 %v561
        %v598 = vpop.f32.mrf.mxu0
        %v599 = vadd.f32 %v505, %v598
        %v600 = vpop.f32.mrf.mxu0
        %v601 = vadd.f32 %v505, %v600
        %602 = vmatmul.bf16.gmra.mxu0 %v564
        %v603 = vpop.f32.mrf.mxu0
        %v604 = vadd.f32 %v505, %v603
        %v605 = vpop.f32.mrf.mxu0
        %v606 = vadd.f32 %v505, %v605
        %607 = vmatmul.bf16.gmra.mxu0 %v567
        %v608 = vpop.f32.mrf.mxu0
        %v609 = vadd.f32 %v505, %v608
        %v610 = vpop.f32.mrf.mxu0
        %v611 = vadd.f32 %v505, %v610
        %612 = vdwg.mxu0
        %v613 = vmax.f32 %v579, 0.0
        %v614 = vmax.f32 %v581, 0.0
        %v615 = vmax.f32 %v584, 0.0
        %v616 = vmax.f32 %v586, 0.0
        %v617 = vmax.f32 %v589, 0.0
        %v618 = vmax.f32 %v591, 0.0
        %v619 = vmax.f32 %v594, 0.0
        %v620 = vmax.f32 %v596, 0.0
        %v621 = vmax.f32 %v599, 0.0
        %v622 = vmax.f32 %v601, 0.0
        %v623 = vmax.f32 %v604, 0.0
        %v624 = vmax.f32 %v606, 0.0
        %v625 = vmax.f32 %v609, 0.0
        %v626 = vmax.f32 %v611, 0.0
        %627 = vst.msk [vmem:[#allocation2 + $0x70] sm:$0xff] %vm472, %v613
        %628 = vst.msk [vmem:[#allocation2 + $0x78] sm:$0xff] %vm472, %v614
        %629 = vst.msk [vmem:[#allocation2 + $0x80] sm:$0xff] %vm472, %v615
        %630 = vst.msk [vmem:[#allocation2 + $0x88] sm:$0xff] %vm472, %v616
        %631 = vst.msk [vmem:[#allocation2 + $0x90] sm:$0xff] %vm472, %v617
        %632 = vst.msk [vmem:[#allocation2 + $0x98] sm:$0xff] %vm472, %v618
        %633 = vst.msk [vmem:[#allocation2 + $0xa0] sm:$0xff] %vm472, %v619
        %634 = vst.msk [vmem:[#allocation2 + $0xa8] sm:$0xff] %vm472, %v620
        %635 = vst.msk [vmem:[#allocation2 + $0xb0] sm:$0xff] %vm472, %v621
        %636 = vst.msk [vmem:[#allocation2 + $0xb8] sm:$0xff] %vm472, %v622
        %637 = vst.msk [vmem:[#allocation2 + $0xc0] sm:$0xff] %vm472, %v623
        %638 = vst.msk [vmem:[#allocation2 + $0xc8] sm:$0xff] %vm472, %v624
        %639 = vst.msk [vmem:[#allocation2 + $0xd0] sm:$0xff] %vm472, %v625
        %640 = vst.msk [vmem:[#allocation2 + $0xd8] sm:$0xff] %vm472, %v626
        %v641 = vld [vmem:[%s329 + $0x70] sm:$0xf]
        %v642 = vld [vmem:[%s329 + $0x74] sm:$0xf]
        %v643 = vld [vmem:[%s329 + $0x78] sm:$0xf]
        %v644 = vld [vmem:[%s329 + $0x7c] sm:$0xf]
        %v645 = vld [vmem:[%s329 + $0x80] sm:$0xf]
        %v646 = vld [vmem:[%s329 + $0x84] sm:$0xf]
        %v647 = vld [vmem:[%s329 + $0x88] sm:$0xf]
        %v648 = vld [vmem:[%s329 + $0x8c] sm:$0xf]
        %v649 = vld [vmem:[%s329 + $0x90] sm:$0xf]
        %v650 = vld [vmem:[%s329 + $0x94] sm:$0xf]
        %v651 = vld [vmem:[%s329 + $0x98] sm:$0xf]
        %v652 = vld [vmem:[%s329 + $0x9c] sm:$0xf]
        %v653 = vld [vmem:[%s329 + $0xa0] sm:$0xf]
        %v654 = vld [vmem:[%s329 + $0xa4] sm:$0xf]
        %v655 = vld [vmem:[%s1] sm:$0xf]
        %v656 = vld [vmem:[%s1 + $0x4] sm:$0xf]
        %v657 = vld [vmem:[%s2] sm:$0x1]
        %v659 = vperm.slane %v657, 0
        %v675 = vunpack.c.l.b16 %v641
        %v676 = vunpack.c.l.b16 %v642
        %v677 = vunpack.c.l.b16 %v643
        %v678 = vunpack.c.l.b16 %v644
        %v679 = vunpack.c.l.b16 %v645
        %v680 = vunpack.c.l.b16 %v646
        %v681 = vunpack.c.l.b16 %v647
        %v682 = vunpack.c.l.b16 %v648
        %v683 = vunpack.c.l.b16 %v649
        %v684 = vunpack.c.l.b16 %v650
        %v685 = vunpack.c.l.b16 %v651
        %v686 = vunpack.c.l.b16 %v652
        %v687 = vunpack.c.l.b16 %v653
        %v688 = vunpack.c.l.b16 %v654
        %v689 = vpack.c.b16 %v676, %v675
        %v690 = vpack.c.b16 %v678, %v677
        %v691 = vpack.c.b16 %v680, %v679
        %v692 = vpack.c.b16 %v682, %v681
        %v693 = vpack.c.b16 %v684, %v683
        %v694 = vpack.c.b16 %v686, %v685
        %v695 = vpack.c.b16 %v688, %v687
        %v698 = vunpack.c.l.b16 %v655
        %v699 = vunpack.c.l.b16 %v656
        %v700 = vpack.c.b16 %v699, %v698
        %v703 = vsel %vm392, %v689, 0
        %v706 = vsel %vm392, %v690, 0
        %v709 = vsel %vm392, %v691, 0
        %v712 = vsel %vm392, %v692, 0
        %v715 = vsel %vm392, %v693, 0
        %v718 = vsel %vm392, %v694, 0
        %v721 = vsel %vm392, %v695, 0
        %723 = vmatpush.bf16.msra.mxu0 0
        %724 = vmatpush.bf16.msra.mxu0 0
        %725 = vmatpush.bf16.msra.mxu0 0
        %726 = vmatpush.bf16.msra.mxu0 0
        %727 = vmatpush.bf16.msra.mxu0 0
        %728 = vmatpush.bf16.msra.mxu0 0
        %729 = vmatpush.bf16.msra.mxu0 0
        %730 = vmatpush.bf16.msra.mxu0 %v700
        %731 = vmatmul.bf16.gmra.mxu0 %v703
        %v732 = vpop.f32.mrf.mxu0
        %v733 = vadd.f32 %v659, %v732
        %v734 = vpop.f32.mrf.mxu0
        %v735 = vadd.f32 %v659, %v734
        %736 = vmatmul.bf16.gmra.mxu0 %v706
        %v737 = vpop.f32.mrf.mxu0
        %v738 = vadd.f32 %v659, %v737
        %v739 = vpop.f32.mrf.mxu0
        %v740 = vadd.f32 %v659, %v739
        %741 = vmatmul.bf16.gmra.mxu0 %v709
        %v742 = vpop.f32.mrf.mxu0
        %v743 = vadd.f32 %v659, %v742
        %v744 = vpop.f32.mrf.mxu0
        %v745 = vadd.f32 %v659, %v744
        %746 = vmatmul.bf16.gmra.mxu0 %v712
        %v747 = vpop.f32.mrf.mxu0
        %v748 = vadd.f32 %v659, %v747
        %v749 = vpop.f32.mrf.mxu0
        %v750 = vadd.f32 %v659, %v749
        %751 = vmatmul.bf16.gmra.mxu0 %v715
        %v752 = vpop.f32.mrf.mxu0
        %v753 = vadd.f32 %v659, %v752
        %v754 = vpop.f32.mrf.mxu0
        %v755 = vadd.f32 %v659, %v754
        %756 = vmatmul.bf16.gmra.mxu0 %v718
        %v757 = vpop.f32.mrf.mxu0
        %v758 = vadd.f32 %v659, %v757
        %v759 = vpop.f32.mrf.mxu0
        %v760 = vadd.f32 %v659, %v759
        %761 = vmatmul.bf16.gmra.mxu0 %v721
        %v762 = vpop.f32.mrf.mxu0
        %v763 = vadd.f32 %v659, %v762
        %v764 = vpop.f32.mrf.mxu0
        %v765 = vadd.f32 %v659, %v764
        %766 = vdwg.mxu0
        %v767 = vmax.f32 %v733, 0.0
        %v768 = vmax.f32 %v735, 0.0
        %v769 = vmax.f32 %v738, 0.0
        %v770 = vmax.f32 %v740, 0.0
        %v771 = vmax.f32 %v743, 0.0
        %v772 = vmax.f32 %v745, 0.0
        %v773 = vmax.f32 %v748, 0.0
        %v774 = vmax.f32 %v750, 0.0
        %v775 = vmax.f32 %v753, 0.0
        %v776 = vmax.f32 %v755, 0.0
        %v777 = vmax.f32 %v758, 0.0
        %v778 = vmax.f32 %v760, 0.0
        %v779 = vmax.f32 %v763, 0.0
        %v780 = vmax.f32 %v765, 0.0
        %781 = vst.msk [vmem:[#allocation2 + $0xe0] sm:$0xff] %vm472, %v767
        %782 = vst.msk [vmem:[#allocation2 + $0xe8] sm:$0xff] %vm472, %v768
        %783 = vst.msk [vmem:[#allocation2 + $0xf0] sm:$0xff] %vm472, %v769
        %784 = vst.msk [vmem:[#allocation2 + $0xf8] sm:$0xff] %vm472, %v770
        %785 = vst.msk [vmem:[#allocation2 + $0x100] sm:$0xff] %vm472, %v771
        %786 = vst.msk [vmem:[#allocation2 + $0x108] sm:$0xff] %vm472, %v772
        %787 = vst.msk [vmem:[#allocation2 + $0x110] sm:$0xff] %vm472, %v773
        %788 = vst.msk [vmem:[#allocation2 + $0x118] sm:$0xff] %vm472, %v774
        %789 = vst.msk [vmem:[#allocation2 + $0x120] sm:$0xff] %vm472, %v775
        %790 = vst.msk [vmem:[#allocation2 + $0x128] sm:$0xff] %vm472, %v776
        %791 = vst.msk [vmem:[#allocation2 + $0x130] sm:$0xff] %vm472, %v777
        %792 = vst.msk [vmem:[#allocation2 + $0x138] sm:$0xff] %vm472, %v778
        %793 = vst.msk [vmem:[#allocation2 + $0x140] sm:$0xff] %vm472, %v779
        %794 = vst.msk [vmem:[#allocation2 + $0x148] sm:$0xff] %vm472, %v780
        %v795 = vld [vmem:[%s329 + $0xa8] sm:$0xf]
        %v796 = vld [vmem:[%s329 + $0xac] sm:$0xf]
        %v797 = vld [vmem:[%s329 + $0xb0] sm:$0xf]
        %v798 = vld [vmem:[%s329 + $0xb4] sm:$0xf]
        %v799 = vld [vmem:[%s329 + $0xb8] sm:$0xf]
        %v800 = vld [vmem:[%s329 + $0xbc] sm:$0xf]
        %v801 = vld [vmem:[%s329 + $0xc0] sm:$0xf]
        %v802 = vld [vmem:[%s329 + $0xc4] sm:$0xf]
        %v803 = vld [vmem:[%s329 + $0xc8] sm:$0xf]
        %v804 = vld [vmem:[%s329 + $0xcc] sm:$0xf]
        %v805 = vld [vmem:[%s329 + $0xd0] sm:$0xf]
        %v806 = vld [vmem:[%s329 + $0xd4] sm:$0xf]
        %v807 = vld [vmem:[%s329 + $0xd8] sm:$0xf]
        %v808 = vld [vmem:[%s329 + $0xdc] sm:$0xf]
        %v809 = vld [vmem:[%s1] sm:$0xf]
        %v810 = vld [vmem:[%s1 + $0x4] sm:$0xf]
        %v811 = vld [vmem:[%s2] sm:$0x1]
        %v813 = vperm.slane %v811, 0
        %v829 = vunpack.c.l.b16 %v795
        %v830 = vunpack.c.l.b16 %v796
        %v831 = vunpack.c.l.b16 %v797
        %v832 = vunpack.c.l.b16 %v798
        %v833 = vunpack.c.l.b16 %v799
        %v834 = vunpack.c.l.b16 %v800
        %v835 = vunpack.c.l.b16 %v801
        %v836 = vunpack.c.l.b16 %v802
        %v837 = vunpack.c.l.b16 %v803
        %v838 = vunpack.c.l.b16 %v804
        %v839 = vunpack.c.l.b16 %v805
        %v840 = vunpack.c.l.b16 %v806
        %v841 = vunpack.c.l.b16 %v807
        %v842 = vunpack.c.l.b16 %v808
        %v843 = vpack.c.b16 %v830, %v829
        %v844 = vpack.c.b16 %v832, %v831
        %v845 = vpack.c.b16 %v834, %v833
        %v846 = vpack.c.b16 %v836, %v835
        %v847 = vpack.c.b16 %v838, %v837
        %v848 = vpack.c.b16 %v840, %v839
        %v849 = vpack.c.b16 %v842, %v841
        %v852 = vunpack.c.l.b16 %v809
        %v853 = vunpack.c.l.b16 %v810
        %v854 = vpack.c.b16 %v853, %v852
        %v857 = vsel %vm392, %v843, 0
        %v860 = vsel %vm392, %v844, 0
        %v863 = vsel %vm392, %v845, 0
        %v866 = vsel %vm392, %v846, 0
        %v869 = vsel %vm392, %v847, 0
        %v872 = vsel %vm392, %v848, 0
        %v875 = vsel %vm392, %v849, 0
        %877 = vmatpush.bf16.msra.mxu0 0
        %878 = vmatpush.bf16.msra.mxu0 0
        %879 = vmatpush.bf16.msra.mxu0 0
        %880 = vmatpush.bf16.msra.mxu0 0
        %881 = vmatpush.bf16.msra.mxu0 0
        %882 = vmatpush.bf16.msra.mxu0 0
        %883 = vmatpush.bf16.msra.mxu0 0
        %884 = vmatpush.bf16.msra.mxu0 %v854
        %885 = vmatmul.bf16.gmra.mxu0 %v857
        %v886 = vpop.f32.mrf.mxu0
        %v887 = vadd.f32 %v813, %v886
        %v888 = vpop.f32.mrf.mxu0
        %v889 = vadd.f32 %v813, %v888
        %890 = vmatmul.bf16.gmra.mxu0 %v860
        %v891 = vpop.f32.mrf.mxu0
        %v892 = vadd.f32 %v813, %v891
        %v893 = vpop.f32.mrf.mxu0
        %v894 = vadd.f32 %v813, %v893
        %895 = vmatmul.bf16.gmra.mxu0 %v863
        %v896 = vpop.f32.mrf.mxu0
        %v897 = vadd.f32 %v813, %v896
        %v898 = vpop.f32.mrf.mxu0
        %v899 = vadd.f32 %v813, %v898
        %900 = vmatmul.bf16.gmra.mxu0 %v866
        %v901 = vpop.f32.mrf.mxu0
        %v902 = vadd.f32 %v813, %v901
        %v903 = vpop.f32.mrf.mxu0
        %v904 = vadd.f32 %v813, %v903
        %905 = vmatmul.bf16.gmra.mxu0 %v869
        %v906 = vpop.f32.mrf.mxu0
        %v907 = vadd.f32 %v813, %v906
        %v908 = vpop.f32.mrf.mxu0
        %v909 = vadd.f32 %v813, %v908
        %910 = vmatmul.bf16.gmra.mxu0 %v872
        %v911 = vpop.f32.mrf.mxu0
        %v912 = vadd.f32 %v813, %v911
        %v913 = vpop.f32.mrf.mxu0
        %v914 = vadd.f32 %v813, %v913
        %915 = vmatmul.bf16.gmra.mxu0 %v875
        %v916 = vpop.f32.mrf.mxu0
        %v917 = vadd.f32 %v813, %v916
        %v918 = vpop.f32.mrf.mxu0
        %v919 = vadd.f32 %v813, %v918
        %920 = vdwg.mxu0
        %v921 = vmax.f32 %v887, 0.0
        %v922 = vmax.f32 %v889, 0.0
        %v923 = vmax.f32 %v892, 0.0
        %v924 = vmax.f32 %v894, 0.0
        %v925 = vmax.f32 %v897, 0.0
        %v926 = vmax.f32 %v899, 0.0
        %v927 = vmax.f32 %v902, 0.0
        %v928 = vmax.f32 %v904, 0.0
        %v929 = vmax.f32 %v907, 0.0
        %v930 = vmax.f32 %v909, 0.0
        %v931 = vmax.f32 %v912, 0.0
        %v932 = vmax.f32 %v914, 0.0
        %v933 = vmax.f32 %v917, 0.0
        %v934 = vmax.f32 %v919, 0.0
        %935 = vst.msk [vmem:[#allocation2 + $0x150] sm:$0xff] %vm472, %v921
        %936 = vst.msk [vmem:[#allocation2 + $0x158] sm:$0xff] %vm472, %v922
        %937 = vst.msk [vmem:[#allocation2 + $0x160] sm:$0xff] %vm472, %v923
        %938 = vst.msk [vmem:[#allocation2 + $0x168] sm:$0xff] %vm472, %v924
        %939 = vst.msk [vmem:[#allocation2 + $0x170] sm:$0xff] %vm472, %v925
        %940 = vst.msk [vmem:[#allocation2 + $0x178] sm:$0xff] %vm472, %v926
        %941 = vst.msk [vmem:[#allocation2 + $0x180] sm:$0xff] %vm472, %v927
        %942 = vst.msk [vmem:[#allocation2 + $0x188] sm:$0xff] %vm472, %v928
        %943 = vst.msk [vmem:[#allocation2 + $0x190] sm:$0xff] %vm472, %v929
        %944 = vst.msk [vmem:[#allocation2 + $0x198] sm:$0xff] %vm472, %v930
        %945 = vst.msk [vmem:[#allocation2 + $0x1a0] sm:$0xff] %vm472, %v931
        %946 = vst.msk [vmem:[#allocation2 + $0x1a8] sm:$0xff] %vm472, %v932
        %947 = vst.msk [vmem:[#allocation2 + $0x1b0] sm:$0xff] %vm472, %v933
        %948 = vst.msk [vmem:[#allocation2 + $0x1b8] sm:$0xff] %vm472, %v934
        %v949 = vld [vmem:[%s329 + $0xe0] sm:$0xf]
        %v950 = vld [vmem:[%s329 + $0xe4] sm:$0xf]
        %v951 = vld [vmem:[%s329 + $0xe8] sm:$0xf]
        %v952 = vld [vmem:[%s329 + $0xec] sm:$0xf]
        %v953 = vld [vmem:[%s329 + $0xf0] sm:$0xf]
        %v954 = vld [vmem:[%s329 + $0xf4] sm:$0xf]
        %v955 = vld [vmem:[%s329 + $0xf8] sm:$0xf]
        %v956 = vld [vmem:[%s329 + $0xfc] sm:$0xf]
        %v957 = vld [vmem:[%s329 + $0x100] sm:$0xf]
        %v958 = vld [vmem:[%s329 + $0x104] sm:$0xf]
        %v959 = vld [vmem:[%s329 + $0x108] sm:$0xf]
        %v960 = vld [vmem:[%s329 + $0x10c] sm:$0xf]
        %v961 = vld [vmem:[%s329 + $0x110] sm:$0xf]
        %v962 = vld [vmem:[%s329 + $0x114] sm:$0xf]
        %v963 = vld [vmem:[%s1] sm:$0xf]
        %v964 = vld [vmem:[%s1 + $0x4] sm:$0xf]
        %v965 = vld [vmem:[%s2] sm:$0x1]
        %v967 = vperm.slane %v965, 0
        %v983 = vunpack.c.l.b16 %v949
        %v984 = vunpack.c.l.b16 %v950
        %v985 = vunpack.c.l.b16 %v951
        %v986 = vunpack.c.l.b16 %v952
        %v987 = vunpack.c.l.b16 %v953
        %v988 = vunpack.c.l.b16 %v954
        %v989 = vunpack.c.l.b16 %v955
        %v990 = vunpack.c.l.b16 %v956
        %v991 = vunpack.c.l.b16 %v957
        %v992 = vunpack.c.l.b16 %v958
        %v993 = vunpack.c.l.b16 %v959
        %v994 = vunpack.c.l.b16 %v960
        %v995 = vunpack.c.l.b16 %v961
        %v996 = vunpack.c.l.b16 %v962
        %v997 = vpack.c.b16 %v984, %v983
        %v998 = vpack.c.b16 %v986, %v985
        %v999 = vpack.c.b16 %v988, %v987
        %v1000 = vpack.c.b16 %v990, %v989
        %v1001 = vpack.c.b16 %v992, %v991
        %v1002 = vpack.c.b16 %v994, %v993
        %v1003 = vpack.c.b16 %v996, %v995
        %v1006 = vunpack.c.l.b16 %v963
        %v1007 = vunpack.c.l.b16 %v964
        %v1008 = vpack.c.b16 %v1007, %v1006
        %v1011 = vsel %vm392, %v997, 0
        %v1014 = vsel %vm392, %v998, 0
        %v1017 = vsel %vm392, %v999, 0
        %v1020 = vsel %vm392, %v1000, 0
        %v1023 = vsel %vm392, %v1001, 0
        %v1026 = vsel %vm392, %v1002, 0
        %v1029 = vsel %vm392, %v1003, 0
        %1031 = vmatpush.bf16.msra.mxu0 0
        %1032 = vmatpush.bf16.msra.mxu0 0
        %1033 = vmatpush.bf16.msra.mxu0 0
        %1034 = vmatpush.bf16.msra.mxu0 0
        %1035 = vmatpush.bf16.msra.mxu0 0
        %1036 = vmatpush.bf16.msra.mxu0 0
        %1037 = vmatpush.bf16.msra.mxu0 0
        %1038 = vmatpush.bf16.msra.mxu0 %v1008
        %1039 = vmatmul.bf16.gmra.mxu0 %v1011
        %v1040 = vpop.f32.mrf.mxu0
        %v1041 = vadd.f32 %v967, %v1040
        %v1042 = vpop.f32.mrf.mxu0
        %v1043 = vadd.f32 %v967, %v1042
        %1044 = vmatmul.bf16.gmra.mxu0 %v1014
        %v1045 = vpop.f32.mrf.mxu0
        %v1046 = vadd.f32 %v967, %v1045
        %v1047 = vpop.f32.mrf.mxu0
        %v1048 = vadd.f32 %v967, %v1047
        %1049 = vmatmul.bf16.gmra.mxu0 %v1017
        %v1050 = vpop.f32.mrf.mxu0
        %v1051 = vadd.f32 %v967, %v1050
        %v1052 = vpop.f32.mrf.mxu0
        %v1053 = vadd.f32 %v967, %v1052
        %1054 = vmatmul.bf16.gmra.mxu0 %v1020
        %v1055 = vpop.f32.mrf.mxu0
        %v1056 = vadd.f32 %v967, %v1055
        %v1057 = vpop.f32.mrf.mxu0
        %v1058 = vadd.f32 %v967, %v1057
        %1059 = vmatmul.bf16.gmra.mxu0 %v1023
        %v1060 = vpop.f32.mrf.mxu0
        %v1061 = vadd.f32 %v967, %v1060
        %v1062 = vpop.f32.mrf.mxu0
        %v1063 = vadd.f32 %v967, %v1062
        %1064 = vmatmul.bf16.gmra.mxu0 %v1026
        %v1065 = vpop.f32.mrf.mxu0
        %v1066 = vadd.f32 %v967, %v1065
        %v1067 = vpop.f32.mrf.mxu0
        %v1068 = vadd.f32 %v967, %v1067
        %1069 = vmatmul.bf16.gmra.mxu0 %v1029
        %v1070 = vpop.f32.mrf.mxu0
        %v1071 = vadd.f32 %v967, %v1070
        %v1072 = vpop.f32.mrf.mxu0
        %v1073 = vadd.f32 %v967, %v1072
        %1074 = vdwg.mxu0
        %v1075 = vmax.f32 %v1041, 0.0
        %v1076 = vmax.f32 %v1043, 0.0
        %v1077 = vmax.f32 %v1046, 0.0
        %v1078 = vmax.f32 %v1048, 0.0
        %v1079 = vmax.f32 %v1051, 0.0
        %v1080 = vmax.f32 %v1053, 0.0
        %v1081 = vmax.f32 %v1056, 0.0
        %v1082 = vmax.f32 %v1058, 0.0
        %v1083 = vmax.f32 %v1061, 0.0
        %v1084 = vmax.f32 %v1063, 0.0
        %v1085 = vmax.f32 %v1066, 0.0
        %v1086 = vmax.f32 %v1068, 0.0
        %v1087 = vmax.f32 %v1071, 0.0
        %v1088 = vmax.f32 %v1073, 0.0
        %1089 = vst.msk [vmem:[#allocation2 + $0x1c0] sm:$0xff] %vm472, %v1075
        %1090 = vst.msk [vmem:[#allocation2 + $0x1c8] sm:$0xff] %vm472, %v1076
        %1091 = vst.msk [vmem:[#allocation2 + $0x1d0] sm:$0xff] %vm472, %v1077
        %1092 = vst.msk [vmem:[#allocation2 + $0x1d8] sm:$0xff] %vm472, %v1078
        %1093 = vst.msk [vmem:[#allocation2 + $0x1e0] sm:$0xff] %vm472, %v1079
        %1094 = vst.msk [vmem:[#allocation2 + $0x1e8] sm:$0xff] %vm472, %v1080
        %1095 = vst.msk [vmem:[#allocation2 + $0x1f0] sm:$0xff] %vm472, %v1081
        %1096 = vst.msk [vmem:[#allocation2 + $0x1f8] sm:$0xff] %vm472, %v1082
        %1097 = vst.msk [vmem:[#allocation2 + $0x200] sm:$0xff] %vm472, %v1083
        %1098 = vst.msk [vmem:[#allocation2 + $0x208] sm:$0xff] %vm472, %v1084
        %1099 = vst.msk [vmem:[#allocation2 + $0x210] sm:$0xff] %vm472, %v1085
        %1100 = vst.msk [vmem:[#allocation2 + $0x218] sm:$0xff] %vm472, %v1086
        %1101 = vst.msk [vmem:[#allocation2 + $0x220] sm:$0xff] %vm472, %v1087
        %1102 = vst.msk [vmem:[#allocation2 + $0x228] sm:$0xff] %vm472, %v1088
        %v1103 = vld [vmem:[%s329 + $0x118] sm:$0xf]
        %v1104 = vld [vmem:[%s329 + $0x11c] sm:$0xf]
        %v1105 = vld [vmem:[%s329 + $0x120] sm:$0xf]
        %v1106 = vld [vmem:[%s329 + $0x124] sm:$0xf]
        %v1107 = vld [vmem:[%s329 + $0x128] sm:$0xf]
        %v1108 = vld [vmem:[%s329 + $0x12c] sm:$0xf]
        %v1109 = vld [vmem:[%s329 + $0x130] sm:$0xf]
        %v1110 = vld [vmem:[%s329 + $0x134] sm:$0xf]
        %v1111 = vld [vmem:[%s329 + $0x138] sm:$0xf]
        %v1112 = vld [vmem:[%s329 + $0x13c] sm:$0xf]
        %v1113 = vld [vmem:[%s329 + $0x140] sm:$0xf]
        %v1114 = vld [vmem:[%s329 + $0x144] sm:$0xf]
        %v1115 = vld [vmem:[%s329 + $0x148] sm:$0xf]
        %v1116 = vld [vmem:[%s329 + $0x14c] sm:$0xf]
        %v1117 = vld [vmem:[%s1] sm:$0xf]
        %v1118 = vld [vmem:[%s1 + $0x4] sm:$0xf]
        %v1119 = vld [vmem:[%s2] sm:$0x1]
        %v1121 = vperm.slane %v1119, 0
        %v1137 = vunpack.c.l.b16 %v1103
        %v1138 = vunpack.c.l.b16 %v1104
        %v1139 = vunpack.c.l.b16 %v1105
        %v1140 = vunpack.c.l.b16 %v1106
        %v1141 = vunpack.c.l.b16 %v1107
        %v1142 = vunpack.c.l.b16 %v1108
        %v1143 = vunpack.c.l.b16 %v1109
        %v1144 = vunpack.c.l.b16 %v1110
        %v1145 = vunpack.c.l.b16 %v1111
        %v1146 = vunpack.c.l.b16 %v1112
        %v1147 = vunpack.c.l.b16 %v1113
        %v1148 = vunpack.c.l.b16 %v1114
        %v1149 = vunpack.c.l.b16 %v1115
        %v1150 = vunpack.c.l.b16 %v1116
        %v1151 = vpack.c.b16 %v1138, %v1137
        %v1152 = vpack.c.b16 %v1140, %v1139
        %v1153 = vpack.c.b16 %v1142, %v1141
        %v1154 = vpack.c.b16 %v1144, %v1143
        %v1155 = vpack.c.b16 %v1146, %v1145
        %v1156 = vpack.c.b16 %v1148, %v1147
        %v1157 = vpack.c.b16 %v1150, %v1149
        %v1160 = vunpack.c.l.b16 %v1117
        %v1161 = vunpack.c.l.b16 %v1118
        %v1162 = vpack.c.b16 %v1161, %v1160
        %v1165 = vsel %vm392, %v1151, 0
        %v1168 = vsel %vm392, %v1152, 0
        %v1171 = vsel %vm392, %v1153, 0
        %v1174 = vsel %vm392, %v1154, 0
        %v1177 = vsel %vm392, %v1155, 0
        %v1180 = vsel %vm392, %v1156, 0
        %v1183 = vsel %vm392, %v1157, 0
        %1185 = vmatpush.bf16.msra.mxu0 0
        %1186 = vmatpush.bf16.msra.mxu0 0
        %1187 = vmatpush.bf16.msra.mxu0 0
        %1188 = vmatpush.bf16.msra.mxu0 0
        %1189 = vmatpush.bf16.msra.mxu0 0
        %1190 = vmatpush.bf16.msra.mxu0 0
        %1191 = vmatpush.bf16.msra.mxu0 0
        %1192 = vmatpush.bf16.msra.mxu0 %v1162
        %1193 = vmatmul.bf16.gmra.mxu0 %v1165
        %v1194 = vpop.f32.mrf.mxu0
        %v1195 = vadd.f32 %v1121, %v1194
        %v1196 = vpop.f32.mrf.mxu0
        %v1197 = vadd.f32 %v1121, %v1196
        %1198 = vmatmul.bf16.gmra.mxu0 %v1168
        %v1199 = vpop.f32.mrf.mxu0
        %v1200 = vadd.f32 %v1121, %v1199
        %v1201 = vpop.f32.mrf.mxu0
        %v1202 = vadd.f32 %v1121, %v1201
        %1203 = vmatmul.bf16.gmra.mxu0 %v1171
        %v1204 = vpop.f32.mrf.mxu0
        %v1205 = vadd.f32 %v1121, %v1204
        %v1206 = vpop.f32.mrf.mxu0
        %v1207 = vadd.f32 %v1121, %v1206
        %1208 = vmatmul.bf16.gmra.mxu0 %v1174
        %v1209 = vpop.f32.mrf.mxu0
        %v1210 = vadd.f32 %v1121, %v1209
        %v1211 = vpop.f32.mrf.mxu0
        %v1212 = vadd.f32 %v1121, %v1211
        %1213 = vmatmul.bf16.gmra.mxu0 %v1177
        %v1214 = vpop.f32.mrf.mxu0
        %v1215 = vadd.f32 %v1121, %v1214
        %v1216 = vpop.f32.mrf.mxu0
        %v1217 = vadd.f32 %v1121, %v1216
        %1218 = vmatmul.bf16.gmra.mxu0 %v1180
        %v1219 = vpop.f32.mrf.mxu0
        %v1220 = vadd.f32 %v1121, %v1219
        %v1221 = vpop.f32.mrf.mxu0
        %v1222 = vadd.f32 %v1121, %v1221
        %1223 = vmatmul.bf16.gmra.mxu0 %v1183
        %v1224 = vpop.f32.mrf.mxu0
        %v1225 = vadd.f32 %v1121, %v1224
        %v1226 = vpop.f32.mrf.mxu0
        %v1227 = vadd.f32 %v1121, %v1226
        %1228 = vdwg.mxu0
        %v1229 = vmax.f32 %v1195, 0.0
        %v1230 = vmax.f32 %v1197, 0.0
        %v1231 = vmax.f32 %v1200, 0.0
        %v1232 = vmax.f32 %v1202, 0.0
        %v1233 = vmax.f32 %v1205, 0.0
        %v1234 = vmax.f32 %v1207, 0.0
        %v1235 = vmax.f32 %v1210, 0.0
        %v1236 = vmax.f32 %v1212, 0.0
        %v1237 = vmax.f32 %v1215, 0.0
        %v1238 = vmax.f32 %v1217, 0.0
        %v1239 = vmax.f32 %v1220, 0.0
        %v1240 = vmax.f32 %v1222, 0.0
        %v1241 = vmax.f32 %v1225, 0.0
        %v1242 = vmax.f32 %v1227, 0.0
        %1243 = vst.msk [vmem:[#allocation2 + $0x230] sm:$0xff] %vm472, %v1229
        %1244 = vst.msk [vmem:[#allocation2 + $0x238] sm:$0xff] %vm472, %v1230
        %1245 = vst.msk [vmem:[#allocation2 + $0x240] sm:$0xff] %vm472, %v1231
        %1246 = vst.msk [vmem:[#allocation2 + $0x248] sm:$0xff] %vm472, %v1232
        %1247 = vst.msk [vmem:[#allocation2 + $0x250] sm:$0xff] %vm472, %v1233
        %1248 = vst.msk [vmem:[#allocation2 + $0x258] sm:$0xff] %vm472, %v1234
        %1249 = vst.msk [vmem:[#allocation2 + $0x260] sm:$0xff] %vm472, %v1235
        %1250 = vst.msk [vmem:[#allocation2 + $0x268] sm:$0xff] %vm472, %v1236
        %1251 = vst.msk [vmem:[#allocation2 + $0x270] sm:$0xff] %vm472, %v1237
        %1252 = vst.msk [vmem:[#allocation2 + $0x278] sm:$0xff] %vm472, %v1238
        %1253 = vst.msk [vmem:[#allocation2 + $0x280] sm:$0xff] %vm472, %v1239
        %1254 = vst.msk [vmem:[#allocation2 + $0x288] sm:$0xff] %vm472, %v1240
        %1255 = vst.msk [vmem:[#allocation2 + $0x290] sm:$0xff] %vm472, %v1241
        %1256 = vst.msk [vmem:[#allocation2 + $0x298] sm:$0xff] %vm472, %v1242
        %v1257 = vld [vmem:[%s329 + $0x150] sm:$0xf]
        %v1258 = vld [vmem:[%s329 + $0x154] sm:$0xf]
        %v1259 = vld [vmem:[%s329 + $0x158] sm:$0xf]
        %v1260 = vld [vmem:[%s329 + $0x15c] sm:$0xf]
        %v1261 = vld [vmem:[%s329 + $0x160] sm:$0xf]
        %v1262 = vld [vmem:[%s329 + $0x164] sm:$0xf]
        %v1263 = vld [vmem:[%s329 + $0x168] sm:$0xf]
        %v1264 = vld [vmem:[%s329 + $0x16c] sm:$0xf]
        %v1265 = vld [vmem:[%s329 + $0x170] sm:$0xf]
        %v1266 = vld [vmem:[%s329 + $0x174] sm:$0xf]
        %v1267 = vld [vmem:[%s329 + $0x178] sm:$0xf]
        %v1268 = vld [vmem:[%s329 + $0x17c] sm:$0xf]
        %v1269 = vld [vmem:[%s329 + $0x180] sm:$0xf]
        %v1270 = vld [vmem:[%s329 + $0x184] sm:$0xf]
        %v1271 = vld [vmem:[%s1] sm:$0xf]
        %v1272 = vld [vmem:[%s1 + $0x4] sm:$0xf]
        %v1273 = vld [vmem:[%s2] sm:$0x1]
        %v1275 = vperm.slane %v1273, 0
        %v1291 = vunpack.c.l.b16 %v1257
        %v1292 = vunpack.c.l.b16 %v1258
        %v1293 = vunpack.c.l.b16 %v1259
        %v1294 = vunpack.c.l.b16 %v1260
        %v1295 = vunpack.c.l.b16 %v1261
        %v1296 = vunpack.c.l.b16 %v1262
        %v1297 = vunpack.c.l.b16 %v1263
        %v1298 = vunpack.c.l.b16 %v1264
        %v1299 = vunpack.c.l.b16 %v1265
        %v1300 = vunpack.c.l.b16 %v1266
        %v1301 = vunpack.c.l.b16 %v1267
        %v1302 = vunpack.c.l.b16 %v1268
        %v1303 = vunpack.c.l.b16 %v1269
        %v1304 = vunpack.c.l.b16 %v1270
        %v1305 = vpack.c.b16 %v1292, %v1291
        %v1306 = vpack.c.b16 %v1294, %v1293
        %v1307 = vpack.c.b16 %v1296, %v1295
        %v1308 = vpack.c.b16 %v1298, %v1297
        %v1309 = vpack.c.b16 %v1300, %v1299
        %v1310 = vpack.c.b16 %v1302, %v1301
        %v1311 = vpack.c.b16 %v1304, %v1303
        %v1314 = vunpack.c.l.b16 %v1271
        %v1315 = vunpack.c.l.b16 %v1272
        %v1316 = vpack.c.b16 %v1315, %v1314
        %v1319 = vsel %vm392, %v1305, 0
        %v1322 = vsel %vm392, %v1306, 0
        %v1325 = vsel %vm392, %v1307, 0
        %v1328 = vsel %vm392, %v1308, 0
        %v1331 = vsel %vm392, %v1309, 0
        %v1334 = vsel %vm392, %v1310, 0
        %v1337 = vsel %vm392, %v1311, 0
        %1339 = vmatpush.bf16.msra.mxu0 0
        %1340 = vmatpush.bf16.msra.mxu0 0
        %1341 = vmatpush.bf16.msra.mxu0 0
        %1342 = vmatpush.bf16.msra.mxu0 0
        %1343 = vmatpush.bf16.msra.mxu0 0
        %1344 = vmatpush.bf16.msra.mxu0 0
        %1345 = vmatpush.bf16.msra.mxu0 0
        %1346 = vmatpush.bf16.msra.mxu0 %v1316
        %1347 = vmatmul.bf16.gmra.mxu0 %v1319
        %v1348 = vpop.f32.mrf.mxu0
        %v1349 = vadd.f32 %v1275, %v1348
        %v1350 = vpop.f32.mrf.mxu0
        %v1351 = vadd.f32 %v1275, %v1350
        %1352 = vmatmul.bf16.gmra.mxu0 %v1322
        %v1353 = vpop.f32.mrf.mxu0
        %v1354 = vadd.f32 %v1275, %v1353
        %v1355 = vpop.f32.mrf.mxu0
        %v1356 = vadd.f32 %v1275, %v1355
        %1357 = vmatmul.bf16.gmra.mxu0 %v1325
        %v1358 = vpop.f32.mrf.mxu0
        %v1359 = vadd.f32 %v1275, %v1358
        %v1360 = vpop.f32.mrf.mxu0
        %v1361 = vadd.f32 %v1275, %v1360
        %1362 = vmatmul.bf16.gmra.mxu0 %v1328
        %v1363 = vpop.f32.mrf.mxu0
        %v1364 = vadd.f32 %v1275, %v1363
        %v1365 = vpop.f32.mrf.mxu0
        %v1366 = vadd.f32 %v1275, %v1365
        %1367 = vmatmul.bf16.gmra.mxu0 %v1331
        %v1368 = vpop.f32.mrf.mxu0
        %v1369 = vadd.f32 %v1275, %v1368
        %v1370 = vpop.f32.mrf.mxu0
        %v1371 = vadd.f32 %v1275, %v1370
        %1372 = vmatmul.bf16.gmra.mxu0 %v1334
        %v1373 = vpop.f32.mrf.mxu0
        %v1374 = vadd.f32 %v1275, %v1373
        %v1375 = vpop.f32.mrf.mxu0
        %v1376 = vadd.f32 %v1275, %v1375
        %1377 = vmatmul.bf16.gmra.mxu0 %v1337
        %v1378 = vpop.f32.mrf.mxu0
        %v1379 = vadd.f32 %v1275, %v1378
        %v1380 = vpop.f32.mrf.mxu0
        %v1381 = vadd.f32 %v1275, %v1380
        %1382 = vdwg.mxu0
        %v1383 = vmax.f32 %v1349, 0.0
        %v1384 = vmax.f32 %v1351, 0.0
        %v1385 = vmax.f32 %v1354, 0.0
        %v1386 = vmax.f32 %v1356, 0.0
        %v1387 = vmax.f32 %v1359, 0.0
        %v1388 = vmax.f32 %v1361, 0.0
        %v1389 = vmax.f32 %v1364, 0.0
        %v1390 = vmax.f32 %v1366, 0.0
        %v1391 = vmax.f32 %v1369, 0.0
        %v1392 = vmax.f32 %v1371, 0.0
        %v1393 = vmax.f32 %v1374, 0.0
        %v1394 = vmax.f32 %v1376, 0.0
        %v1395 = vmax.f32 %v1379, 0.0
        %v1396 = vmax.f32 %v1381, 0.0
        %1397 = vst.msk [vmem:[#allocation2 + $0x2a0] sm:$0xff] %vm472, %v1383
        %1398 = vst.msk [vmem:[#allocation2 + $0x2a8] sm:$0xff] %vm472, %v1384
        %1399 = vst.msk [vmem:[#allocation2 + $0x2b0] sm:$0xff] %vm472, %v1385
        %1400 = vst.msk [vmem:[#allocation2 + $0x2b8] sm:$0xff] %vm472, %v1386
        %1401 = vst.msk [vmem:[#allocation2 + $0x2c0] sm:$0xff] %vm472, %v1387
        %1402 = vst.msk [vmem:[#allocation2 + $0x2c8] sm:$0xff] %vm472, %v1388
        %1403 = vst.msk [vmem:[#allocation2 + $0x2d0] sm:$0xff] %vm472, %v1389
        %1404 = vst.msk [vmem:[#allocation2 + $0x2d8] sm:$0xff] %vm472, %v1390
        %1405 = vst.msk [vmem:[#allocation2 + $0x2e0] sm:$0xff] %vm472, %v1391
        %1406 = vst.msk [vmem:[#allocation2 + $0x2e8] sm:$0xff] %vm472, %v1392
        %1407 = vst.msk [vmem:[#allocation2 + $0x2f0] sm:$0xff] %vm472, %v1393
        %1408 = vst.msk [vmem:[#allocation2 + $0x2f8] sm:$0xff] %vm472, %v1394
        %1409 = vst.msk [vmem:[#allocation2 + $0x300] sm:$0xff] %vm472, %v1395
        %1410 = vst.msk [vmem:[#allocation2 + $0x308] sm:$0xff] %vm472, %v1396
        %1411 = vst.msk [vmem:[#allocation3] sm:$0xff] %vm472, 0.0
        %1412 = vst.msk [vmem:[#allocation3 + $0x8] sm:$0xff] %vm472, 0.0
        %1413 = vst.msk [vmem:[#allocation3 + $0x10] sm:$0xff] %vm472, 0.0
        %1414 = vst.msk [vmem:[#allocation3 + $0x18] sm:$0xff] %vm472, 0.0
        %1415 = vst.msk [vmem:[#allocation3 + $0x20] sm:$0xff] %vm472, 0.0
        %1416 = vst.msk [vmem:[#allocation3 + $0x28] sm:$0xff] %vm472, 0.0
        %1417 = vst.msk [vmem:[#allocation3 + $0x30] sm:$0xff] %vm472, 0.0
        %1418 = vst.msk [vmem:[#allocation3 + $0x38] sm:$0xff] %vm472, 0.0
        %1419 = vst.msk [vmem:[#allocation3 + $0x40] sm:$0xff] %vm472, 0.0
        %1420 = vst.msk [vmem:[#allocation3 + $0x48] sm:$0xff] %vm472, 0.0
        %1421 = vst.msk [vmem:[#allocation3 + $0x50] sm:$0xff] %vm472, 0.0
        %1422 = vst.msk [vmem:[#allocation3 + $0x58] sm:$0xff] %vm472, 0.0
        %1423 = vst.msk [vmem:[#allocation3 + $0x60] sm:$0xff] %vm472, 0.0
        %1424 = vst.msk [vmem:[#allocation3 + $0x68] sm:$0xff] %vm472, 0.0
        %1425 = vst.msk [vmem:[#allocation3 + $0x70] sm:$0xff] %vm472, 0.0
        %1426 = vst.msk [vmem:[#allocation3 + $0x78] sm:$0xff] %vm472, 0.0
        %1427 = vst.msk [vmem:[#allocation3 + $0x80] sm:$0xff] %vm472, 0.0
        %1428 = vst.msk [vmem:[#allocation3 + $0x88] sm:$0xff] %vm472, 0.0
        %1429 = vst.msk [vmem:[#allocation3 + $0x90] sm:$0xff] %vm472, 0.0
        %1430 = vst.msk [vmem:[#allocation3 + $0x98] sm:$0xff] %vm472, 0.0
        %1431 = vst.msk [vmem:[#allocation3 + $0xa0] sm:$0xff] %vm472, 0.0
        %1432 = vst.msk [vmem:[#allocation3 + $0xa8] sm:$0xff] %vm472, 0.0
        %1433 = vst.msk [vmem:[#allocation3 + $0xb0] sm:$0xff] %vm472, 0.0
        %1434 = vst.msk [vmem:[#allocation3 + $0xb8] sm:$0xff] %vm472, 0.0
        %1435 = vst.msk [vmem:[#allocation3 + $0xc0] sm:$0xff] %vm472, 0.0
        %1436 = vst.msk [vmem:[#allocation3 + $0xc8] sm:$0xff] %vm472, 0.0
        %1437 = vst.msk [vmem:[#allocation3 + $0xd0] sm:$0xff] %vm472, 0.0
        %1438 = vst.msk [vmem:[#allocation3 + $0xd8] sm:$0xff] %vm472, 0.0
        %1439 = vst.msk [vmem:[#allocation3 + $0xe0] sm:$0xff] %vm472, 0.0
        %1440 = vst.msk [vmem:[#allocation3 + $0xe8] sm:$0xff] %vm472, 0.0
        %1441 = vst.msk [vmem:[#allocation3 + $0xf0] sm:$0xff] %vm472, 0.0
        %1442 = vst.msk [vmem:[#allocation3 + $0xf8] sm:$0xff] %vm472, 0.0
        %1443 = vst.msk [vmem:[#allocation3 + $0x100] sm:$0xff] %vm472, 0.0
        %v1444 = vld [vmem:[#allocation2] ss:$2 sm:$0xff]
        %s1445 = scalar_lea.vmem [#allocation2], 16
        %v1446 = vld [vmem:[%s1445] ss:$2 sm:$0x3f]
        %s1447 = scalar_lea.vmem [#allocation2], 1
        %v1448 = vld [vmem:[%s1447] ss:$2 sm:$0xff]
        %s1449 = scalar_lea.vmem [#allocation2], 17
        %v1450 = vld [vmem:[%s1449] ss:$2 sm:$0x3f]
        %s1451 = scalar_lea.vmem [#allocation2], 28
        %v1452 = vld [vmem:[%s1451] ss:$2 sm:$0xff]
        %s1453 = scalar_lea.vmem [#allocation2], 44
        %v1454 = vld [vmem:[%s1453] ss:$2 sm:$0x3f]
        %s1455 = scalar_lea.vmem [#allocation2], 29
        %v1456 = vld [vmem:[%s1455] ss:$2 sm:$0xff]
        %s1457 = scalar_lea.vmem [#allocation2], 45
        %v1458 = vld [vmem:[%s1457] ss:$2 sm:$0x3f]
        %v1459 = vmax.f32 %v1444, %v1448
        %v1460 = vmax.f32 %v1446, %v1450
        %v1461 = vmax.f32 %v1452, %v1456
        %v1462 = vmax.f32 %v1454, %v1458
        %v1463 = vmax.f32 %v1459, %v1461
        %v1464 = vmax.f32 %v1460, %v1462
        %1465 = vst.msk [vmem:[#allocation3 + $0x11] sm:$0xff] %vm472, %v1463
        %vm1466 = vcmask 259072
        %1467 = vst.msk [vmem:[#allocation3 + $0x19] sm:$0x3f] %vm1466, %v1464
        %s1468 = scalar_lea.vmem [#allocation2], 56
        %v1469 = vld [vmem:[%s1468] ss:$2 sm:$0xff]
        %s1470 = scalar_lea.vmem [#allocation2], 72
        %v1471 = vld [vmem:[%s1470] ss:$2 sm:$0x3f]
        %s1472 = scalar_lea.vmem [#allocation2], 57
        %v1473 = vld [vmem:[%s1472] ss:$2 sm:$0xff]
        %s1474 = scalar_lea.vmem [#allocation2], 73
        %v1475 = vld [vmem:[%s1474] ss:$2 sm:$0x3f]
        %s1476 = scalar_lea.vmem [#allocation2], 84
        %v1477 = vld [vmem:[%s1476] ss:$2 sm:$0xff]
        %s1478 = scalar_lea.vmem [#allocation2], 100
        %v1479 = vld [vmem:[%s1478] ss:$2 sm:$0x3f]
        %s1480 = scalar_lea.vmem [#allocation2], 85
        %v1481 = vld [vmem:[%s1480] ss:$2 sm:$0xff]
        %s1482 = scalar_lea.vmem [#allocation2], 101
        %v1483 = vld [vmem:[%s1482] ss:$2 sm:$0x3f]
        %v1484 = vmax.f32 %v1469, %v1473
        %v1485 = vmax.f32 %v1471, %v1475
        %v1486 = vmax.f32 %v1477, %v1481
        %v1487 = vmax.f32 %v1479, %v1483
        %v1488 = vmax.f32 %v1484, %v1486
        %v1489 = vmax.f32 %v1485, %v1487
        %1490 = vst.msk [vmem:[#allocation3 + $0x21] sm:$0xff] %vm472, %v1488
        %1491 = vst.msk [vmem:[#allocation3 + $0x29] sm:$0x3f] %vm1466, %v1489
        %s1492 = scalar_lea.vmem [#allocation2], 112
        %v1493 = vld [vmem:[%s1492] ss:$2 sm:$0xff]
        %s1494 = scalar_lea.vmem [#allocation2], 128
        %v1495 = vld [vmem:[%s1494] ss:$2 sm:$0x3f]
        %s1496 = scalar_lea.vmem [#allocation2], 113
        %v1497 = vld [vmem:[%s1496] ss:$2 sm:$0xff]
        %s1498 = scalar_lea.vmem [#allocation2], 129
        %v1499 = vld [vmem:[%s1498] ss:$2 sm:$0x3f]
        %s1500 = scalar_lea.vmem [#allocation2], 140
        %v1501 = vld [vmem:[%s1500] ss:$2 sm:$0xff]
        %s1502 = scalar_lea.vmem [#allocation2], 156
        %v1503 = vld [vmem:[%s1502] ss:$2 sm:$0x3f]
        %s1504 = scalar_lea.vmem [#allocation2], 141
        %v1505 = vld [vmem:[%s1504] ss:$2 sm:$0xff]
        %s1506 = scalar_lea.vmem [#allocation2], 157
        %v1507 = vld [vmem:[%s1506] ss:$2 sm:$0x3f]
        %v1508 = vmax.f32 %v1493, %v1497
        %v1509 = vmax.f32 %v1495, %v1499
        %v1510 = vmax.f32 %v1501, %v1505
        %v1511 = vmax.f32 %v1503, %v1507
        %v1512 = vmax.f32 %v1508, %v1510
        %v1513 = vmax.f32 %v1509, %v1511
        %1514 = vst.msk [vmem:[#allocation3 + $0x31] sm:$0xff] %vm472, %v1512
        %1515 = vst.msk [vmem:[#allocation3 + $0x39] sm:$0x3f] %vm1466, %v1513
        %s1516 = scalar_lea.vmem [#allocation2], 168
        %v1517 = vld [vmem:[%s1516] ss:$2 sm:$0xff]
        %s1518 = scalar_lea.vmem [#allocation2], 184
        %v1519 = vld [vmem:[%s1518] ss:$2 sm:$0x3f]
        %s1520 = scalar_lea.vmem [#allocation2], 169
        %v1521 = vld [vmem:[%s1520] ss:$2 sm:$0xff]
        %s1522 = scalar_lea.vmem [#allocation2], 185
        %v1523 = vld [vmem:[%s1522] ss:$2 sm:$0x3f]
        %s1524 = scalar_lea.vmem [#allocation2], 196
        %v1525 = vld [vmem:[%s1524] ss:$2 sm:$0xff]
        %s1526 = scalar_lea.vmem [#allocation2], 212
        %v1527 = vld [vmem:[%s1526] ss:$2 sm:$0x3f]
        %s1528 = scalar_lea.vmem [#allocation2], 197
        %v1529 = vld [vmem:[%s1528] ss:$2 sm:$0xff]
        %s1530 = scalar_lea.vmem [#allocation2], 213
        %v1531 = vld [vmem:[%s1530] ss:$2 sm:$0x3f]
        %v1532 = vmax.f32 %v1517, %v1521
        %v1533 = vmax.f32 %v1519, %v1523
        %v1534 = vmax.f32 %v1525, %v1529
        %v1535 = vmax.f32 %v1527, %v1531
        %v1536 = vmax.f32 %v1532, %v1534
        %v1537 = vmax.f32 %v1533, %v1535
        %1538 = vst.msk [vmem:[#allocation3 + $0x41] sm:$0xff] %vm472, %v1536
        %1539 = vst.msk [vmem:[#allocation3 + $0x49] sm:$0x3f] %vm1466, %v1537
        %s1540 = scalar_lea.vmem [#allocation2], 224
        %v1541 = vld [vmem:[%s1540] ss:$2 sm:$0xff]
        %s1542 = scalar_lea.vmem [#allocation2], 240
        %v1543 = vld [vmem:[%s1542] ss:$2 sm:$0x3f]
        %s1544 = scalar_lea.vmem [#allocation2], 225
        %v1545 = vld [vmem:[%s1544] ss:$2 sm:$0xff]
        %s1546 = scalar_lea.vmem [#allocation2], 241
        %v1547 = vld [vmem:[%s1546] ss:$2 sm:$0x3f]
        %s1548 = scalar_lea.vmem [#allocation2], 252
        %v1549 = vld [vmem:[%s1548] ss:$2 sm:$0xff]
        %s1550 = scalar_lea.vmem [#allocation2], 268
        %v1551 = vld [vmem:[%s1550] ss:$2 sm:$0x3f]
        %s1552 = scalar_lea.vmem [#allocation2], 253
        %v1553 = vld [vmem:[%s1552] ss:$2 sm:$0xff]
        %s1554 = scalar_lea.vmem [#allocation2], 269
        %v1555 = vld [vmem:[%s1554] ss:$2 sm:$0x3f]
        %v1556 = vmax.f32 %v1541, %v1545
        %v1557 = vmax.f32 %v1543, %v1547
        %v1558 = vmax.f32 %v1549, %v1553
        %v1559 = vmax.f32 %v1551, %v1555
        %v1560 = vmax.f32 %v1556, %v1558
        %v1561 = vmax.f32 %v1557, %v1559
        %1562 = vst.msk [vmem:[#allocation3 + $0x51] sm:$0xff] %vm472, %v1560
        %1563 = vst.msk [vmem:[#allocation3 + $0x59] sm:$0x3f] %vm1466, %v1561
        %s1564 = scalar_lea.vmem [#allocation2], 280
        %v1565 = vld [vmem:[%s1564] ss:$2 sm:$0xff]
        %s1566 = scalar_lea.vmem [#allocation2], 296
        %v1567 = vld [vmem:[%s1566] ss:$2 sm:$0x3f]
        %s1568 = scalar_lea.vmem [#allocation2], 281
        %v1569 = vld [vmem:[%s1568] ss:$2 sm:$0xff]
        %s1570 = scalar_lea.vmem [#allocation2], 297
        %v1571 = vld [vmem:[%s1570] ss:$2 sm:$0x3f]
        %s1572 = scalar_lea.vmem [#allocation2], 308
        %v1573 = vld [vmem:[%s1572] ss:$2 sm:$0xff]
        %s1574 = scalar_lea.vmem [#allocation2], 324
        %v1575 = vld [vmem:[%s1574] ss:$2 sm:$0x3f]
        %s1576 = scalar_lea.vmem [#allocation2], 309
        %v1577 = vld [vmem:[%s1576] ss:$2 sm:$0xff]
        %s1578 = scalar_lea.vmem [#allocation2], 325
        %v1579 = vld [vmem:[%s1578] ss:$2 sm:$0x3f]
        %v1580 = vmax.f32 %v1565, %v1569
        %v1581 = vmax.f32 %v1567, %v1571
        %v1582 = vmax.f32 %v1573, %v1577
        %v1583 = vmax.f32 %v1575, %v1579
        %v1584 = vmax.f32 %v1580, %v1582
        %v1585 = vmax.f32 %v1581, %v1583
        %1586 = vst.msk [vmem:[#allocation3 + $0x61] sm:$0xff] %vm472, %v1584
        %1587 = vst.msk [vmem:[#allocation3 + $0x69] sm:$0x3f] %vm1466, %v1585
        %s1588 = scalar_lea.vmem [#allocation2], 336
        %v1589 = vld [vmem:[%s1588] ss:$2 sm:$0xff]
        %s1590 = scalar_lea.vmem [#allocation2], 352
        %v1591 = vld [vmem:[%s1590] ss:$2 sm:$0x3f]
        %s1592 = scalar_lea.vmem [#allocation2], 337
        %v1593 = vld [vmem:[%s1592] ss:$2 sm:$0xff]
        %s1594 = scalar_lea.vmem [#allocation2], 353
        %v1595 = vld [vmem:[%s1594] ss:$2 sm:$0x3f]
        %s1596 = scalar_lea.vmem [#allocation2], 364
        %v1597 = vld [vmem:[%s1596] ss:$2 sm:$0xff]
        %s1598 = scalar_lea.vmem [#allocation2], 380
        %v1599 = vld [vmem:[%s1598] ss:$2 sm:$0x3f]
        %s1600 = scalar_lea.vmem [#allocation2], 365
        %v1601 = vld [vmem:[%s1600] ss:$2 sm:$0xff]
        %s1602 = scalar_lea.vmem [#allocation2], 381
        %v1603 = vld [vmem:[%s1602] ss:$2 sm:$0x3f]
        %v1604 = vmax.f32 %v1589, %v1593
        %v1605 = vmax.f32 %v1591, %v1595
        %v1606 = vmax.f32 %v1597, %v1601
        %v1607 = vmax.f32 %v1599, %v1603
        %v1608 = vmax.f32 %v1604, %v1606
        %v1609 = vmax.f32 %v1605, %v1607
        %1610 = vst.msk [vmem:[#allocation3 + $0x71] sm:$0xff] %vm472, %v1608
        %1611 = vst.msk [vmem:[#allocation3 + $0x79] sm:$0x3f] %vm1466, %v1609
        %s1612 = scalar_lea.vmem [#allocation2], 392
        %v1613 = vld [vmem:[%s1612] ss:$2 sm:$0xff]
        %s1614 = scalar_lea.vmem [#allocation2], 408
        %v1615 = vld [vmem:[%s1614] ss:$2 sm:$0x3f]
        %s1616 = scalar_lea.vmem [#allocation2], 393
        %v1617 = vld [vmem:[%s1616] ss:$2 sm:$0xff]
        %s1618 = scalar_lea.vmem [#allocation2], 409
        %v1619 = vld [vmem:[%s1618] ss:$2 sm:$0x3f]
        %s1620 = scalar_lea.vmem [#allocation2], 420
        %v1621 = vld [vmem:[%s1620] ss:$2 sm:$0xff]
        %s1622 = scalar_lea.vmem [#allocation2], 436
        %v1623 = vld [vmem:[%s1622] ss:$2 sm:$0x3f]
        %s1624 = scalar_lea.vmem [#allocation2], 421
        %v1625 = vld [vmem:[%s1624] ss:$2 sm:$0xff]
        %s1626 = scalar_lea.vmem [#allocation2], 437
        %v1627 = vld [vmem:[%s1626] ss:$2 sm:$0x3f]
        %v1628 = vmax.f32 %v1613, %v1617
        %v1629 = vmax.f32 %v1615, %v1619
        %v1630 = vmax.f32 %v1621, %v1625
        %v1631 = vmax.f32 %v1623, %v1627
        %v1632 = vmax.f32 %v1628, %v1630
        %v1633 = vmax.f32 %v1629, %v1631
        %1634 = vst.msk [vmem:[#allocation3 + $0x81] sm:$0xff] %vm472, %v1632
        %1635 = vst.msk [vmem:[#allocation3 + $0x89] sm:$0x3f] %vm1466, %v1633
        %s1636 = scalar_lea.vmem [#allocation2], 448
        %v1637 = vld [vmem:[%s1636] ss:$2 sm:$0xff]
        %s1638 = scalar_lea.vmem [#allocation2], 464
        %v1639 = vld [vmem:[%s1638] ss:$2 sm:$0x3f]
        %s1640 = scalar_lea.vmem [#allocation2], 449
        %v1641 = vld [vmem:[%s1640] ss:$2 sm:$0xff]
        %s1642 = scalar_lea.vmem [#allocation2], 465
        %v1643 = vld [vmem:[%s1642] ss:$2 sm:$0x3f]
        %s1644 = scalar_lea.vmem [#allocation2], 476
        %v1645 = vld [vmem:[%s1644] ss:$2 sm:$0xff]
        %s1646 = scalar_lea.vmem [#allocation2], 492
        %v1647 = vld [vmem:[%s1646] ss:$2 sm:$0x3f]
        %s1648 = scalar_lea.vmem [#allocation2], 477
        %v1649 = vld [vmem:[%s1648] ss:$2 sm:$0xff]
        %s1650 = scalar_lea.vmem [#allocation2], 493
        %v1651 = vld [vmem:[%s1650] ss:$2 sm:$0x3f]
        %v1652 = vmax.f32 %v1637, %v1641
        %v1653 = vmax.f32 %v1639, %v1643
        %v1654 = vmax.f32 %v1645, %v1649
        %v1655 = vmax.f32 %v1647, %v1651
        %v1656 = vmax.f32 %v1652, %v1654
        %v1657 = vmax.f32 %v1653, %v1655
        %1658 = vst.msk [vmem:[#allocation3 + $0x91] sm:$0xff] %vm472, %v1656
        %1659 = vst.msk [vmem:[#allocation3 + $0x99] sm:$0x3f] %vm1466, %v1657
        %s1660 = scalar_lea.vmem [#allocation2], 504
        %v1661 = vld [vmem:[%s1660] ss:$2 sm:$0xff]
        %s1662 = scalar_lea.vmem [#allocation2], 520
        %v1663 = vld [vmem:[%s1662] ss:$2 sm:$0x3f]
        %s1664 = scalar_lea.vmem [#allocation2], 505
        %v1665 = vld [vmem:[%s1664] ss:$2 sm:$0xff]
        %s1666 = scalar_lea.vmem [#allocation2], 521
        %v1667 = vld [vmem:[%s1666] ss:$2 sm:$0x3f]
        %s1668 = scalar_lea.vmem [#allocation2], 532
        %v1669 = vld [vmem:[%s1668] ss:$2 sm:$0xff]
        %s1670 = scalar_lea.vmem [#allocation2], 548
        %v1671 = vld [vmem:[%s1670] ss:$2 sm:$0x3f]
        %s1672 = scalar_lea.vmem [#allocation2], 533
        %v1673 = vld [vmem:[%s1672] ss:$2 sm:$0xff]
        %s1674 = scalar_lea.vmem [#allocation2], 549
        %v1675 = vld [vmem:[%s1674] ss:$2 sm:$0x3f]
        %v1676 = vmax.f32 %v1661, %v1665
        %v1677 = vmax.f32 %v1663, %v1667
        %v1678 = vmax.f32 %v1669, %v1673
        %v1679 = vmax.f32 %v1671, %v1675
        %v1680 = vmax.f32 %v1676, %v1678
        %v1681 = vmax.f32 %v1677, %v1679
        %1682 = vst.msk [vmem:[#allocation3 + $0xa1] sm:$0xff] %vm472, %v1680
        %1683 = vst.msk [vmem:[#allocation3 + $0xa9] sm:$0x3f] %vm1466, %v1681
        %s1684 = scalar_lea.vmem [#allocation2], 560
        %v1685 = vld [vmem:[%s1684] ss:$2 sm:$0xff]
        %s1686 = scalar_lea.vmem [#allocation2], 576
        %v1687 = vld [vmem:[%s1686] ss:$2 sm:$0x3f]
        %s1688 = scalar_lea.vmem [#allocation2], 561
        %v1689 = vld [vmem:[%s1688] ss:$2 sm:$0xff]
        %s1690 = scalar_lea.vmem [#allocation2], 577
        %v1691 = vld [vmem:[%s1690] ss:$2 sm:$0x3f]
        %s1692 = scalar_lea.vmem [#allocation2], 588
        %v1693 = vld [vmem:[%s1692] ss:$2 sm:$0xff]
        %s1694 = scalar_lea.vmem [#allocation2], 604
        %v1695 = vld [vmem:[%s1694] ss:$2 sm:$0x3f]
        %s1696 = scalar_lea.vmem [#allocation2], 589
        %v1697 = vld [vmem:[%s1696] ss:$2 sm:$0xff]
        %s1698 = scalar_lea.vmem [#allocation2], 605
        %v1699 = vld [vmem:[%s1698] ss:$2 sm:$0x3f]
        %v1700 = vmax.f32 %v1685, %v1689
        %v1701 = vmax.f32 %v1687, %v1691
        %v1702 = vmax.f32 %v1693, %v1697
        %v1703 = vmax.f32 %v1695, %v1699
        %v1704 = vmax.f32 %v1700, %v1702
        %v1705 = vmax.f32 %v1701, %v1703
        %1706 = vst.msk [vmem:[#allocation3 + $0xb1] sm:$0xff] %vm472, %v1704
        %1707 = vst.msk [vmem:[#allocation3 + $0xb9] sm:$0x3f] %vm1466, %v1705
        %s1708 = scalar_lea.vmem [#allocation2], 616
        %v1709 = vld [vmem:[%s1708] ss:$2 sm:$0xff]
        %s1710 = scalar_lea.vmem [#allocation2], 632
        %v1711 = vld [vmem:[%s1710] ss:$2 sm:$0x3f]
        %s1712 = scalar_lea.vmem [#allocation2], 617
        %v1713 = vld [vmem:[%s1712] ss:$2 sm:$0xff]
        %s1714 = scalar_lea.vmem [#allocation2], 633
        %v1715 = vld [vmem:[%s1714] ss:$2 sm:$0x3f]
        %s1716 = scalar_lea.vmem [#allocation2], 644
        %v1717 = vld [vmem:[%s1716] ss:$2 sm:$0xff]
        %s1718 = scalar_lea.vmem [#allocation2], 660
        %v1719 = vld [vmem:[%s1718] ss:$2 sm:$0x3f]
        %s1720 = scalar_lea.vmem [#allocation2], 645
        %v1721 = vld [vmem:[%s1720] ss:$2 sm:$0xff]
        %s1722 = scalar_lea.vmem [#allocation2], 661
        %v1723 = vld [vmem:[%s1722] ss:$2 sm:$0x3f]
        %v1724 = vmax.f32 %v1709, %v1713
        %v1725 = vmax.f32 %v1711, %v1715
        %v1726 = vmax.f32 %v1717, %v1721
        %v1727 = vmax.f32 %v1719, %v1723
        %v1728 = vmax.f32 %v1724, %v1726
        %v1729 = vmax.f32 %v1725, %v1727
        %1730 = vst.msk [vmem:[#allocation3 + $0xc1] sm:$0xff] %vm472, %v1728
        %1731 = vst.msk [vmem:[#allocation3 + $0xc9] sm:$0x3f] %vm1466, %v1729
        %s1732 = scalar_lea.vmem [#allocation2], 672
        %v1733 = vld [vmem:[%s1732] ss:$2 sm:$0xff]
        %s1734 = scalar_lea.vmem [#allocation2], 688
        %v1735 = vld [vmem:[%s1734] ss:$2 sm:$0x3f]
        %s1736 = scalar_lea.vmem [#allocation2], 673
        %v1737 = vld [vmem:[%s1736] ss:$2 sm:$0xff]
        %s1738 = scalar_lea.vmem [#allocation2], 689
        %v1739 = vld [vmem:[%s1738] ss:$2 sm:$0x3f]
        %s1740 = scalar_lea.vmem [#allocation2], 700
        %v1741 = vld [vmem:[%s1740] ss:$2 sm:$0xff]
        %s1742 = scalar_lea.vmem [#allocation2], 716
        %v1743 = vld [vmem:[%s1742] ss:$2 sm:$0x3f]
        %s1744 = scalar_lea.vmem [#allocation2], 701
        %v1745 = vld [vmem:[%s1744] ss:$2 sm:$0xff]
        %s1746 = scalar_lea.vmem [#allocation2], 717
        %v1747 = vld [vmem:[%s1746] ss:$2 sm:$0x3f]
        %v1748 = vmax.f32 %v1733, %v1737
        %v1749 = vmax.f32 %v1735, %v1739
        %v1750 = vmax.f32 %v1741, %v1745
        %v1751 = vmax.f32 %v1743, %v1747
        %v1752 = vmax.f32 %v1748, %v1750
        %v1753 = vmax.f32 %v1749, %v1751
        %1754 = vst.msk [vmem:[#allocation3 + $0xd1] sm:$0xff] %vm472, %v1752
        %1755 = vst.msk [vmem:[#allocation3 + $0xd9] sm:$0x3f] %vm1466, %v1753
        %s1756 = scalar_lea.vmem [#allocation2], 728
        %v1757 = vld [vmem:[%s1756] ss:$2 sm:$0xff]
        %s1758 = scalar_lea.vmem [#allocation2], 744
        %v1759 = vld [vmem:[%s1758] ss:$2 sm:$0x3f]
        %s1760 = scalar_lea.vmem [#allocation2], 729
        %v1761 = vld [vmem:[%s1760] ss:$2 sm:$0xff]
        %s1762 = scalar_lea.vmem [#allocation2], 745
        %v1763 = vld [vmem:[%s1762] ss:$2 sm:$0x3f]
        %s1764 = scalar_lea.vmem [#allocation2], 756
        %v1765 = vld [vmem:[%s1764] ss:$2 sm:$0xff]
        %s1766 = scalar_lea.vmem [#allocation2], 772
        %v1767 = vld [vmem:[%s1766] ss:$2 sm:$0x3f]
        %s1768 = scalar_lea.vmem [#allocation2], 757
        %v1769 = vld [vmem:[%s1768] ss:$2 sm:$0xff]
        %s1770 = scalar_lea.vmem [#allocation2], 773
        %v1771 = vld [vmem:[%s1770] ss:$2 sm:$0x3f]
        %v1772 = vmax.f32 %v1757, %v1761
        %v1773 = vmax.f32 %v1759, %v1763
        %v1774 = vmax.f32 %v1765, %v1769
        %v1775 = vmax.f32 %v1767, %v1771
        %v1776 = vmax.f32 %v1772, %v1774
        %v1777 = vmax.f32 %v1773, %v1775
        %1778 = vst.msk [vmem:[#allocation3 + $0xe1] sm:$0xff] %vm472, %v1776
        %1779 = vst.msk [vmem:[#allocation3 + $0xe9] sm:$0x3f] %vm1466, %v1777
        %v1780 = vld [vmem:[#allocation3] sm:$0xff]
        %v1781 = vld [vmem:[#allocation3 + $0x8] sm:$0xff]
        %v1782 = vld [vmem:[#allocation3 + $0x10] sm:$0xff]
        %v1783 = vld [vmem:[#allocation3 + $0x18] sm:$0xff]
        %v1784 = vld [vmem:[#allocation3 + $0x20] sm:$0xff]
        %v1785 = vld [vmem:[#allocation3 + $0x28] sm:$0xff]
        %v1786 = vld [vmem:[#allocation3 + $0x30] sm:$0xff]
        %v1787 = vld [vmem:[#allocation3 + $0x38] sm:$0xff]
        %v1788 = vld [vmem:[#allocation3 + $0x40] sm:$0xff]
        %v1789 = vld [vmem:[#allocation3 + $0x48] sm:$0xff]
        %v1790 = vld [vmem:[#allocation3 + $0x50] sm:$0xff]
        %v1791 = vld [vmem:[#allocation3 + $0x58] sm:$0xff]
        %v1792 = vld [vmem:[#allocation3 + $0x60] sm:$0xff]
        %v1793 = vld [vmem:[#allocation3 + $0x68] sm:$0xff]
        %v1794 = vld [vmem:[#allocation3 + $0x70] sm:$0xff]
        %v1795 = vld [vmem:[#allocation3 + $0x78] sm:$0xff]
        %v1796 = vld [vmem:[#allocation3 + $0x80] sm:$0xff]
        %v1797 = vld [vmem:[#allocation3 + $0x88] sm:$0xff]
        %v1798 = vld [vmem:[#allocation3 + $0x90] sm:$0xff]
        %v1799 = vld [vmem:[#allocation3 + $0x98] sm:$0xff]
        %v1800 = vld [vmem:[#allocation3 + $0xa0] sm:$0xff]
        %v1801 = vld [vmem:[#allocation3 + $0xa8] sm:$0xff]
        %v1802 = vld [vmem:[#allocation3 + $0xb0] sm:$0xff]
        %v1803 = vld [vmem:[#allocation3 + $0xb8] sm:$0xff]
        %v1804 = vld [vmem:[#allocation3 + $0xc0] sm:$0xff]
        %v1805 = vld [vmem:[#allocation3 + $0xc8] sm:$0xff]
        %v1806 = vld [vmem:[#allocation3 + $0xd0] sm:$0xff]
        %v1807 = vld [vmem:[#allocation3 + $0xd8] sm:$0xff]
        %1808 = vst.msk [vmem:[#allocation4] sm:$0xff] %vm472, %v1780
        %1809 = vst.msk [vmem:[#allocation4 + $0x18] sm:$0xff] %vm472, %v1781
        %1810 = vst.msk [vmem:[#allocation4 + $0x30] sm:$0xff] %vm472, %v1782
        %1811 = vst.msk [vmem:[#allocation4 + $0x48] sm:$0xff] %vm472, %v1783
        %1812 = vst.msk [vmem:[#allocation4 + $0x60] sm:$0xff] %vm472, %v1784
        %1813 = vst.msk [vmem:[#allocation4 + $0x78] sm:$0xff] %vm472, %v1785
        %1814 = vst.msk [vmem:[#allocation4 + $0x90] sm:$0xff] %vm472, %v1786
        %1815 = vst.msk [vmem:[#allocation4 + $0xa8] sm:$0xff] %vm472, %v1787
        %1816 = vst.msk [vmem:[#allocation4 + $0xc0] sm:$0xff] %vm472, %v1788
        %1817 = vst.msk [vmem:[#allocation4 + $0xd8] sm:$0xff] %vm472, %v1789
        %1818 = vst.msk [vmem:[#allocation4 + $0xf0] sm:$0xff] %vm472, %v1790
        %1819 = vst.msk [vmem:[#allocation4 + $0x108] sm:$0xff] %vm472, %v1791
        %1820 = vst.msk [vmem:[#allocation4 + $0x120] sm:$0xff] %vm472, %v1792
        %1821 = vst.msk [vmem:[#allocation4 + $0x138] sm:$0xff] %vm472, %v1793
        %1822 = vst.msk [vmem:[#allocation4 + $0x150] sm:$0xff] %vm472, %v1794
        %1823 = vst.msk [vmem:[#allocation4 + $0x168] sm:$0xff] %vm472, %v1795
        %1824 = vst.msk [vmem:[#allocation4 + $0x180] sm:$0xff] %vm472, %v1796
        %1825 = vst.msk [vmem:[#allocation4 + $0x198] sm:$0xff] %vm472, %v1797
        %1826 = vst.msk [vmem:[#allocation4 + $0x1b0] sm:$0xff] %vm472, %v1798
        %1827 = vst.msk [vmem:[#allocation4 + $0x1c8] sm:$0xff] %vm472, %v1799
        %1828 = vst.msk [vmem:[#allocation4 + $0x1e0] sm:$0xff] %vm472, %v1800
        %1829 = vst.msk [vmem:[#allocation4 + $0x1f8] sm:$0xff] %vm472, %v1801
        %1830 = vst.msk [vmem:[#allocation4 + $0x210] sm:$0xff] %vm472, %v1802
        %1831 = vst.msk [vmem:[#allocation4 + $0x228] sm:$0xff] %vm472, %v1803
        %1832 = vst.msk [vmem:[#allocation4 + $0x240] sm:$0xff] %vm472, %v1804
        %1833 = vst.msk [vmem:[#allocation4 + $0x258] sm:$0xff] %vm472, %v1805
        %1834 = vst.msk [vmem:[#allocation4 + $0x270] sm:$0xff] %vm472, %v1806
        %1835 = vst.msk [vmem:[#allocation4 + $0x288] sm:$0xff] %vm472, %v1807
        %v1836 = vld [vmem:[#allocation3 + $0x1] sm:$0xff]
        %v1837 = vld [vmem:[#allocation3 + $0x9] sm:$0xff]
        %v1838 = vld [vmem:[#allocation3 + $0x11] sm:$0xff]
        %v1839 = vld [vmem:[#allocation3 + $0x19] sm:$0xff]
        %v1840 = vld [vmem:[#allocation3 + $0x21] sm:$0xff]
        %v1841 = vld [vmem:[#allocation3 + $0x29] sm:$0xff]
        %v1842 = vld [vmem:[#allocation3 + $0x31] sm:$0xff]
        %v1843 = vld [vmem:[#allocation3 + $0x39] sm:$0xff]
        %v1844 = vld [vmem:[#allocation3 + $0x41] sm:$0xff]
        %v1845 = vld [vmem:[#allocation3 + $0x49] sm:$0xff]
        %v1846 = vld [vmem:[#allocation3 + $0x51] sm:$0xff]
        %v1847 = vld [vmem:[#allocation3 + $0x59] sm:$0xff]
        %v1848 = vld [vmem:[#allocation3 + $0x61] sm:$0xff]
        %v1849 = vld [vmem:[#allocation3 + $0x69] sm:$0xff]
        %v1850 = vld [vmem:[#allocation3 + $0x71] sm:$0xff]
        %v1851 = vld [vmem:[#allocation3 + $0x79] sm:$0xff]
        %v1852 = vld [vmem:[#allocation3 + $0x81] sm:$0xff]
        %v1853 = vld [vmem:[#allocation3 + $0x89] sm:$0xff]
        %v1854 = vld [vmem:[#allocation3 + $0x91] sm:$0xff]
        %v1855 = vld [vmem:[#allocation3 + $0x99] sm:$0xff]
        %v1856 = vld [vmem:[#allocation3 + $0xa1] sm:$0xff]
        %v1857 = vld [vmem:[#allocation3 + $0xa9] sm:$0xff]
        %v1858 = vld [vmem:[#allocation3 + $0xb1] sm:$0xff]
        %v1859 = vld [vmem:[#allocation3 + $0xb9] sm:$0xff]
        %v1860 = vld [vmem:[#allocation3 + $0xc1] sm:$0xff]
        %v1861 = vld [vmem:[#allocation3 + $0xc9] sm:$0xff]
        %v1862 = vld [vmem:[#allocation3 + $0xd1] sm:$0xff]
        %v1863 = vld [vmem:[#allocation3 + $0xd9] sm:$0xff]
        %1892 = vrot.lane.b32.xlu0 %v1836, 32
        %v1893 = vpop.permute.xlu0 %1892
        %1894 = vrot.lane.b32.xlu0 %v1837, 32
        %v1895 = vpop.permute.xlu0 %1894
        %1896 = vrot.lane.b32.xlu0 %v1838, 32
        %v1897 = vpop.permute.xlu0 %1896
        %1898 = vrot.lane.b32.xlu0 %v1839, 32
        %v1899 = vpop.permute.xlu0 %1898
        %1900 = vrot.lane.b32.xlu0 %v1840, 32
        %v1901 = vpop.permute.xlu0 %1900
        %1902 = vrot.lane.b32.xlu0 %v1841, 32
        %v1903 = vpop.permute.xlu0 %1902
        %1904 = vrot.lane.b32.xlu0 %v1842, 32
        %v1905 = vpop.permute.xlu0 %1904
        %1906 = vrot.lane.b32.xlu0 %v1843, 32
        %v1907 = vpop.permute.xlu0 %1906
        %1908 = vrot.lane.b32.xlu0 %v1844, 32
        %v1909 = vpop.permute.xlu0 %1908
        %1910 = vrot.lane.b32.xlu0 %v1845, 32
        %v1911 = vpop.permute.xlu0 %1910
        %1912 = vrot.lane.b32.xlu0 %v1846, 32
        %v1913 = vpop.permute.xlu0 %1912
        %1914 = vrot.lane.b32.xlu0 %v1847, 32
        %v1915 = vpop.permute.xlu0 %1914
        %1916 = vrot.lane.b32.xlu0 %v1848, 32
        %v1917 = vpop.permute.xlu0 %1916
        %1918 = vrot.lane.b32.xlu0 %v1849, 32
        %v1919 = vpop.permute.xlu0 %1918
        %1920 = vrot.lane.b32.xlu0 %v1850, 32
        %v1921 = vpop.permute.xlu0 %1920
        %1922 = vrot.lane.b32.xlu0 %v1851, 32
        %v1923 = vpop.permute.xlu0 %1922
        %1924 = vrot.lane.b32.xlu0 %v1852, 32
        %v1925 = vpop.permute.xlu0 %1924
        %1926 = vrot.lane.b32.xlu0 %v1853, 32
        %v1927 = vpop.permute.xlu0 %1926
        %1928 = vrot.lane.b32.xlu0 %v1854, 32
        %v1929 = vpop.permute.xlu0 %1928
        %1930 = vrot.lane.b32.xlu0 %v1855, 32
        %v1931 = vpop.permute.xlu0 %1930
        %1932 = vrot.lane.b32.xlu0 %v1856, 32
        %v1933 = vpop.permute.xlu0 %1932
        %1934 = vrot.lane.b32.xlu0 %v1857, 32
        %v1935 = vpop.permute.xlu0 %1934
        %1936 = vrot.lane.b32.xlu0 %v1858, 32
        %v1937 = vpop.permute.xlu0 %1936
        %1938 = vrot.lane.b32.xlu0 %v1859, 32
        %v1939 = vpop.permute.xlu0 %1938
        %1940 = vrot.lane.b32.xlu0 %v1860, 32
        %v1941 = vpop.permute.xlu0 %1940
        %1942 = vrot.lane.b32.xlu0 %v1861, 32
        %v1943 = vpop.permute.xlu0 %1942
        %1944 = vrot.lane.b32.xlu0 %v1862, 32
        %v1945 = vpop.permute.xlu0 %1944
        %1946 = vrot.lane.b32.xlu0 %v1863, 32
        %v1947 = vpop.permute.xlu0 %1946
        %vm1976 = vcmask 523520
        %1977 = vst.msk [vmem:[#allocation4] sm:$0xff] %vm1976, %v1893
        %1978 = vst.msk [vmem:[#allocation4 + $0x18] sm:$0xff] %vm1976, %v1895
        %1979 = vst.msk [vmem:[#allocation4 + $0x30] sm:$0xff] %vm1976, %v1897
        %1980 = vst.msk [vmem:[#allocation4 + $0x48] sm:$0xff] %vm1976, %v1899
        %1981 = vst.msk [vmem:[#allocation4 + $0x60] sm:$0xff] %vm1976, %v1901
        %1982 = vst.msk [vmem:[#allocation4 + $0x78] sm:$0xff] %vm1976, %v1903
        %1983 = vst.msk [vmem:[#allocation4 + $0x90] sm:$0xff] %vm1976, %v1905
        %1984 = vst.msk [vmem:[#allocation4 + $0xa8] sm:$0xff] %vm1976, %v1907
        %1985 = vst.msk [vmem:[#allocation4 + $0xc0] sm:$0xff] %vm1976, %v1909
        %1986 = vst.msk [vmem:[#allocation4 + $0xd8] sm:$0xff] %vm1976, %v1911
        %1987 = vst.msk [vmem:[#allocation4 + $0xf0] sm:$0xff] %vm1976, %v1913
        %1988 = vst.msk [vmem:[#allocation4 + $0x108] sm:$0xff] %vm1976, %v1915
        %1989 = vst.msk [vmem:[#allocation4 + $0x120] sm:$0xff] %vm1976, %v1917
        %1990 = vst.msk [vmem:[#allocation4 + $0x138] sm:$0xff] %vm1976, %v1919
        %1991 = vst.msk [vmem:[#allocation4 + $0x150] sm:$0xff] %vm1976, %v1921
        %1992 = vst.msk [vmem:[#allocation4 + $0x168] sm:$0xff] %vm1976, %v1923
        %1993 = vst.msk [vmem:[#allocation4 + $0x180] sm:$0xff] %vm1976, %v1925
        %1994 = vst.msk [vmem:[#allocation4 + $0x198] sm:$0xff] %vm1976, %v1927
        %1995 = vst.msk [vmem:[#allocation4 + $0x1b0] sm:$0xff] %vm1976, %v1929
        %1996 = vst.msk [vmem:[#allocation4 + $0x1c8] sm:$0xff] %vm1976, %v1931
        %1997 = vst.msk [vmem:[#allocation4 + $0x1e0] sm:$0xff] %vm1976, %v1933
        %1998 = vst.msk [vmem:[#allocation4 + $0x1f8] sm:$0xff] %vm1976, %v1935
        %1999 = vst.msk [vmem:[#allocation4 + $0x210] sm:$0xff] %vm1976, %v1937
        %2000 = vst.msk [vmem:[#allocation4 + $0x228] sm:$0xff] %vm1976, %v1939
        %2001 = vst.msk [vmem:[#allocation4 + $0x240] sm:$0xff] %vm1976, %v1941
        %2002 = vst.msk [vmem:[#allocation4 + $0x258] sm:$0xff] %vm1976, %v1943
        %2003 = vst.msk [vmem:[#allocation4 + $0x270] sm:$0xff] %vm1976, %v1945
        %2004 = vst.msk [vmem:[#allocation4 + $0x288] sm:$0xff] %vm1976, %v1947
        %v2005 = vld [vmem:[#allocation3 + $0x2] sm:$0xff]
        %v2006 = vld [vmem:[#allocation3 + $0xa] sm:$0xff]
        %v2007 = vld [vmem:[#allocation3 + $0x12] sm:$0xff]
        %v2008 = vld [vmem:[#allocation3 + $0x1a] sm:$0xff]
        %v2009 = vld [vmem:[#allocation3 + $0x22] sm:$0xff]
        %v2010 = vld [vmem:[#allocation3 + $0x2a] sm:$0xff]
        %v2011 = vld [vmem:[#allocation3 + $0x32] sm:$0xff]
        %v2012 = vld [vmem:[#allocation3 + $0x3a] sm:$0xff]
        %v2013 = vld [vmem:[#allocation3 + $0x42] sm:$0xff]
        %v2014 = vld [vmem:[#allocation3 + $0x4a] sm:$0xff]
        %v2015 = vld [vmem:[#allocation3 + $0x52] sm:$0xff]
        %v2016 = vld [vmem:[#allocation3 + $0x5a] sm:$0xff]
        %v2017 = vld [vmem:[#allocation3 + $0x62] sm:$0xff]
        %v2018 = vld [vmem:[#allocation3 + $0x6a] sm:$0xff]
        %v2019 = vld [vmem:[#allocation3 + $0x72] sm:$0xff]
        %v2020 = vld [vmem:[#allocation3 + $0x7a] sm:$0xff]
        %v2021 = vld [vmem:[#allocation3 + $0x82] sm:$0xff]
        %v2022 = vld [vmem:[#allocation3 + $0x8a] sm:$0xff]
        %v2023 = vld [vmem:[#allocation3 + $0x92] sm:$0xff]
        %v2024 = vld [vmem:[#allocation3 + $0x9a] sm:$0xff]
        %v2025 = vld [vmem:[#allocation3 + $0xa2] sm:$0xff]
        %v2026 = vld [vmem:[#allocation3 + $0xaa] sm:$0xff]
        %v2027 = vld [vmem:[#allocation3 + $0xb2] sm:$0xff]
        %v2028 = vld [vmem:[#allocation3 + $0xba] sm:$0xff]
        %v2029 = vld [vmem:[#allocation3 + $0xc2] sm:$0xff]
        %v2030 = vld [vmem:[#allocation3 + $0xca] sm:$0xff]
        %v2031 = vld [vmem:[#allocation3 + $0xd2] sm:$0xff]
        %v2032 = vld [vmem:[#allocation3 + $0xda] sm:$0xff]
        %2061 = vrot.lane.b32.xlu0 %v2005, 64
        %v2062 = vpop.permute.xlu0 %2061
        %2063 = vrot.lane.b32.xlu0 %v2006, 64
        %v2064 = vpop.permute.xlu0 %2063
        %2065 = vrot.lane.b32.xlu0 %v2007, 64
        %v2066 = vpop.permute.xlu0 %2065
        %2067 = vrot.lane.b32.xlu0 %v2008, 64
        %v2068 = vpop.permute.xlu0 %2067
        %2069 = vrot.lane.b32.xlu0 %v2009, 64
        %v2070 = vpop.permute.xlu0 %2069
        %2071 = vrot.lane.b32.xlu0 %v2010, 64
        %v2072 = vpop.permute.xlu0 %2071
        %2073 = vrot.lane.b32.xlu0 %v2011, 64
        %v2074 = vpop.permute.xlu0 %2073
        %2075 = vrot.lane.b32.xlu0 %v2012, 64
        %v2076 = vpop.permute.xlu0 %2075
        %2077 = vrot.lane.b32.xlu0 %v2013, 64
        %v2078 = vpop.permute.xlu0 %2077
        %2079 = vrot.lane.b32.xlu0 %v2014, 64
        %v2080 = vpop.permute.xlu0 %2079
        %2081 = vrot.lane.b32.xlu0 %v2015, 64
        %v2082 = vpop.permute.xlu0 %2081
        %2083 = vrot.lane.b32.xlu0 %v2016, 64
        %v2084 = vpop.permute.xlu0 %2083
        %2085 = vrot.lane.b32.xlu0 %v2017, 64
        %v2086 = vpop.permute.xlu0 %2085
        %2087 = vrot.lane.b32.xlu0 %v2018, 64
        %v2088 = vpop.permute.xlu0 %2087
        %2089 = vrot.lane.b32.xlu0 %v2019, 64
        %v2090 = vpop.permute.xlu0 %2089
        %2091 = vrot.lane.b32.xlu0 %v2020, 64
        %v2092 = vpop.permute.xlu0 %2091
        %2093 = vrot.lane.b32.xlu0 %v2021, 64
        %v2094 = vpop.permute.xlu0 %2093
        %2095 = vrot.lane.b32.xlu0 %v2022, 64
        %v2096 = vpop.permute.xlu0 %2095
        %2097 = vrot.lane.b32.xlu0 %v2023, 64
        %v2098 = vpop.permute.xlu0 %2097
        %2099 = vrot.lane.b32.xlu0 %v2024, 64
        %v2100 = vpop.permute.xlu0 %2099
        %2101 = vrot.lane.b32.xlu0 %v2025, 64
        %v2102 = vpop.permute.xlu0 %2101
        %2103 = vrot.lane.b32.xlu0 %v2026, 64
        %v2104 = vpop.permute.xlu0 %2103
        %2105 = vrot.lane.b32.xlu0 %v2027, 64
        %v2106 = vpop.permute.xlu0 %2105
        %2107 = vrot.lane.b32.xlu0 %v2028, 64
        %v2108 = vpop.permute.xlu0 %2107
        %2109 = vrot.lane.b32.xlu0 %v2029, 64
        %v2110 = vpop.permute.xlu0 %2109
        %2111 = vrot.lane.b32.xlu0 %v2030, 64
        %v2112 = vpop.permute.xlu0 %2111
        %2113 = vrot.lane.b32.xlu0 %v2031, 64
        %v2114 = vpop.permute.xlu0 %2113
        %2115 = vrot.lane.b32.xlu0 %v2032, 64
        %v2116 = vpop.permute.xlu0 %2115
        %vm2145 = vcmask 785920
        %2146 = vst.msk [vmem:[#allocation4] sm:$0xff] %vm2145, %v2062
        %2147 = vst.msk [vmem:[#allocation4 + $0x18] sm:$0xff] %vm2145, %v2064
        %2148 = vst.msk [vmem:[#allocation4 + $0x30] sm:$0xff] %vm2145, %v2066
        %2149 = vst.msk [vmem:[#allocation4 + $0x48] sm:$0xff] %vm2145, %v2068
        %2150 = vst.msk [vmem:[#allocation4 + $0x60] sm:$0xff] %vm2145, %v2070
        %2151 = vst.msk [vmem:[#allocation4 + $0x78] sm:$0xff] %vm2145, %v2072
        %2152 = vst.msk [vmem:[#allocation4 + $0x90] sm:$0xff] %vm2145, %v2074
        %2153 = vst.msk [vmem:[#allocation4 + $0xa8] sm:$0xff] %vm2145, %v2076
        %2154 = vst.msk [vmem:[#allocation4 + $0xc0] sm:$0xff] %vm2145, %v2078
        %2155 = vst.msk [vmem:[#allocation4 + $0xd8] sm:$0xff] %vm2145, %v2080
        %2156 = vst.msk [vmem:[#allocation4 + $0xf0] sm:$0xff] %vm2145, %v2082
        %2157 = vst.msk [vmem:[#allocation4 + $0x108] sm:$0xff] %vm2145, %v2084
        %2158 = vst.msk [vmem:[#allocation4 + $0x120] sm:$0xff] %vm2145, %v2086
        %2159 = vst.msk [vmem:[#allocation4 + $0x138] sm:$0xff] %vm2145, %v2088
        %2160 = vst.msk [vmem:[#allocation4 + $0x150] sm:$0xff] %vm2145, %v2090
        %2161 = vst.msk [vmem:[#allocation4 + $0x168] sm:$0xff] %vm2145, %v2092
        %2162 = vst.msk [vmem:[#allocation4 + $0x180] sm:$0xff] %vm2145, %v2094
        %2163 = vst.msk [vmem:[#allocation4 + $0x198] sm:$0xff] %vm2145, %v2096
        %2164 = vst.msk [vmem:[#allocation4 + $0x1b0] sm:$0xff] %vm2145, %v2098
        %2165 = vst.msk [vmem:[#allocation4 + $0x1c8] sm:$0xff] %vm2145, %v2100
        %2166 = vst.msk [vmem:[#allocation4 + $0x1e0] sm:$0xff] %vm2145, %v2102
        %2167 = vst.msk [vmem:[#allocation4 + $0x1f8] sm:$0xff] %vm2145, %v2104
        %2168 = vst.msk [vmem:[#allocation4 + $0x210] sm:$0xff] %vm2145, %v2106
        %2169 = vst.msk [vmem:[#allocation4 + $0x228] sm:$0xff] %vm2145, %v2108
        %2170 = vst.msk [vmem:[#allocation4 + $0x240] sm:$0xff] %vm2145, %v2110
        %2171 = vst.msk [vmem:[#allocation4 + $0x258] sm:$0xff] %vm2145, %v2112
        %2172 = vst.msk [vmem:[#allocation4 + $0x270] sm:$0xff] %vm2145, %v2114
        %2173 = vst.msk [vmem:[#allocation4 + $0x288] sm:$0xff] %vm2145, %v2116
        %v2174 = vld [vmem:[#allocation3 + $0x10] sm:$0xff]
        %v2175 = vld [vmem:[#allocation3 + $0x18] sm:$0xff]
        %v2176 = vld [vmem:[#allocation3 + $0x20] sm:$0xff]
        %v2177 = vld [vmem:[#allocation3 + $0x28] sm:$0xff]
        %v2178 = vld [vmem:[#allocation3 + $0x30] sm:$0xff]
        %v2179 = vld [vmem:[#allocation3 + $0x38] sm:$0xff]
        %v2180 = vld [vmem:[#allocation3 + $0x40] sm:$0xff]
        %v2181 = vld [vmem:[#allocation3 + $0x48] sm:$0xff]
        %v2182 = vld [vmem:[#allocation3 + $0x50] sm:$0xff]
        %v2183 = vld [vmem:[#allocation3 + $0x58] sm:$0xff]
        %v2184 = vld [vmem:[#allocation3 + $0x60] sm:$0xff]
        %v2185 = vld [vmem:[#allocation3 + $0x68] sm:$0xff]
        %v2186 = vld [vmem:[#allocation3 + $0x70] sm:$0xff]
        %v2187 = vld [vmem:[#allocation3 + $0x78] sm:$0xff]
        %v2188 = vld [vmem:[#allocation3 + $0x80] sm:$0xff]
        %v2189 = vld [vmem:[#allocation3 + $0x88] sm:$0xff]
        %v2190 = vld [vmem:[#allocation3 + $0x90] sm:$0xff]
        %v2191 = vld [vmem:[#allocation3 + $0x98] sm:$0xff]
        %v2192 = vld [vmem:[#allocation3 + $0xa0] sm:$0xff]
        %v2193 = vld [vmem:[#allocation3 + $0xa8] sm:$0xff]
        %v2194 = vld [vmem:[#allocation3 + $0xb0] sm:$0xff]
        %v2195 = vld [vmem:[#allocation3 + $0xb8] sm:$0xff]
        %v2196 = vld [vmem:[#allocation3 + $0xc0] sm:$0xff]
        %v2197 = vld [vmem:[#allocation3 + $0xc8] sm:$0xff]
        %v2198 = vld [vmem:[#allocation3 + $0xd0] sm:$0xff]
        %v2199 = vld [vmem:[#allocation3 + $0xd8] sm:$0xff]
        %v2200 = vld [vmem:[#allocation3 + $0xe0] sm:$0xff]
        %v2201 = vld [vmem:[#allocation3 + $0xe8] sm:$0xff]
        %2230 = vrot.lane.b32.xlu0 %v2174, 96
        %v2231 = vpop.permute.xlu0 %2230
        %2232 = vrot.lane.b32.xlu0 %v2175, 96
        %v2233 = vpop.permute.xlu0 %2232
        %2234 = vrot.lane.b32.xlu0 %v2176, 96
        %v2235 = vpop.permute.xlu0 %2234
        %2236 = vrot.lane.b32.xlu0 %v2177, 96
        %v2237 = vpop.permute.xlu0 %2236
        %2238 = vrot.lane.b32.xlu0 %v2178, 96
        %v2239 = vpop.permute.xlu0 %2238
        %2240 = vrot.lane.b32.xlu0 %v2179, 96
        %v2241 = vpop.permute.xlu0 %2240
        %2242 = vrot.lane.b32.xlu0 %v2180, 96
        %v2243 = vpop.permute.xlu0 %2242
        %2244 = vrot.lane.b32.xlu0 %v2181, 96
        %v2245 = vpop.permute.xlu0 %2244
        %2246 = vrot.lane.b32.xlu0 %v2182, 96
        %v2247 = vpop.permute.xlu0 %2246
        %2248 = vrot.lane.b32.xlu0 %v2183, 96
        %v2249 = vpop.permute.xlu0 %2248
        %2250 = vrot.lane.b32.xlu0 %v2184, 96
        %v2251 = vpop.permute.xlu0 %2250
        %2252 = vrot.lane.b32.xlu0 %v2185, 96
        %v2253 = vpop.permute.xlu0 %2252
        %2254 = vrot.lane.b32.xlu0 %v2186, 96
        %v2255 = vpop.permute.xlu0 %2254
        %2256 = vrot.lane.b32.xlu0 %v2187, 96
        %v2257 = vpop.permute.xlu0 %2256
        %2258 = vrot.lane.b32.xlu0 %v2188, 96
        %v2259 = vpop.permute.xlu0 %2258
        %2260 = vrot.lane.b32.xlu0 %v2189, 96
        %v2261 = vpop.permute.xlu0 %2260
        %2262 = vrot.lane.b32.xlu0 %v2190, 96
        %v2263 = vpop.permute.xlu0 %2262
        %2264 = vrot.lane.b32.xlu0 %v2191, 96
        %v2265 = vpop.permute.xlu0 %2264
        %2266 = vrot.lane.b32.xlu0 %v2192, 96
        %v2267 = vpop.permute.xlu0 %2266
        %2268 = vrot.lane.b32.xlu0 %v2193, 96
        %v2269 = vpop.permute.xlu0 %2268
        %2270 = vrot.lane.b32.xlu0 %v2194, 96
        %v2271 = vpop.permute.xlu0 %2270
        %2272 = vrot.lane.b32.xlu0 %v2195, 96
        %v2273 = vpop.permute.xlu0 %2272
        %2274 = vrot.lane.b32.xlu0 %v2196, 96
        %v2275 = vpop.permute.xlu0 %2274
        %2276 = vrot.lane.b32.xlu0 %v2197, 96
        %v2277 = vpop.permute.xlu0 %2276
        %2278 = vrot.lane.b32.xlu0 %v2198, 96
        %v2279 = vpop.permute.xlu0 %2278
        %2280 = vrot.lane.b32.xlu0 %v2199, 96
        %v2281 = vpop.permute.xlu0 %2280
        %2282 = vrot.lane.b32.xlu0 %v2200, 96
        %v2283 = vpop.permute.xlu0 %2282
        %2284 = vrot.lane.b32.xlu0 %v2201, 96
        %v2285 = vpop.permute.xlu0 %2284
        %vm2314 = vcmask 1048320
        %2315 = vst.msk [vmem:[#allocation4] sm:$0xff] %vm2314, %v2231
        %2316 = vst.msk [vmem:[#allocation4 + $0x18] sm:$0xff] %vm2314, %v2233
        %2317 = vst.msk [vmem:[#allocation4 + $0x30] sm:$0xff] %vm2314, %v2235
        %2318 = vst.msk [vmem:[#allocation4 + $0x48] sm:$0xff] %vm2314, %v2237
        %2319 = vst.msk [vmem:[#allocation4 + $0x60] sm:$0xff] %vm2314, %v2239
        %2320 = vst.msk [vmem:[#allocation4 + $0x78] sm:$0xff] %vm2314, %v2241
        %2321 = vst.msk [vmem:[#allocation4 + $0x90] sm:$0xff] %vm2314, %v2243
        %2322 = vst.msk [vmem:[#allocation4 + $0xa8] sm:$0xff] %vm2314, %v2245
        %2323 = vst.msk [vmem:[#allocation4 + $0xc0] sm:$0xff] %vm2314, %v2247
        %2324 = vst.msk [vmem:[#allocation4 + $0xd8] sm:$0xff] %vm2314, %v2249
        %2325 = vst.msk [vmem:[#allocation4 + $0xf0] sm:$0xff] %vm2314, %v2251
        %2326 = vst.msk [vmem:[#allocation4 + $0x108] sm:$0xff] %vm2314, %v2253
        %2327 = vst.msk [vmem:[#allocation4 + $0x120] sm:$0xff] %vm2314, %v2255
        %2328 = vst.msk [vmem:[#allocation4 + $0x138] sm:$0xff] %vm2314, %v2257
        %2329 = vst.msk [vmem:[#allocation4 + $0x150] sm:$0xff] %vm2314, %v2259
        %2330 = vst.msk [vmem:[#allocation4 + $0x168] sm:$0xff] %vm2314, %v2261
        %2331 = vst.msk [vmem:[#allocation4 + $0x180] sm:$0xff] %vm2314, %v2263
        %2332 = vst.msk [vmem:[#allocation4 + $0x198] sm:$0xff] %vm2314, %v2265
        %2333 = vst.msk [vmem:[#allocation4 + $0x1b0] sm:$0xff] %vm2314, %v2267
        %2334 = vst.msk [vmem:[#allocation4 + $0x1c8] sm:$0xff] %vm2314, %v2269
        %2335 = vst.msk [vmem:[#allocation4 + $0x1e0] sm:$0xff] %vm2314, %v2271
        %2336 = vst.msk [vmem:[#allocation4 + $0x1f8] sm:$0xff] %vm2314, %v2273
        %2337 = vst.msk [vmem:[#allocation4 + $0x210] sm:$0xff] %vm2314, %v2275
        %2338 = vst.msk [vmem:[#allocation4 + $0x228] sm:$0xff] %vm2314, %v2277
        %2339 = vst.msk [vmem:[#allocation4 + $0x240] sm:$0xff] %vm2314, %v2279
        %2340 = vst.msk [vmem:[#allocation4 + $0x258] sm:$0xff] %vm2314, %v2281
        %2341 = vst.msk [vmem:[#allocation4 + $0x270] sm:$0xff] %vm2314, %v2283
        %2342 = vst.msk [vmem:[#allocation4 + $0x288] sm:$0xff] %vm2314, %v2285
        %v2343 = vld [vmem:[#allocation3 + $0x11] sm:$0xff]
        %v2344 = vld [vmem:[#allocation3 + $0x19] sm:$0xff]
        %v2345 = vld [vmem:[#allocation3 + $0x21] sm:$0xff]
        %v2346 = vld [vmem:[#allocation3 + $0x29] sm:$0xff]
        %v2347 = vld [vmem:[#allocation3 + $0x31] sm:$0xff]
        %v2348 = vld [vmem:[#allocation3 + $0x39] sm:$0xff]
        %v2349 = vld [vmem:[#allocation3 + $0x41] sm:$0xff]
        %v2350 = vld [vmem:[#allocation3 + $0x49] sm:$0xff]
        %v2351 = vld [vmem:[#allocation3 + $0x51] sm:$0xff]
        %v2352 = vld [vmem:[#allocation3 + $0x59] sm:$0xff]
        %v2353 = vld [vmem:[#allocation3 + $0x61] sm:$0xff]
        %v2354 = vld [vmem:[#allocation3 + $0x69] sm:$0xff]
        %v2355 = vld [vmem:[#allocation3 + $0x71] sm:$0xff]
        %v2356 = vld [vmem:[#allocation3 + $0x79] sm:$0xff]
        %v2357 = vld [vmem:[#allocation3 + $0x81] sm:$0xff]
        %v2358 = vld [vmem:[#allocation3 + $0x89] sm:$0xff]
        %v2359 = vld [vmem:[#allocation3 + $0x91] sm:$0xff]
        %v2360 = vld [vmem:[#allocation3 + $0x99] sm:$0xff]
        %v2361 = vld [vmem:[#allocation3 + $0xa1] sm:$0xff]
        %v2362 = vld [vmem:[#allocation3 + $0xa9] sm:$0xff]
        %v2363 = vld [vmem:[#allocation3 + $0xb1] sm:$0xff]
        %v2364 = vld [vmem:[#allocation3 + $0xb9] sm:$0xff]
        %v2365 = vld [vmem:[#allocation3 + $0xc1] sm:$0xff]
        %v2366 = vld [vmem:[#allocation3 + $0xc9] sm:$0xff]
        %v2367 = vld [vmem:[#allocation3 + $0xd1] sm:$0xff]
        %v2368 = vld [vmem:[#allocation3 + $0xd9] sm:$0xff]
        %v2369 = vld [vmem:[#allocation3 + $0xe1] sm:$0xff]
        %v2370 = vld [vmem:[#allocation3 + $0xe9] sm:$0xff]
        %2371 = vst.msk [vmem:[#allocation4 + $0x8] sm:$0xff] %vm472, %v2343
        %2372 = vst.msk [vmem:[#allocation4 + $0x20] sm:$0xff] %vm472, %v2344
        %2373 = vst.msk [vmem:[#allocation4 + $0x38] sm:$0xff] %vm472, %v2345
        %2374 = vst.msk [vmem:[#allocation4 + $0x50] sm:$0xff] %vm472, %v2346
        %2375 = vst.msk [vmem:[#allocation4 + $0x68] sm:$0xff] %vm472, %v2347
        %2376 = vst.msk [vmem:[#allocation4 + $0x80] sm:$0xff] %vm472, %v2348
        %2377 = vst.msk [vmem:[#allocation4 + $0x98] sm:$0xff] %vm472, %v2349
        %2378 = vst.msk [vmem:[#allocation4 + $0xb0] sm:$0xff] %vm472, %v2350
        %2379 = vst.msk [vmem:[#allocation4 + $0xc8] sm:$0xff] %vm472, %v2351
        %2380 = vst.msk [vmem:[#allocation4 + $0xe0] sm:$0xff] %vm472, %v2352
        %2381 = vst.msk [vmem:[#allocation4 + $0xf8] sm:$0xff] %vm472, %v2353
        %2382 = vst.msk [vmem:[#allocation4 + $0x110] sm:$0xff] %vm472, %v2354
        %2383 = vst.msk [vmem:[#allocation4 + $0x128] sm:$0xff] %vm472, %v2355
        %2384 = vst.msk [vmem:[#allocation4 + $0x140] sm:$0xff] %vm472, %v2356
        %2385 = vst.msk [vmem:[#allocation4 + $0x158] sm:$0xff] %vm472, %v2357
        %2386 = vst.msk [vmem:[#allocation4 + $0x170] sm:$0xff] %vm472, %v2358
        %2387 = vst.msk [vmem:[#allocation4 + $0x188] sm:$0xff] %vm472, %v2359
        %2388 = vst.msk [vmem:[#allocation4 + $0x1a0] sm:$0xff] %vm472, %v2360
        %2389 = vst.msk [vmem:[#allocation4 + $0x1b8] sm:$0xff] %vm472, %v2361
        %2390 = vst.msk [vmem:[#allocation4 + $0x1d0] sm:$0xff] %vm472, %v2362
        %2391 = vst.msk [vmem:[#allocation4 + $0x1e8] sm:$0xff] %vm472, %v2363
        %2392 = vst.msk [vmem:[#allocation4 + $0x200] sm:$0xff] %vm472, %v2364
        %2393 = vst.msk [vmem:[#allocation4 + $0x218] sm:$0xff] %vm472, %v2365
        %2394 = vst.msk [vmem:[#allocation4 + $0x230] sm:$0xff] %vm472, %v2366
        %2395 = vst.msk [vmem:[#allocation4 + $0x248] sm:$0xff] %vm472, %v2367
        %2396 = vst.msk [vmem:[#allocation4 + $0x260] sm:$0xff] %vm472, %v2368
        %2397 = vst.msk [vmem:[#allocation4 + $0x278] sm:$0xff] %vm472, %v2369
        %2398 = vst.msk [vmem:[#allocation4 + $0x290] sm:$0xff] %vm472, %v2370
        %v2399 = vld [vmem:[#allocation3 + $0x12] sm:$0xff]
        %v2400 = vld [vmem:[#allocation3 + $0x1a] sm:$0xff]
        %v2401 = vld [vmem:[#allocation3 + $0x22] sm:$0xff]
        %v2402 = vld [vmem:[#allocation3 + $0x2a] sm:$0xff]
        %v2403 = vld [vmem:[#allocation3 + $0x32] sm:$0xff]
        %v2404 = vld [vmem:[#allocation3 + $0x3a] sm:$0xff]
        %v2405 = vld [vmem:[#allocation3 + $0x42] sm:$0xff]
        %v2406 = vld [vmem:[#allocation3 + $0x4a] sm:$0xff]
        %v2407 = vld [vmem:[#allocation3 + $0x52] sm:$0xff]
        %v2408 = vld [vmem:[#allocation3 + $0x5a] sm:$0xff]
        %v2409 = vld [vmem:[#allocation3 + $0x62] sm:$0xff]
        %v2410 = vld [vmem:[#allocation3 + $0x6a] sm:$0xff]
        %v2411 = vld [vmem:[#allocation3 + $0x72] sm:$0xff]
        %v2412 = vld [vmem:[#allocation3 + $0x7a] sm:$0xff]
        %v2413 = vld [vmem:[#allocation3 + $0x82] sm:$0xff]
        %v2414 = vld [vmem:[#allocation3 + $0x8a] sm:$0xff]
        %v2415 = vld [vmem:[#allocation3 + $0x92] sm:$0xff]
        %v2416 = vld [vmem:[#allocation3 + $0x9a] sm:$0xff]
        %v2417 = vld [vmem:[#allocation3 + $0xa2] sm:$0xff]
        %v2418 = vld [vmem:[#allocation3 + $0xaa] sm:$0xff]
        %v2419 = vld [vmem:[#allocation3 + $0xb2] sm:$0xff]
        %v2420 = vld [vmem:[#allocation3 + $0xba] sm:$0xff]
        %v2421 = vld [vmem:[#allocation3 + $0xc2] sm:$0xff]
        %v2422 = vld [vmem:[#allocation3 + $0xca] sm:$0xff]
        %v2423 = vld [vmem:[#allocation3 + $0xd2] sm:$0xff]
        %v2424 = vld [vmem:[#allocation3 + $0xda] sm:$0xff]
        %v2425 = vld [vmem:[#allocation3 + $0xe2] sm:$0xff]
        %v2426 = vld [vmem:[#allocation3 + $0xea] sm:$0xff]
        %2455 = vrot.lane.b32.xlu0 %v2399, 32
        %v2456 = vpop.permute.xlu0 %2455
        %2457 = vrot.lane.b32.xlu0 %v2400, 32
        %v2458 = vpop.permute.xlu0 %2457
        %2459 = vrot.lane.b32.xlu0 %v2401, 32
        %v2460 = vpop.permute.xlu0 %2459
        %2461 = vrot.lane.b32.xlu0 %v2402, 32
        %v2462 = vpop.permute.xlu0 %2461
        %2463 = vrot.lane.b32.xlu0 %v2403, 32
        %v2464 = vpop.permute.xlu0 %2463
        %2465 = vrot.lane.b32.xlu0 %v2404, 32
        %v2466 = vpop.permute.xlu0 %2465
        %2467 = vrot.lane.b32.xlu0 %v2405, 32
        %v2468 = vpop.permute.xlu0 %2467
        %2469 = vrot.lane.b32.xlu0 %v2406, 32
        %v2470 = vpop.permute.xlu0 %2469
        %2471 = vrot.lane.b32.xlu0 %v2407, 32
        %v2472 = vpop.permute.xlu0 %2471
        %2473 = vrot.lane.b32.xlu0 %v2408, 32
        %v2474 = vpop.permute.xlu0 %2473
        %2475 = vrot.lane.b32.xlu0 %v2409, 32
        %v2476 = vpop.permute.xlu0 %2475
        %2477 = vrot.lane.b32.xlu0 %v2410, 32
        %v2478 = vpop.permute.xlu0 %2477
        %2479 = vrot.lane.b32.xlu0 %v2411, 32
        %v2480 = vpop.permute.xlu0 %2479
        %2481 = vrot.lane.b32.xlu0 %v2412, 32
        %v2482 = vpop.permute.xlu0 %2481
        %2483 = vrot.lane.b32.xlu0 %v2413, 32
        %v2484 = vpop.permute.xlu0 %2483
        %2485 = vrot.lane.b32.xlu0 %v2414, 32
        %v2486 = vpop.permute.xlu0 %2485
        %2487 = vrot.lane.b32.xlu0 %v2415, 32
        %v2488 = vpop.permute.xlu0 %2487
        %2489 = vrot.lane.b32.xlu0 %v2416, 32
        %v2490 = vpop.permute.xlu0 %2489
        %2491 = vrot.lane.b32.xlu0 %v2417, 32
        %v2492 = vpop.permute.xlu0 %2491
        %2493 = vrot.lane.b32.xlu0 %v2418, 32
        %v2494 = vpop.permute.xlu0 %2493
        %2495 = vrot.lane.b32.xlu0 %v2419, 32
        %v2496 = vpop.permute.xlu0 %2495
        %2497 = vrot.lane.b32.xlu0 %v2420, 32
        %v2498 = vpop.permute.xlu0 %2497
        %2499 = vrot.lane.b32.xlu0 %v2421, 32
        %v2500 = vpop.permute.xlu0 %2499
        %2501 = vrot.lane.b32.xlu0 %v2422, 32
        %v2502 = vpop.permute.xlu0 %2501
        %2503 = vrot.lane.b32.xlu0 %v2423, 32
        %v2504 = vpop.permute.xlu0 %2503
        %2505 = vrot.lane.b32.xlu0 %v2424, 32
        %v2506 = vpop.permute.xlu0 %2505
        %2507 = vrot.lane.b32.xlu0 %v2425, 32
        %v2508 = vpop.permute.xlu0 %2507
        %2509 = vrot.lane.b32.xlu0 %v2426, 32
        %v2510 = vpop.permute.xlu0 %2509
        %2539 = vst.msk [vmem:[#allocation4 + $0x8] sm:$0xff] %vm1976, %v2456
        %2540 = vst.msk [vmem:[#allocation4 + $0x20] sm:$0xff] %vm1976, %v2458
        %2541 = vst.msk [vmem:[#allocation4 + $0x38] sm:$0xff] %vm1976, %v2460
        %2542 = vst.msk [vmem:[#allocation4 + $0x50] sm:$0xff] %vm1976, %v2462
        %2543 = vst.msk [vmem:[#allocation4 + $0x68] sm:$0xff] %vm1976, %v2464
        %2544 = vst.msk [vmem:[#allocation4 + $0x80] sm:$0xff] %vm1976, %v2466
        %2545 = vst.msk [vmem:[#allocation4 + $0x98] sm:$0xff] %vm1976, %v2468
        %2546 = vst.msk [vmem:[#allocation4 + $0xb0] sm:$0xff] %vm1976, %v2470
        %2547 = vst.msk [vmem:[#allocation4 + $0xc8] sm:$0xff] %vm1976, %v2472
        %2548 = vst.msk [vmem:[#allocation4 + $0xe0] sm:$0xff] %vm1976, %v2474
        %2549 = vst.msk [vmem:[#allocation4 + $0xf8] sm:$0xff] %vm1976, %v2476
        %2550 = vst.msk [vmem:[#allocation4 + $0x110] sm:$0xff] %vm1976, %v2478
        %2551 = vst.msk [vmem:[#allocation4 + $0x128] sm:$0xff] %vm1976, %v2480
        %2552 = vst.msk [vmem:[#allocation4 + $0x140] sm:$0xff] %vm1976, %v2482
        %2553 = vst.msk [vmem:[#allocation4 + $0x158] sm:$0xff] %vm1976, %v2484
        %2554 = vst.msk [vmem:[#allocation4 + $0x170] sm:$0xff] %vm1976, %v2486
        %2555 = vst.msk [vmem:[#allocation4 + $0x188] sm:$0xff] %vm1976, %v2488
        %2556 = vst.msk [vmem:[#allocation4 + $0x1a0] sm:$0xff] %vm1976, %v2490
        %2557 = vst.msk [vmem:[#allocation4 + $0x1b8] sm:$0xff] %vm1976, %v2492
        %2558 = vst.msk [vmem:[#allocation4 + $0x1d0] sm:$0xff] %vm1976, %v2494
        %2559 = vst.msk [vmem:[#allocation4 + $0x1e8] sm:$0xff] %vm1976, %v2496
        %2560 = vst.msk [vmem:[#allocation4 + $0x200] sm:$0xff] %vm1976, %v2498
        %2561 = vst.msk [vmem:[#allocation4 + $0x218] sm:$0xff] %vm1976, %v2500
        %2562 = vst.msk [vmem:[#allocation4 + $0x230] sm:$0xff] %vm1976, %v2502
        %2563 = vst.msk [vmem:[#allocation4 + $0x248] sm:$0xff] %vm1976, %v2504
        %2564 = vst.msk [vmem:[#allocation4 + $0x260] sm:$0xff] %vm1976, %v2506
        %2565 = vst.msk [vmem:[#allocation4 + $0x278] sm:$0xff] %vm1976, %v2508
        %2566 = vst.msk [vmem:[#allocation4 + $0x290] sm:$0xff] %vm1976, %v2510
        %v2567 = vld [vmem:[#allocation3 + $0x20] sm:$0xff]
        %v2568 = vld [vmem:[#allocation3 + $0x28] sm:$0xff]
        %v2569 = vld [vmem:[#allocation3 + $0x30] sm:$0xff]
        %v2570 = vld [vmem:[#allocation3 + $0x38] sm:$0xff]
        %v2571 = vld [vmem:[#allocation3 + $0x40] sm:$0xff]
        %v2572 = vld [vmem:[#allocation3 + $0x48] sm:$0xff]
        %v2573 = vld [vmem:[#allocation3 + $0x50] sm:$0xff]
        %v2574 = vld [vmem:[#allocation3 + $0x58] sm:$0xff]
        %v2575 = vld [vmem:[#allocation3 + $0x60] sm:$0xff]
        %v2576 = vld [vmem:[#allocation3 + $0x68] sm:$0xff]
        %v2577 = vld [vmem:[#allocation3 + $0x70] sm:$0xff]
        %v2578 = vld [vmem:[#allocation3 + $0x78] sm:$0xff]
        %v2579 = vld [vmem:[#allocation3 + $0x80] sm:$0xff]
        %v2580 = vld [vmem:[#allocation3 + $0x88] sm:$0xff]
        %v2581 = vld [vmem:[#allocation3 + $0x90] sm:$0xff]
        %v2582 = vld [vmem:[#allocation3 + $0x98] sm:$0xff]
        %v2583 = vld [vmem:[#allocation3 + $0xa0] sm:$0xff]
        %v2584 = vld [vmem:[#allocation3 + $0xa8] sm:$0xff]
        %v2585 = vld [vmem:[#allocation3 + $0xb0] sm:$0xff]
        %v2586 = vld [vmem:[#allocation3 + $0xb8] sm:$0xff]
        %v2587 = vld [vmem:[#allocation3 + $0xc0] sm:$0xff]
        %v2588 = vld [vmem:[#allocation3 + $0xc8] sm:$0xff]
        %v2589 = vld [vmem:[#allocation3 + $0xd0] sm:$0xff]
        %v2590 = vld [vmem:[#allocation3 + $0xd8] sm:$0xff]
        %v2591 = vld [vmem:[#allocation3 + $0xe0] sm:$0xff]
        %v2592 = vld [vmem:[#allocation3 + $0xe8] sm:$0xff]
        %v2593 = vld [vmem:[#allocation3 + $0xf0] sm:$0xff]
        %v2594 = vld [vmem:[#allocation3 + $0xf8] sm:$0xff]
        %2623 = vrot.lane.b32.xlu0 %v2567, 64
        %v2624 = vpop.permute.xlu0 %2623
        %2625 = vrot.lane.b32.xlu0 %v2568, 64
        %v2626 = vpop.permute.xlu0 %2625
        %2627 = vrot.lane.b32.xlu0 %v2569, 64
        %v2628 = vpop.permute.xlu0 %2627
        %2629 = vrot.lane.b32.xlu0 %v2570, 64
        %v2630 = vpop.permute.xlu0 %2629
        %2631 = vrot.lane.b32.xlu0 %v2571, 64
        %v2632 = vpop.permute.xlu0 %2631
        %2633 = vrot.lane.b32.xlu0 %v2572, 64
        %v2634 = vpop.permute.xlu0 %2633
        %2635 = vrot.lane.b32.xlu0 %v2573, 64
        %v2636 = vpop.permute.xlu0 %2635
        %2637 = vrot.lane.b32.xlu0 %v2574, 64
        %v2638 = vpop.permute.xlu0 %2637
        %2639 = vrot.lane.b32.xlu0 %v2575, 64
        %v2640 = vpop.permute.xlu0 %2639
        %2641 = vrot.lane.b32.xlu0 %v2576, 64
        %v2642 = vpop.permute.xlu0 %2641
        %2643 = vrot.lane.b32.xlu0 %v2577, 64
        %v2644 = vpop.permute.xlu0 %2643
        %2645 = vrot.lane.b32.xlu0 %v2578, 64
        %v2646 = vpop.permute.xlu0 %2645
        %2647 = vrot.lane.b32.xlu0 %v2579, 64
        %v2648 = vpop.permute.xlu0 %2647
        %2649 = vrot.lane.b32.xlu0 %v2580, 64
        %v2650 = vpop.permute.xlu0 %2649
        %2651 = vrot.lane.b32.xlu0 %v2581, 64
        %v2652 = vpop.permute.xlu0 %2651
        %2653 = vrot.lane.b32.xlu0 %v2582, 64
        %v2654 = vpop.permute.xlu0 %2653
        %2655 = vrot.lane.b32.xlu0 %v2583, 64
        %v2656 = vpop.permute.xlu0 %2655
        %2657 = vrot.lane.b32.xlu0 %v2584, 64
        %v2658 = vpop.permute.xlu0 %2657
        %2659 = vrot.lane.b32.xlu0 %v2585, 64
        %v2660 = vpop.permute.xlu0 %2659
        %2661 = vrot.lane.b32.xlu0 %v2586, 64
        %v2662 = vpop.permute.xlu0 %2661
        %2663 = vrot.lane.b32.xlu0 %v2587, 64
        %v2664 = vpop.permute.xlu0 %2663
        %2665 = vrot.lane.b32.xlu0 %v2588, 64
        %v2666 = vpop.permute.xlu0 %2665
        %2667 = vrot.lane.b32.xlu0 %v2589, 64
        %v2668 = vpop.permute.xlu0 %2667
        %2669 = vrot.lane.b32.xlu0 %v2590, 64
        %v2670 = vpop.permute.xlu0 %2669
        %2671 = vrot.lane.b32.xlu0 %v2591, 64
        %v2672 = vpop.permute.xlu0 %2671
        %2673 = vrot.lane.b32.xlu0 %v2592, 64
        %v2674 = vpop.permute.xlu0 %2673
        %2675 = vrot.lane.b32.xlu0 %v2593, 64
        %v2676 = vpop.permute.xlu0 %2675
        %2677 = vrot.lane.b32.xlu0 %v2594, 64
        %v2678 = vpop.permute.xlu0 %2677
        %2707 = vst.msk [vmem:[#allocation4 + $0x8] sm:$0xff] %vm2145, %v2624
        %2708 = vst.msk [vmem:[#allocation4 + $0x20] sm:$0xff] %vm2145, %v2626
        %2709 = vst.msk [vmem:[#allocation4 + $0x38] sm:$0xff] %vm2145, %v2628
        %2710 = vst.msk [vmem:[#allocation4 + $0x50] sm:$0xff] %vm2145, %v2630
        %2711 = vst.msk [vmem:[#allocation4 + $0x68] sm:$0xff] %vm2145, %v2632
        %2712 = vst.msk [vmem:[#allocation4 + $0x80] sm:$0xff] %vm2145, %v2634
        %2713 = vst.msk [vmem:[#allocation4 + $0x98] sm:$0xff] %vm2145, %v2636
        %2714 = vst.msk [vmem:[#allocation4 + $0xb0] sm:$0xff] %vm2145, %v2638
        %2715 = vst.msk [vmem:[#allocation4 + $0xc8] sm:$0xff] %vm2145, %v2640
        %2716 = vst.msk [vmem:[#allocation4 + $0xe0] sm:$0xff] %vm2145, %v2642
        %2717 = vst.msk [vmem:[#allocation4 + $0xf8] sm:$0xff] %vm2145, %v2644
        %2718 = vst.msk [vmem:[#allocation4 + $0x110] sm:$0xff] %vm2145, %v2646
        %2719 = vst.msk [vmem:[#allocation4 + $0x128] sm:$0xff] %vm2145, %v2648
        %2720 = vst.msk [vmem:[#allocation4 + $0x140] sm:$0xff] %vm2145, %v2650
        %2721 = vst.msk [vmem:[#allocation4 + $0x158] sm:$0xff] %vm2145, %v2652
        %2722 = vst.msk [vmem:[#allocation4 + $0x170] sm:$0xff] %vm2145, %v2654
        %2723 = vst.msk [vmem:[#allocation4 + $0x188] sm:$0xff] %vm2145, %v2656
        %2724 = vst.msk [vmem:[#allocation4 + $0x1a0] sm:$0xff] %vm2145, %v2658
        %2725 = vst.msk [vmem:[#allocation4 + $0x1b8] sm:$0xff] %vm2145, %v2660
        %2726 = vst.msk [vmem:[#allocation4 + $0x1d0] sm:$0xff] %vm2145, %v2662
        %2727 = vst.msk [vmem:[#allocation4 + $0x1e8] sm:$0xff] %vm2145, %v2664
        %2728 = vst.msk [vmem:[#allocation4 + $0x200] sm:$0xff] %vm2145, %v2666
        %2729 = vst.msk [vmem:[#allocation4 + $0x218] sm:$0xff] %vm2145, %v2668
        %2730 = vst.msk [vmem:[#allocation4 + $0x230] sm:$0xff] %vm2145, %v2670
        %2731 = vst.msk [vmem:[#allocation4 + $0x248] sm:$0xff] %vm2145, %v2672
        %2732 = vst.msk [vmem:[#allocation4 + $0x260] sm:$0xff] %vm2145, %v2674
        %2733 = vst.msk [vmem:[#allocation4 + $0x278] sm:$0xff] %vm2145, %v2676
        %2734 = vst.msk [vmem:[#allocation4 + $0x290] sm:$0xff] %vm2145, %v2678
        %v2735 = vld [vmem:[#allocation3 + $0x21] sm:$0xff]
        %v2736 = vld [vmem:[#allocation3 + $0x29] sm:$0xff]
        %v2737 = vld [vmem:[#allocation3 + $0x31] sm:$0xff]
        %v2738 = vld [vmem:[#allocation3 + $0x39] sm:$0xff]
        %v2739 = vld [vmem:[#allocation3 + $0x41] sm:$0xff]
        %v2740 = vld [vmem:[#allocation3 + $0x49] sm:$0xff]
        %v2741 = vld [vmem:[#allocation3 + $0x51] sm:$0xff]
        %v2742 = vld [vmem:[#allocation3 + $0x59] sm:$0xff]
        %v2743 = vld [vmem:[#allocation3 + $0x61] sm:$0xff]
        %v2744 = vld [vmem:[#allocation3 + $0x69] sm:$0xff]
        %v2745 = vld [vmem:[#allocation3 + $0x71] sm:$0xff]
        %v2746 = vld [vmem:[#allocation3 + $0x79] sm:$0xff]
        %v2747 = vld [vmem:[#allocation3 + $0x81] sm:$0xff]
        %v2748 = vld [vmem:[#allocation3 + $0x89] sm:$0xff]
        %v2749 = vld [vmem:[#allocation3 + $0x91] sm:$0xff]
        %v2750 = vld [vmem:[#allocation3 + $0x99] sm:$0xff]
        %v2751 = vld [vmem:[#allocation3 + $0xa1] sm:$0xff]
        %v2752 = vld [vmem:[#allocation3 + $0xa9] sm:$0xff]
        %v2753 = vld [vmem:[#allocation3 + $0xb1] sm:$0xff]
        %v2754 = vld [vmem:[#allocation3 + $0xb9] sm:$0xff]
        %v2755 = vld [vmem:[#allocation3 + $0xc1] sm:$0xff]
        %v2756 = vld [vmem:[#allocation3 + $0xc9] sm:$0xff]
        %v2757 = vld [vmem:[#allocation3 + $0xd1] sm:$0xff]
        %v2758 = vld [vmem:[#allocation3 + $0xd9] sm:$0xff]
        %v2759 = vld [vmem:[#allocation3 + $0xe1] sm:$0xff]
        %v2760 = vld [vmem:[#allocation3 + $0xe9] sm:$0xff]
        %v2761 = vld [vmem:[#allocation3 + $0xf1] sm:$0xff]
        %v2762 = vld [vmem:[#allocation3 + $0xf9] sm:$0xff]
        %2791 = vrot.lane.b32.xlu0 %v2735, 96
        %v2792 = vpop.permute.xlu0 %2791
        %2793 = vrot.lane.b32.xlu0 %v2736, 96
        %v2794 = vpop.permute.xlu0 %2793
        %2795 = vrot.lane.b32.xlu0 %v2737, 96
        %v2796 = vpop.permute.xlu0 %2795
        %2797 = vrot.lane.b32.xlu0 %v2738, 96
        %v2798 = vpop.permute.xlu0 %2797
        %2799 = vrot.lane.b32.xlu0 %v2739, 96
        %v2800 = vpop.permute.xlu0 %2799
        %2801 = vrot.lane.b32.xlu0 %v2740, 96
        %v2802 = vpop.permute.xlu0 %2801
        %2803 = vrot.lane.b32.xlu0 %v2741, 96
        %v2804 = vpop.permute.xlu0 %2803
        %2805 = vrot.lane.b32.xlu0 %v2742, 96
        %v2806 = vpop.permute.xlu0 %2805
        %2807 = vrot.lane.b32.xlu0 %v2743, 96
        %v2808 = vpop.permute.xlu0 %2807
        %2809 = vrot.lane.b32.xlu0 %v2744, 96
        %v2810 = vpop.permute.xlu0 %2809
        %2811 = vrot.lane.b32.xlu0 %v2745, 96
        %v2812 = vpop.permute.xlu0 %2811
        %2813 = vrot.lane.b32.xlu0 %v2746, 96
        %v2814 = vpop.permute.xlu0 %2813
        %2815 = vrot.lane.b32.xlu0 %v2747, 96
        %v2816 = vpop.permute.xlu0 %2815
        %2817 = vrot.lane.b32.xlu0 %v2748, 96
        %v2818 = vpop.permute.xlu0 %2817
        %2819 = vrot.lane.b32.xlu0 %v2749, 96
        %v2820 = vpop.permute.xlu0 %2819
        %2821 = vrot.lane.b32.xlu0 %v2750, 96
        %v2822 = vpop.permute.xlu0 %2821
        %2823 = vrot.lane.b32.xlu0 %v2751, 96
        %v2824 = vpop.permute.xlu0 %2823
        %2825 = vrot.lane.b32.xlu0 %v2752, 96
        %v2826 = vpop.permute.xlu0 %2825
        %2827 = vrot.lane.b32.xlu0 %v2753, 96
        %v2828 = vpop.permute.xlu0 %2827
        %2829 = vrot.lane.b32.xlu0 %v2754, 96
        %v2830 = vpop.permute.xlu0 %2829
        %2831 = vrot.lane.b32.xlu0 %v2755, 96
        %v2832 = vpop.permute.xlu0 %2831
        %2833 = vrot.lane.b32.xlu0 %v2756, 96
        %v2834 = vpop.permute.xlu0 %2833
        %2835 = vrot.lane.b32.xlu0 %v2757, 96
        %v2836 = vpop.permute.xlu0 %2835
        %2837 = vrot.lane.b32.xlu0 %v2758, 96
        %v2838 = vpop.permute.xlu0 %2837
        %2839 = vrot.lane.b32.xlu0 %v2759, 96
        %v2840 = vpop.permute.xlu0 %2839
        %2841 = vrot.lane.b32.xlu0 %v2760, 96
        %v2842 = vpop.permute.xlu0 %2841
        %2843 = vrot.lane.b32.xlu0 %v2761, 96
        %v2844 = vpop.permute.xlu0 %2843
        %2845 = vrot.lane.b32.xlu0 %v2762, 96
        %v2846 = vpop.permute.xlu0 %2845
        %2875 = vst.msk [vmem:[#allocation4 + $0x8] sm:$0xff] %vm2314, %v2792
        %2876 = vst.msk [vmem:[#allocation4 + $0x20] sm:$0xff] %vm2314, %v2794
        %2877 = vst.msk [vmem:[#allocation4 + $0x38] sm:$0xff] %vm2314, %v2796
        %2878 = vst.msk [vmem:[#allocation4 + $0x50] sm:$0xff] %vm2314, %v2798
        %2879 = vst.msk [vmem:[#allocation4 + $0x68] sm:$0xff] %vm2314, %v2800
        %2880 = vst.msk [vmem:[#allocation4 + $0x80] sm:$0xff] %vm2314, %v2802
        %2881 = vst.msk [vmem:[#allocation4 + $0x98] sm:$0xff] %vm2314, %v2804
        %2882 = vst.msk [vmem:[#allocation4 + $0xb0] sm:$0xff] %vm2314, %v2806
        %2883 = vst.msk [vmem:[#allocation4 + $0xc8] sm:$0xff] %vm2314, %v2808
        %2884 = vst.msk [vmem:[#allocation4 + $0xe0] sm:$0xff] %vm2314, %v2810
        %2885 = vst.msk [vmem:[#allocation4 + $0xf8] sm:$0xff] %vm2314, %v2812
        %2886 = vst.msk [vmem:[#allocation4 + $0x110] sm:$0xff] %vm2314, %v2814
        %2887 = vst.msk [vmem:[#allocation4 + $0x128] sm:$0xff] %vm2314, %v2816
        %2888 = vst.msk [vmem:[#allocation4 + $0x140] sm:$0xff] %vm2314, %v2818
        %2889 = vst.msk [vmem:[#allocation4 + $0x158] sm:$0xff] %vm2314, %v2820
        %2890 = vst.msk [vmem:[#allocation4 + $0x170] sm:$0xff] %vm2314, %v2822
        %2891 = vst.msk [vmem:[#allocation4 + $0x188] sm:$0xff] %vm2314, %v2824
        %2892 = vst.msk [vmem:[#allocation4 + $0x1a0] sm:$0xff] %vm2314, %v2826
        %2893 = vst.msk [vmem:[#allocation4 + $0x1b8] sm:$0xff] %vm2314, %v2828
        %2894 = vst.msk [vmem:[#allocation4 + $0x1d0] sm:$0xff] %vm2314, %v2830
        %2895 = vst.msk [vmem:[#allocation4 + $0x1e8] sm:$0xff] %vm2314, %v2832
        %2896 = vst.msk [vmem:[#allocation4 + $0x200] sm:$0xff] %vm2314, %v2834
        %2897 = vst.msk [vmem:[#allocation4 + $0x218] sm:$0xff] %vm2314, %v2836
        %2898 = vst.msk [vmem:[#allocation4 + $0x230] sm:$0xff] %vm2314, %v2838
        %2899 = vst.msk [vmem:[#allocation4 + $0x248] sm:$0xff] %vm2314, %v2840
        %2900 = vst.msk [vmem:[#allocation4 + $0x260] sm:$0xff] %vm2314, %v2842
        %2901 = vst.msk [vmem:[#allocation4 + $0x278] sm:$0xff] %vm2314, %v2844
        %2902 = vst.msk [vmem:[#allocation4 + $0x290] sm:$0xff] %vm2314, %v2846
        %v2903 = vld [vmem:[#allocation3 + $0x22] sm:$0xff]
        %v2904 = vld [vmem:[#allocation3 + $0x2a] sm:$0xff]
        %v2905 = vld [vmem:[#allocation3 + $0x32] sm:$0xff]
        %v2906 = vld [vmem:[#allocation3 + $0x3a] sm:$0xff]
        %v2907 = vld [vmem:[#allocation3 + $0x42] sm:$0xff]
        %v2908 = vld [vmem:[#allocation3 + $0x4a] sm:$0xff]
        %v2909 = vld [vmem:[#allocation3 + $0x52] sm:$0xff]
        %v2910 = vld [vmem:[#allocation3 + $0x5a] sm:$0xff]
        %v2911 = vld [vmem:[#allocation3 + $0x62] sm:$0xff]
        %v2912 = vld [vmem:[#allocation3 + $0x6a] sm:$0xff]
        %v2913 = vld [vmem:[#allocation3 + $0x72] sm:$0xff]
        %v2914 = vld [vmem:[#allocation3 + $0x7a] sm:$0xff]
        %v2915 = vld [vmem:[#allocation3 + $0x82] sm:$0xff]
        %v2916 = vld [vmem:[#allocation3 + $0x8a] sm:$0xff]
        %v2917 = vld [vmem:[#allocation3 + $0x92] sm:$0xff]
        %v2918 = vld [vmem:[#allocation3 + $0x9a] sm:$0xff]
        %v2919 = vld [vmem:[#allocation3 + $0xa2] sm:$0xff]
        %v2920 = vld [vmem:[#allocation3 + $0xaa] sm:$0xff]
        %v2921 = vld [vmem:[#allocation3 + $0xb2] sm:$0xff]
        %v2922 = vld [vmem:[#allocation3 + $0xba] sm:$0xff]
        %v2923 = vld [vmem:[#allocation3 + $0xc2] sm:$0xff]
        %v2924 = vld [vmem:[#allocation3 + $0xca] sm:$0xff]
        %v2925 = vld [vmem:[#allocation3 + $0xd2] sm:$0xff]
        %v2926 = vld [vmem:[#allocation3 + $0xda] sm:$0xff]
        %v2927 = vld [vmem:[#allocation3 + $0xe2] sm:$0xff]
        %v2928 = vld [vmem:[#allocation3 + $0xea] sm:$0xff]
        %v2929 = vld [vmem:[#allocation3 + $0xf2] sm:$0xff]
        %v2930 = vld [vmem:[#allocation3 + $0xfa] sm:$0xff]
        %2931 = vst.msk [vmem:[#allocation4 + $0x10] sm:$0xff] %vm472, %v2903
        %2932 = vst.msk [vmem:[#allocation4 + $0x28] sm:$0xff] %vm472, %v2904
        %2933 = vst.msk [vmem:[#allocation4 + $0x40] sm:$0xff] %vm472, %v2905
        %2934 = vst.msk [vmem:[#allocation4 + $0x58] sm:$0xff] %vm472, %v2906
        %2935 = vst.msk [vmem:[#allocation4 + $0x70] sm:$0xff] %vm472, %v2907
        %2936 = vst.msk [vmem:[#allocation4 + $0x88] sm:$0xff] %vm472, %v2908
        %2937 = vst.msk [vmem:[#allocation4 + $0xa0] sm:$0xff] %vm472, %v2909
        %2938 = vst.msk [vmem:[#allocation4 + $0xb8] sm:$0xff] %vm472, %v2910
        %2939 = vst.msk [vmem:[#allocation4 + $0xd0] sm:$0xff] %vm472, %v2911
        %2940 = vst.msk [vmem:[#allocation4 + $0xe8] sm:$0xff] %vm472, %v2912
        %2941 = vst.msk [vmem:[#allocation4 + $0x100] sm:$0xff] %vm472, %v2913
        %2942 = vst.msk [vmem:[#allocation4 + $0x118] sm:$0xff] %vm472, %v2914
        %2943 = vst.msk [vmem:[#allocation4 + $0x130] sm:$0xff] %vm472, %v2915
        %2944 = vst.msk [vmem:[#allocation4 + $0x148] sm:$0xff] %vm472, %v2916
        %2945 = vst.msk [vmem:[#allocation4 + $0x160] sm:$0xff] %vm472, %v2917
        %2946 = vst.msk [vmem:[#allocation4 + $0x178] sm:$0xff] %vm472, %v2918
        %2947 = vst.msk [vmem:[#allocation4 + $0x190] sm:$0xff] %vm472, %v2919
        %2948 = vst.msk [vmem:[#allocation4 + $0x1a8] sm:$0xff] %vm472, %v2920
        %2949 = vst.msk [vmem:[#allocation4 + $0x1c0] sm:$0xff] %vm472, %v2921
        %2950 = vst.msk [vmem:[#allocation4 + $0x1d8] sm:$0xff] %vm472, %v2922
        %2951 = vst.msk [vmem:[#allocation4 + $0x1f0] sm:$0xff] %vm472, %v2923
        %2952 = vst.msk [vmem:[#allocation4 + $0x208] sm:$0xff] %vm472, %v2924
        %2953 = vst.msk [vmem:[#allocation4 + $0x220] sm:$0xff] %vm472, %v2925
        %2954 = vst.msk [vmem:[#allocation4 + $0x238] sm:$0xff] %vm472, %v2926
        %2955 = vst.msk [vmem:[#allocation4 + $0x250] sm:$0xff] %vm472, %v2927
        %2956 = vst.msk [vmem:[#allocation4 + $0x268] sm:$0xff] %vm472, %v2928
        %2957 = vst.msk [vmem:[#allocation4 + $0x280] sm:$0xff] %vm472, %v2929
        %2958 = vst.msk [vmem:[#allocation4 + $0x298] sm:$0xff] %vm472, %v2930
        %v2959 = vld [vmem:[#allocation4] sm:$0xff]
        %v2960 = vld [vmem:[#allocation4 + $0x8] sm:$0xff]
        %v2961 = vld [vmem:[#allocation4 + $0x10] sm:$0xff]
        %v2962 = vld [vmem:[#allocation4 + $0x18] sm:$0xff]
        %v2963 = vld [vmem:[#allocation4 + $0x20] sm:$0xff]
        %v2964 = vld [vmem:[#allocation4 + $0x28] sm:$0xff]
        %v2965 = vld [vmem:[#allocation4 + $0x30] sm:$0xff]
        %v2966 = vld [vmem:[#allocation4 + $0x38] sm:$0xff]
        %v2967 = vld [vmem:[#allocation4 + $0x40] sm:$0xff]
        %v2968 = vld [vmem:[#allocation4 + $0x48] sm:$0xff]
        %v2969 = vld [vmem:[#allocation4 + $0x50] sm:$0xff]
        %v2970 = vld [vmem:[#allocation4 + $0x58] sm:$0xff]
        %v2971 = vld [vmem:[#allocation4 + $0x60] sm:$0xff]
        %v2972 = vld [vmem:[#allocation4 + $0x68] sm:$0xff]
        %v2973 = vld [vmem:[#allocation4 + $0x70] sm:$0xff]
        %v2974 = vld [vmem:[#allocation4 + $0x78] sm:$0xff]
        %v2975 = vld [vmem:[#allocation4 + $0x80] sm:$0xff]
        %v2976 = vld [vmem:[#allocation4 + $0x88] sm:$0xff]
        %v2977 = vld [vmem:[#allocation4 + $0x90] sm:$0xff]
        %v2978 = vld [vmem:[#allocation4 + $0x98] sm:$0xff]
        %v2979 = vld [vmem:[#allocation4 + $0xa0] sm:$0xff]
        %v2980 = vld [vmem:[#allocation4 + $0xa8] sm:$0xff]
        %v2981 = vld [vmem:[#allocation4 + $0xb0] sm:$0xff]
        %v2982 = vld [vmem:[#allocation4 + $0xb8] sm:$0xff]
        %v2983 = vld [vmem:[#allocation4 + $0xc0] sm:$0xff]
        %v2984 = vld [vmem:[#allocation4 + $0xc8] sm:$0xff]
        %v2985 = vld [vmem:[#allocation4 + $0xd0] sm:$0xff]
        %v2986 = vld [vmem:[#allocation4 + $0xd8] sm:$0xff]
        %v2987 = vld [vmem:[#allocation4 + $0xe0] sm:$0xff]
        %v2988 = vld [vmem:[#allocation4 + $0xe8] sm:$0xff]
        %v2989 = vld [vmem:[#allocation4 + $0xf0] sm:$0xff]
        %v2990 = vld [vmem:[#allocation4 + $0xf8] sm:$0xff]
        %v2991 = vld [vmem:[#allocation4 + $0x100] sm:$0xff]
        %v2992 = vld [vmem:[#allocation4 + $0x108] sm:$0xff]
        %v2993 = vld [vmem:[#allocation4 + $0x110] sm:$0xff]
        %v2994 = vld [vmem:[#allocation4 + $0x118] sm:$0xff]
        %v2995 = vld [vmem:[#allocation4 + $0x120] sm:$0xff]
        %v2996 = vld [vmem:[#allocation4 + $0x128] sm:$0xff]
        %v2997 = vld [vmem:[#allocation4 + $0x130] sm:$0xff]
        %v2998 = vld [vmem:[#allocation4 + $0x138] sm:$0xff]
        %v2999 = vld [vmem:[#allocation4 + $0x140] sm:$0xff]
        %v3000 = vld [vmem:[#allocation4 + $0x148] sm:$0xff]
        %v3001 = vld [vmem:[#allocation4 + $0x150] sm:$0xff]
        %v3002 = vld [vmem:[#allocation4 + $0x158] sm:$0xff]
        %v3003 = vld [vmem:[#allocation4 + $0x160] sm:$0xff]
        %v3004 = vld [vmem:[#allocation4 + $0x168] sm:$0xff]
        %v3005 = vld [vmem:[#allocation4 + $0x170] sm:$0xff]
        %v3006 = vld [vmem:[#allocation4 + $0x178] sm:$0xff]
        %v3007 = vld [vmem:[#allocation4 + $0x180] sm:$0xff]
        %v3008 = vld [vmem:[#allocation4 + $0x188] sm:$0xff]
        %v3009 = vld [vmem:[#allocation4 + $0x190] sm:$0xff]
        %v3010 = vld [vmem:[#allocation4 + $0x198] sm:$0xff]
        %v3011 = vld [vmem:[#allocation4 + $0x1a0] sm:$0xff]
        %v3012 = vld [vmem:[#allocation4 + $0x1a8] sm:$0xff]
        %v3013 = vld [vmem:[#allocation4 + $0x1b0] sm:$0xff]
        %v3014 = vld [vmem:[#allocation4 + $0x1b8] sm:$0xff]
        %v3015 = vld [vmem:[#allocation4 + $0x1c0] sm:$0xff]
        %v3016 = vld [vmem:[#allocation4 + $0x1c8] sm:$0xff]
        %v3017 = vld [vmem:[#allocation4 + $0x1d0] sm:$0xff]
        %v3018 = vld [vmem:[#allocation4 + $0x1d8] sm:$0xff]
        %v3019 = vld [vmem:[#allocation4 + $0x1e0] sm:$0xff]
        %v3020 = vld [vmem:[#allocation4 + $0x1e8] sm:$0xff]
        %v3021 = vld [vmem:[#allocation4 + $0x1f0] sm:$0xff]
        %v3022 = vld [vmem:[#allocation4 + $0x1f8] sm:$0xff]
        %v3023 = vld [vmem:[#allocation4 + $0x200] sm:$0xff]
        %v3024 = vld [vmem:[#allocation4 + $0x208] sm:$0xff]
        %v3025 = vld [vmem:[#allocation4 + $0x210] sm:$0xff]
        %v3026 = vld [vmem:[#allocation4 + $0x218] sm:$0xff]
        %v3027 = vld [vmem:[#allocation4 + $0x220] sm:$0xff]
        %v3028 = vld [vmem:[#allocation4 + $0x228] sm:$0xff]
        %v3029 = vld [vmem:[#allocation4 + $0x230] sm:$0xff]
        %v3030 = vld [vmem:[#allocation4 + $0x238] sm:$0xff]
        %v3031 = vld [vmem:[#allocation4 + $0x240] sm:$0xff]
        %v3032 = vld [vmem:[#allocation4 + $0x248] sm:$0xff]
        %v3033 = vld [vmem:[#allocation4 + $0x250] sm:$0xff]
        %v3034 = vld [vmem:[#allocation4 + $0x258] sm:$0xff]
        %v3035 = vld [vmem:[#allocation4 + $0x260] sm:$0xff]
        %v3036 = vld [vmem:[#allocation4 + $0x268] sm:$0xff]
        %v3037 = vld [vmem:[#allocation4 + $0x270] sm:$0xff]
        %v3038 = vld [vmem:[#allocation4 + $0x278] sm:$0xff]
        %v3039 = vld [vmem:[#allocation4 + $0x280] sm:$0xff]
        %v3040 = vld [vmem:[#allocation4 + $0x288] sm:$0xff]
        %v3041 = vld [vmem:[#allocation4 + $0x290] sm:$0xff]
        %v3042 = vld [vmem:[#allocation4 + $0x298] sm:$0xff]
        %v3043 = vpack.c.bf16 %v2962, %v2959
        %v3044 = vpack.c.bf16 %v2963, %v2960
        %v3045 = vpack.c.bf16 %v2964, %v2961
        %v3046 = vpack.c.bf16 %v2968, %v2965
        %v3047 = vpack.c.bf16 %v2969, %v2966
        %v3048 = vpack.c.bf16 %v2970, %v2967
        %v3049 = vpack.c.bf16 %v2974, %v2971
        %v3050 = vpack.c.bf16 %v2975, %v2972
        %v3051 = vpack.c.bf16 %v2976, %v2973
        %v3052 = vpack.c.bf16 %v2980, %v2977
        %v3053 = vpack.c.bf16 %v2981, %v2978
        %v3054 = vpack.c.bf16 %v2982, %v2979
        %v3055 = vpack.c.bf16 %v2986, %v2983
        %v3056 = vpack.c.bf16 %v2987, %v2984
        %v3057 = vpack.c.bf16 %v2988, %v2985
        %v3058 = vpack.c.bf16 %v2992, %v2989
        %v3059 = vpack.c.bf16 %v2993, %v2990
        %v3060 = vpack.c.bf16 %v2994, %v2991
        %v3061 = vpack.c.bf16 %v2998, %v2995
        %v3062 = vpack.c.bf16 %v2999, %v2996
        %v3063 = vpack.c.bf16 %v3000, %v2997
        %v3064 = vpack.c.bf16 %v3004, %v3001
        %v3065 = vpack.c.bf16 %v3005, %v3002
        %v3066 = vpack.c.bf16 %v3006, %v3003
        %v3067 = vpack.c.bf16 %v3010, %v3007
        %v3068 = vpack.c.bf16 %v3011, %v3008
        %v3069 = vpack.c.bf16 %v3012, %v3009
        %v3070 = vpack.c.bf16 %v3016, %v3013
        %v3071 = vpack.c.bf16 %v3017, %v3014
        %v3072 = vpack.c.bf16 %v3018, %v3015
        %v3073 = vpack.c.bf16 %v3022, %v3019
        %v3074 = vpack.c.bf16 %v3023, %v3020
        %v3075 = vpack.c.bf16 %v3024, %v3021
        %v3076 = vpack.c.bf16 %v3028, %v3025
        %v3077 = vpack.c.bf16 %v3029, %v3026
        %v3078 = vpack.c.bf16 %v3030, %v3027
        %v3079 = vpack.c.bf16 %v3034, %v3031
        %v3080 = vpack.c.bf16 %v3035, %v3032
        %v3081 = vpack.c.bf16 %v3036, %v3033
        %v3082 = vpack.c.bf16 %v3040, %v3037
        %v3083 = vpack.c.bf16 %v3041, %v3038
        %v3084 = vpack.c.bf16 %v3042, %v3039
        %v3085 = vld [vmem:[%s3] sm:$0xf]
        %v3086 = vld [vmem:[%s3 + $0x4] sm:$0xf]
        %v3087 = vld [vmem:[%s3 + $0x8] sm:$0xf]
        %v3088 = vld [vmem:[%s3 + $0xc] sm:$0xf]
        %v3089 = vld [vmem:[%s3 + $0x10] sm:$0xf]
        %v3090 = vld [vmem:[%s3 + $0x14] sm:$0xf]
        %v3091 = vld [vmem:[%s3 + $0x18] sm:$0xf]
        %v3092 = vld [vmem:[%s3 + $0x1c] sm:$0xf]
        %v3093 = vld [vmem:[%s3 + $0x20] sm:$0xf]
        %v3094 = vld [vmem:[%s3 + $0x24] sm:$0xf]
        %v3095 = vld [vmem:[%s3 + $0x28] sm:$0xf]
        %v3096 = vld [vmem:[%s3 + $0x2c] sm:$0xf]
        %v3097 = vld [vmem:[%s3 + $0x30] sm:$0xf]
        %v3098 = vld [vmem:[%s3 + $0x34] sm:$0xf]
        %v3099 = vld [vmem:[%s3 + $0x38] sm:$0xf]
        %v3100 = vld [vmem:[%s3 + $0x3c] sm:$0xf]
        %v3101 = vld [vmem:[%s3 + $0x40] sm:$0xf]
        %v3102 = vld [vmem:[%s3 + $0x44] sm:$0xf]
        %v3103 = vld [vmem:[%s3 + $0x48] sm:$0xf]
        %v3104 = vld [vmem:[%s3 + $0x4c] sm:$0xf]
        %v3105 = vld [vmem:[%s3 + $0x50] sm:$0xf]
        %v3106 = vld [vmem:[%s3 + $0x54] sm:$0xf]
        %v3107 = vld [vmem:[%s3 + $0x58] sm:$0xf]
        %v3108 = vld [vmem:[%s3 + $0x5c] sm:$0xf]
        %v3109 = vld [vmem:[%s3 + $0x60] sm:$0xf]
        %v3110 = vld [vmem:[%s3 + $0x64] sm:$0xf]
        %v3111 = vld [vmem:[%s3 + $0x68] sm:$0xf]
        %v3112 = vld [vmem:[%s3 + $0x6c] sm:$0xf]
        %v3113 = vld [vmem:[%s3 + $0x70] sm:$0xf]
        %v3114 = vld [vmem:[%s3 + $0x74] sm:$0xf]
        %v3115 = vld [vmem:[%s3 + $0x78] sm:$0xf]
        %v3116 = vld [vmem:[%s3 + $0x7c] sm:$0xf]
        %v3117 = vld [vmem:[%s3 + $0x80] sm:$0xf]
        %v3118 = vld [vmem:[%s3 + $0x84] sm:$0xf]
        %v3119 = vld [vmem:[%s3 + $0x88] sm:$0xf]
        %v3120 = vld [vmem:[%s3 + $0x8c] sm:$0xf]
        %v3121 = vld [vmem:[%s4] sm:$0x1]
        %v3123 = vperm.slane %v3121, 0
        %v3161 = vunpack.c.l.b16 %v3085
        %v3162 = vunpack.c.l.b16 %v3086
        %v3163 = vunpack.c.l.b16 %v3087
        %v3164 = vunpack.c.l.b16 %v3088
        %v3165 = vunpack.c.l.b16 %v3089
        %v3166 = vunpack.c.l.b16 %v3090
        %v3167 = vunpack.c.l.b16 %v3091
        %v3168 = vunpack.c.l.b16 %v3092
        %v3169 = vunpack.c.l.b16 %v3093
        %v3170 = vunpack.c.l.b16 %v3094
        %v3171 = vunpack.c.l.b16 %v3095
        %v3172 = vunpack.c.l.b16 %v3096
        %v3173 = vunpack.c.l.b16 %v3097
        %v3174 = vunpack.c.l.b16 %v3098
        %v3175 = vunpack.c.l.b16 %v3099
        %v3176 = vunpack.c.l.b16 %v3100
        %v3177 = vunpack.c.l.b16 %v3101
        %v3178 = vunpack.c.l.b16 %v3102
        %v3179 = vunpack.c.l.b16 %v3103
        %v3180 = vunpack.c.l.b16 %v3104
        %v3181 = vunpack.c.l.b16 %v3105
        %v3182 = vunpack.c.l.b16 %v3106
        %v3183 = vunpack.c.l.b16 %v3107
        %v3184 = vunpack.c.l.b16 %v3108
        %v3185 = vunpack.c.l.b16 %v3109
        %v3186 = vunpack.c.l.b16 %v3110
        %v3187 = vunpack.c.l.b16 %v3111
        %v3188 = vunpack.c.l.b16 %v3112
        %v3189 = vunpack.c.l.b16 %v3113
        %v3190 = vunpack.c.l.b16 %v3114
        %v3191 = vunpack.c.l.b16 %v3115
        %v3192 = vunpack.c.l.b16 %v3116
        %v3193 = vunpack.c.l.b16 %v3117
        %v3194 = vunpack.c.l.b16 %v3118
        %v3195 = vunpack.c.l.b16 %v3119
        %v3196 = vunpack.c.l.b16 %v3120
        %v3197 = vpack.c.b16 %v3162, %v3161
        %v3198 = vpack.c.b16 %v3164, %v3163
        %v3199 = vpack.c.b16 %v3166, %v3165
        %v3200 = vpack.c.b16 %v3168, %v3167
        %v3201 = vpack.c.b16 %v3170, %v3169
        %v3202 = vpack.c.b16 %v3172, %v3171
        %v3203 = vpack.c.b16 %v3174, %v3173
        %v3204 = vpack.c.b16 %v3176, %v3175
        %v3205 = vpack.c.b16 %v3178, %v3177
        %v3206 = vpack.c.b16 %v3180, %v3179
        %v3207 = vpack.c.b16 %v3182, %v3181
        %v3208 = vpack.c.b16 %v3184, %v3183
        %v3209 = vpack.c.b16 %v3186, %v3185
        %v3210 = vpack.c.b16 %v3188, %v3187
        %v3211 = vpack.c.b16 %v3190, %v3189
        %v3212 = vpack.c.b16 %v3192, %v3191
        %v3213 = vpack.c.b16 %v3194, %v3193
        %v3214 = vpack.c.b16 %v3196, %v3195
        %v3234 = vsel %vm472, %v3045, 0
        %v3237 = vsel %vm472, %v3048, 0
        %v3240 = vsel %vm472, %v3051, 0
        %v3243 = vsel %vm472, %v3054, 0
        %v3246 = vsel %vm472, %v3057, 0
        %v3249 = vsel %vm472, %v3060, 0
        %v3252 = vsel %vm472, %v3063, 0
        %v3255 = vsel %vm472, %v3066, 0
        %v3258 = vsel %vm472, %v3069, 0
        %v3261 = vsel %vm472, %v3072, 0
        %v3264 = vsel %vm472, %v3075, 0
        %v3267 = vsel %vm472, %v3078, 0
        %v3270 = vsel %vm472, %v3081, 0
        %v3273 = vsel %vm472, %v3084, 0
        %3275 = vmatpush.bf16.msra.mxu0 %v3204
        %3276 = vmatpush.bf16.msra.mxu0 %v3203
        %3277 = vmatpush.bf16.msra.mxu0 %v3202
        %3278 = vmatpush.bf16.msra.mxu0 %v3201
        %3279 = vmatpush.bf16.msra.mxu0 %v3200
        %3280 = vmatpush.bf16.msra.mxu0 %v3199
        %3281 = vmatpush.bf16.msra.mxu0 %v3198
        %3282 = vmatpush.bf16.msra.mxu0 %v3197
        %3283 = vmatmul.bf16.gmra.mxu0 %v3043
        %v3284 = vpop.f32.mrf.mxu0
        %v3285 = vadd.f32 %v3123, %v3284
        %v3286 = vpop.f32.mrf.mxu0
        %v3287 = vadd.f32 %v3123, %v3286
        %3288 = vmatmul.bf16.gmra.mxu0 %v3046
        %v3289 = vpop.f32.mrf.mxu0
        %v3290 = vadd.f32 %v3123, %v3289
        %v3291 = vpop.f32.mrf.mxu0
        %v3292 = vadd.f32 %v3123, %v3291
        %3293 = vmatmul.bf16.gmra.mxu0 %v3049
        %v3294 = vpop.f32.mrf.mxu0
        %v3295 = vadd.f32 %v3123, %v3294
        %v3296 = vpop.f32.mrf.mxu0
        %v3297 = vadd.f32 %v3123, %v3296
        %3298 = vmatmul.bf16.gmra.mxu0 %v3052
        %v3299 = vpop.f32.mrf.mxu0
        %v3300 = vadd.f32 %v3123, %v3299
        %v3301 = vpop.f32.mrf.mxu0
        %v3302 = vadd.f32 %v3123, %v3301
        %3303 = vmatmul.bf16.gmra.mxu0 %v3055
        %v3304 = vpop.f32.mrf.mxu0
        %v3305 = vadd.f32 %v3123, %v3304
        %v3306 = vpop.f32.mrf.mxu0
        %v3307 = vadd.f32 %v3123, %v3306
        %3308 = vmatmul.bf16.gmra.mxu0 %v3058
        %v3309 = vpop.f32.mrf.mxu0
        %v3310 = vadd.f32 %v3123, %v3309
        %v3311 = vpop.f32.mrf.mxu0
        %v3312 = vadd.f32 %v3123, %v3311
        %3313 = vmatmul.bf16.gmra.mxu0 %v3061
        %v3314 = vpop.f32.mrf.mxu0
        %v3315 = vadd.f32 %v3123, %v3314
        %v3316 = vpop.f32.mrf.mxu0
        %v3317 = vadd.f32 %v3123, %v3316
        %3318 = vmatmul.bf16.gmra.mxu0 %v3064
        %v3319 = vpop.f32.mrf.mxu0
        %v3320 = vadd.f32 %v3123, %v3319
        %v3321 = vpop.f32.mrf.mxu0
        %v3322 = vadd.f32 %v3123, %v3321
        %3323 = vmatmul.bf16.gmra.mxu0 %v3067
        %v3324 = vpop.f32.mrf.mxu0
        %v3325 = vadd.f32 %v3123, %v3324
        %v3326 = vpop.f32.mrf.mxu0
        %v3327 = vadd.f32 %v3123, %v3326
        %3328 = vmatmul.bf16.gmra.mxu0 %v3070
        %v3329 = vpop.f32.mrf.mxu0
        %v3330 = vadd.f32 %v3123, %v3329
        %v3331 = vpop.f32.mrf.mxu0
        %v3332 = vadd.f32 %v3123, %v3331
        %3333 = vmatmul.bf16.gmra.mxu0 %v3073
        %v3334 = vpop.f32.mrf.mxu0
        %v3335 = vadd.f32 %v3123, %v3334
        %v3336 = vpop.f32.mrf.mxu0
        %v3337 = vadd.f32 %v3123, %v3336
        %3338 = vmatmul.bf16.gmra.mxu0 %v3076
        %v3339 = vpop.f32.mrf.mxu0
        %v3340 = vadd.f32 %v3123, %v3339
        %v3341 = vpop.f32.mrf.mxu0
        %v3342 = vadd.f32 %v3123, %v3341
        %3343 = vmatmul.bf16.gmra.mxu0 %v3079
        %v3344 = vpop.f32.mrf.mxu0
        %v3345 = vadd.f32 %v3123, %v3344
        %v3346 = vpop.f32.mrf.mxu0
        %v3347 = vadd.f32 %v3123, %v3346
        %3348 = vmatmul.bf16.gmra.mxu0 %v3082
        %v3349 = vpop.f32.mrf.mxu0
        %v3350 = vadd.f32 %v3123, %v3349
        %v3351 = vpop.f32.mrf.mxu0
        %v3352 = vadd.f32 %v3123, %v3351
        %3353 = vdwg.mxu0
        %3354 = vmatpush.bf16.msra.mxu0 %v3212
        %3355 = vmatpush.bf16.msra.mxu0 %v3211
        %3356 = vmatpush.bf16.msra.mxu0 %v3210
        %3357 = vmatpush.bf16.msra.mxu0 %v3209
        %3358 = vmatpush.bf16.msra.mxu0 %v3208
        %3359 = vmatpush.bf16.msra.mxu0 %v3207
        %3360 = vmatpush.bf16.msra.mxu0 %v3206
        %3361 = vmatpush.bf16.msra.mxu0 %v3205
        %3362 = vmatmul.bf16.gmra.mxu0 %v3044
        %v3363 = vpop.f32.mrf.mxu0
        %v3364 = vadd.f32 %v3285, %v3363
        %v3365 = vpop.f32.mrf.mxu0
        %v3366 = vadd.f32 %v3287, %v3365
        %3367 = vmatmul.bf16.gmra.mxu0 %v3047
        %v3368 = vpop.f32.mrf.mxu0
        %v3369 = vadd.f32 %v3290, %v3368
        %v3370 = vpop.f32.mrf.mxu0
        %v3371 = vadd.f32 %v3292, %v3370
        %3372 = vmatmul.bf16.gmra.mxu0 %v3050
        %v3373 = vpop.f32.mrf.mxu0
        %v3374 = vadd.f32 %v3295, %v3373
        %v3375 = vpop.f32.mrf.mxu0
        %v3376 = vadd.f32 %v3297, %v3375
        %3377 = vmatmul.bf16.gmra.mxu0 %v3053
        %v3378 = vpop.f32.mrf.mxu0
        %v3379 = vadd.f32 %v3300, %v3378
        %v3380 = vpop.f32.mrf.mxu0
        %v3381 = vadd.f32 %v3302, %v3380
        %3382 = vmatmul.bf16.gmra.mxu0 %v3056
        %v3383 = vpop.f32.mrf.mxu0
        %v3384 = vadd.f32 %v3305, %v3383
        %v3385 = vpop.f32.mrf.mxu0
        %v3386 = vadd.f32 %v3307, %v3385
        %3387 = vmatmul.bf16.gmra.mxu0 %v3059
        %v3388 = vpop.f32.mrf.mxu0
        %v3389 = vadd.f32 %v3310, %v3388
        %v3390 = vpop.f32.mrf.mxu0
        %v3391 = vadd.f32 %v3312, %v3390
        %3392 = vmatmul.bf16.gmra.mxu0 %v3062
        %v3393 = vpop.f32.mrf.mxu0
        %v3394 = vadd.f32 %v3315, %v3393
        %v3395 = vpop.f32.mrf.mxu0
        %v3396 = vadd.f32 %v3317, %v3395
        %3397 = vmatmul.bf16.gmra.mxu0 %v3065
        %v3398 = vpop.f32.mrf.mxu0
        %v3399 = vadd.f32 %v3320, %v3398
        %v3400 = vpop.f32.mrf.mxu0
        %v3401 = vadd.f32 %v3322, %v3400
        %3402 = vmatmul.bf16.gmra.mxu0 %v3068
        %v3403 = vpop.f32.mrf.mxu0
        %v3404 = vadd.f32 %v3325, %v3403
        %v3405 = vpop.f32.mrf.mxu0
        %v3406 = vadd.f32 %v3327, %v3405
        %3407 = vmatmul.bf16.gmra.mxu0 %v3071
        %v3408 = vpop.f32.mrf.mxu0
        %v3409 = vadd.f32 %v3330, %v3408
        %v3410 = vpop.f32.mrf.mxu0
        %v3411 = vadd.f32 %v3332, %v3410
        %3412 = vmatmul.bf16.gmra.mxu0 %v3074
        %v3413 = vpop.f32.mrf.mxu0
        %v3414 = vadd.f32 %v3335, %v3413
        %v3415 = vpop.f32.mrf.mxu0
        %v3416 = vadd.f32 %v3337, %v3415
        %3417 = vmatmul.bf16.gmra.mxu0 %v3077
        %v3418 = vpop.f32.mrf.mxu0
        %v3419 = vadd.f32 %v3340, %v3418
        %v3420 = vpop.f32.mrf.mxu0
        %v3421 = vadd.f32 %v3342, %v3420
        %3422 = vmatmul.bf16.gmra.mxu0 %v3080
        %v3423 = vpop.f32.mrf.mxu0
        %v3424 = vadd.f32 %v3345, %v3423
        %v3425 = vpop.f32.mrf.mxu0
        %v3426 = vadd.f32 %v3347, %v3425
        %3427 = vmatmul.bf16.gmra.mxu0 %v3083
        %v3428 = vpop.f32.mrf.mxu0
        %v3429 = vadd.f32 %v3350, %v3428
        %v3430 = vpop.f32.mrf.mxu0
        %v3431 = vadd.f32 %v3352, %v3430
        %3432 = vdwg.mxu0
        %3433 = vmatpush.bf16.msra.mxu0 0
        %3434 = vmatpush.bf16.msra.mxu0 0
        %3435 = vmatpush.bf16.msra.mxu0 0
        %3436 = vmatpush.bf16.msra.mxu0 0
        %3437 = vmatpush.bf16.msra.mxu0 0
        %3438 = vmatpush.bf16.msra.mxu0 0
        %3439 = vmatpush.bf16.msra.mxu0 %v3214
        %3440 = vmatpush.bf16.msra.mxu0 %v3213
        %3441 = vmatmul.bf16.gmra.mxu0 %v3234
        %v3442 = vpop.f32.mrf.mxu0
        %v3443 = vadd.f32 %v3364, %v3442
        %v3444 = vpop.f32.mrf.mxu0
        %v3445 = vadd.f32 %v3366, %v3444
        %3446 = vmatmul.bf16.gmra.mxu0 %v3237
        %v3447 = vpop.f32.mrf.mxu0
        %v3448 = vadd.f32 %v3369, %v3447
        %v3449 = vpop.f32.mrf.mxu0
        %v3450 = vadd.f32 %v3371, %v3449
        %3451 = vmatmul.bf16.gmra.mxu0 %v3240
        %v3452 = vpop.f32.mrf.mxu0
        %v3453 = vadd.f32 %v3374, %v3452
        %v3454 = vpop.f32.mrf.mxu0
        %v3455 = vadd.f32 %v3376, %v3454
        %3456 = vmatmul.bf16.gmra.mxu0 %v3243
        %v3457 = vpop.f32.mrf.mxu0
        %v3458 = vadd.f32 %v3379, %v3457
        %v3459 = vpop.f32.mrf.mxu0
        %v3460 = vadd.f32 %v3381, %v3459
        %3461 = vmatmul.bf16.gmra.mxu0 %v3246
        %v3462 = vpop.f32.mrf.mxu0
        %v3463 = vadd.f32 %v3384, %v3462
        %v3464 = vpop.f32.mrf.mxu0
        %v3465 = vadd.f32 %v3386, %v3464
        %3466 = vmatmul.bf16.gmra.mxu0 %v3249
        %v3467 = vpop.f32.mrf.mxu0
        %v3468 = vadd.f32 %v3389, %v3467
        %v3469 = vpop.f32.mrf.mxu0
        %v3470 = vadd.f32 %v3391, %v3469
        %3471 = vmatmul.bf16.gmra.mxu0 %v3252
        %v3472 = vpop.f32.mrf.mxu0
        %v3473 = vadd.f32 %v3394, %v3472
        %v3474 = vpop.f32.mrf.mxu0
        %v3475 = vadd.f32 %v3396, %v3474
        %3476 = vmatmul.bf16.gmra.mxu0 %v3255
        %v3477 = vpop.f32.mrf.mxu0
        %v3478 = vadd.f32 %v3399, %v3477
        %v3479 = vpop.f32.mrf.mxu0
        %v3480 = vadd.f32 %v3401, %v3479
        %3481 = vmatmul.bf16.gmra.mxu0 %v3258
        %v3482 = vpop.f32.mrf.mxu0
        %v3483 = vadd.f32 %v3404, %v3482
        %v3484 = vpop.f32.mrf.mxu0
        %v3485 = vadd.f32 %v3406, %v3484
        %3486 = vmatmul.bf16.gmra.mxu0 %v3261
        %v3487 = vpop.f32.mrf.mxu0
        %v3488 = vadd.f32 %v3409, %v3487
        %v3489 = vpop.f32.mrf.mxu0
        %v3490 = vadd.f32 %v3411, %v3489
        %3491 = vmatmul.bf16.gmra.mxu0 %v3264
        %v3492 = vpop.f32.mrf.mxu0
        %v3493 = vadd.f32 %v3414, %v3492
        %v3494 = vpop.f32.mrf.mxu0
        %v3495 = vadd.f32 %v3416, %v3494
        %3496 = vmatmul.bf16.gmra.mxu0 %v3267
        %v3497 = vpop.f32.mrf.mxu0
        %v3498 = vadd.f32 %v3419, %v3497
        %v3499 = vpop.f32.mrf.mxu0
        %v3500 = vadd.f32 %v3421, %v3499
        %3501 = vmatmul.bf16.gmra.mxu0 %v3270
        %v3502 = vpop.f32.mrf.mxu0
        %v3503 = vadd.f32 %v3424, %v3502
        %v3504 = vpop.f32.mrf.mxu0
        %v3505 = vadd.f32 %v3426, %v3504
        %3506 = vmatmul.bf16.gmra.mxu0 %v3273
        %v3507 = vpop.f32.mrf.mxu0
        %v3508 = vadd.f32 %v3429, %v3507
        %v3509 = vpop.f32.mrf.mxu0
        %v3510 = vadd.f32 %v3431, %v3509
        %3511 = vdwg.mxu0
        %v3512 = vmax.f32 %v3443, 0.0
        %v3513 = vmax.f32 %v3445, 0.0
        %v3514 = vmax.f32 %v3448, 0.0
        %v3515 = vmax.f32 %v3450, 0.0
        %v3516 = vmax.f32 %v3453, 0.0
        %v3517 = vmax.f32 %v3455, 0.0
        %v3518 = vmax.f32 %v3458, 0.0
        %v3519 = vmax.f32 %v3460, 0.0
        %v3520 = vmax.f32 %v3463, 0.0
        %v3521 = vmax.f32 %v3465, 0.0
        %v3522 = vmax.f32 %v3468, 0.0
        %v3523 = vmax.f32 %v3470, 0.0
        %v3524 = vmax.f32 %v3473, 0.0
        %v3525 = vmax.f32 %v3475, 0.0
        %v3526 = vmax.f32 %v3478, 0.0
        %v3527 = vmax.f32 %v3480, 0.0
        %v3528 = vmax.f32 %v3483, 0.0
        %v3529 = vmax.f32 %v3485, 0.0
        %v3530 = vmax.f32 %v3488, 0.0
        %v3531 = vmax.f32 %v3490, 0.0
        %v3532 = vmax.f32 %v3493, 0.0
        %v3533 = vmax.f32 %v3495, 0.0
        %v3534 = vmax.f32 %v3498, 0.0
        %v3535 = vmax.f32 %v3500, 0.0
        %v3536 = vmax.f32 %v3503, 0.0
        %v3537 = vmax.f32 %v3505, 0.0
        %v3538 = vmax.f32 %v3508, 0.0
        %v3539 = vmax.f32 %v3510, 0.0
        %vm3540 = vcmask 523264
        %3541 = vst.msk [vmem:[#allocation5] sm:$0xff] %vm3540, %v3512
        %3542 = vst.msk [vmem:[#allocation5 + $0x8] sm:$0xff] %vm3540, %v3513
        %3543 = vst.msk [vmem:[#allocation5 + $0x10] sm:$0xff] %vm3540, %v3514
        %3544 = vst.msk [vmem:[#allocation5 + $0x18] sm:$0xff] %vm3540, %v3515
        %3545 = vst.msk [vmem:[#allocation5 + $0x20] sm:$0xff] %vm3540, %v3516
        %3546 = vst.msk [vmem:[#allocation5 + $0x28] sm:$0xff] %vm3540, %v3517
        %3547 = vst.msk [vmem:[#allocation5 + $0x30] sm:$0xff] %vm3540, %v3518
        %3548 = vst.msk [vmem:[#allocation5 + $0x38] sm:$0xff] %vm3540, %v3519
        %3549 = vst.msk [vmem:[#allocation5 + $0x40] sm:$0xff] %vm3540, %v3520
        %3550 = vst.msk [vmem:[#allocation5 + $0x48] sm:$0xff] %vm3540, %v3521
        %3551 = vst.msk [vmem:[#allocation5 + $0x50] sm:$0xff] %vm3540, %v3522
        %3552 = vst.msk [vmem:[#allocation5 + $0x58] sm:$0xff] %vm3540, %v3523
        %3553 = vst.msk [vmem:[#allocation5 + $0x60] sm:$0xff] %vm3540, %v3524
        %3554 = vst.msk [vmem:[#allocation5 + $0x68] sm:$0xff] %vm3540, %v3525
        %3555 = vst.msk [vmem:[#allocation5 + $0x70] sm:$0xff] %vm3540, %v3526
        %3556 = vst.msk [vmem:[#allocation5 + $0x78] sm:$0xff] %vm3540, %v3527
        %3557 = vst.msk [vmem:[#allocation5 + $0x80] sm:$0xff] %vm3540, %v3528
        %3558 = vst.msk [vmem:[#allocation5 + $0x88] sm:$0xff] %vm3540, %v3529
        %3559 = vst.msk [vmem:[#allocation5 + $0x90] sm:$0xff] %vm3540, %v3530
        %3560 = vst.msk [vmem:[#allocation5 + $0x98] sm:$0xff] %vm3540, %v3531
        %3561 = vst.msk [vmem:[#allocation5 + $0xa0] sm:$0xff] %vm3540, %v3532
        %3562 = vst.msk [vmem:[#allocation5 + $0xa8] sm:$0xff] %vm3540, %v3533
        %3563 = vst.msk [vmem:[#allocation5 + $0xb0] sm:$0xff] %vm3540, %v3534
        %3564 = vst.msk [vmem:[#allocation5 + $0xb8] sm:$0xff] %vm3540, %v3535
        %3565 = vst.msk [vmem:[#allocation5 + $0xc0] sm:$0xff] %vm3540, %v3536
        %3566 = vst.msk [vmem:[#allocation5 + $0xc8] sm:$0xff] %vm3540, %v3537
        %3567 = vst.msk [vmem:[#allocation5 + $0xd0] sm:$0xff] %vm3540, %v3538
        %3568 = vst.msk [vmem:[#allocation5 + $0xd8] sm:$0xff] %vm3540, %v3539
        %v3569 = vld [vmem:[#allocation5] ss:$2 sm:$0x7f]
        %s3570 = scalar_lea.vmem [#allocation5], 1
        %v3571 = vld [vmem:[%s3570] ss:$2 sm:$0x7f]
        %s3572 = scalar_lea.vmem [#allocation5], 16
        %v3573 = vld [vmem:[%s3572] ss:$2 sm:$0x7f]
        %s3574 = scalar_lea.vmem [#allocation5], 17
        %v3575 = vld [vmem:[%s3574] ss:$2 sm:$0x7f]
        %v3576 = vmax.f32 %v3569, %v3571
        %v3577 = vmax.f32 %v3573, %v3575
        %v3578 = vmax.f32 %v3576, %v3577
        %v3579 = vlaneseq
        %vm3580 = vcmp.ge.s32.totalorder %v3579, 0
        %vm3581 = vcmp.lt.s32.totalorder %v3579, 64
        %vm3582 = vmand %vm3580, %vm3581
        %3583 = vst.msk [vmem:[#allocation6] sm:$0x1] %vm3582, %v3578
        %3585 = vst [vmem:[#allocation1] sm:$0xff] %v3578
        %s3586 = scalar_lea.vmem [#allocation1], 1
        %v3587 = vld [vmem:[%s3586] ss:$9 sm:$0xff]
        %3588 = vrot.lane.b32.xlu0 %v3587, 64
        %v3589 = vpop.permute.xlu0 %3588
        %vm3591 = vcmp.ge.s32.totalorder %v3579, 64
        %vm3592 = vcmp.lt.s32.totalorder %v3579, 128
        %vm3593 = vmand %vm3591, %vm3592
        %3594 = vst.msk [vmem:[#allocation6] sm:$0x1] %vm3593, %v3589
        %3595 = vst [vmem:[#allocation1] sm:$0xff] %v3578
        %s3596 = scalar_lea.vmem [#allocation1], 2
        %v3597 = vld [vmem:[%s3596] ss:$9 sm:$0xff]
        %3599 = vst.msk [vmem:[#allocation6 + $0x1] sm:$0x1] %vm3582, %v3597
        %3600 = vst [vmem:[#allocation1] sm:$0xff] %v3578
        %s3601 = scalar_lea.vmem [#allocation1], 3
        %v3602 = vld [vmem:[%s3601] ss:$9 sm:$0xff]
        %3603 = vrot.lane.b32.xlu0 %v3602, 64
        %v3604 = vpop.permute.xlu0 %3603
        %3606 = vst.msk [vmem:[#allocation6 + $0x1] sm:$0x1] %vm3593, %v3604
        %3607 = vst [vmem:[#allocation1] sm:$0xff] %v3578
        %s3608 = scalar_lea.vmem [#allocation1], 4
        %v3609 = vld [vmem:[%s3608] ss:$9 sm:$0xff]
        %3611 = vst.msk [vmem:[#allocation6 + $0x2] sm:$0x1] %vm3582, %v3609
        %3612 = vst [vmem:[#allocation1] sm:$0xff] %v3578
        %s3613 = scalar_lea.vmem [#allocation1], 5
        %v3614 = vld [vmem:[%s3613] ss:$9 sm:$0xff]
        %3615 = vrot.lane.b32.xlu0 %v3614, 64
        %v3616 = vpop.permute.xlu0 %3615
        %3618 = vst.msk [vmem:[#allocation6 + $0x2] sm:$0x1] %vm3593, %v3616
        %3619 = vst [vmem:[#allocation1] sm:$0xff] %v3578
        %s3620 = scalar_lea.vmem [#allocation1], 6
        %v3621 = vld [vmem:[%s3620] ss:$9 sm:$0xff]
        %3623 = vst.msk [vmem:[#allocation6 + $0x3] sm:$0x1] %vm3582, %v3621
        %s3624 = scalar_lea.vmem [#allocation5], 32
        %v3625 = vld [vmem:[%s3624] ss:$2 sm:$0x7f]
        %s3626 = scalar_lea.vmem [#allocation5], 33
        %v3627 = vld [vmem:[%s3626] ss:$2 sm:$0x7f]
        %s3628 = scalar_lea.vmem [#allocation5], 48
        %v3629 = vld [vmem:[%s3628] ss:$2 sm:$0x7f]
        %s3630 = scalar_lea.vmem [#allocation5], 49
        %v3631 = vld [vmem:[%s3630] ss:$2 sm:$0x7f]
        %v3632 = vmax.f32 %v3625, %v3627
        %v3633 = vmax.f32 %v3629, %v3631
        %v3634 = vmax.f32 %v3632, %v3633
        %3636 = vrot.lane.b32.xlu0 %v3634, 64
        %v3637 = vpop.permute.xlu0 %3636
        %3639 = vst.msk [vmem:[#allocation6 + $0x3] sm:$0x1] %vm3593, %v3637
        %3640 = vst [vmem:[#allocation1] sm:$0xff] %v3634
        %s3641 = scalar_lea.vmem [#allocation1], 1
        %v3642 = vld [vmem:[%s3641] ss:$9 sm:$0xff]
        %3644 = vst.msk [vmem:[#allocation6 + $0x4] sm:$0x1] %vm3582, %v3642
        %3645 = vst [vmem:[#allocation1] sm:$0xff] %v3634
        %s3646 = scalar_lea.vmem [#allocation1], 2
        %v3647 = vld [vmem:[%s3646] ss:$9 sm:$0xff]
        %3648 = vrot.lane.b32.xlu0 %v3647, 64
        %v3649 = vpop.permute.xlu0 %3648
        %3651 = vst.msk [vmem:[#allocation6 + $0x4] sm:$0x1] %vm3593, %v3649
        %3652 = vst [vmem:[#allocation1] sm:$0xff] %v3634
        %s3653 = scalar_lea.vmem [#allocation1], 3
        %v3654 = vld [vmem:[%s3653] ss:$9 sm:$0xff]
        %3656 = vst.msk [vmem:[#allocation6 + $0x5] sm:$0x1] %vm3582, %v3654
        %3657 = vst [vmem:[#allocation1] sm:$0xff] %v3634
        %s3658 = scalar_lea.vmem [#allocation1], 4
        %v3659 = vld [vmem:[%s3658] ss:$9 sm:$0xff]
        %3660 = vrot.lane.b32.xlu0 %v3659, 64
        %v3661 = vpop.permute.xlu0 %3660
        %3663 = vst.msk [vmem:[#allocation6 + $0x5] sm:$0x1] %vm3593, %v3661
        %3664 = vst [vmem:[#allocation1] sm:$0xff] %v3634
        %s3665 = scalar_lea.vmem [#allocation1], 5
        %v3666 = vld [vmem:[%s3665] ss:$9 sm:$0xff]
        %3668 = vst.msk [vmem:[#allocation6 + $0x6] sm:$0x1] %vm3582, %v3666
        %3669 = vst [vmem:[#allocation1] sm:$0xff] %v3634
        %s3670 = scalar_lea.vmem [#allocation1], 6
        %v3671 = vld [vmem:[%s3670] ss:$9 sm:$0xff]
        %3672 = vrot.lane.b32.xlu0 %v3671, 64
        %v3673 = vpop.permute.xlu0 %3672
        %3675 = vst.msk [vmem:[#allocation6 + $0x6] sm:$0x1] %vm3593, %v3673
        %s3676 = scalar_lea.vmem [#allocation5], 64
        %v3677 = vld [vmem:[%s3676] ss:$2 sm:$0x7f]
        %s3678 = scalar_lea.vmem [#allocation5], 65
        %v3679 = vld [vmem:[%s3678] ss:$2 sm:$0x7f]
        %s3680 = scalar_lea.vmem [#allocation5], 80
        %v3681 = vld [vmem:[%s3680] ss:$2 sm:$0x7f]
        %s3682 = scalar_lea.vmem [#allocation5], 81
        %v3683 = vld [vmem:[%s3682] ss:$2 sm:$0x7f]
        %v3684 = vmax.f32 %v3677, %v3679
        %v3685 = vmax.f32 %v3681, %v3683
        %v3686 = vmax.f32 %v3684, %v3685
        %3687 = vst.msk [vmem:[#allocation6 + $0x7] sm:$0x1] %vm3582, %v3686
        %3689 = vst [vmem:[#allocation1] sm:$0xff] %v3686
        %s3690 = scalar_lea.vmem [#allocation1], 1
        %v3691 = vld [vmem:[%s3690] ss:$9 sm:$0xff]
        %3692 = vrot.lane.b32.xlu0 %v3691, 64
        %v3693 = vpop.permute.xlu0 %3692
        %3695 = vst.msk [vmem:[#allocation6 + $0x7] sm:$0x1] %vm3593, %v3693
        %3696 = vst [vmem:[#allocation1] sm:$0xff] %v3686
        %s3697 = scalar_lea.vmem [#allocation1], 2
        %v3698 = vld [vmem:[%s3697] ss:$9 sm:$0xff]
        %3700 = vst.msk [vmem:[#allocation6 + $0x8] sm:$0x1] %vm3582, %v3698
        %3701 = vst [vmem:[#allocation1] sm:$0xff] %v3686
        %s3702 = scalar_lea.vmem [#allocation1], 3
        %v3703 = vld [vmem:[%s3702] ss:$9 sm:$0xff]
        %3704 = vrot.lane.b32.xlu0 %v3703, 64
        %v3705 = vpop.permute.xlu0 %3704
        %3707 = vst.msk [vmem:[#allocation6 + $0x8] sm:$0x1] %vm3593, %v3705
        %3708 = vst [vmem:[#allocation1] sm:$0xff] %v3686
        %s3709 = scalar_lea.vmem [#allocation1], 4
        %v3710 = vld [vmem:[%s3709] ss:$9 sm:$0xff]
        %3712 = vst.msk [vmem:[#allocation6 + $0x9] sm:$0x1] %vm3582, %v3710
        %3713 = vst [vmem:[#allocation1] sm:$0xff] %v3686
        %s3714 = scalar_lea.vmem [#allocation1], 5
        %v3715 = vld [vmem:[%s3714] ss:$9 sm:$0xff]
        %3716 = vrot.lane.b32.xlu0 %v3715, 64
        %v3717 = vpop.permute.xlu0 %3716
        %3719 = vst.msk [vmem:[#allocation6 + $0x9] sm:$0x1] %vm3593, %v3717
        %3720 = vst [vmem:[#allocation1] sm:$0xff] %v3686
        %s3721 = scalar_lea.vmem [#allocation1], 6
        %v3722 = vld [vmem:[%s3721] ss:$9 sm:$0xff]
        %3724 = vst.msk [vmem:[#allocation6 + $0xa] sm:$0x1] %vm3582, %v3722
        %s3725 = scalar_lea.vmem [#allocation5], 96
        %v3726 = vld [vmem:[%s3725] ss:$2 sm:$0x7f]
        %s3727 = scalar_lea.vmem [#allocation5], 97
        %v3728 = vld [vmem:[%s3727] ss:$2 sm:$0x7f]
        %s3729 = scalar_lea.vmem [#allocation5], 112
        %v3730 = vld [vmem:[%s3729] ss:$2 sm:$0x7f]
        %s3731 = scalar_lea.vmem [#allocation5], 113
        %v3732 = vld [vmem:[%s3731] ss:$2 sm:$0x7f]
        %v3733 = vmax.f32 %v3726, %v3728
        %v3734 = vmax.f32 %v3730, %v3732
        %v3735 = vmax.f32 %v3733, %v3734
        %3737 = vrot.lane.b32.xlu0 %v3735, 64
        %v3738 = vpop.permute.xlu0 %3737
        %3740 = vst.msk [vmem:[#allocation6 + $0xa] sm:$0x1] %vm3593, %v3738
        %3741 = vst [vmem:[#allocation1] sm:$0xff] %v3735
        %s3742 = scalar_lea.vmem [#allocation1], 1
        %v3743 = vld [vmem:[%s3742] ss:$9 sm:$0xff]
        %3745 = vst.msk [vmem:[#allocation6 + $0xb] sm:$0x1] %vm3582, %v3743
        %3746 = vst [vmem:[#allocation1] sm:$0xff] %v3735
        %s3747 = scalar_lea.vmem [#allocation1], 2
        %v3748 = vld [vmem:[%s3747] ss:$9 sm:$0xff]
        %3749 = vrot.lane.b32.xlu0 %v3748, 64
        %v3750 = vpop.permute.xlu0 %3749
        %3752 = vst.msk [vmem:[#allocation6 + $0xb] sm:$0x1] %vm3593, %v3750
        %3753 = vst [vmem:[#allocation1] sm:$0xff] %v3735
        %s3754 = scalar_lea.vmem [#allocation1], 3
        %v3755 = vld [vmem:[%s3754] ss:$9 sm:$0xff]
        %3757 = vst.msk [vmem:[#allocation6 + $0xc] sm:$0x1] %vm3582, %v3755
        %3758 = vst [vmem:[#allocation1] sm:$0xff] %v3735
        %s3759 = scalar_lea.vmem [#allocation1], 4
        %v3760 = vld [vmem:[%s3759] ss:$9 sm:$0xff]
        %3761 = vrot.lane.b32.xlu0 %v3760, 64
        %v3762 = vpop.permute.xlu0 %3761
        %3764 = vst.msk [vmem:[#allocation6 + $0xc] sm:$0x1] %vm3593, %v3762
        %3765 = vst [vmem:[#allocation1] sm:$0xff] %v3735
        %s3766 = scalar_lea.vmem [#allocation1], 5
        %v3767 = vld [vmem:[%s3766] ss:$9 sm:$0xff]
        %3769 = vst.msk [vmem:[#allocation6 + $0xd] sm:$0x1] %vm3582, %v3767
        %3770 = vst [vmem:[#allocation1] sm:$0xff] %v3735
        %s3771 = scalar_lea.vmem [#allocation1], 6
        %v3772 = vld [vmem:[%s3771] ss:$9 sm:$0xff]
        %3773 = vrot.lane.b32.xlu0 %v3772, 64
        %v3774 = vpop.permute.xlu0 %3773
        %3776 = vst.msk [vmem:[#allocation6 + $0xd] sm:$0x1] %vm3593, %v3774
        %s3777 = scalar_lea.vmem [#allocation5], 128
        %v3778 = vld [vmem:[%s3777] ss:$2 sm:$0x7f]
        %s3779 = scalar_lea.vmem [#allocation5], 129
        %v3780 = vld [vmem:[%s3779] ss:$2 sm:$0x7f]
        %s3781 = scalar_lea.vmem [#allocation5], 144
        %v3782 = vld [vmem:[%s3781] ss:$2 sm:$0x7f]
        %s3783 = scalar_lea.vmem [#allocation5], 145
        %v3784 = vld [vmem:[%s3783] ss:$2 sm:$0x7f]
        %v3785 = vmax.f32 %v3778, %v3780
        %v3786 = vmax.f32 %v3782, %v3784
        %v3787 = vmax.f32 %v3785, %v3786
        %3788 = vst.msk [vmem:[#allocation6 + $0xe] sm:$0x1] %vm3582, %v3787
        %3790 = vst [vmem:[#allocation1] sm:$0xff] %v3787
        %s3791 = scalar_lea.vmem [#allocation1], 1
        %v3792 = vld [vmem:[%s3791] ss:$9 sm:$0xff]
        %3793 = vrot.lane.b32.xlu0 %v3792, 64
        %v3794 = vpop.permute.xlu0 %3793
        %3796 = vst.msk [vmem:[#allocation6 + $0xe] sm:$0x1] %vm3593, %v3794
        %3797 = vst [vmem:[#allocation1] sm:$0xff] %v3787
        %s3798 = scalar_lea.vmem [#allocation1], 2
        %v3799 = vld [vmem:[%s3798] ss:$9 sm:$0xff]
        %3801 = vst.msk [vmem:[#allocation6 + $0xf] sm:$0x1] %vm3582, %v3799
        %3802 = vst [vmem:[#allocation1] sm:$0xff] %v3787
        %s3803 = scalar_lea.vmem [#allocation1], 3
        %v3804 = vld [vmem:[%s3803] ss:$9 sm:$0xff]
        %3805 = vrot.lane.b32.xlu0 %v3804, 64
        %v3806 = vpop.permute.xlu0 %3805
        %3808 = vst.msk [vmem:[#allocation6 + $0xf] sm:$0x1] %vm3593, %v3806
        %3809 = vst [vmem:[#allocation1] sm:$0xff] %v3787
        %s3810 = scalar_lea.vmem [#allocation1], 4
        %v3811 = vld [vmem:[%s3810] ss:$9 sm:$0xff]
        %3813 = vst.msk [vmem:[#allocation6 + $0x10] sm:$0x1] %vm3582, %v3811
        %3814 = vst [vmem:[#allocation1] sm:$0xff] %v3787
        %s3815 = scalar_lea.vmem [#allocation1], 5
        %v3816 = vld [vmem:[%s3815] ss:$9 sm:$0xff]
        %3817 = vrot.lane.b32.xlu0 %v3816, 64
        %v3818 = vpop.permute.xlu0 %3817
        %3820 = vst.msk [vmem:[#allocation6 + $0x10] sm:$0x1] %vm3593, %v3818
        %3821 = vst [vmem:[#allocation1] sm:$0xff] %v3787
        %s3822 = scalar_lea.vmem [#allocation1], 6
        %v3823 = vld [vmem:[%s3822] ss:$9 sm:$0xff]
        %3825 = vst.msk [vmem:[#allocation6 + $0x11] sm:$0x1] %vm3582, %v3823
        %s3826 = scalar_lea.vmem [#allocation5], 160
        %v3827 = vld [vmem:[%s3826] ss:$2 sm:$0x7f]
        %s3828 = scalar_lea.vmem [#allocation5], 161
        %v3829 = vld [vmem:[%s3828] ss:$2 sm:$0x7f]
        %s3830 = scalar_lea.vmem [#allocation5], 176
        %v3831 = vld [vmem:[%s3830] ss:$2 sm:$0x7f]
        %s3832 = scalar_lea.vmem [#allocation5], 177
        %v3833 = vld [vmem:[%s3832] ss:$2 sm:$0x7f]
        %v3834 = vmax.f32 %v3827, %v3829
        %v3835 = vmax.f32 %v3831, %v3833
        %v3836 = vmax.f32 %v3834, %v3835
        %3838 = vrot.lane.b32.xlu0 %v3836, 64
        %v3839 = vpop.permute.xlu0 %3838
        %3841 = vst.msk [vmem:[#allocation6 + $0x11] sm:$0x1] %vm3593, %v3839
        %3842 = vst [vmem:[#allocation1] sm:$0xff] %v3836
        %s3843 = scalar_lea.vmem [#allocation1], 1
        %v3844 = vld [vmem:[%s3843] ss:$9 sm:$0xff]
        %3846 = vst.msk [vmem:[#allocation6 + $0x12] sm:$0x1] %vm3582, %v3844
        %3847 = vst [vmem:[#allocation1] sm:$0xff] %v3836
        %s3848 = scalar_lea.vmem [#allocation1], 2
        %v3849 = vld [vmem:[%s3848] ss:$9 sm:$0xff]
        %3850 = vrot.lane.b32.xlu0 %v3849, 64
        %v3851 = vpop.permute.xlu0 %3850
        %3853 = vst.msk [vmem:[#allocation6 + $0x12] sm:$0x1] %vm3593, %v3851
        %3854 = vst [vmem:[#allocation1] sm:$0xff] %v3836
        %s3855 = scalar_lea.vmem [#allocation1], 3
        %v3856 = vld [vmem:[%s3855] ss:$9 sm:$0xff]
        %3858 = vst.msk [vmem:[#allocation6 + $0x13] sm:$0x1] %vm3582, %v3856
        %3859 = vst [vmem:[#allocation1] sm:$0xff] %v3836
        %s3860 = scalar_lea.vmem [#allocation1], 4
        %v3861 = vld [vmem:[%s3860] ss:$9 sm:$0xff]
        %3862 = vrot.lane.b32.xlu0 %v3861, 64
        %v3863 = vpop.permute.xlu0 %3862
        %3865 = vst.msk [vmem:[#allocation6 + $0x13] sm:$0x1] %vm3593, %v3863
        %3866 = vst [vmem:[#allocation1] sm:$0xff] %v3836
        %s3867 = scalar_lea.vmem [#allocation1], 5
        %v3868 = vld [vmem:[%s3867] ss:$9 sm:$0xff]
        %3870 = vst.msk [vmem:[#allocation6 + $0x14] sm:$0x1] %vm3582, %v3868
        %3871 = vst [vmem:[#allocation1] sm:$0xff] %v3836
        %s3872 = scalar_lea.vmem [#allocation1], 6
        %v3873 = vld [vmem:[%s3872] ss:$9 sm:$0xff]
        %3874 = vrot.lane.b32.xlu0 %v3873, 64
        %v3875 = vpop.permute.xlu0 %3874
        %3877 = vst.msk [vmem:[#allocation6 + $0x14] sm:$0x1] %vm3593, %v3875
        %s3878 = scalar_lea.vmem [#allocation5], 192
        %v3879 = vld [vmem:[%s3878] ss:$2 sm:$0x7f]
        %s3880 = scalar_lea.vmem [#allocation5], 193
        %v3881 = vld [vmem:[%s3880] ss:$2 sm:$0x7f]
        %s3882 = scalar_lea.vmem [#allocation5], 208
        %v3883 = vld [vmem:[%s3882] ss:$2 sm:$0x7f]
        %s3884 = scalar_lea.vmem [#allocation5], 209
        %v3885 = vld [vmem:[%s3884] ss:$2 sm:$0x7f]
        %v3886 = vmax.f32 %v3879, %v3881
        %v3887 = vmax.f32 %v3883, %v3885
        %v3888 = vmax.f32 %v3886, %v3887
        %3889 = vst.msk [vmem:[#allocation6 + $0x15] sm:$0x1] %vm3582, %v3888
        %3891 = vst [vmem:[#allocation1] sm:$0xff] %v3888
        %s3892 = scalar_lea.vmem [#allocation1], 1
        %v3893 = vld [vmem:[%s3892] ss:$9 sm:$0xff]
        %3894 = vrot.lane.b32.xlu0 %v3893, 64
        %v3895 = vpop.permute.xlu0 %3894
        %3897 = vst.msk [vmem:[#allocation6 + $0x15] sm:$0x1] %vm3593, %v3895
        %3898 = vst [vmem:[#allocation1] sm:$0xff] %v3888
        %s3899 = scalar_lea.vmem [#allocation1], 2
        %v3900 = vld [vmem:[%s3899] ss:$9 sm:$0xff]
        %3902 = vst.msk [vmem:[#allocation6 + $0x16] sm:$0x1] %vm3582, %v3900
        %3903 = vst [vmem:[#allocation1] sm:$0xff] %v3888
        %s3904 = scalar_lea.vmem [#allocation1], 3
        %v3905 = vld [vmem:[%s3904] ss:$9 sm:$0xff]
        %3906 = vrot.lane.b32.xlu0 %v3905, 64
        %v3907 = vpop.permute.xlu0 %3906
        %3909 = vst.msk [vmem:[#allocation6 + $0x16] sm:$0x1] %vm3593, %v3907
        %3910 = vst [vmem:[#allocation1] sm:$0xff] %v3888
        %s3911 = scalar_lea.vmem [#allocation1], 4
        %v3912 = vld [vmem:[%s3911] ss:$9 sm:$0xff]
        %3914 = vst.msk [vmem:[#allocation6 + $0x17] sm:$0x1] %vm3582, %v3912
        %3915 = vst [vmem:[#allocation1] sm:$0xff] %v3888
        %s3916 = scalar_lea.vmem [#allocation1], 5
        %v3917 = vld [vmem:[%s3916] ss:$9 sm:$0xff]
        %3918 = vrot.lane.b32.xlu0 %v3917, 64
        %v3919 = vpop.permute.xlu0 %3918
        %3921 = vst.msk [vmem:[#allocation6 + $0x17] sm:$0x1] %vm3593, %v3919
        %3922 = vst [vmem:[#allocation1] sm:$0xff] %v3888
        %s3923 = scalar_lea.vmem [#allocation1], 6
        %v3924 = vld [vmem:[%s3923] ss:$9 sm:$0xff]
        %3926 = vst.msk [vmem:[#allocation6 + $0x18] sm:$0x1] %vm3582, %v3924
        %v3927 = vld [vmem:[#allocation6] sm:$0xff]
        %v3928 = vld [vmem:[#allocation6 + $0x8] sm:$0xff]
        %v3929 = vld [vmem:[#allocation6 + $0x10] sm:$0xff]
        %v3930 = vld [vmem:[#allocation6 + $0x18] sm:$0x1]
        %v3935 = vperm.slane %v3927, 0
        %v3936 = vperm.slane %v3927, 1
        %v3937 = vperm.slane %v3927, 2
        %v3938 = vperm.slane %v3927, 3
        %v3939 = vperm.slane %v3927, 4
        %v3940 = vperm.slane %v3927, 5
        %v3941 = vperm.slane %v3927, 6
        %v3942 = vperm.slane %v3927, 7
        %v3943 = vperm.slane %v3928, 0
        %v3944 = vperm.slane %v3928, 1
        %v3945 = vperm.slane %v3928, 2
        %v3946 = vperm.slane %v3928, 3
        %v3947 = vperm.slane %v3928, 4
        %v3948 = vperm.slane %v3928, 5
        %v3949 = vperm.slane %v3928, 6
        %v3950 = vperm.slane %v3928, 7
        %v3951 = vperm.slane %v3929, 0
        %v3952 = vperm.slane %v3929, 1
        %v3953 = vperm.slane %v3929, 2
        %v3954 = vperm.slane %v3929, 3
        %v3955 = vperm.slane %v3929, 4
        %v3956 = vperm.slane %v3929, 5
        %v3957 = vperm.slane %v3929, 6
        %v3958 = vperm.slane %v3929, 7
        %v3959 = vperm.slane %v3930, 0
        %v3985 = vpack.c.bf16 %v3935, %v3935
        %v3986 = vpack.c.bf16 %v3936, %v3936
        %v3987 = vpack.c.bf16 %v3937, %v3937
        %v3988 = vpack.c.bf16 %v3938, %v3938
        %v3989 = vpack.c.bf16 %v3939, %v3939
        %v3990 = vpack.c.bf16 %v3940, %v3940
        %v3991 = vpack.c.bf16 %v3941, %v3941
        %v3992 = vpack.c.bf16 %v3942, %v3942
        %v3993 = vpack.c.bf16 %v3943, %v3943
        %v3994 = vpack.c.bf16 %v3944, %v3944
        %v3995 = vpack.c.bf16 %v3945, %v3945
        %v3996 = vpack.c.bf16 %v3946, %v3946
        %v3997 = vpack.c.bf16 %v3947, %v3947
        %v3998 = vpack.c.bf16 %v3948, %v3948
        %v3999 = vpack.c.bf16 %v3949, %v3949
        %v4000 = vpack.c.bf16 %v3950, %v3950
        %v4001 = vpack.c.bf16 %v3951, %v3951
        %v4002 = vpack.c.bf16 %v3952, %v3952
        %v4003 = vpack.c.bf16 %v3953, %v3953
        %v4004 = vpack.c.bf16 %v3954, %v3954
        %v4005 = vpack.c.bf16 %v3955, %v3955
        %v4006 = vpack.c.bf16 %v3956, %v3956
        %v4007 = vpack.c.bf16 %v3957, %v3957
        %v4008 = vpack.c.bf16 %v3958, %v3958
        %v4009 = vpack.c.bf16 %v3959, %v3959
        %v4010 = vld [vmem:[%s5] sm:$0xf]
        %v4011 = vld [vmem:[%s5 + $0x4] sm:$0xf]
        %v4012 = vld [vmem:[%s5 + $0x8] sm:$0xf]
        %v4013 = vld [vmem:[%s5 + $0xc] sm:$0xf]
        %v4014 = vld [vmem:[%s5 + $0x10] sm:$0xf]
        %v4015 = vld [vmem:[%s5 + $0x14] sm:$0xf]
        %v4016 = vld [vmem:[%s5 + $0x18] sm:$0xf]
        %v4017 = vld [vmem:[%s5 + $0x1c] sm:$0xf]
        %v4018 = vld [vmem:[%s5 + $0x20] sm:$0xf]
        %v4019 = vld [vmem:[%s5 + $0x24] sm:$0xf]
        %v4020 = vld [vmem:[%s5 + $0x28] sm:$0xf]
        %v4021 = vld [vmem:[%s5 + $0x2c] sm:$0xf]
        %v4022 = vld [vmem:[%s5 + $0x30] sm:$0xf]
        %v4023 = vld [vmem:[%s5 + $0x34] sm:$0xf]
        %v4024 = vld [vmem:[%s5 + $0x38] sm:$0xf]
        %v4025 = vld [vmem:[%s5 + $0x3c] sm:$0xf]
        %v4026 = vld [vmem:[%s5 + $0x40] sm:$0xf]
        %v4027 = vld [vmem:[%s5 + $0x44] sm:$0xf]
        %v4028 = vld [vmem:[%s5 + $0x48] sm:$0xf]
        %v4029 = vld [vmem:[%s5 + $0x4c] sm:$0xf]
        %v4030 = vld [vmem:[%s5 + $0x50] sm:$0xf]
        %v4031 = vld [vmem:[%s5 + $0x54] sm:$0xf]
        %v4032 = vld [vmem:[%s5 + $0x58] sm:$0xf]
        %v4033 = vld [vmem:[%s5 + $0x5c] sm:$0xf]
        %v4034 = vld [vmem:[%s5 + $0x60] sm:$0xf]
        %v4035 = vld [vmem:[%s5 + $0x64] sm:$0xf]
        %v4036 = vld [vmem:[%s5 + $0x68] sm:$0xf]
        %v4037 = vld [vmem:[%s5 + $0x6c] sm:$0xf]
        %v4038 = vld [vmem:[%s5 + $0x70] sm:$0xf]
        %v4039 = vld [vmem:[%s5 + $0x74] sm:$0xf]
        %v4040 = vld [vmem:[%s5 + $0x78] sm:$0xf]
        %v4041 = vld [vmem:[%s5 + $0x7c] sm:$0xf]
        %v4042 = vld [vmem:[%s5 + $0x80] sm:$0xf]
        %v4043 = vld [vmem:[%s5 + $0x84] sm:$0xf]
        %v4044 = vld [vmem:[%s5 + $0x88] sm:$0xf]
        %v4045 = vld [vmem:[%s5 + $0x8c] sm:$0xf]
        %v4046 = vld [vmem:[%s5 + $0x90] sm:$0xf]
        %v4047 = vld [vmem:[%s5 + $0x94] sm:$0xf]
        %v4048 = vld [vmem:[%s5 + $0x98] sm:$0xf]
        %v4049 = vld [vmem:[%s5 + $0x9c] sm:$0xf]
        %v4050 = vld [vmem:[%s5 + $0xa0] sm:$0xf]
        %v4051 = vld [vmem:[%s5 + $0xa4] sm:$0xf]
        %v4052 = vld [vmem:[%s5 + $0xa8] sm:$0xf]
        %v4053 = vld [vmem:[%s5 + $0xac] sm:$0xf]
        %v4054 = vld [vmem:[%s5 + $0xb0] sm:$0xf]
        %v4055 = vld [vmem:[%s5 + $0xb4] sm:$0xf]
        %v4056 = vld [vmem:[%s5 + $0xb8] sm:$0xf]
        %v4057 = vld [vmem:[%s5 + $0xbc] sm:$0xf]
        %v4058 = vld [vmem:[%s5 + $0xc0] sm:$0xf]
        %v4059 = vld [vmem:[%s5 + $0xc4] sm:$0xf]
        %v4060 = vld [vmem:[%s5 + $0xc8] sm:$0xf]
        %v4061 = vld [vmem:[%s5 + $0xcc] sm:$0xf]
        %v4062 = vld [vmem:[%s5 + $0xd0] sm:$0xf]
        %v4063 = vld [vmem:[%s5 + $0xd4] sm:$0xf]
        %v4064 = vld [vmem:[%s5 + $0xd8] sm:$0xf]
        %v4065 = vld [vmem:[%s5 + $0xdc] sm:$0xf]
        %v4066 = vld [vmem:[%s5 + $0xe0] sm:$0xf]
        %v4067 = vld [vmem:[%s5 + $0xe4] sm:$0xf]
        %v4068 = vld [vmem:[%s5 + $0xe8] sm:$0xf]
        %v4069 = vld [vmem:[%s5 + $0xec] sm:$0xf]
        %v4070 = vld [vmem:[%s5 + $0xf0] sm:$0xf]
        %v4071 = vld [vmem:[%s5 + $0xf4] sm:$0xf]
        %v4072 = vld [vmem:[%s5 + $0xf8] sm:$0xf]
        %v4073 = vld [vmem:[%s5 + $0xfc] sm:$0xf]
        %v4074 = vld [vmem:[%s5 + $0x100] sm:$0xf]
        %v4075 = vld [vmem:[%s5 + $0x104] sm:$0xf]
        %v4076 = vld [vmem:[%s5 + $0x108] sm:$0xf]
        %v4077 = vld [vmem:[%s5 + $0x10c] sm:$0xf]
        %v4078 = vld [vmem:[%s5 + $0x110] sm:$0xf]
        %v4079 = vld [vmem:[%s5 + $0x114] sm:$0xf]
        %v4080 = vld [vmem:[%s5 + $0x118] sm:$0xf]
        %v4081 = vld [vmem:[%s5 + $0x11c] sm:$0xf]
        %v4082 = vld [vmem:[%s5 + $0x120] sm:$0xf]
        %v4083 = vld [vmem:[%s5 + $0x124] sm:$0xf]
        %v4084 = vld [vmem:[%s5 + $0x128] sm:$0xf]
        %v4085 = vld [vmem:[%s5 + $0x12c] sm:$0xf]
        %v4086 = vld [vmem:[%s5 + $0x130] sm:$0xf]
        %v4087 = vld [vmem:[%s5 + $0x134] sm:$0xf]
        %v4088 = vld [vmem:[%s5 + $0x138] sm:$0xf]
        %v4089 = vld [vmem:[%s5 + $0x13c] sm:$0xf]
        %v4090 = vld [vmem:[%s5 + $0x140] sm:$0xf]
        %v4091 = vld [vmem:[%s5 + $0x144] sm:$0xf]
        %v4092 = vld [vmem:[%s5 + $0x148] sm:$0xf]
        %v4093 = vld [vmem:[%s5 + $0x14c] sm:$0xf]
        %v4094 = vld [vmem:[%s5 + $0x150] sm:$0xf]
        %v4095 = vld [vmem:[%s5 + $0x154] sm:$0xf]
        %v4096 = vld [vmem:[%s5 + $0x158] sm:$0xf]
        %v4097 = vld [vmem:[%s5 + $0x15c] sm:$0xf]
        %v4098 = vld [vmem:[%s5 + $0x160] sm:$0xf]
        %v4099 = vld [vmem:[%s5 + $0x164] sm:$0xf]
        %v4100 = vld [vmem:[%s5 + $0x168] sm:$0xf]
        %v4101 = vld [vmem:[%s5 + $0x16c] sm:$0xf]
        %v4102 = vld [vmem:[%s5 + $0x170] sm:$0xf]
        %v4103 = vld [vmem:[%s5 + $0x174] sm:$0xf]
        %v4104 = vld [vmem:[%s5 + $0x178] sm:$0xf]
        %v4105 = vld [vmem:[%s5 + $0x17c] sm:$0xf]
        %v4106 = vld [vmem:[%s5 + $0x180] sm:$0xf]
        %v4107 = vld [vmem:[%s5 + $0x184] sm:$0xf]
        %v4108 = vld [vmem:[%s5 + $0x188] sm:$0xf]
        %v4109 = vld [vmem:[%s5 + $0x18c] sm:$0xf]
        %v4110 = vld [vmem:[%s5 + $0x190] sm:$0xf]
        %v4111 = vld [vmem:[%s5 + $0x194] sm:$0xf]
        %v4112 = vld [vmem:[%s5 + $0x198] sm:$0xf]
        %v4113 = vld [vmem:[%s5 + $0x19c] sm:$0xf]
        %v4114 = vld [vmem:[%s5 + $0x1a0] sm:$0xf]
        %v4115 = vld [vmem:[%s5 + $0x1a4] sm:$0xf]
        %v4116 = vld [vmem:[%s5 + $0x1a8] sm:$0xf]
        %v4117 = vld [vmem:[%s5 + $0x1ac] sm:$0xf]
        %v4118 = vld [vmem:[%s5 + $0x1b0] sm:$0xf]
        %v4119 = vld [vmem:[%s5 + $0x1b4] sm:$0xf]
        %v4120 = vld [vmem:[%s5 + $0x1b8] sm:$0xf]
        %v4121 = vld [vmem:[%s5 + $0x1bc] sm:$0xf]
        %v4122 = vld [vmem:[%s5 + $0x1c0] sm:$0xf]
        %v4123 = vld [vmem:[%s5 + $0x1c4] sm:$0xf]
        %v4124 = vld [vmem:[%s5 + $0x1c8] sm:$0xf]
        %v4125 = vld [vmem:[%s5 + $0x1cc] sm:$0xf]
        %v4126 = vld [vmem:[%s5 + $0x1d0] sm:$0xf]
        %v4127 = vld [vmem:[%s5 + $0x1d4] sm:$0xf]
        %v4128 = vld [vmem:[%s5 + $0x1d8] sm:$0xf]
        %v4129 = vld [vmem:[%s5 + $0x1dc] sm:$0xf]
        %v4130 = vld [vmem:[%s5 + $0x1e0] sm:$0xf]
        %v4131 = vld [vmem:[%s5 + $0x1e4] sm:$0xf]
        %v4132 = vld [vmem:[%s5 + $0x1e8] sm:$0xf]
        %v4133 = vld [vmem:[%s5 + $0x1ec] sm:$0xf]
        %v4134 = vld [vmem:[%s5 + $0x1f0] sm:$0xf]
        %v4135 = vld [vmem:[%s5 + $0x1f4] sm:$0xf]
        %v4136 = vld [vmem:[%s5 + $0x1f8] sm:$0xf]
        %v4137 = vld [vmem:[%s5 + $0x1fc] sm:$0xf]
        %v4138 = vld [vmem:[%s5 + $0x200] sm:$0xf]
        %v4139 = vld [vmem:[%s5 + $0x204] sm:$0xf]
        %v4140 = vld [vmem:[%s5 + $0x208] sm:$0xf]
        %v4141 = vld [vmem:[%s5 + $0x20c] sm:$0xf]
        %v4142 = vld [vmem:[%s5 + $0x210] sm:$0xf]
        %v4143 = vld [vmem:[%s5 + $0x214] sm:$0xf]
        %v4144 = vld [vmem:[%s5 + $0x218] sm:$0xf]
        %v4145 = vld [vmem:[%s5 + $0x21c] sm:$0xf]
        %v4146 = vld [vmem:[%s5 + $0x220] sm:$0xf]
        %v4147 = vld [vmem:[%s5 + $0x224] sm:$0xf]
        %v4148 = vld [vmem:[%s5 + $0x228] sm:$0xf]
        %v4149 = vld [vmem:[%s5 + $0x22c] sm:$0xf]
        %v4150 = vld [vmem:[%s5 + $0x230] sm:$0xf]
        %v4151 = vld [vmem:[%s5 + $0x234] sm:$0xf]
        %v4152 = vld [vmem:[%s5 + $0x238] sm:$0xf]
        %v4153 = vld [vmem:[%s5 + $0x23c] sm:$0xf]
        %v4154 = vld [vmem:[%s5 + $0x240] sm:$0xf]
        %v4155 = vld [vmem:[%s5 + $0x244] sm:$0xf]
        %v4156 = vld [vmem:[%s5 + $0x248] sm:$0xf]
        %v4157 = vld [vmem:[%s5 + $0x24c] sm:$0xf]
        %v4158 = vld [vmem:[%s5 + $0x250] sm:$0xf]
        %v4159 = vld [vmem:[%s5 + $0x254] sm:$0xf]
        %v4160 = vld [vmem:[%s5 + $0x258] sm:$0xf]
        %v4161 = vld [vmem:[%s5 + $0x25c] sm:$0xf]
        %v4162 = vld [vmem:[%s5 + $0x260] sm:$0xf]
        %v4163 = vld [vmem:[%s5 + $0x264] sm:$0xf]
        %v4164 = vld [vmem:[%s5 + $0x268] sm:$0xf]
        %v4165 = vld [vmem:[%s5 + $0x26c] sm:$0xf]
        %v4166 = vld [vmem:[%s5 + $0x270] sm:$0xf]
        %v4167 = vld [vmem:[%s5 + $0x274] sm:$0xf]
        %v4168 = vld [vmem:[%s5 + $0x278] sm:$0xf]
        %v4169 = vld [vmem:[%s5 + $0x27c] sm:$0xf]
        %v4170 = vld [vmem:[%s5 + $0x280] sm:$0xf]
        %v4171 = vld [vmem:[%s5 + $0x284] sm:$0xf]
        %v4172 = vld [vmem:[%s5 + $0x288] sm:$0xf]
        %v4173 = vld [vmem:[%s5 + $0x28c] sm:$0xf]
        %v4174 = vld [vmem:[%s5 + $0x290] sm:$0xf]
        %v4175 = vld [vmem:[%s5 + $0x294] sm:$0xf]
        %v4176 = vld [vmem:[%s5 + $0x298] sm:$0xf]
        %v4177 = vld [vmem:[%s5 + $0x29c] sm:$0xf]
        %v4178 = vld [vmem:[%s5 + $0x2a0] sm:$0xf]
        %v4179 = vld [vmem:[%s5 + $0x2a4] sm:$0xf]
        %v4180 = vld [vmem:[%s5 + $0x2a8] sm:$0xf]
        %v4181 = vld [vmem:[%s5 + $0x2ac] sm:$0xf]
        %v4182 = vld [vmem:[%s5 + $0x2b0] sm:$0xf]
        %v4183 = vld [vmem:[%s5 + $0x2b4] sm:$0xf]
        %v4184 = vld [vmem:[%s5 + $0x2b8] sm:$0xf]
        %v4185 = vld [vmem:[%s5 + $0x2bc] sm:$0xf]
        %v4186 = vld [vmem:[%s5 + $0x2c0] sm:$0xf]
        %v4187 = vld [vmem:[%s5 + $0x2c4] sm:$0xf]
        %v4188 = vld [vmem:[%s5 + $0x2c8] sm:$0xf]
        %v4189 = vld [vmem:[%s5 + $0x2cc] sm:$0xf]
        %v4190 = vld [vmem:[%s5 + $0x2d0] sm:$0xf]
        %v4191 = vld [vmem:[%s5 + $0x2d4] sm:$0xf]
        %v4192 = vld [vmem:[%s5 + $0x2d8] sm:$0xf]
        %v4193 = vld [vmem:[%s5 + $0x2dc] sm:$0xf]
        %v4194 = vld [vmem:[%s5 + $0x2e0] sm:$0xf]
        %v4195 = vld [vmem:[%s5 + $0x2e4] sm:$0xf]
        %v4196 = vld [vmem:[%s5 + $0x2e8] sm:$0xf]
        %v4197 = vld [vmem:[%s5 + $0x2ec] sm:$0xf]
        %v4198 = vld [vmem:[%s5 + $0x2f0] sm:$0xf]
        %v4199 = vld [vmem:[%s5 + $0x2f4] sm:$0xf]
        %v4200 = vld [vmem:[%s5 + $0x2f8] sm:$0xf]
        %v4201 = vld [vmem:[%s5 + $0x2fc] sm:$0xf]
        %v4202 = vld [vmem:[%s5 + $0x300] sm:$0xf]
        %v4203 = vld [vmem:[%s5 + $0x304] sm:$0xf]
        %v4204 = vld [vmem:[%s5 + $0x308] sm:$0xf]
        %v4205 = vld [vmem:[%s5 + $0x30c] sm:$0xf]
        %v4206 = vld [vmem:[%s5 + $0x310] sm:$0xf]
        %v4207 = vld [vmem:[%s5 + $0x314] sm:$0xf]
        %v4208 = vld [vmem:[%s5 + $0x318] sm:$0xf]
        %v4209 = vld [vmem:[%s5 + $0x31c] sm:$0xf]
        %v4210 = vld [vmem:[%s5 + $0x320] sm:$0xf]
        %v4211 = vld [vmem:[%s5 + $0x324] sm:$0xf]
        %v4212 = vld [vmem:[%s5 + $0x328] sm:$0xf]
        %v4213 = vld [vmem:[%s5 + $0x32c] sm:$0xf]
        %v4214 = vld [vmem:[%s5 + $0x330] sm:$0xf]
        %v4215 = vld [vmem:[%s5 + $0x334] sm:$0xf]
        %v4216 = vld [vmem:[%s5 + $0x338] sm:$0xf]
        %v4217 = vld [vmem:[%s5 + $0x33c] sm:$0xf]
        %v4218 = vld [vmem:[%s5 + $0x340] sm:$0xf]
        %v4219 = vld [vmem:[%s5 + $0x344] sm:$0xf]
        %v4220 = vld [vmem:[%s5 + $0x348] sm:$0xf]
        %v4221 = vld [vmem:[%s5 + $0x34c] sm:$0xf]
        %v4222 = vld [vmem:[%s5 + $0x350] sm:$0xf]
        %v4223 = vld [vmem:[%s5 + $0x354] sm:$0xf]
        %v4224 = vld [vmem:[%s5 + $0x358] sm:$0xf]
        %v4225 = vld [vmem:[%s5 + $0x35c] sm:$0xf]
        %v4226 = vld [vmem:[%s5 + $0x360] sm:$0xf]
        %v4227 = vld [vmem:[%s5 + $0x364] sm:$0xf]
        %v4228 = vld [vmem:[%s5 + $0x368] sm:$0xf]
        %v4229 = vld [vmem:[%s5 + $0x36c] sm:$0xf]
        %v4230 = vld [vmem:[%s5 + $0x370] sm:$0xf]
        %v4231 = vld [vmem:[%s5 + $0x374] sm:$0xf]
        %v4232 = vld [vmem:[%s5 + $0x378] sm:$0xf]
        %v4233 = vld [vmem:[%s5 + $0x37c] sm:$0xf]
        %v4234 = vld [vmem:[%s5 + $0x380] sm:$0xf]
        %v4235 = vld [vmem:[%s5 + $0x384] sm:$0xf]
        %v4236 = vld [vmem:[%s5 + $0x388] sm:$0xf]
        %v4237 = vld [vmem:[%s5 + $0x38c] sm:$0xf]
        %v4238 = vld [vmem:[%s5 + $0x390] sm:$0xf]
        %v4239 = vld [vmem:[%s5 + $0x394] sm:$0xf]
        %v4240 = vld [vmem:[%s5 + $0x398] sm:$0xf]
        %v4241 = vld [vmem:[%s5 + $0x39c] sm:$0xf]
        %v4242 = vld [vmem:[%s5 + $0x3a0] sm:$0xf]
        %v4243 = vld [vmem:[%s5 + $0x3a4] sm:$0xf]
        %v4244 = vld [vmem:[%s5 + $0x3a8] sm:$0xf]
        %v4245 = vld [vmem:[%s5 + $0x3ac] sm:$0xf]
        %v4246 = vld [vmem:[%s5 + $0x3b0] sm:$0xf]
        %v4247 = vld [vmem:[%s5 + $0x3b4] sm:$0xf]
        %v4248 = vld [vmem:[%s5 + $0x3b8] sm:$0xf]
        %v4249 = vld [vmem:[%s5 + $0x3bc] sm:$0xf]
        %v4250 = vld [vmem:[%s5 + $0x3c0] sm:$0xf]
        %v4251 = vld [vmem:[%s5 + $0x3c4] sm:$0xf]
        %v4252 = vld [vmem:[%s5 + $0x3c8] sm:$0xf]
        %v4253 = vld [vmem:[%s5 + $0x3cc] sm:$0xf]
        %v4254 = vld [vmem:[%s5 + $0x3d0] sm:$0xf]
        %v4255 = vld [vmem:[%s5 + $0x3d4] sm:$0xf]
        %v4256 = vld [vmem:[%s5 + $0x3d8] sm:$0xf]
        %v4257 = vld [vmem:[%s5 + $0x3dc] sm:$0xf]
        %v4258 = vld [vmem:[%s5 + $0x3e0] sm:$0xf]
        %v4259 = vld [vmem:[%s5 + $0x3e4] sm:$0xf]
        %v4260 = vld [vmem:[%s5 + $0x3e8] sm:$0xf]
        %v4261 = vld [vmem:[%s5 + $0x3ec] sm:$0xf]
        %v4262 = vld [vmem:[%s5 + $0x3f0] sm:$0xf]
        %v4263 = vld [vmem:[%s5 + $0x3f4] sm:$0xf]
        %v4264 = vld [vmem:[%s5 + $0x3f8] sm:$0xf]
        %v4265 = vld [vmem:[%s5 + $0x3fc] sm:$0xf]
        %v4266 = vld [vmem:[%s5 + $0x400] sm:$0xf]
        %v4267 = vld [vmem:[%s5 + $0x404] sm:$0xf]
        %v4268 = vld [vmem:[%s5 + $0x408] sm:$0xf]
        %v4269 = vld [vmem:[%s5 + $0x40c] sm:$0xf]
        %v4270 = vld [vmem:[%s5 + $0x410] sm:$0xf]
        %v4271 = vld [vmem:[%s5 + $0x414] sm:$0xf]
        %v4272 = vld [vmem:[%s5 + $0x418] sm:$0xf]
        %v4273 = vld [vmem:[%s5 + $0x41c] sm:$0xf]
        %v4274 = vld [vmem:[%s5 + $0x420] sm:$0xf]
        %v4275 = vld [vmem:[%s5 + $0x424] sm:$0xf]
        %v4276 = vld [vmem:[%s5 + $0x428] sm:$0xf]
        %v4277 = vld [vmem:[%s5 + $0x42c] sm:$0xf]
        %v4278 = vld [vmem:[%s5 + $0x430] sm:$0xf]
        %v4279 = vld [vmem:[%s5 + $0x434] sm:$0xf]
        %v4280 = vld [vmem:[%s5 + $0x438] sm:$0xf]
        %v4281 = vld [vmem:[%s5 + $0x43c] sm:$0xf]
        %v4282 = vld [vmem:[%s5 + $0x440] sm:$0xf]
        %v4283 = vld [vmem:[%s5 + $0x444] sm:$0xf]
        %v4284 = vld [vmem:[%s5 + $0x448] sm:$0xf]
        %v4285 = vld [vmem:[%s5 + $0x44c] sm:$0xf]
        %v4286 = vld [vmem:[%s5 + $0x450] sm:$0xf]
        %v4287 = vld [vmem:[%s5 + $0x454] sm:$0xf]
        %v4288 = vld [vmem:[%s5 + $0x458] sm:$0xf]
        %v4289 = vld [vmem:[%s5 + $0x45c] sm:$0xf]
        %v4290 = vld [vmem:[%s5 + $0x460] sm:$0xf]
        %v4291 = vld [vmem:[%s5 + $0x464] sm:$0xf]
        %v4292 = vld [vmem:[%s5 + $0x468] sm:$0xf]
        %v4293 = vld [vmem:[%s5 + $0x46c] sm:$0xf]
        %v4294 = vld [vmem:[%s5 + $0x470] sm:$0xf]
        %v4295 = vld [vmem:[%s5 + $0x474] sm:$0xf]
        %v4296 = vld [vmem:[%s5 + $0x478] sm:$0xf]
        %v4297 = vld [vmem:[%s5 + $0x47c] sm:$0xf]
        %v4298 = vld [vmem:[%s5 + $0x480] sm:$0xf]
        %v4299 = vld [vmem:[%s5 + $0x484] sm:$0xf]
        %v4300 = vld [vmem:[%s5 + $0x488] sm:$0xf]
        %v4301 = vld [vmem:[%s5 + $0x48c] sm:$0xf]
        %v4302 = vld [vmem:[%s5 + $0x490] sm:$0xf]
        %v4303 = vld [vmem:[%s5 + $0x494] sm:$0xf]
        %v4304 = vld [vmem:[%s5 + $0x498] sm:$0xf]
        %v4305 = vld [vmem:[%s5 + $0x49c] sm:$0xf]
        %v4306 = vld [vmem:[%s5 + $0x4a0] sm:$0xf]
        %v4307 = vld [vmem:[%s5 + $0x4a4] sm:$0xf]
        %v4308 = vld [vmem:[%s5 + $0x4a8] sm:$0xf]
        %v4309 = vld [vmem:[%s5 + $0x4ac] sm:$0xf]
        %v4310 = vld [vmem:[%s5 + $0x4b0] sm:$0xf]
        %v4311 = vld [vmem:[%s5 + $0x4b4] sm:$0xf]
        %v4312 = vld [vmem:[%s5 + $0x4b8] sm:$0xf]
        %v4313 = vld [vmem:[%s5 + $0x4bc] sm:$0xf]
        %v4314 = vld [vmem:[%s5 + $0x4c0] sm:$0xf]
        %v4315 = vld [vmem:[%s5 + $0x4c4] sm:$0xf]
        %v4316 = vld [vmem:[%s5 + $0x4c8] sm:$0xf]
        %v4317 = vld [vmem:[%s5 + $0x4cc] sm:$0xf]
        %v4318 = vld [vmem:[%s5 + $0x4d0] sm:$0xf]
        %v4319 = vld [vmem:[%s5 + $0x4d4] sm:$0xf]
        %v4320 = vld [vmem:[%s5 + $0x4d8] sm:$0xf]
        %v4321 = vld [vmem:[%s5 + $0x4dc] sm:$0xf]
        %v4322 = vld [vmem:[%s5 + $0x4e0] sm:$0xf]
        %v4323 = vld [vmem:[%s5 + $0x4e4] sm:$0xf]
        %v4324 = vld [vmem:[%s5 + $0x4e8] sm:$0xf]
        %v4325 = vld [vmem:[%s5 + $0x4ec] sm:$0xf]
        %v4326 = vld [vmem:[%s5 + $0x4f0] sm:$0xf]
        %v4327 = vld [vmem:[%s5 + $0x4f4] sm:$0xf]
        %v4328 = vld [vmem:[%s5 + $0x4f8] sm:$0xf]
        %v4329 = vld [vmem:[%s5 + $0x4fc] sm:$0xf]
        %v4330 = vld [vmem:[%s5 + $0x500] sm:$0xf]
        %v4331 = vld [vmem:[%s5 + $0x504] sm:$0xf]
        %v4332 = vld [vmem:[%s5 + $0x508] sm:$0xf]
        %v4333 = vld [vmem:[%s5 + $0x50c] sm:$0xf]
        %v4334 = vld [vmem:[%s5 + $0x510] sm:$0xf]
        %v4335 = vld [vmem:[%s5 + $0x514] sm:$0xf]
        %v4336 = vld [vmem:[%s5 + $0x518] sm:$0xf]
        %v4337 = vld [vmem:[%s5 + $0x51c] sm:$0xf]
        %v4338 = vld [vmem:[%s5 + $0x520] sm:$0xf]
        %v4339 = vld [vmem:[%s5 + $0x524] sm:$0xf]
        %v4340 = vld [vmem:[%s5 + $0x528] sm:$0xf]
        %v4341 = vld [vmem:[%s5 + $0x52c] sm:$0xf]
        %v4342 = vld [vmem:[%s5 + $0x530] sm:$0xf]
        %v4343 = vld [vmem:[%s5 + $0x534] sm:$0xf]
        %v4344 = vld [vmem:[%s5 + $0x538] sm:$0xf]
        %v4345 = vld [vmem:[%s5 + $0x53c] sm:$0xf]
        %v4346 = vld [vmem:[%s5 + $0x540] sm:$0xf]
        %v4347 = vld [vmem:[%s5 + $0x544] sm:$0xf]
        %v4348 = vld [vmem:[%s5 + $0x548] sm:$0xf]
        %v4349 = vld [vmem:[%s5 + $0x54c] sm:$0xf]
        %v4350 = vld [vmem:[%s5 + $0x550] sm:$0xf]
        %v4351 = vld [vmem:[%s5 + $0x554] sm:$0xf]
        %v4352 = vld [vmem:[%s5 + $0x558] sm:$0xf]
        %v4353 = vld [vmem:[%s5 + $0x55c] sm:$0xf]
        %v4354 = vld [vmem:[%s5 + $0x560] sm:$0xf]
        %v4355 = vld [vmem:[%s5 + $0x564] sm:$0xf]
        %v4356 = vld [vmem:[%s5 + $0x568] sm:$0xf]
        %v4357 = vld [vmem:[%s5 + $0x56c] sm:$0xf]
        %v4358 = vld [vmem:[%s5 + $0x570] sm:$0xf]
        %v4359 = vld [vmem:[%s5 + $0x574] sm:$0xf]
        %v4360 = vld [vmem:[%s5 + $0x578] sm:$0xf]
        %v4361 = vld [vmem:[%s5 + $0x57c] sm:$0xf]
        %v4362 = vld [vmem:[%s5 + $0x580] sm:$0xf]
        %v4363 = vld [vmem:[%s5 + $0x584] sm:$0xf]
        %v4364 = vld [vmem:[%s5 + $0x588] sm:$0xf]
        %v4365 = vld [vmem:[%s5 + $0x58c] sm:$0xf]
        %v4366 = vld [vmem:[%s5 + $0x590] sm:$0xf]
        %v4367 = vld [vmem:[%s5 + $0x594] sm:$0xf]
        %v4368 = vld [vmem:[%s5 + $0x598] sm:$0xf]
        %v4369 = vld [vmem:[%s5 + $0x59c] sm:$0xf]
        %v4370 = vld [vmem:[%s5 + $0x5a0] sm:$0xf]
        %v4371 = vld [vmem:[%s5 + $0x5a4] sm:$0xf]
        %v4372 = vld [vmem:[%s5 + $0x5a8] sm:$0xf]
        %v4373 = vld [vmem:[%s5 + $0x5ac] sm:$0xf]
        %v4374 = vld [vmem:[%s5 + $0x5b0] sm:$0xf]
        %v4375 = vld [vmem:[%s5 + $0x5b4] sm:$0xf]
        %v4376 = vld [vmem:[%s5 + $0x5b8] sm:$0xf]
        %v4377 = vld [vmem:[%s5 + $0x5bc] sm:$0xf]
        %v4378 = vld [vmem:[%s5 + $0x5c0] sm:$0xf]
        %v4379 = vld [vmem:[%s5 + $0x5c4] sm:$0xf]
        %v4380 = vld [vmem:[%s5 + $0x5c8] sm:$0xf]
        %v4381 = vld [vmem:[%s5 + $0x5cc] sm:$0xf]
        %v4382 = vld [vmem:[%s5 + $0x5d0] sm:$0xf]
        %v4383 = vld [vmem:[%s5 + $0x5d4] sm:$0xf]
        %v4384 = vld [vmem:[%s5 + $0x5d8] sm:$0xf]
        %v4385 = vld [vmem:[%s5 + $0x5dc] sm:$0xf]
        %v4386 = vld [vmem:[%s5 + $0x5e0] sm:$0xf]
        %v4387 = vld [vmem:[%s5 + $0x5e4] sm:$0xf]
        %v4388 = vld [vmem:[%s5 + $0x5e8] sm:$0xf]
        %v4389 = vld [vmem:[%s5 + $0x5ec] sm:$0xf]
        %v4390 = vld [vmem:[%s5 + $0x5f0] sm:$0xf]
        %v4391 = vld [vmem:[%s5 + $0x5f4] sm:$0xf]
        %v4392 = vld [vmem:[%s5 + $0x5f8] sm:$0xf]
        %v4393 = vld [vmem:[%s5 + $0x5fc] sm:$0xf]
        %v4394 = vld [vmem:[%s5 + $0x600] sm:$0xf]
        %v4395 = vld [vmem:[%s5 + $0x604] sm:$0xf]
        %v4396 = vld [vmem:[%s5 + $0x608] sm:$0xf]
        %v4397 = vld [vmem:[%s5 + $0x60c] sm:$0xf]
        %v4398 = vld [vmem:[%s5 + $0x610] sm:$0xf]
        %v4399 = vld [vmem:[%s5 + $0x614] sm:$0xf]
        %v4400 = vld [vmem:[%s5 + $0x618] sm:$0xf]
        %v4401 = vld [vmem:[%s5 + $0x61c] sm:$0xf]
        %v4402 = vld [vmem:[%s6] sm:$0x1]
        %v4795 = vunpack.c.l.b16 %v4010
        %v4796 = vunpack.c.l.b16 %v4011
        %v4797 = vunpack.c.l.b16 %v4012
        %v4798 = vunpack.c.l.b16 %v4013
        %v4799 = vunpack.c.l.b16 %v4014
        %v4800 = vunpack.c.l.b16 %v4015
        %v4801 = vunpack.c.l.b16 %v4016
        %v4802 = vunpack.c.l.b16 %v4017
        %v4803 = vunpack.c.l.b16 %v4018
        %v4804 = vunpack.c.l.b16 %v4019
        %v4805 = vunpack.c.l.b16 %v4020
        %v4806 = vunpack.c.l.b16 %v4021
        %v4807 = vunpack.c.l.b16 %v4022
        %v4808 = vunpack.c.l.b16 %v4023
        %v4809 = vunpack.c.l.b16 %v4024
        %v4810 = vunpack.c.l.b16 %v4025
        %v4811 = vunpack.c.l.b16 %v4026
        %v4812 = vunpack.c.l.b16 %v4027
        %v4813 = vunpack.c.l.b16 %v4028
        %v4814 = vunpack.c.l.b16 %v4029
        %v4815 = vunpack.c.l.b16 %v4030
        %v4816 = vunpack.c.l.b16 %v4031
        %v4817 = vunpack.c.l.b16 %v4032
        %v4818 = vunpack.c.l.b16 %v4033
        %v4819 = vunpack.c.l.b16 %v4034
        %v4820 = vunpack.c.l.b16 %v4035
        %v4821 = vunpack.c.l.b16 %v4036
        %v4822 = vunpack.c.l.b16 %v4037
        %v4823 = vunpack.c.l.b16 %v4038
        %v4824 = vunpack.c.l.b16 %v4039
        %v4825 = vunpack.c.l.b16 %v4040
        %v4826 = vunpack.c.l.b16 %v4041
        %v4827 = vunpack.c.l.b16 %v4042
        %v4828 = vunpack.c.l.b16 %v4043
        %v4829 = vunpack.c.l.b16 %v4044
        %v4830 = vunpack.c.l.b16 %v4045
        %v4831 = vunpack.c.l.b16 %v4046
        %v4832 = vunpack.c.l.b16 %v4047
        %v4833 = vunpack.c.l.b16 %v4048
        %v4834 = vunpack.c.l.b16 %v4049
        %v4835 = vunpack.c.l.b16 %v4050
        %v4836 = vunpack.c.l.b16 %v4051
        %v4837 = vunpack.c.l.b16 %v4052
        %v4838 = vunpack.c.l.b16 %v4053
        %v4839 = vunpack.c.l.b16 %v4054
        %v4840 = vunpack.c.l.b16 %v4055
        %v4841 = vunpack.c.l.b16 %v4056
        %v4842 = vunpack.c.l.b16 %v4057
        %v4843 = vunpack.c.l.b16 %v4058
        %v4844 = vunpack.c.l.b16 %v4059
        %v4845 = vunpack.c.l.b16 %v4060
        %v4846 = vunpack.c.l.b16 %v4061
        %v4847 = vunpack.c.l.b16 %v4062
        %v4848 = vunpack.c.l.b16 %v4063
        %v4849 = vunpack.c.l.b16 %v4064
        %v4850 = vunpack.c.l.b16 %v4065
        %v4851 = vunpack.c.l.b16 %v4066
        %v4852 = vunpack.c.l.b16 %v4067
        %v4853 = vunpack.c.l.b16 %v4068
        %v4854 = vunpack.c.l.b16 %v4069
        %v4855 = vunpack.c.l.b16 %v4070
        %v4856 = vunpack.c.l.b16 %v4071
        %v4857 = vunpack.c.l.b16 %v4072
        %v4858 = vunpack.c.l.b16 %v4073
        %v4859 = vunpack.c.l.b16 %v4074
        %v4860 = vunpack.c.l.b16 %v4075
        %v4861 = vunpack.c.l.b16 %v4076
        %v4862 = vunpack.c.l.b16 %v4077
        %v4863 = vunpack.c.l.b16 %v4078
        %v4864 = vunpack.c.l.b16 %v4079
        %v4865 = vunpack.c.l.b16 %v4080
        %v4866 = vunpack.c.l.b16 %v4081
        %v4867 = vunpack.c.l.b16 %v4082
        %v4868 = vunpack.c.l.b16 %v4083
        %v4869 = vunpack.c.l.b16 %v4084
        %v4870 = vunpack.c.l.b16 %v4085
        %v4871 = vunpack.c.l.b16 %v4086
        %v4872 = vunpack.c.l.b16 %v4087
        %v4873 = vunpack.c.l.b16 %v4088
        %v4874 = vunpack.c.l.b16 %v4089
        %v4875 = vunpack.c.l.b16 %v4090
        %v4876 = vunpack.c.l.b16 %v4091
        %v4877 = vunpack.c.l.b16 %v4092
        %v4878 = vunpack.c.l.b16 %v4093
        %v4879 = vunpack.c.l.b16 %v4094
        %v4880 = vunpack.c.l.b16 %v4095
        %v4881 = vunpack.c.l.b16 %v4096
        %v4882 = vunpack.c.l.b16 %v4097
        %v4883 = vunpack.c.l.b16 %v4098
        %v4884 = vunpack.c.l.b16 %v4099
        %v4885 = vunpack.c.l.b16 %v4100
        %v4886 = vunpack.c.l.b16 %v4101
        %v4887 = vunpack.c.l.b16 %v4102
        %v4888 = vunpack.c.l.b16 %v4103
        %v4889 = vunpack.c.l.b16 %v4104
        %v4890 = vunpack.c.l.b16 %v4105
        %v4891 = vunpack.c.l.b16 %v4106
        %v4892 = vunpack.c.l.b16 %v4107
        %v4893 = vunpack.c.l.b16 %v4108
        %v4894 = vunpack.c.l.b16 %v4109
        %v4895 = vunpack.c.l.b16 %v4110
        %v4896 = vunpack.c.l.b16 %v4111
        %v4897 = vunpack.c.l.b16 %v4112
        %v4898 = vunpack.c.l.b16 %v4113
        %v4899 = vunpack.c.l.b16 %v4114
        %v4900 = vunpack.c.l.b16 %v4115
        %v4901 = vunpack.c.l.b16 %v4116
        %v4902 = vunpack.c.l.b16 %v4117
        %v4903 = vunpack.c.l.b16 %v4118
        %v4904 = vunpack.c.l.b16 %v4119
        %v4905 = vunpack.c.l.b16 %v4120
        %v4906 = vunpack.c.l.b16 %v4121
        %v4907 = vunpack.c.l.b16 %v4122
        %v4908 = vunpack.c.l.b16 %v4123
        %v4909 = vunpack.c.l.b16 %v4124
        %v4910 = vunpack.c.l.b16 %v4125
        %v4911 = vunpack.c.l.b16 %v4126
        %v4912 = vunpack.c.l.b16 %v4127
        %v4913 = vunpack.c.l.b16 %v4128
        %v4914 = vunpack.c.l.b16 %v4129
        %v4915 = vunpack.c.l.b16 %v4130
        %v4916 = vunpack.c.l.b16 %v4131
        %v4917 = vunpack.c.l.b16 %v4132
        %v4918 = vunpack.c.l.b16 %v4133
        %v4919 = vunpack.c.l.b16 %v4134
        %v4920 = vunpack.c.l.b16 %v4135
        %v4921 = vunpack.c.l.b16 %v4136
        %v4922 = vunpack.c.l.b16 %v4137
        %v4923 = vunpack.c.l.b16 %v4138
        %v4924 = vunpack.c.l.b16 %v4139
        %v4925 = vunpack.c.l.b16 %v4140
        %v4926 = vunpack.c.l.b16 %v4141
        %v4927 = vunpack.c.l.b16 %v4142
        %v4928 = vunpack.c.l.b16 %v4143
        %v4929 = vunpack.c.l.b16 %v4144
        %v4930 = vunpack.c.l.b16 %v4145
        %v4931 = vunpack.c.l.b16 %v4146
        %v4932 = vunpack.c.l.b16 %v4147
        %v4933 = vunpack.c.l.b16 %v4148
        %v4934 = vunpack.c.l.b16 %v4149
        %v4935 = vunpack.c.l.b16 %v4150
        %v4936 = vunpack.c.l.b16 %v4151
        %v4937 = vunpack.c.l.b16 %v4152
        %v4938 = vunpack.c.l.b16 %v4153
        %v4939 = vunpack.c.l.b16 %v4154
        %v4940 = vunpack.c.l.b16 %v4155
        %v4941 = vunpack.c.l.b16 %v4156
        %v4942 = vunpack.c.l.b16 %v4157
        %v4943 = vunpack.c.l.b16 %v4158
        %v4944 = vunpack.c.l.b16 %v4159
        %v4945 = vunpack.c.l.b16 %v4160
        %v4946 = vunpack.c.l.b16 %v4161
        %v4947 = vunpack.c.l.b16 %v4162
        %v4948 = vunpack.c.l.b16 %v4163
        %v4949 = vunpack.c.l.b16 %v4164
        %v4950 = vunpack.c.l.b16 %v4165
        %v4951 = vunpack.c.l.b16 %v4166
        %v4952 = vunpack.c.l.b16 %v4167
        %v4953 = vunpack.c.l.b16 %v4168
        %v4954 = vunpack.c.l.b16 %v4169
        %v4955 = vunpack.c.l.b16 %v4170
        %v4956 = vunpack.c.l.b16 %v4171
        %v4957 = vunpack.c.l.b16 %v4172
        %v4958 = vunpack.c.l.b16 %v4173
        %v4959 = vunpack.c.l.b16 %v4174
        %v4960 = vunpack.c.l.b16 %v4175
        %v4961 = vunpack.c.l.b16 %v4176
        %v4962 = vunpack.c.l.b16 %v4177
        %v4963 = vunpack.c.l.b16 %v4178
        %v4964 = vunpack.c.l.b16 %v4179
        %v4965 = vunpack.c.l.b16 %v4180
        %v4966 = vunpack.c.l.b16 %v4181
        %v4967 = vunpack.c.l.b16 %v4182
        %v4968 = vunpack.c.l.b16 %v4183
        %v4969 = vunpack.c.l.b16 %v4184
        %v4970 = vunpack.c.l.b16 %v4185
        %v4971 = vunpack.c.l.b16 %v4186
        %v4972 = vunpack.c.l.b16 %v4187
        %v4973 = vunpack.c.l.b16 %v4188
        %v4974 = vunpack.c.l.b16 %v4189
        %v4975 = vunpack.c.l.b16 %v4190
        %v4976 = vunpack.c.l.b16 %v4191
        %v4977 = vunpack.c.l.b16 %v4192
        %v4978 = vunpack.c.l.b16 %v4193
        %v4979 = vunpack.c.l.b16 %v4194
        %v4980 = vunpack.c.l.b16 %v4195
        %v4981 = vunpack.c.l.b16 %v4196
        %v4982 = vunpack.c.l.b16 %v4197
        %v4983 = vunpack.c.l.b16 %v4198
        %v4984 = vunpack.c.l.b16 %v4199
        %v4985 = vunpack.c.l.b16 %v4200
        %v4986 = vunpack.c.l.b16 %v4201
        %v4987 = vunpack.c.l.b16 %v4202
        %v4988 = vunpack.c.l.b16 %v4203
        %v4989 = vunpack.c.l.b16 %v4204
        %v4990 = vunpack.c.l.b16 %v4205
        %v4991 = vunpack.c.l.b16 %v4206
        %v4992 = vunpack.c.l.b16 %v4207
        %v4993 = vunpack.c.l.b16 %v4208
        %v4994 = vunpack.c.l.b16 %v4209
        %v4995 = vunpack.c.l.b16 %v4210
        %v4996 = vunpack.c.l.b16 %v4211
        %v4997 = vunpack.c.l.b16 %v4212
        %v4998 = vunpack.c.l.b16 %v4213
        %v4999 = vunpack.c.l.b16 %v4214
        %v5000 = vunpack.c.l.b16 %v4215
        %v5001 = vunpack.c.l.b16 %v4216
        %v5002 = vunpack.c.l.b16 %v4217
        %v5003 = vunpack.c.l.b16 %v4218
        %v5004 = vunpack.c.l.b16 %v4219
        %v5005 = vunpack.c.l.b16 %v4220
        %v5006 = vunpack.c.l.b16 %v4221
        %v5007 = vunpack.c.l.b16 %v4222
        %v5008 = vunpack.c.l.b16 %v4223
        %v5009 = vunpack.c.l.b16 %v4224
        %v5010 = vunpack.c.l.b16 %v4225
        %v5011 = vunpack.c.l.b16 %v4226
        %v5012 = vunpack.c.l.b16 %v4227
        %v5013 = vunpack.c.l.b16 %v4228
        %v5014 = vunpack.c.l.b16 %v4229
        %v5015 = vunpack.c.l.b16 %v4230
        %v5016 = vunpack.c.l.b16 %v4231
        %v5017 = vunpack.c.l.b16 %v4232
        %v5018 = vunpack.c.l.b16 %v4233
        %v5019 = vunpack.c.l.b16 %v4234
        %v5020 = vunpack.c.l.b16 %v4235
        %v5021 = vunpack.c.l.b16 %v4236
        %v5022 = vunpack.c.l.b16 %v4237
        %v5023 = vunpack.c.l.b16 %v4238
        %v5024 = vunpack.c.l.b16 %v4239
        %v5025 = vunpack.c.l.b16 %v4240
        %v5026 = vunpack.c.l.b16 %v4241
        %v5027 = vunpack.c.l.b16 %v4242
        %v5028 = vunpack.c.l.b16 %v4243
        %v5029 = vunpack.c.l.b16 %v4244
        %v5030 = vunpack.c.l.b16 %v4245
        %v5031 = vunpack.c.l.b16 %v4246
        %v5032 = vunpack.c.l.b16 %v4247
        %v5033 = vunpack.c.l.b16 %v4248
        %v5034 = vunpack.c.l.b16 %v4249
        %v5035 = vunpack.c.l.b16 %v4250
        %v5036 = vunpack.c.l.b16 %v4251
        %v5037 = vunpack.c.l.b16 %v4252
        %v5038 = vunpack.c.l.b16 %v4253
        %v5039 = vunpack.c.l.b16 %v4254
        %v5040 = vunpack.c.l.b16 %v4255
        %v5041 = vunpack.c.l.b16 %v4256
        %v5042 = vunpack.c.l.b16 %v4257
        %v5043 = vunpack.c.l.b16 %v4258
        %v5044 = vunpack.c.l.b16 %v4259
        %v5045 = vunpack.c.l.b16 %v4260
        %v5046 = vunpack.c.l.b16 %v4261
        %v5047 = vunpack.c.l.b16 %v4262
        %v5048 = vunpack.c.l.b16 %v4263
        %v5049 = vunpack.c.l.b16 %v4264
        %v5050 = vunpack.c.l.b16 %v4265
        %v5051 = vunpack.c.l.b16 %v4266
        %v5052 = vunpack.c.l.b16 %v4267
        %v5053 = vunpack.c.l.b16 %v4268
        %v5054 = vunpack.c.l.b16 %v4269
        %v5055 = vunpack.c.l.b16 %v4270
        %v5056 = vunpack.c.l.b16 %v4271
        %v5057 = vunpack.c.l.b16 %v4272
        %v5058 = vunpack.c.l.b16 %v4273
        %v5059 = vunpack.c.l.b16 %v4274
        %v5060 = vunpack.c.l.b16 %v4275
        %v5061 = vunpack.c.l.b16 %v4276
        %v5062 = vunpack.c.l.b16 %v4277
        %v5063 = vunpack.c.l.b16 %v4278
        %v5064 = vunpack.c.l.b16 %v4279
        %v5065 = vunpack.c.l.b16 %v4280
        %v5066 = vunpack.c.l.b16 %v4281
        %v5067 = vunpack.c.l.b16 %v4282
        %v5068 = vunpack.c.l.b16 %v4283
        %v5069 = vunpack.c.l.b16 %v4284
        %v5070 = vunpack.c.l.b16 %v4285
        %v5071 = vunpack.c.l.b16 %v4286
        %v5072 = vunpack.c.l.b16 %v4287
        %v5073 = vunpack.c.l.b16 %v4288
        %v5074 = vunpack.c.l.b16 %v4289
        %v5075 = vunpack.c.l.b16 %v4290
        %v5076 = vunpack.c.l.b16 %v4291
        %v5077 = vunpack.c.l.b16 %v4292
        %v5078 = vunpack.c.l.b16 %v4293
        %v5079 = vunpack.c.l.b16 %v4294
        %v5080 = vunpack.c.l.b16 %v4295
        %v5081 = vunpack.c.l.b16 %v4296
        %v5082 = vunpack.c.l.b16 %v4297
        %v5083 = vunpack.c.l.b16 %v4298
        %v5084 = vunpack.c.l.b16 %v4299
        %v5085 = vunpack.c.l.b16 %v4300
        %v5086 = vunpack.c.l.b16 %v4301
        %v5087 = vunpack.c.l.b16 %v4302
        %v5088 = vunpack.c.l.b16 %v4303
        %v5089 = vunpack.c.l.b16 %v4304
        %v5090 = vunpack.c.l.b16 %v4305
        %v5091 = vunpack.c.l.b16 %v4306
        %v5092 = vunpack.c.l.b16 %v4307
        %v5093 = vunpack.c.l.b16 %v4308
        %v5094 = vunpack.c.l.b16 %v4309
        %v5095 = vunpack.c.l.b16 %v4310
        %v5096 = vunpack.c.l.b16 %v4311
        %v5097 = vunpack.c.l.b16 %v4312
        %v5098 = vunpack.c.l.b16 %v4313
        %v5099 = vunpack.c.l.b16 %v4314
        %v5100 = vunpack.c.l.b16 %v4315
        %v5101 = vunpack.c.l.b16 %v4316
        %v5102 = vunpack.c.l.b16 %v4317
        %v5103 = vunpack.c.l.b16 %v4318
        %v5104 = vunpack.c.l.b16 %v4319
        %v5105 = vunpack.c.l.b16 %v4320
        %v5106 = vunpack.c.l.b16 %v4321
        %v5107 = vunpack.c.l.b16 %v4322
        %v5108 = vunpack.c.l.b16 %v4323
        %v5109 = vunpack.c.l.b16 %v4324
        %v5110 = vunpack.c.l.b16 %v4325
        %v5111 = vunpack.c.l.b16 %v4326
        %v5112 = vunpack.c.l.b16 %v4327
        %v5113 = vunpack.c.l.b16 %v4328
        %v5114 = vunpack.c.l.b16 %v4329
        %v5115 = vunpack.c.l.b16 %v4330
        %v5116 = vunpack.c.l.b16 %v4331
        %v5117 = vunpack.c.l.b16 %v4332
        %v5118 = vunpack.c.l.b16 %v4333
        %v5119 = vunpack.c.l.b16 %v4334
        %v5120 = vunpack.c.l.b16 %v4335
        %v5121 = vunpack.c.l.b16 %v4336
        %v5122 = vunpack.c.l.b16 %v4337
        %v5123 = vunpack.c.l.b16 %v4338
        %v5124 = vunpack.c.l.b16 %v4339
        %v5125 = vunpack.c.l.b16 %v4340
        %v5126 = vunpack.c.l.b16 %v4341
        %v5127 = vunpack.c.l.b16 %v4342
        %v5128 = vunpack.c.l.b16 %v4343
        %v5129 = vunpack.c.l.b16 %v4344
        %v5130 = vunpack.c.l.b16 %v4345
        %v5131 = vunpack.c.l.b16 %v4346
        %v5132 = vunpack.c.l.b16 %v4347
        %v5133 = vunpack.c.l.b16 %v4348
        %v5134 = vunpack.c.l.b16 %v4349
        %v5135 = vunpack.c.l.b16 %v4350
        %v5136 = vunpack.c.l.b16 %v4351
        %v5137 = vunpack.c.l.b16 %v4352
        %v5138 = vunpack.c.l.b16 %v4353
        %v5139 = vunpack.c.l.b16 %v4354
        %v5140 = vunpack.c.l.b16 %v4355
        %v5141 = vunpack.c.l.b16 %v4356
        %v5142 = vunpack.c.l.b16 %v4357
        %v5143 = vunpack.c.l.b16 %v4358
        %v5144 = vunpack.c.l.b16 %v4359
        %v5145 = vunpack.c.l.b16 %v4360
        %v5146 = vunpack.c.l.b16 %v4361
        %v5147 = vunpack.c.l.b16 %v4362
        %v5148 = vunpack.c.l.b16 %v4363
        %v5149 = vunpack.c.l.b16 %v4364
        %v5150 = vunpack.c.l.b16 %v4365
        %v5151 = vunpack.c.l.b16 %v4366
        %v5152 = vunpack.c.l.b16 %v4367
        %v5153 = vunpack.c.l.b16 %v4368
        %v5154 = vunpack.c.l.b16 %v4369
        %v5155 = vunpack.c.l.b16 %v4370
        %v5156 = vunpack.c.l.b16 %v4371
        %v5157 = vunpack.c.l.b16 %v4372
        %v5158 = vunpack.c.l.b16 %v4373
        %v5159 = vunpack.c.l.b16 %v4374
        %v5160 = vunpack.c.l.b16 %v4375
        %v5161 = vunpack.c.l.b16 %v4376
        %v5162 = vunpack.c.l.b16 %v4377
        %v5163 = vunpack.c.l.b16 %v4378
        %v5164 = vunpack.c.l.b16 %v4379
        %v5165 = vunpack.c.l.b16 %v4380
        %v5166 = vunpack.c.l.b16 %v4381
        %v5167 = vunpack.c.l.b16 %v4382
        %v5168 = vunpack.c.l.b16 %v4383
        %v5169 = vunpack.c.l.b16 %v4384
        %v5170 = vunpack.c.l.b16 %v4385
        %v5171 = vunpack.c.l.b16 %v4386
        %v5172 = vunpack.c.l.b16 %v4387
        %v5173 = vunpack.c.l.b16 %v4388
        %v5174 = vunpack.c.l.b16 %v4389
        %v5175 = vunpack.c.l.b16 %v4390
        %v5176 = vunpack.c.l.b16 %v4391
        %v5177 = vunpack.c.l.b16 %v4392
        %v5178 = vunpack.c.l.b16 %v4393
        %v5179 = vunpack.c.l.b16 %v4394
        %v5180 = vunpack.c.l.b16 %v4395
        %v5181 = vunpack.c.l.b16 %v4396
        %v5182 = vunpack.c.l.b16 %v4397
        %v5183 = vunpack.c.l.b16 %v4398
        %v5184 = vunpack.c.l.b16 %v4399
        %v5185 = vunpack.c.l.b16 %v4400
        %v5186 = vunpack.c.l.b16 %v4401
        %v5187 = vpack.c.b16 %v4796, %v4795
        %v5188 = vpack.c.b16 %v4798, %v4797
        %v5189 = vpack.c.b16 %v4800, %v4799
        %v5190 = vpack.c.b16 %v4802, %v4801
        %v5191 = vpack.c.b16 %v4804, %v4803
        %v5192 = vpack.c.b16 %v4806, %v4805
        %v5193 = vpack.c.b16 %v4808, %v4807
        %v5194 = vpack.c.b16 %v4810, %v4809
        %v5195 = vpack.c.b16 %v4812, %v4811
        %v5196 = vpack.c.b16 %v4814, %v4813
        %v5197 = vpack.c.b16 %v4816, %v4815
        %v5198 = vpack.c.b16 %v4818, %v4817
        %v5199 = vpack.c.b16 %v4820, %v4819
        %v5200 = vpack.c.b16 %v4822, %v4821
        %v5201 = vpack.c.b16 %v4824, %v4823
        %v5202 = vpack.c.b16 %v4826, %v4825
        %v5203 = vpack.c.b16 %v4828, %v4827
        %v5204 = vpack.c.b16 %v4830, %v4829
        %v5205 = vpack.c.b16 %v4832, %v4831
        %v5206 = vpack.c.b16 %v4834, %v4833
        %v5207 = vpack.c.b16 %v4836, %v4835
        %v5208 = vpack.c.b16 %v4838, %v4837
        %v5209 = vpack.c.b16 %v4840, %v4839
        %v5210 = vpack.c.b16 %v4842, %v4841
        %v5211 = vpack.c.b16 %v4844, %v4843
        %v5212 = vpack.c.b16 %v4846, %v4845
        %v5213 = vpack.c.b16 %v4848, %v4847
        %v5214 = vpack.c.b16 %v4850, %v4849
        %v5215 = vpack.c.b16 %v4852, %v4851
        %v5216 = vpack.c.b16 %v4854, %v4853
        %v5217 = vpack.c.b16 %v4856, %v4855
        %v5218 = vpack.c.b16 %v4858, %v4857
        %v5219 = vpack.c.b16 %v4860, %v4859
        %v5220 = vpack.c.b16 %v4862, %v4861
        %v5221 = vpack.c.b16 %v4864, %v4863
        %v5222 = vpack.c.b16 %v4866, %v4865
        %v5223 = vpack.c.b16 %v4868, %v4867
        %v5224 = vpack.c.b16 %v4870, %v4869
        %v5225 = vpack.c.b16 %v4872, %v4871
        %v5226 = vpack.c.b16 %v4874, %v4873
        %v5227 = vpack.c.b16 %v4876, %v4875
        %v5228 = vpack.c.b16 %v4878, %v4877
        %v5229 = vpack.c.b16 %v4880, %v4879
        %v5230 = vpack.c.b16 %v4882, %v4881
        %v5231 = vpack.c.b16 %v4884, %v4883
        %v5232 = vpack.c.b16 %v4886, %v4885
        %v5233 = vpack.c.b16 %v4888, %v4887
        %v5234 = vpack.c.b16 %v4890, %v4889
        %v5235 = vpack.c.b16 %v4892, %v4891
        %v5236 = vpack.c.b16 %v4894, %v4893
        %v5237 = vpack.c.b16 %v4896, %v4895
        %v5238 = vpack.c.b16 %v4898, %v4897
        %v5239 = vpack.c.b16 %v4900, %v4899
        %v5240 = vpack.c.b16 %v4902, %v4901
        %v5241 = vpack.c.b16 %v4904, %v4903
        %v5242 = vpack.c.b16 %v4906, %v4905
        %v5243 = vpack.c.b16 %v4908, %v4907
        %v5244 = vpack.c.b16 %v4910, %v4909
        %v5245 = vpack.c.b16 %v4912, %v4911
        %v5246 = vpack.c.b16 %v4914, %v4913
        %v5247 = vpack.c.b16 %v4916, %v4915
        %v5248 = vpack.c.b16 %v4918, %v4917
        %v5249 = vpack.c.b16 %v4920, %v4919
        %v5250 = vpack.c.b16 %v4922, %v4921
        %v5251 = vpack.c.b16 %v4924, %v4923
        %v5252 = vpack.c.b16 %v4926, %v4925
        %v5253 = vpack.c.b16 %v4928, %v4927
        %v5254 = vpack.c.b16 %v4930, %v4929
        %v5255 = vpack.c.b16 %v4932, %v4931
        %v5256 = vpack.c.b16 %v4934, %v4933
        %v5257 = vpack.c.b16 %v4936, %v4935
        %v5258 = vpack.c.b16 %v4938, %v4937
        %v5259 = vpack.c.b16 %v4940, %v4939
        %v5260 = vpack.c.b16 %v4942, %v4941
        %v5261 = vpack.c.b16 %v4944, %v4943
        %v5262 = vpack.c.b16 %v4946, %v4945
        %v5263 = vpack.c.b16 %v4948, %v4947
        %v5264 = vpack.c.b16 %v4950, %v4949
        %v5265 = vpack.c.b16 %v4952, %v4951
        %v5266 = vpack.c.b16 %v4954, %v4953
        %v5267 = vpack.c.b16 %v4956, %v4955
        %v5268 = vpack.c.b16 %v4958, %v4957
        %v5269 = vpack.c.b16 %v4960, %v4959
        %v5270 = vpack.c.b16 %v4962, %v4961
        %v5271 = vpack.c.b16 %v4964, %v4963
        %v5272 = vpack.c.b16 %v4966, %v4965
        %v5273 = vpack.c.b16 %v4968, %v4967
        %v5274 = vpack.c.b16 %v4970, %v4969
        %v5275 = vpack.c.b16 %v4972, %v4971
        %v5276 = vpack.c.b16 %v4974, %v4973
        %v5277 = vpack.c.b16 %v4976, %v4975
        %v5278 = vpack.c.b16 %v4978, %v4977
        %v5279 = vpack.c.b16 %v4980, %v4979
        %v5280 = vpack.c.b16 %v4982, %v4981
        %v5281 = vpack.c.b16 %v4984, %v4983
        %v5282 = vpack.c.b16 %v4986, %v4985
        %v5283 = vpack.c.b16 %v4988, %v4987
        %v5284 = vpack.c.b16 %v4990, %v4989
        %v5285 = vpack.c.b16 %v4992, %v4991
        %v5286 = vpack.c.b16 %v4994, %v4993
        %v5287 = vpack.c.b16 %v4996, %v4995
        %v5288 = vpack.c.b16 %v4998, %v4997
        %v5289 = vpack.c.b16 %v5000, %v4999
        %v5290 = vpack.c.b16 %v5002, %v5001
        %v5291 = vpack.c.b16 %v5004, %v5003
        %v5292 = vpack.c.b16 %v5006, %v5005
        %v5293 = vpack.c.b16 %v5008, %v5007
        %v5294 = vpack.c.b16 %v5010, %v5009
        %v5295 = vpack.c.b16 %v5012, %v5011
        %v5296 = vpack.c.b16 %v5014, %v5013
        %v5297 = vpack.c.b16 %v5016, %v5015
        %v5298 = vpack.c.b16 %v5018, %v5017
        %v5299 = vpack.c.b16 %v5020, %v5019
        %v5300 = vpack.c.b16 %v5022, %v5021
        %v5301 = vpack.c.b16 %v5024, %v5023
        %v5302 = vpack.c.b16 %v5026, %v5025
        %v5303 = vpack.c.b16 %v5028, %v5027
        %v5304 = vpack.c.b16 %v5030, %v5029
        %v5305 = vpack.c.b16 %v5032, %v5031
        %v5306 = vpack.c.b16 %v5034, %v5033
        %v5307 = vpack.c.b16 %v5036, %v5035
        %v5308 = vpack.c.b16 %v5038, %v5037
        %v5309 = vpack.c.b16 %v5040, %v5039
        %v5310 = vpack.c.b16 %v5042, %v5041
        %v5311 = vpack.c.b16 %v5044, %v5043
        %v5312 = vpack.c.b16 %v5046, %v5045
        %v5313 = vpack.c.b16 %v5048, %v5047
        %v5314 = vpack.c.b16 %v5050, %v5049
        %v5315 = vpack.c.b16 %v5052, %v5051
        %v5316 = vpack.c.b16 %v5054, %v5053
        %v5317 = vpack.c.b16 %v5056, %v5055
        %v5318 = vpack.c.b16 %v5058, %v5057
        %v5319 = vpack.c.b16 %v5060, %v5059
        %v5320 = vpack.c.b16 %v5062, %v5061
        %v5321 = vpack.c.b16 %v5064, %v5063
        %v5322 = vpack.c.b16 %v5066, %v5065
        %v5323 = vpack.c.b16 %v5068, %v5067
        %v5324 = vpack.c.b16 %v5070, %v5069
        %v5325 = vpack.c.b16 %v5072, %v5071
        %v5326 = vpack.c.b16 %v5074, %v5073
        %v5327 = vpack.c.b16 %v5076, %v5075
        %v5328 = vpack.c.b16 %v5078, %v5077
        %v5329 = vpack.c.b16 %v5080, %v5079
        %v5330 = vpack.c.b16 %v5082, %v5081
        %v5331 = vpack.c.b16 %v5084, %v5083
        %v5332 = vpack.c.b16 %v5086, %v5085
        %v5333 = vpack.c.b16 %v5088, %v5087
        %v5334 = vpack.c.b16 %v5090, %v5089
        %v5335 = vpack.c.b16 %v5092, %v5091
        %v5336 = vpack.c.b16 %v5094, %v5093
        %v5337 = vpack.c.b16 %v5096, %v5095
        %v5338 = vpack.c.b16 %v5098, %v5097
        %v5339 = vpack.c.b16 %v5100, %v5099
        %v5340 = vpack.c.b16 %v5102, %v5101
        %v5341 = vpack.c.b16 %v5104, %v5103
        %v5342 = vpack.c.b16 %v5106, %v5105
        %v5343 = vpack.c.b16 %v5108, %v5107
        %v5344 = vpack.c.b16 %v5110, %v5109
        %v5345 = vpack.c.b16 %v5112, %v5111
        %v5346 = vpack.c.b16 %v5114, %v5113
        %v5347 = vpack.c.b16 %v5116, %v5115
        %v5348 = vpack.c.b16 %v5118, %v5117
        %v5349 = vpack.c.b16 %v5120, %v5119
        %v5350 = vpack.c.b16 %v5122, %v5121
        %v5351 = vpack.c.b16 %v5124, %v5123
        %v5352 = vpack.c.b16 %v5126, %v5125
        %v5353 = vpack.c.b16 %v5128, %v5127
        %v5354 = vpack.c.b16 %v5130, %v5129
        %v5355 = vpack.c.b16 %v5132, %v5131
        %v5356 = vpack.c.b16 %v5134, %v5133
        %v5357 = vpack.c.b16 %v5136, %v5135
        %v5358 = vpack.c.b16 %v5138, %v5137
        %v5359 = vpack.c.b16 %v5140, %v5139
        %v5360 = vpack.c.b16 %v5142, %v5141
        %v5361 = vpack.c.b16 %v5144, %v5143
        %v5362 = vpack.c.b16 %v5146, %v5145
        %v5363 = vpack.c.b16 %v5148, %v5147
        %v5364 = vpack.c.b16 %v5150, %v5149
        %v5365 = vpack.c.b16 %v5152, %v5151
        %v5366 = vpack.c.b16 %v5154, %v5153
        %v5367 = vpack.c.b16 %v5156, %v5155
        %v5368 = vpack.c.b16 %v5158, %v5157
        %v5369 = vpack.c.b16 %v5160, %v5159
        %v5370 = vpack.c.b16 %v5162, %v5161
        %v5371 = vpack.c.b16 %v5164, %v5163
        %v5372 = vpack.c.b16 %v5166, %v5165
        %v5373 = vpack.c.b16 %v5168, %v5167
        %v5374 = vpack.c.b16 %v5170, %v5169
        %v5375 = vpack.c.b16 %v5172, %v5171
        %v5376 = vpack.c.b16 %v5174, %v5173
        %v5377 = vpack.c.b16 %v5176, %v5175
        %v5378 = vpack.c.b16 %v5178, %v5177
        %v5379 = vpack.c.b16 %v5180, %v5179
        %v5380 = vpack.c.b16 %v5182, %v5181
        %v5381 = vpack.c.b16 %v5184, %v5183
        %v5382 = vpack.c.b16 %v5186, %v5185
        %v5580 = vsel %vm3540, %v4009, 0
        %5582 = vmatpush.bf16.msra.mxu0 %v5194
        %5583 = vmatpush.bf16.msra.mxu0 %v5193
        %5584 = vmatpush.bf16.msra.mxu0 %v5192
        %5585 = vmatpush.bf16.msra.mxu0 %v5191
        %5586 = vmatpush.bf16.msra.mxu0 %v5190
        %5587 = vmatpush.bf16.msra.mxu0 %v5189
        %5588 = vmatpush.bf16.msra.mxu0 %v5188
        %5589 = vmatpush.bf16.msra.mxu0 %v5187
        %5590 = vmatmul.bf16.gmra.mxu0 %v3985
        %v5591 = vpop.f32.mrf.mxu0
        %v5592 = vadd.f32 %v4402, %v5591
        %v5593 = vpop.f32.mrf.mxu0
        %5594 = vdwg.mxu0
        %5595 = vmatpush.bf16.msra.mxu0 %v5202
        %5596 = vmatpush.bf16.msra.mxu0 %v5201
        %5597 = vmatpush.bf16.msra.mxu0 %v5200
        %5598 = vmatpush.bf16.msra.mxu0 %v5199
        %5599 = vmatpush.bf16.msra.mxu0 %v5198
        %5600 = vmatpush.bf16.msra.mxu0 %v5197
        %5601 = vmatpush.bf16.msra.mxu0 %v5196
        %5602 = vmatpush.bf16.msra.mxu0 %v5195
        %5603 = vmatmul.bf16.gmra.mxu0 %v3986
        %v5604 = vpop.f32.mrf.mxu0
        %v5605 = vadd.f32 %v5592, %v5604
        %v5606 = vpop.f32.mrf.mxu0
        %5607 = vdwg.mxu0
        %5608 = vmatpush.bf16.msra.mxu0 %v5210
        %5609 = vmatpush.bf16.msra.mxu0 %v5209
        %5610 = vmatpush.bf16.msra.mxu0 %v5208
        %5611 = vmatpush.bf16.msra.mxu0 %v5207
        %5612 = vmatpush.bf16.msra.mxu0 %v5206
        %5613 = vmatpush.bf16.msra.mxu0 %v5205
        %5614 = vmatpush.bf16.msra.mxu0 %v5204
        %5615 = vmatpush.bf16.msra.mxu0 %v5203
        %5616 = vmatmul.bf16.gmra.mxu0 %v3987
        %v5617 = vpop.f32.mrf.mxu0
        %v5618 = vadd.f32 %v5605, %v5617
        %v5619 = vpop.f32.mrf.mxu0
        %5620 = vdwg.mxu0
        %5621 = vmatpush.bf16.msra.mxu0 %v5218
        %5622 = vmatpush.bf16.msra.mxu0 %v5217
        %5623 = vmatpush.bf16.msra.mxu0 %v5216
        %5624 = vmatpush.bf16.msra.mxu0 %v5215
        %5625 = vmatpush.bf16.msra.mxu0 %v5214
        %5626 = vmatpush.bf16.msra.mxu0 %v5213
        %5627 = vmatpush.bf16.msra.mxu0 %v5212
        %5628 = vmatpush.bf16.msra.mxu0 %v5211
        %5629 = vmatmul.bf16.gmra.mxu0 %v3988
        %v5630 = vpop.f32.mrf.mxu0
        %v5631 = vadd.f32 %v5618, %v5630
        %v5632 = vpop.f32.mrf.mxu0
        %5633 = vdwg.mxu0
        %5634 = vmatpush.bf16.msra.mxu0 %v5226
        %5635 = vmatpush.bf16.msra.mxu0 %v5225
        %5636 = vmatpush.bf16.msra.mxu0 %v5224
        %5637 = vmatpush.bf16.msra.mxu0 %v5223
        %5638 = vmatpush.bf16.msra.mxu0 %v5222
        %5639 = vmatpush.bf16.msra.mxu0 %v5221
        %5640 = vmatpush.bf16.msra.mxu0 %v5220
        %5641 = vmatpush.bf16.msra.mxu0 %v5219
        %5642 = vmatmul.bf16.gmra.mxu0 %v3989
        %v5643 = vpop.f32.mrf.mxu0
        %v5644 = vadd.f32 %v5631, %v5643
        %v5645 = vpop.f32.mrf.mxu0
        %5646 = vdwg.mxu0
        %5647 = vmatpush.bf16.msra.mxu0 %v5234
        %5648 = vmatpush.bf16.msra.mxu0 %v5233
        %5649 = vmatpush.bf16.msra.mxu0 %v5232
        %5650 = vmatpush.bf16.msra.mxu0 %v5231
        %5651 = vmatpush.bf16.msra.mxu0 %v5230
        %5652 = vmatpush.bf16.msra.mxu0 %v5229
        %5653 = vmatpush.bf16.msra.mxu0 %v5228
        %5654 = vmatpush.bf16.msra.mxu0 %v5227
        %5655 = vmatmul.bf16.gmra.mxu0 %v3990
        %v5656 = vpop.f32.mrf.mxu0
        %v5657 = vadd.f32 %v5644, %v5656
        %v5658 = vpop.f32.mrf.mxu0
        %5659 = vdwg.mxu0
        %5660 = vmatpush.bf16.msra.mxu0 %v5242
        %5661 = vmatpush.bf16.msra.mxu0 %v5241
        %5662 = vmatpush.bf16.msra.mxu0 %v5240
        %5663 = vmatpush.bf16.msra.mxu0 %v5239
        %5664 = vmatpush.bf16.msra.mxu0 %v5238
        %5665 = vmatpush.bf16.msra.mxu0 %v5237
        %5666 = vmatpush.bf16.msra.mxu0 %v5236
        %5667 = vmatpush.bf16.msra.mxu0 %v5235
        %5668 = vmatmul.bf16.gmra.mxu0 %v3991
        %v5669 = vpop.f32.mrf.mxu0
        %v5670 = vadd.f32 %v5657, %v5669
        %v5671 = vpop.f32.mrf.mxu0
        %5672 = vdwg.mxu0
        %5673 = vmatpush.bf16.msra.mxu0 %v5250
        %5674 = vmatpush.bf16.msra.mxu0 %v5249
        %5675 = vmatpush.bf16.msra.mxu0 %v5248
        %5676 = vmatpush.bf16.msra.mxu0 %v5247
        %5677 = vmatpush.bf16.msra.mxu0 %v5246
        %5678 = vmatpush.bf16.msra.mxu0 %v5245
        %5679 = vmatpush.bf16.msra.mxu0 %v5244
        %5680 = vmatpush.bf16.msra.mxu0 %v5243
        %5681 = vmatmul.bf16.gmra.mxu0 %v3992
        %v5682 = vpop.f32.mrf.mxu0
        %v5683 = vadd.f32 %v5670, %v5682
        %v5684 = vpop.f32.mrf.mxu0
        %5685 = vdwg.mxu0
        %5686 = vmatpush.bf16.msra.mxu0 %v5258
        %5687 = vmatpush.bf16.msra.mxu0 %v5257
        %5688 = vmatpush.bf16.msra.mxu0 %v5256
        %5689 = vmatpush.bf16.msra.mxu0 %v5255
        %5690 = vmatpush.bf16.msra.mxu0 %v5254
        %5691 = vmatpush.bf16.msra.mxu0 %v5253
        %5692 = vmatpush.bf16.msra.mxu0 %v5252
        %5693 = vmatpush.bf16.msra.mxu0 %v5251
        %5694 = vmatmul.bf16.gmra.mxu0 %v3993
        %v5695 = vpop.f32.mrf.mxu0
        %v5696 = vadd.f32 %v5683, %v5695
        %v5697 = vpop.f32.mrf.mxu0
        %5698 = vdwg.mxu0
        %5699 = vmatpush.bf16.msra.mxu0 %v5266
        %5700 = vmatpush.bf16.msra.mxu0 %v5265
        %5701 = vmatpush.bf16.msra.mxu0 %v5264
        %5702 = vmatpush.bf16.msra.mxu0 %v5263
        %5703 = vmatpush.bf16.msra.mxu0 %v5262
        %5704 = vmatpush.bf16.msra.mxu0 %v5261
        %5705 = vmatpush.bf16.msra.mxu0 %v5260
        %5706 = vmatpush.bf16.msra.mxu0 %v5259
        %5707 = vmatmul.bf16.gmra.mxu0 %v3994
        %v5708 = vpop.f32.mrf.mxu0
        %v5709 = vadd.f32 %v5696, %v5708
        %v5710 = vpop.f32.mrf.mxu0
        %5711 = vdwg.mxu0
        %5712 = vmatpush.bf16.msra.mxu0 %v5274
        %5713 = vmatpush.bf16.msra.mxu0 %v5273
        %5714 = vmatpush.bf16.msra.mxu0 %v5272
        %5715 = vmatpush.bf16.msra.mxu0 %v5271
        %5716 = vmatpush.bf16.msra.mxu0 %v5270
        %5717 = vmatpush.bf16.msra.mxu0 %v5269
        %5718 = vmatpush.bf16.msra.mxu0 %v5268
        %5719 = vmatpush.bf16.msra.mxu0 %v5267
        %5720 = vmatmul.bf16.gmra.mxu0 %v3995
        %v5721 = vpop.f32.mrf.mxu0
        %v5722 = vadd.f32 %v5709, %v5721
        %v5723 = vpop.f32.mrf.mxu0
        %5724 = vdwg.mxu0
        %5725 = vmatpush.bf16.msra.mxu0 %v5282
        %5726 = vmatpush.bf16.msra.mxu0 %v5281
        %5727 = vmatpush.bf16.msra.mxu0 %v5280
        %5728 = vmatpush.bf16.msra.mxu0 %v5279
        %5729 = vmatpush.bf16.msra.mxu0 %v5278
        %5730 = vmatpush.bf16.msra.mxu0 %v5277
        %5731 = vmatpush.bf16.msra.mxu0 %v5276
        %5732 = vmatpush.bf16.msra.mxu0 %v5275
        %5733 = vmatmul.bf16.gmra.mxu0 %v3996
        %v5734 = vpop.f32.mrf.mxu0
        %v5735 = vadd.f32 %v5722, %v5734
        %v5736 = vpop.f32.mrf.mxu0
        %5737 = vdwg.mxu0
        %5738 = vmatpush.bf16.msra.mxu0 %v5290
        %5739 = vmatpush.bf16.msra.mxu0 %v5289
        %5740 = vmatpush.bf16.msra.mxu0 %v5288
        %5741 = vmatpush.bf16.msra.mxu0 %v5287
        %5742 = vmatpush.bf16.msra.mxu0 %v5286
        %5743 = vmatpush.bf16.msra.mxu0 %v5285
        %5744 = vmatpush.bf16.msra.mxu0 %v5284
        %5745 = vmatpush.bf16.msra.mxu0 %v5283
        %5746 = vmatmul.bf16.gmra.mxu0 %v3997
        %v5747 = vpop.f32.mrf.mxu0
        %v5748 = vadd.f32 %v5735, %v5747
        %v5749 = vpop.f32.mrf.mxu0
        %5750 = vdwg.mxu0
        %5751 = vmatpush.bf16.msra.mxu0 %v5298
        %5752 = vmatpush.bf16.msra.mxu0 %v5297
        %5753 = vmatpush.bf16.msra.mxu0 %v5296
        %5754 = vmatpush.bf16.msra.mxu0 %v5295
        %5755 = vmatpush.bf16.msra.mxu0 %v5294
        %5756 = vmatpush.bf16.msra.mxu0 %v5293
        %5757 = vmatpush.bf16.msra.mxu0 %v5292
        %5758 = vmatpush.bf16.msra.mxu0 %v5291
        %5759 = vmatmul.bf16.gmra.mxu0 %v3998
        %v5760 = vpop.f32.mrf.mxu0
        %v5761 = vadd.f32 %v5748, %v5760
        %v5762 = vpop.f32.mrf.mxu0
        %5763 = vdwg.mxu0
        %5764 = vmatpush.bf16.msra.mxu0 %v5306
        %5765 = vmatpush.bf16.msra.mxu0 %v5305
        %5766 = vmatpush.bf16.msra.mxu0 %v5304
        %5767 = vmatpush.bf16.msra.mxu0 %v5303
        %5768 = vmatpush.bf16.msra.mxu0 %v5302
        %5769 = vmatpush.bf16.msra.mxu0 %v5301
        %5770 = vmatpush.bf16.msra.mxu0 %v5300
        %5771 = vmatpush.bf16.msra.mxu0 %v5299
        %5772 = vmatmul.bf16.gmra.mxu0 %v3999
        %v5773 = vpop.f32.mrf.mxu0
        %v5774 = vadd.f32 %v5761, %v5773
        %v5775 = vpop.f32.mrf.mxu0
        %5776 = vdwg.mxu0
        %5777 = vmatpush.bf16.msra.mxu0 %v5314
        %5778 = vmatpush.bf16.msra.mxu0 %v5313
        %5779 = vmatpush.bf16.msra.mxu0 %v5312
        %5780 = vmatpush.bf16.msra.mxu0 %v5311
        %5781 = vmatpush.bf16.msra.mxu0 %v5310
        %5782 = vmatpush.bf16.msra.mxu0 %v5309
        %5783 = vmatpush.bf16.msra.mxu0 %v5308
        %5784 = vmatpush.bf16.msra.mxu0 %v5307
        %5785 = vmatmul.bf16.gmra.mxu0 %v4000
        %v5786 = vpop.f32.mrf.mxu0
        %v5787 = vadd.f32 %v5774, %v5786
        %v5788 = vpop.f32.mrf.mxu0
        %5789 = vdwg.mxu0
        %5790 = vmatpush.bf16.msra.mxu0 %v5322
        %5791 = vmatpush.bf16.msra.mxu0 %v5321
        %5792 = vmatpush.bf16.msra.mxu0 %v5320
        %5793 = vmatpush.bf16.msra.mxu0 %v5319
        %5794 = vmatpush.bf16.msra.mxu0 %v5318
        %5795 = vmatpush.bf16.msra.mxu0 %v5317
        %5796 = vmatpush.bf16.msra.mxu0 %v5316
        %5797 = vmatpush.bf16.msra.mxu0 %v5315
        %5798 = vmatmul.bf16.gmra.mxu0 %v4001
        %v5799 = vpop.f32.mrf.mxu0
        %v5800 = vadd.f32 %v5787, %v5799
        %v5801 = vpop.f32.mrf.mxu0
        %5802 = vdwg.mxu0
        %5803 = vmatpush.bf16.msra.mxu0 %v5330
        %5804 = vmatpush.bf16.msra.mxu0 %v5329
        %5805 = vmatpush.bf16.msra.mxu0 %v5328
        %5806 = vmatpush.bf16.msra.mxu0 %v5327
        %5807 = vmatpush.bf16.msra.mxu0 %v5326
        %5808 = vmatpush.bf16.msra.mxu0 %v5325
        %5809 = vmatpush.bf16.msra.mxu0 %v5324
        %5810 = vmatpush.bf16.msra.mxu0 %v5323
        %5811 = vmatmul.bf16.gmra.mxu0 %v4002
        %v5812 = vpop.f32.mrf.mxu0
        %v5813 = vadd.f32 %v5800, %v5812
        %v5814 = vpop.f32.mrf.mxu0
        %5815 = vdwg.mxu0
        %5816 = vmatpush.bf16.msra.mxu0 %v5338
        %5817 = vmatpush.bf16.msra.mxu0 %v5337
        %5818 = vmatpush.bf16.msra.mxu0 %v5336
        %5819 = vmatpush.bf16.msra.mxu0 %v5335
        %5820 = vmatpush.bf16.msra.mxu0 %v5334
        %5821 = vmatpush.bf16.msra.mxu0 %v5333
        %5822 = vmatpush.bf16.msra.mxu0 %v5332
        %5823 = vmatpush.bf16.msra.mxu0 %v5331
        %5824 = vmatmul.bf16.gmra.mxu0 %v4003
        %v5825 = vpop.f32.mrf.mxu0
        %v5826 = vadd.f32 %v5813, %v5825
        %v5827 = vpop.f32.mrf.mxu0
        %5828 = vdwg.mxu0
        %5829 = vmatpush.bf16.msra.mxu0 %v5346
        %5830 = vmatpush.bf16.msra.mxu0 %v5345
        %5831 = vmatpush.bf16.msra.mxu0 %v5344
        %5832 = vmatpush.bf16.msra.mxu0 %v5343
        %5833 = vmatpush.bf16.msra.mxu0 %v5342
        %5834 = vmatpush.bf16.msra.mxu0 %v5341
        %5835 = vmatpush.bf16.msra.mxu0 %v5340
        %5836 = vmatpush.bf16.msra.mxu0 %v5339
        %5837 = vmatmul.bf16.gmra.mxu0 %v4004
        %v5838 = vpop.f32.mrf.mxu0
        %v5839 = vadd.f32 %v5826, %v5838
        %v5840 = vpop.f32.mrf.mxu0
        %5841 = vdwg.mxu0
        %5842 = vmatpush.bf16.msra.mxu0 %v5354
        %5843 = vmatpush.bf16.msra.mxu0 %v5353
        %5844 = vmatpush.bf16.msra.mxu0 %v5352
        %5845 = vmatpush.bf16.msra.mxu0 %v5351
        %5846 = vmatpush.bf16.msra.mxu0 %v5350
        %5847 = vmatpush.bf16.msra.mxu0 %v5349
        %5848 = vmatpush.bf16.msra.mxu0 %v5348
        %5849 = vmatpush.bf16.msra.mxu0 %v5347
        %5850 = vmatmul.bf16.gmra.mxu0 %v4005
        %v5851 = vpop.f32.mrf.mxu0
        %v5852 = vadd.f32 %v5839, %v5851
        %v5853 = vpop.f32.mrf.mxu0
        %5854 = vdwg.mxu0
        %5855 = vmatpush.bf16.msra.mxu0 %v5362
        %5856 = vmatpush.bf16.msra.mxu0 %v5361
        %5857 = vmatpush.bf16.msra.mxu0 %v5360
        %5858 = vmatpush.bf16.msra.mxu0 %v5359
        %5859 = vmatpush.bf16.msra.mxu0 %v5358
        %5860 = vmatpush.bf16.msra.mxu0 %v5357
        %5861 = vmatpush.bf16.msra.mxu0 %v5356
        %5862 = vmatpush.bf16.msra.mxu0 %v5355
        %5863 = vmatmul.bf16.gmra.mxu0 %v4006
        %v5864 = vpop.f32.mrf.mxu0
        %v5865 = vadd.f32 %v5852, %v5864
        %v5866 = vpop.f32.mrf.mxu0
        %5867 = vdwg.mxu0
        %5868 = vmatpush.bf16.msra.mxu0 %v5370
        %5869 = vmatpush.bf16.msra.mxu0 %v5369
        %5870 = vmatpush.bf16.msra.mxu0 %v5368
        %5871 = vmatpush.bf16.msra.mxu0 %v5367
        %5872 = vmatpush.bf16.msra.mxu0 %v5366
        %5873 = vmatpush.bf16.msra.mxu0 %v5365
        %5874 = vmatpush.bf16.msra.mxu0 %v5364
        %5875 = vmatpush.bf16.msra.mxu0 %v5363
        %5876 = vmatmul.bf16.gmra.mxu0 %v4007
        %v5877 = vpop.f32.mrf.mxu0
        %v5878 = vadd.f32 %v5865, %v5877
        %v5879 = vpop.f32.mrf.mxu0
        %5880 = vdwg.mxu0
        %5881 = vmatpush.bf16.msra.mxu0 %v5378
        %5882 = vmatpush.bf16.msra.mxu0 %v5377
        %5883 = vmatpush.bf16.msra.mxu0 %v5376
        %5884 = vmatpush.bf16.msra.mxu0 %v5375
        %5885 = vmatpush.bf16.msra.mxu0 %v5374
        %5886 = vmatpush.bf16.msra.mxu0 %v5373
        %5887 = vmatpush.bf16.msra.mxu0 %v5372
        %5888 = vmatpush.bf16.msra.mxu0 %v5371
        %5889 = vmatmul.bf16.gmra.mxu0 %v4008
        %v5890 = vpop.f32.mrf.mxu0
        %v5891 = vadd.f32 %v5878, %v5890
        %v5892 = vpop.f32.mrf.mxu0
        %5893 = vdwg.mxu0
        %5894 = vmatpush.bf16.msra.mxu0 0
        %5895 = vmatpush.bf16.msra.mxu0 0
        %5896 = vmatpush.bf16.msra.mxu0 0
        %5897 = vmatpush.bf16.msra.mxu0 0
        %5898 = vmatpush.bf16.msra.mxu0 %v5382
        %5899 = vmatpush.bf16.msra.mxu0 %v5381
        %5900 = vmatpush.bf16.msra.mxu0 %v5380
        %5901 = vmatpush.bf16.msra.mxu0 %v5379
        %5902 = vmatmul.bf16.gmra.mxu0 %v5580
        %v5903 = vpop.f32.mrf.mxu0
        %v5904 = vadd.f32 %v5891, %v5903
        %v5905 = vpop.f32.mrf.mxu0
        %5906 = vdwg.mxu0
        %v5907 = vmax.f32 %v5904, 0.0
        %v5908 = vpack.c.bf16 %v5907, %v5907
        %v5909 = vld [vmem:[%s7] sm:$0xf]
        %v5910 = vld [vmem:[%s7 + $0x4] sm:$0xf]
        %v5911 = vld [vmem:[%s7 + $0x8] sm:$0xf]
        %v5912 = vld [vmem:[%s7 + $0xc] sm:$0xf]
        %v5913 = vld [vmem:[%s7 + $0x10] sm:$0xf]
        %v5914 = vld [vmem:[%s7 + $0x14] sm:$0xf]
        %v5915 = vld [vmem:[%s7 + $0x18] sm:$0xf]
        %v5916 = vld [vmem:[%s7 + $0x1c] sm:$0xf]
        %v5917 = vld [vmem:[%s7 + $0x20] sm:$0xf]
        %v5918 = vld [vmem:[%s7 + $0x24] sm:$0xf]
        %v5919 = vld [vmem:[%s7 + $0x28] sm:$0xf]
        %v5920 = vld [vmem:[%s7 + $0x2c] sm:$0xf]
        %v5921 = vld [vmem:[%s7 + $0x30] sm:$0xf]
        %v5922 = vld [vmem:[%s7 + $0x34] sm:$0xf]
        %v5923 = vld [vmem:[%s7 + $0x38] sm:$0xf]
        %v5924 = vld [vmem:[%s7 + $0x3c] sm:$0xf]
        %v5925 = vld [vmem:[%s8] sm:$0x1]
        %v5942 = vunpack.c.l.b16 %v5909
        %v5943 = vunpack.c.l.b16 %v5910
        %v5944 = vunpack.c.l.b16 %v5911
        %v5945 = vunpack.c.l.b16 %v5912
        %v5946 = vunpack.c.l.b16 %v5913
        %v5947 = vunpack.c.l.b16 %v5914
        %v5948 = vunpack.c.l.b16 %v5915
        %v5949 = vunpack.c.l.b16 %v5916
        %v5950 = vunpack.c.l.b16 %v5917
        %v5951 = vunpack.c.l.b16 %v5918
        %v5952 = vunpack.c.l.b16 %v5919
        %v5953 = vunpack.c.l.b16 %v5920
        %v5954 = vunpack.c.l.b16 %v5921
        %v5955 = vunpack.c.l.b16 %v5922
        %v5956 = vunpack.c.l.b16 %v5923
        %v5957 = vunpack.c.l.b16 %v5924
        %v5958 = vpack.c.b16 %v5943, %v5942
        %v5959 = vpack.c.b16 %v5945, %v5944
        %v5960 = vpack.c.b16 %v5947, %v5946
        %v5961 = vpack.c.b16 %v5949, %v5948
        %v5962 = vpack.c.b16 %v5951, %v5950
        %v5963 = vpack.c.b16 %v5953, %v5952
        %v5964 = vpack.c.b16 %v5955, %v5954
        %v5965 = vpack.c.b16 %v5957, %v5956
        %5974 = vmatpush.bf16.msra.mxu0 %v5965
        %5975 = vmatpush.bf16.msra.mxu0 %v5964
        %5976 = vmatpush.bf16.msra.mxu0 %v5963
        %5977 = vmatpush.bf16.msra.mxu0 %v5962
        %5978 = vmatpush.bf16.msra.mxu0 %v5961
        %5979 = vmatpush.bf16.msra.mxu0 %v5960
        %5980 = vmatpush.bf16.msra.mxu0 %v5959
        %5981 = vmatpush.bf16.msra.mxu0 %v5958
        %5982 = vmatmul.bf16.gmra.mxu0 %v5908
        %v5983 = vpop.f32.mrf.mxu0
        %v5984 = vadd.f32 %v5925, %v5983
        %v5985 = vpop.f32.mrf.mxu0
        %5986 = vdwg.mxu0
        %vm5987 = vcmask 73728
        %5988 = vst.msk [vmem:[%s324] sm:$0x1] %vm5987, %v5984
        %s5989 = sand.u32 %s225, 1
        %s5990 = scalar_lea.sflag [#allocation8], %s5989
        %s5991 = sand.u32 %s225, 1
        %s5992 = scalar_lea.vmem [#allocation7], %s5991
        // Predicated region
        $region57: #{cnn_forward.1} parent=55 // pred_check
          %p5993 = pneg %p235
        $region58: #{cnn_forward.1} parent=55 // pred_check_branch
          %5995 = sbr.rel (%p5993) target = $region60
        $region59: #{cnn_forward.1} parent=55 // pred_region
          %5997 = vsyncadd %s5990, 0
          %s5998 = scalar_lea.hbm %s9, %s23
          %s6000 = sshll.u32 %s5992, 4
          %s6001 = int_to_ptr.vmem [resolvable:$true] %s6000
          %s6002 = sshll.u32 %s5998, 4
          %s6003 = int_to_ptr.hbm [resolvable:$true] %s6002
          %6005 = dma.vmem_to_hbm [thread:$0]  %s6001, 16, %s6003, %s5990
        $region60: #{cnn_forward.1} parent=55 // pred_fallthru
          _
      $region56: #{cnn_forward.1} parent=5 // pred_fallthru
        _
      %p6006 = scmp.le.s32.totalorder 2, %s18
      // Predicated region
      $region61: #{cnn_forward.1} parent=5 // pred_check
        %p6007 = pneg %p6006
      $region62: #{cnn_forward.1} parent=5 // pred_check_branch
        %6009 = sbr.rel (%p6007) target = $region64
      $region63: #{cnn_forward.1} parent=5 // pred_region
        %s6010 = ssub.s32 %s18, 2
        // Predicated region
        $region65: #{cnn_forward.1} parent=63 // pred_check
          %p6011 = pneg %p241
        $region66: #{cnn_forward.1} parent=63 // pred_check_branch
          %6013 = sbr.rel (%p6011) target = $region68
        $region67: #{cnn_forward.1} parent=63 // pred_region
          %s6014 = sand.u32 %s226, 1
          %s6015 = scalar_lea.sflag [#allocation8], %s6014
          %s6016 = sand.u32 %s226, 1
          %s6017 = scalar_lea.vmem [#allocation7], %s6016
          %6019 = dma.done %s6015, 16
        $region68: #{cnn_forward.1} parent=63 // pred_fallthru
          _
      $region64: #{cnn_forward.1} parent=5 // pred_fallthru
        _
    $region6: #{cnn_forward.1} parent=1 // loop_footer
      %s22 = sadd.s32 1, %s18
    $region7: #{cnn_forward.1} parent=1 // loop_footer_branch
      %17 = sbr.rel target = $region3
    $region8: #{cnn_forward.1} parent=1 // loop_exit
      _
    %6020 = vsyncpa [#allocation8], 1
    %s6021 = scalar_lea.sflag [#allocation8], 1
    %6022 = vsyncpa %s6021, 1

</llo_original>
